<compile_context>
chip_gen: v7x
topology: tpu7x:2x2x1
jax: 0.10.0
libtpu: 0.0.40
codegen_flags: <defaults>
</compile_context>

<pallas_src>
import jax
import jax.numpy as jnp
from jax.experimental import pallas as pl
from jax.experimental.pallas import tpu as pltpu

EPS = 1e-5
NUM_GROUPS = 4


# --------------------------- ConvD fused kernel ---------------------------
def _make_convd_kernel(D, H, W, Cin, Cp, n_win, guard):
    DHW = D * H * W
    taps = [(kd, kh, kw) for kd in range(3) for kh in range(3) for kw in range(3)]
    # tap offsets in the flat (D,H,W) index; tap order t = kd*9 + kh*3 + kw
    offsets = [(kd - 1) * H * W + (kh - 1) * W + (kw - 1) for (kd, kh, kw) in taps]
    gs = Cp // NUM_GROUPS
    inv_cnt = 1.0 / float(gs * DHW)

    def kernel(xw_ref, w1_ref, w2_ref, w3_ref, gb_ref, gsel_ref, mrows_ref,
               o_ref, buf_ref, patch1_ref, patch_ref):
        f32 = jnp.float32

        # Per-step zeroing of ONLY the guard column bands (interior rows are
        # either rewritten before they are read, or - rows [Cin:Cp) before
        # conv1 - never read thanks to conv1's tight K=27*Cin patch).  Doing
        # it every step keeps each grid step self-contained (megacore safe).
        buf_ref[:, pl.ds(0, guard)] = jnp.zeros((Cp, guard), f32)
        buf_ref[:, pl.ds(guard + DHW, guard)] = jnp.zeros((Cp, guard), f32)

        # ---- fused 2x2x2 max-pool; window copies are sublane-packed ----
        pooled = xw_ref[0, pl.ds(0, Cin), :]                       # (Cin, DHW)
        for k in range(1, n_win):
            pooled = jnp.maximum(pooled, xw_ref[0, pl.ds(k * Cin, Cin), :])
        buf_ref[pl.ds(0, Cin), pl.ds(guard, DHW)] = pooled

        # Per-tap conv zero-padding mask, rebuilt from 6 boundary-indicator
        # rows (d>0, d<D-1, h>0, h<H-1, w>0, w<W-1); trivial axes are skipped
        # at trace time.  These VPU multiplies co-issue with the patch stores.
        def tap_mask(kd, kh, kw):
            rows = []
            if kd == 0: rows.append(0)
            if kd == 2: rows.append(1)
            if kh == 0: rows.append(2)
            if kh == 2: rows.append(3)
            if kw == 0: rows.append(4)
            if kw == 2: rows.append(5)
            if not rows:
                return None
            m = mrows_ref[pl.ds(rows[0], 1), :]
            for r in rows[1:]:
                m = m * mrows_ref[pl.ds(r, 1), :]
            return m

        def conv(w_ref, p_ref, cin):
            # im2col: 27 shifted + boundary-masked (cin, DHW) views of the
            # guarded flat buffer, packed to bf16 at the store, then ONE
            # (Cp, 27*cin) @ (27*cin, DHW) bf16 MXU matmul with f32 accumulate.
            for t, (kd, kh, kw) in enumerate(taps):
                shifted = buf_ref[pl.ds(0, cin), pl.ds(guard + offsets[t], DHW)]
                m = tap_mask(kd, kh, kw)
                v = shifted if m is None else shifted * m          # f32 math
                p_ref[pl.ds(t * cin, cin), :] = v.astype(jnp.bfloat16)
            return jnp.dot(w_ref[...], p_ref[...],
                           preferred_element_type=jnp.float32)     # (Cp, DHW) f32

        # GroupNorm with reordered reductions: lane-sum per channel first,
        # then a tiny one-hot group combine (no (Cp,DHW) MXU intermediates).
        def group_mean(col):                                       # col: (Cp, 1)
            out = jnp.zeros((Cp, 1), f32)
            for g in range(NUM_GROUPS):
                sel = gsel_ref[:, pl.ds(g, 1)]                     # (Cp, 1) one-hot
                out = out + sel * (jnp.sum(col * sel) * inv_cnt)
            return out

        def groupnorm(z, idx):
            gamma = gb_ref[:, pl.ds(2 * idx, 1)]                   # (Cp, 1)
            beta = gb_ref[:, pl.ds(2 * idx + 1, 1)]                # (Cp, 1)
            mean = group_mean(jnp.sum(z, axis=1, keepdims=True))
            d = z - mean                                           # two-pass variance
            var = group_mean(jnp.sum(d * d, axis=1, keepdims=True))
            return d * jax.lax.rsqrt(var + EPS) * gamma + beta

        # x = bn1(conv1(x))      (no relu); conv1 uses tight K = 27*Cin patch
        x1 = groupnorm(conv(w1_ref, patch1_ref, Cin), 0)
        buf_ref[:, pl.ds(guard, DHW)] = x1

        # y = relu(bn2(conv2(x)))
        y = jnp.maximum(groupnorm(conv(w2_ref, patch_ref, Cp), 1), 0.0)
        # TODO(synk): F.dropout3d with p>0 (training-mode RNG) not implemented; module default p=0.0.
        buf_ref[:, pl.ds(guard, DHW)] = y

        # y = bn3(conv3(y))
        y = groupnorm(conv(w3_ref, patch_ref, Cp), 2)

        # out = relu(x + y)  -- lane-dense (Cp, DHW) unmasked 512-lane store
        o_ref[0] = jnp.maximum(x1 + y, 0.0)

    return kernel


def convd_forward(x_ncdhw, params, *, first=False):
    """ConvD forward. x_ncdhw: (N, Cin, D, H, W) f32 -> (N, Cp, D', H', W')."""
    x = x_ncdhw.astype(jnp.float32)
    N, Cin, D0, H0, W0 = x.shape
    w1, w2, w3 = params["w1"], params["w2"], params["w3"]          # OIDHW
    Cp = w1.shape[0]
    assert Cp % NUM_GROUPS == 0

    if not first:
        D, H, W = D0 // 2, H0 // 2, W0 // 2
        # Expose the 2x2x2 pooling window as leading copies, sublane-packed
        # together with the Cin channels -> no half-empty sublane padding.
        xw = x.reshape(N, Cin, D, 2, H, 2, W, 2)
        xw = jnp.transpose(xw, (0, 3, 5, 7, 1, 2, 4, 6))           # (N,2,2,2,Cin,D,H,W)
        xw = xw.reshape(N, 8 * Cin, D * H * W)                     # (N, 8*Cin, DHW)
        n_win = 8
    else:
        D, H, W = D0, H0, W0
        xw = x.reshape(N, Cin, D * H * W)
        n_win = 1
    DHW = D * H * W

    # Weights: OIDHW -> (O, 27*I) bf16, K index = tap*I + ci (tap = kd*9+kh*3+kw).
    def prep_w(w):
        o, i = w.shape[0], w.shape[1]
        return (jnp.transpose(w, (0, 2, 3, 4, 1)).reshape(o, 27 * i)
                .astype(jnp.bfloat16))
    w1f, w2f, w3f = prep_w(w1), prep_w(w2), prep_w(w3)

    # gamma/beta packed as columns: [g1, b1, g2, b2, g3, b3]  -> (Cp, 6)
    gb = jnp.stack([params["g1"], params["b1"], params["g2"], params["b2"],
                    params["g3"], params["b3"]], axis=1).astype(jnp.float32)

    # One-hot channel->group selector columns (Cp, NUM_GROUPS).
    gs = Cp // NUM_GROUPS
    gid = jnp.arange(Cp) // gs
    gsel = (gid[:, None] == jnp.arange(NUM_GROUPS)[None, :]).astype(jnp.float32)

    # 6 boundary-indicator rows over the flat (D,H,W) index (+2 ones rows of pad).
    dd = jnp.arange(D).reshape(D, 1, 1)
    hh = jnp.arange(H).reshape(1, H, 1)
    ww = jnp.arange(W).reshape(1, 1, W)
    def row(c):
        return jnp.broadcast_to(c, (D, H, W)).reshape(1, DHW).astype(jnp.float32)
    mrows = jnp.concatenate(
        [row(dd > 0), row(dd < D - 1), row(hh > 0), row(hh < H - 1),
         row(ww > 0), row(ww < W - 1), jnp.ones((2, DHW), jnp.float32)], axis=0)

    max_off = H * W + W + 1
    guard = max(128, ((max_off + 127) // 128) * 128)               # zero guard band

    kernel = _make_convd_kernel(D, H, W, Cin, Cp, n_win, guard)

    k1, k2 = 27 * Cin, 27 * Cp
    cost = pl.CostEstimate(
        flops=int(N * 2 * DHW * Cp * (k1 + 2 * k2)),
        transcendentals=int(N * 3 * Cp),
        bytes_accessed=int(xw.size * 4 + N * Cp * DHW * 4 +
                           2 * (w1f.size + w2f.size + w3f.size) +
                           4 * (gb.size + gsel.size + mrows.size)))

    out = pl.pallas_call(
        kernel,
        out_shape=jax.ShapeDtypeStruct((N, Cp, DHW), jnp.float32),
        grid_spec=pltpu.PrefetchScalarGridSpec(
            num_scalar_prefetch=0,
            grid=(N,),
            in_specs=[
                pl.BlockSpec((1, n_win * Cin, DHW), lambda n: (n, 0, 0)),
                pl.BlockSpec((Cp, 27 * Cin), lambda n: (0, 0)),
                pl.BlockSpec((Cp, 27 * Cp), lambda n: (0, 0)),
                pl.BlockSpec((Cp, 27 * Cp), lambda n: (0, 0)),
                pl.BlockSpec((Cp, 6), lambda n: (0, 0)),
                pl.BlockSpec((Cp, NUM_GROUPS), lambda n: (0, 0)),
                pl.BlockSpec((8, DHW), lambda n: (0, 0)),
            ],
            out_specs=pl.BlockSpec((1, Cp, DHW), lambda n: (n, 0, 0)),
            scratch_shapes=[
                pltpu.VMEM((Cp, DHW + 2 * guard), jnp.float32),    # guarded flat acts
                pltpu.VMEM((27 * Cin, DHW), jnp.bfloat16),         # conv1 im2col patch
                pltpu.VMEM((27 * Cp, DHW), jnp.bfloat16),          # conv2/3 im2col patch
            ],
        ),
        compiler_params=pltpu.CompilerParams(
            dimension_semantics=("parallel",),
            vmem_limit_bytes=32 * 1024 * 1024),
        cost_estimate=cost,
    )(xw, w1f, w2f, w3f, gb, gsel, mrows)

    # (N, Cp, DHW) -> NCDHW for free (no transpose on the output path).
    return out.reshape(N, Cp, D, H, W)


# ------------------------- pure-JAX reference ----------------------------
def convd_reference(x, params, *, first=False):
    if not first:
        N, C, D, H, W = x.shape
        x = x.reshape(N, C, D // 2, 2, H // 2, 2, W // 2, 2).max(axis=(3, 5, 7))

    def conv(x, w):
        return jax.lax.conv_general_dilated(
            x, w, window_strides=(1, 1, 1),
            padding=((1, 1), (1, 1), (1, 1)),
            dimension_numbers=("NCDHW", "OIDHW", "NCDHW"))

    def gn(x, g, b):
        N, C, D, H, W = x.shape
        xg = x.reshape(N, NUM_GROUPS, -1)
        mean = xg.mean(axis=2, keepdims=True)
        var = ((xg - mean) ** 2).mean(axis=2, keepdims=True)
        xn = ((xg - mean) / jnp.sqrt(var + EPS)).reshape(N, C, D, H, W)
        return xn * g.reshape(1, C, 1, 1, 1) + b.reshape(1, C, 1, 1, 1)

    x1 = gn(conv(x, params["w1"]), params["g1"], params["b1"])
    y = jax.nn.relu(gn(conv(x1, params["w2"]), params["g2"], params["b2"]))
    y = gn(conv(y, params["w3"]), params["g3"], params["b3"])
    return jax.nn.relu(x1 + y)


# --------------------------------- main ----------------------------------
if __name__ == "__main__":
    key = jax.random.PRNGKey(0)
    N, Cin, Cp, S = 2, 4, 8, 16        # inplanes=4, planes=8, spatial=16

    keys = jax.random.split(key, 10)
    x = jax.random.normal(keys[0], (N, Cin, S, S, S), dtype=jnp.float32)
    params = {
        "w1": 0.1 * jax.random.normal(keys[1], (Cp, Cin, 3, 3, 3), dtype=jnp.float32),
        "w2": 0.1 * jax.random.normal(keys[2], (Cp, Cp, 3, 3, 3), dtype=jnp.float32),
        "w3": 0.1 * jax.random.normal(keys[3], (Cp, Cp, 3, 3, 3), dtype=jnp.float32),
        "g1": 1.0 + 0.1 * jax.random.normal(keys[4], (Cp,), dtype=jnp.float32),
        "b1": 0.1 * jax.random.normal(keys[5], (Cp,), dtype=jnp.float32),
        "g2": 1.0 + 0.1 * jax.random.normal(keys[6], (Cp,), dtype=jnp.float32),
        "b2": 0.1 * jax.random.normal(keys[7], (Cp,), dtype=jnp.float32),
        "g3": 1.0 + 0.1 * jax.random.normal(keys[8], (Cp,), dtype=jnp.float32),
        "b3": 0.1 * jax.random.normal(keys[9], (Cp,), dtype=jnp.float32),
    }

    out = jax.block_until_ready(convd_forward(x, params, first=False))
    ref = jax.block_until_ready(convd_reference(x, params, first=False))

    assert out.shape == ref.shape == (N, Cp, S // 2, S // 2, S // 2), out.shape
    err = jnp.abs(out - ref)
    max_err = float(jnp.max(err))
    mean_err = float(jnp.mean(err))
    # bf16 im2col patch / weights (with f32 accumulation) -> tolerance loosened
    # vs. the all-f32 reference; a structural bug would give O(1) errors.
    assert max_err < 1e-1, f"max abs error too large: {max_err}"
    assert mean_err < 1e-2, f"mean abs error too large: {mean_err}"
    print("KERNEL_OK")
</pallas_src>

<mosaic_0001>
module attributes {stable_mosaic.version = 11 : i64} {
  func.func @kernel(%arg0: i32, %arg1: memref<1x32x512xf32, #tpu.memory_space<vmem>>, %arg2: memref<8x108xbf16, #tpu.memory_space<vmem>>, %arg3: memref<8x216xbf16, #tpu.memory_space<vmem>>, %arg4: memref<8x216xbf16, #tpu.memory_space<vmem>>, %arg5: memref<8x6xf32, #tpu.memory_space<vmem>>, %arg6: memref<8x4xf32, #tpu.memory_space<vmem>>, %arg7: memref<8x512xf32, #tpu.memory_space<vmem>>, %arg8: memref<1x8x512xf32, #tpu.memory_space<vmem>>, %arg9: memref<8x768xf32, #tpu.memory_space<vmem>>, %arg10: memref<108x512xbf16, #tpu.memory_space<vmem>>, %arg11: memref<216x512xbf16, #tpu.memory_space<vmem>>) attributes {dimension_semantics = [#tpu.dimension_semantics<parallel>], iteration_bounds = array<i64: 2>, scalar_prefetch = 0 : i64, scratch_operands = 3 : i64, tpu.core_type = #tpu.core_type<tc>, window_params = [{transform_indices = @transform_0, window_bounds = array<i64: 1, 32, 512>}, {pipeline_mode = #tpu.pipeline_mode<synchronous>, transform_indices = @transform_1, window_bounds = array<i64: 8, 108>}, {pipeline_mode = #tpu.pipeline_mode<synchronous>, transform_indices = @transform_2, window_bounds = array<i64: 8, 216>}, {pipeline_mode = #tpu.pipeline_mode<synchronous>, transform_indices = @transform_3, window_bounds = array<i64: 8, 216>}, {pipeline_mode = #tpu.pipeline_mode<synchronous>, transform_indices = @transform_4, window_bounds = array<i64: 8, 6>}, {pipeline_mode = #tpu.pipeline_mode<synchronous>, transform_indices = @transform_5, window_bounds = array<i64: 8, 4>}, {pipeline_mode = #tpu.pipeline_mode<synchronous>, transform_indices = @transform_6, window_bounds = array<i64: 8, 512>}, {transform_indices = @transform_7, window_bounds = array<i64: 1, 8, 512>}]} {
    %cst = arith.constant 0.000000e+00 : f32
    %0 = vector.broadcast %cst : f32 to vector<8x128xf32>
    %c0 = arith.constant 0 : index
    %c0_0 = arith.constant 0 : index
    %1 = vector.load %arg9[%c0, %c0_0] : memref<8x768xf32, #tpu.memory_space<vmem>>, vector<8x128xf32>
    tpu.vector_store %arg9[%c0, %c0_0], %0 {strides = array<i32>} : memref<8x768xf32, #tpu.memory_space<vmem>>, vector<8x128xf32>,
    %cst_1 = arith.constant 0.000000e+00 : f32
    %2 = vector.broadcast %cst_1 : f32 to vector<8x128xf32>
    %c0_2 = arith.constant 0 : index
    %c640 = arith.constant 640 : index
    %3 = vector.load %arg9[%c0_2, %c640] : memref<8x768xf32, #tpu.memory_space<vmem>>, vector<8x128xf32>
    tpu.vector_store %arg9[%c0_2, %c640], %2 {strides = array<i32>} : memref<8x768xf32, #tpu.memory_space<vmem>>, vector<8x128xf32>,
    %c0_3 = arith.constant 0 : index
    %c0_4 = arith.constant 0 : index
    %c0_5 = arith.constant 0 : index
    %4 = vector.load %arg1[%c0_3, %c0_4, %c0_5] : memref<1x32x512xf32, #tpu.memory_space<vmem>>, vector<1x4x512xf32>
    %5 = vector.shape_cast %4 : vector<1x4x512xf32> to vector<4x512xf32>
    %c0_6 = arith.constant 0 : index
    %c4 = arith.constant 4 : index
    %c0_7 = arith.constant 0 : index
    %6 = vector.load %arg1[%c0_6, %c4, %c0_7] : memref<1x32x512xf32, #tpu.memory_space<vmem>>, vector<1x4x512xf32>
    %7 = vector.shape_cast %6 : vector<1x4x512xf32> to vector<4x512xf32>
    %8 = arith.maximumf %5, %7 : vector<4x512xf32>
    %c0_8 = arith.constant 0 : index
    %c8 = arith.constant 8 : index
    %c0_9 = arith.constant 0 : index
    %9 = vector.load %arg1[%c0_8, %c8, %c0_9] : memref<1x32x512xf32, #tpu.memory_space<vmem>>, vector<1x4x512xf32>
    %10 = vector.shape_cast %9 : vector<1x4x512xf32> to vector<4x512xf32>
    %11 = arith.maximumf %8, %10 : vector<4x512xf32>
    %c0_10 = arith.constant 0 : index
    %c12 = arith.constant 12 : index
    %c0_11 = arith.constant 0 : index
    %12 = vector.load %arg1[%c0_10, %c12, %c0_11] : memref<1x32x512xf32, #tpu.memory_space<vmem>>, vector<1x4x512xf32>
    %13 = vector.shape_cast %12 : vector<1x4x512xf32> to vector<4x512xf32>
    %14 = arith.maximumf %11, %13 : vector<4x512xf32>
    %c0_12 = arith.constant 0 : index
    %c16 = arith.constant 16 : index
    %c0_13 = arith.constant 0 : index
    %15 = vector.load %arg1[%c0_12, %c16, %c0_13] : memref<1x32x512xf32, #tpu.memory_space<vmem>>, vector<1x4x512xf32>
    %16 = vector.shape_cast %15 : vector<1x4x512xf32> to vector<4x512xf32>
    %17 = arith.maximumf %14, %16 : vector<4x512xf32>
    %c0_14 = arith.constant 0 : index
    %c20 = arith.constant 20 : index
    %c0_15 = arith.constant 0 : index
    %18 = vector.load %arg1[%c0_14, %c20, %c0_15] : memref<1x32x512xf32, #tpu.memory_space<vmem>>, vector<1x4x512xf32>
    %19 = vector.shape_cast %18 : vector<1x4x512xf32> to vector<4x512xf32>
    %20 = arith.maximumf %17, %19 : vector<4x512xf32>
    %c0_16 = arith.constant 0 : index
    %c24 = arith.constant 24 : index
    %c0_17 = arith.constant 0 : index
    %21 = vector.load %arg1[%c0_16, %c24, %c0_17] : memref<1x32x512xf32, #tpu.memory_space<vmem>>, vector<1x4x512xf32>
    %22 = vector.shape_cast %21 : vector<1x4x512xf32> to vector<4x512xf32>
    %23 = arith.maximumf %20, %22 : vector<4x512xf32>
    %c0_18 = arith.constant 0 : index
    %c28 = arith.constant 28 : index
    %c0_19 = arith.constant 0 : index
    %24 = vector.load %arg1[%c0_18, %c28, %c0_19] : memref<1x32x512xf32, #tpu.memory_space<vmem>>, vector<1x4x512xf32>
    %25 = vector.shape_cast %24 : vector<1x4x512xf32> to vector<4x512xf32>
    %26 = arith.maximumf %23, %25 : vector<4x512xf32>
    %c0_20 = arith.constant 0 : index
    %c128 = arith.constant 128 : index
    %27 = vector.load %arg9[%c0_20, %c128] : memref<8x768xf32, #tpu.memory_space<vmem>>, vector<4x512xf32>
    tpu.vector_store %arg9[%c0_20, %c128], %26 {strides = array<i32>} : memref<8x768xf32, #tpu.memory_space<vmem>>, vector<4x512xf32>,
    %c0_21 = arith.constant 0 : index
    %c55 = arith.constant 55 : index
    %28 = vector.load %arg9[%c0_21, %c55] : memref<8x768xf32, #tpu.memory_space<vmem>>, vector<4x512xf32>
    %c0_22 = arith.constant 0 : index
    %c0_23 = arith.constant 0 : index
    %29 = vector.load %arg7[%c0_22, %c0_23] : memref<8x512xf32, #tpu.memory_space<vmem>>, vector<1x512xf32>
    %c2 = arith.constant 2 : index
    %c0_24 = arith.constant 0 : index
    %30 = vector.load %arg7[%c2, %c0_24] : memref<8x512xf32, #tpu.memory_space<vmem>>, vector<1x512xf32>
    %31 = arith.mulf %29, %30 : vector<1x512xf32>
    %c4_25 = arith.constant 4 : index
    %c0_26 = arith.constant 0 : index
    %32 = vector.load %arg7[%c4_25, %c0_26] : memref<8x512xf32, #tpu.memory_space<vmem>>, vector<1x512xf32>
    %33 = arith.mulf %31, %32 : vector<1x512xf32>
    %34 = vector.broadcast %33 : vector<1x512xf32> to vector<4x512xf32>
    %35 = arith.mulf %28, %34 : vector<4x512xf32>
    %36 = arith.truncf %35 : vector<4x512xf32> to vector<4x512xbf16>
    %c0_27 = arith.constant 0 : index
    %c0_28 = arith.constant 0 : index
    %37 = vector.load %arg10[%c0_27, %c0_28] : memref<108x512xbf16, #tpu.memory_space<vmem>>, vector<4x512xbf16>
    tpu.vector_store %arg10[%c0_27, %c0_28], %36 {strides = array<i32>} : memref<108x512xbf16, #tpu.memory_space<vmem>>, vector<4x512xbf16>,
    %c0_29 = arith.constant 0 : index
    %c56 = arith.constant 56 : index
    %38 = vector.load %arg9[%c0_29, %c56] : memref<8x768xf32, #tpu.memory_space<vmem>>, vector<4x512xf32>
    %c0_30 = arith.constant 0 : index
    %c0_31 = arith.constant 0 : index
    %39 = vector.load %arg7[%c0_30, %c0_31] : memref<8x512xf32, #tpu.memory_space<vmem>>, vector<1x512xf32>
    %c2_32 = arith.constant 2 : index
    %c0_33 = arith.constant 0 : index
    %40 = vector.load %arg7[%c2_32, %c0_33] : memref<8x512xf32, #tpu.memory_space<vmem>>, vector<1x512xf32>
    %41 = arith.mulf %39, %40 : vector<1x512xf32>
    %42 = vector.broadcast %41 : vector<1x512xf32> to vector<4x512xf32>
    %43 = arith.mulf %38, %42 : vector<4x512xf32>
    %44 = arith.truncf %43 : vector<4x512xf32> to vector<4x512xbf16>
    %c4_34 = arith.constant 4 : index
    %c0_35 = arith.constant 0 : index
    %45 = vector.load %arg10[%c4_34, %c0_35] : memref<108x512xbf16, #tpu.memory_space<vmem>>, vector<4x512xbf16>
    tpu.vector_store %arg10[%c4_34, %c0_35], %44 {strides = array<i32>} : memref<108x512xbf16, #tpu.memory_space<vmem>>, vector<4x512xbf16>,
    %c0_36 = arith.constant 0 : index
    %c57 = arith.constant 57 : index
    %46 = vector.load %arg9[%c0_36, %c57] : memref<8x768xf32, #tpu.memory_space<vmem>>, vector<4x512xf32>
    %c0_37 = arith.constant 0 : index
    %c0_38 = arith.constant 0 : index
    %47 = vector.load %arg7[%c0_37, %c0_38] : memref<8x512xf32, #tpu.memory_space<vmem>>, vector<1x512xf32>
    %c2_39 = arith.constant 2 : index
    %c0_40 = arith.constant 0 : index
    %48 = vector.load %arg7[%c2_39, %c0_40] : memref<8x512xf32, #tpu.memory_space<vmem>>, vector<1x512xf32>
    %49 = arith.mulf %47, %48 : vector<1x512xf32>
    %c5 = arith.constant 5 : index
    %c0_41 = arith.constant 0 : index
    %50 = vector.load %arg7[%c5, %c0_41] : memref<8x512xf32, #tpu.memory_space<vmem>>, vector<1x512xf32>
    %51 = arith.mulf %49, %50 : vector<1x512xf32>
    %52 = vector.broadcast %51 : vector<1x512xf32> to vector<4x512xf32>
    %53 = arith.mulf %46, %52 : vector<4x512xf32>
    %54 = arith.truncf %53 : vector<4x512xf32> to vector<4x512xbf16>
    %c8_42 = arith.constant 8 : index
    %c0_43 = arith.constant 0 : index
    %55 = vector.load %arg10[%c8_42, %c0_43] : memref<108x512xbf16, #tpu.memory_space<vmem>>, vector<4x512xbf16>
    tpu.vector_store %arg10[%c8_42, %c0_43], %54 {strides = array<i32>} : memref<108x512xbf16, #tpu.memory_space<vmem>>, vector<4x512xbf16>,
    %c0_44 = arith.constant 0 : index
    %c63 = arith.constant 63 : index
    %56 = vector.load %arg9[%c0_44, %c63] : memref<8x768xf32, #tpu.memory_space<vmem>>, vector<4x512xf32>
    %c0_45 = arith.constant 0 : index
    %c0_46 = arith.constant 0 : index
    %57 = vector.load %arg7[%c0_45, %c0_46] : memref<8x512xf32, #tpu.memory_space<vmem>>, vector<1x512xf32>
    %c4_47 = arith.constant 4 : index
    %c0_48 = arith.constant 0 : index
    %58 = vector.load %arg7[%c4_47, %c0_48] : memref<8x512xf32, #tpu.memory_space<vmem>>, vector<1x512xf32>
    %59 = arith.mulf %57, %58 : vector<1x512xf32>
    %60 = vector.broadcast %59 : vector<1x512xf32> to vector<4x512xf32>
    %61 = arith.mulf %56, %60 : vector<4x512xf32>
    %62 = arith.truncf %61 : vector<4x512xf32> to vector<4x512xbf16>
    %c12_49 = arith.constant 12 : index
    %c0_50 = arith.constant 0 : index
    %63 = vector.load %arg10[%c12_49, %c0_50] : memref<108x512xbf16, #tpu.memory_space<vmem>>, vector<4x512xbf16>
    tpu.vector_store %arg10[%c12_49, %c0_50], %62 {strides = array<i32>} : memref<108x512xbf16, #tpu.memory_space<vmem>>, vector<4x512xbf16>,
    %c0_51 = arith.constant 0 : index
    %c64 = arith.constant 64 : index
    %64 = vector.load %arg9[%c0_51, %c64] : memref<8x768xf32, #tpu.memory_space<vmem>>, vector<4x512xf32>
    %c0_52 = arith.constant 0 : index
    %c0_53 = arith.constant 0 : index
    %65 = vector.load %arg7[%c0_52, %c0_53] : memref<8x512xf32, #tpu.memory_space<vmem>>, vector<1x512xf32>
    %66 = vector.broadcast %65 : vector<1x512xf32> to vector<4x512xf32>
    %67 = arith.mulf %64, %66 : vector<4x512xf32>
    %68 = arith.truncf %67 : vector<4x512xf32> to vector<4x512xbf16>
    %c16_54 = arith.constant 16 : index
    %c0_55 = arith.constant 0 : index
    %69 = vector.load %arg10[%c16_54, %c0_55] : memref<108x512xbf16, #tpu.memory_space<vmem>>, vector<4x512xbf16>
    tpu.vector_store %arg10[%c16_54, %c0_55], %68 {strides = array<i32>} : memref<108x512xbf16, #tpu.memory_space<vmem>>, vector<4x512xbf16>,
    %c0_56 = arith.constant 0 : index
    %c65 = arith.constant 65 : index
    %70 = vector.load %arg9[%c0_56, %c65] : memref<8x768xf32, #tpu.memory_space<vmem>>, vector<4x512xf32>
    %c0_57 = arith.constant 0 : index
    %c0_58 = arith.constant 0 : index
    %71 = vector.load %arg7[%c0_57, %c0_58] : memref<8x512xf32, #tpu.memory_space<vmem>>, vector<1x512xf32>
    %c5_59 = arith.constant 5 : index
    %c0_60 = arith.constant 0 : index
    %72 = vector.load %arg7[%c5_59, %c0_60] : memref<8x512xf32, #tpu.memory_space<vmem>>, vector<1x512xf32>
    %73 = arith.mulf %71, %72 : vector<1x512xf32>
    %74 = vector.broadcast %73 : vector<1x512xf32> to vector<4x512xf32>
    %75 = arith.mulf %70, %74 : vector<4x512xf32>
    %76 = arith.truncf %75 : vector<4x512xf32> to vector<4x512xbf16>
    %c20_61 = arith.constant 20 : index
    %c0_62 = arith.constant 0 : index
    %77 = vector.load %arg10[%c20_61, %c0_62] : memref<108x512xbf16, #tpu.memory_space<vmem>>, vector<4x512xbf16>
    tpu.vector_store %arg10[%c20_61, %c0_62], %76 {strides = array<i32>} : memref<108x512xbf16, #tpu.memory_space<vmem>>, vector<4x512xbf16>,
    %c0_63 = arith.constant 0 : index
    %c71 = arith.constant 71 : index
    %78 = vector.load %arg9[%c0_63, %c71] : memref<8x768xf32, #tpu.memory_space<vmem>>, vector<4x512xf32>
    %c0_64 = arith.constant 0 : index
    %c0_65 = arith.constant 0 : index
    %79 = vector.load %arg7[%c0_64, %c0_65] : memref<8x512xf32, #tpu.memory_space<vmem>>, vector<1x512xf32>
    %c3 = arith.constant 3 : index
    %c0_66 = arith.constant 0 : index
    %80 = vector.load %arg7[%c3, %c0_66] : memref<8x512xf32, #tpu.memory_space<vmem>>, vector<1x512xf32>
    %81 = arith.mulf %79, %80 : vector<1x512xf32>
    %c4_67 = arith.constant 4 : index
    %c0_68 = arith.constant 0 : index
    %82 = vector.load %arg7[%c4_67, %c0_68] : memref<8x512xf32, #tpu.memory_space<vmem>>, vector<1x512xf32>
    %83 = arith.mulf %81, %82 : vector<1x512xf32>
    %84 = vector.broadcast %83 : vector<1x512xf32> to vector<4x512xf32>
    %85 = arith.mulf %78, %84 : vector<4x512xf32>
    %86 = arith.truncf %85 : vector<4x512xf32> to vector<4x512xbf16>
    %c24_69 = arith.constant 24 : index
    %c0_70 = arith.constant 0 : index
    %87 = vector.load %arg10[%c24_69, %c0_70] : memref<108x512xbf16, #tpu.memory_space<vmem>>, vector<4x512xbf16>
    tpu.vector_store %arg10[%c24_69, %c0_70], %86 {strides = array<i32>} : memref<108x512xbf16, #tpu.memory_space<vmem>>, vector<4x512xbf16>,
    %c0_71 = arith.constant 0 : index
    %c72 = arith.constant 72 : index
    %88 = vector.load %arg9[%c0_71, %c72] : memref<8x768xf32, #tpu.memory_space<vmem>>, vector<4x512xf32>
    %c0_72 = arith.constant 0 : index
    %c0_73 = arith.constant 0 : index
    %89 = vector.load %arg7[%c0_72, %c0_73] : memref<8x512xf32, #tpu.memory_space<vmem>>, vector<1x512xf32>
    %c3_74 = arith.constant 3 : index
    %c0_75 = arith.constant 0 : index
    %90 = vector.load %arg7[%c3_74, %c0_75] : memref<8x512xf32, #tpu.memory_space<vmem>>, vector<1x512xf32>
    %91 = arith.mulf %89, %90 : vector<1x512xf32>
    %92 = vector.broadcast %91 : vector<1x512xf32> to vector<4x512xf32>
    %93 = arith.mulf %88, %92 : vector<4x512xf32>
    %94 = arith.truncf %93 : vector<4x512xf32> to vector<4x512xbf16>
    %c28_76 = arith.constant 28 : index
    %c0_77 = arith.constant 0 : index
    %95 = vector.load %arg10[%c28_76, %c0_77] : memref<108x512xbf16, #tpu.memory_space<vmem>>, vector<4x512xbf16>
    tpu.vector_store %arg10[%c28_76, %c0_77], %94 {strides = array<i32>} : memref<108x512xbf16, #tpu.memory_space<vmem>>, vector<4x512xbf16>,
    %c0_78 = arith.constant 0 : index
    %c73 = arith.constant 73 : index
    %96 = vector.load %arg9[%c0_78, %c73] : memref<8x768xf32, #tpu.memory_space<vmem>>, vector<4x512xf32>
    %c0_79 = arith.constant 0 : index
    %c0_80 = arith.constant 0 : index
    %97 = vector.load %arg7[%c0_79, %c0_80] : memref<8x512xf32, #tpu.memory_space<vmem>>, vector<1x512xf32>
    %c3_81 = arith.constant 3 : index
    %c0_82 = arith.constant 0 : index
    %98 = vector.load %arg7[%c3_81, %c0_82] : memref<8x512xf32, #tpu.memory_space<vmem>>, vector<1x512xf32>
    %99 = arith.mulf %97, %98 : vector<1x512xf32>
    %c5_83 = arith.constant 5 : index
    %c0_84 = arith.constant 0 : index
    %100 = vector.load %arg7[%c5_83, %c0_84] : memref<8x512xf32, #tpu.memory_space<vmem>>, vector<1x512xf32>
    %101 = arith.mulf %99, %100 : vector<1x512xf32>
    %102 = vector.broadcast %101 : vector<1x512xf32> to vector<4x512xf32>
    %103 = arith.mulf %96, %102 : vector<4x512xf32>
    %104 = arith.truncf %103 : vector<4x512xf32> to vector<4x512xbf16>
    %c32 = arith.constant 32 : index
    %c0_85 = arith.constant 0 : index
    %105 = vector.load %arg10[%c32, %c0_85] : memref<108x512xbf16, #tpu.memory_space<vmem>>, vector<4x512xbf16>
    tpu.vector_store %arg10[%c32, %c0_85], %104 {strides = array<i32>} : memref<108x512xbf16, #tpu.memory_space<vmem>>, vector<4x512xbf16>,
    %c0_86 = arith.constant 0 : index
    %c119 = arith.constant 119 : index
    %106 = vector.load %arg9[%c0_86, %c119] : memref<8x768xf32, #tpu.memory_space<vmem>>, vector<4x512xf32>
    %c2_87 = arith.constant 2 : index
    %c0_88 = arith.constant 0 : index
    %107 = vector.load %arg7[%c2_87, %c0_88] : memref<8x512xf32, #tpu.memory_space<vmem>>, vector<1x512xf32>
    %c4_89 = arith.constant 4 : index
    %c0_90 = arith.constant 0 : index
    %108 = vector.load %arg7[%c4_89, %c0_90] : memref<8x512xf32, #tpu.memory_space<vmem>>, vector<1x512xf32>
    %109 = arith.mulf %107, %108 : vector<1x512xf32>
    %110 = vector.broadcast %109 : vector<1x512xf32> to vector<4x512xf32>
    %111 = arith.mulf %106, %110 : vector<4x512xf32>
    %112 = arith.truncf %111 : vector<4x512xf32> to vector<4x512xbf16>
    %c36 = arith.constant 36 : index
    %c0_91 = arith.constant 0 : index
    %113 = vector.load %arg10[%c36, %c0_91] : memref<108x512xbf16, #tpu.memory_space<vmem>>, vector<4x512xbf16>
    tpu.vector_store %arg10[%c36, %c0_91], %112 {strides = array<i32>} : memref<108x512xbf16, #tpu.memory_space<vmem>>, vector<4x512xbf16>,
    %c0_92 = arith.constant 0 : index
    %c120 = arith.constant 120 : index
    %114 = vector.load %arg9[%c0_92, %c120] : memref<8x768xf32, #tpu.memory_space<vmem>>, vector<4x512xf32>
    %c2_93 = arith.constant 2 : index
    %c0_94 = arith.constant 0 : index
    %115 = vector.load %arg7[%c2_93, %c0_94] : memref<8x512xf32, #tpu.memory_space<vmem>>, vector<1x512xf32>
    %116 = vector.broadcast %115 : vector<1x512xf32> to vector<4x512xf32>
    %117 = arith.mulf %114, %116 : vector<4x512xf32>
    %118 = arith.truncf %117 : vector<4x512xf32> to vector<4x512xbf16>
    %c40 = arith.constant 40 : index
    %c0_95 = arith.constant 0 : index
    %119 = vector.load %arg10[%c40, %c0_95] : memref<108x512xbf16, #tpu.memory_space<vmem>>, vector<4x512xbf16>
    tpu.vector_store %arg10[%c40, %c0_95], %118 {strides = array<i32>} : memref<108x512xbf16, #tpu.memory_space<vmem>>, vector<4x512xbf16>,
    %c0_96 = arith.constant 0 : index
    %c121 = arith.constant 121 : index
    %120 = vector.load %arg9[%c0_96, %c121] : memref<8x768xf32, #tpu.memory_space<vmem>>, vector<4x512xf32>
    %c2_97 = arith.constant 2 : index
    %c0_98 = arith.constant 0 : index
    %121 = vector.load %arg7[%c2_97, %c0_98] : memref<8x512xf32, #tpu.memory_space<vmem>>, vector<1x512xf32>
    %c5_99 = arith.constant 5 : index
    %c0_100 = arith.constant 0 : index
    %122 = vector.load %arg7[%c5_99, %c0_100] : memref<8x512xf32, #tpu.memory_space<vmem>>, vector<1x512xf32>
    %123 = arith.mulf %121, %122 : vector<1x512xf32>
    %124 = vector.broadcast %123 : vector<1x512xf32> to vector<4x512xf32>
    %125 = arith.mulf %120, %124 : vector<4x512xf32>
    %126 = arith.truncf %125 : vector<4x512xf32> to vector<4x512xbf16>
    %c44 = arith.constant 44 : index
    %c0_101 = arith.constant 0 : index
    %127 = vector.load %arg10[%c44, %c0_101] : memref<108x512xbf16, #tpu.memory_space<vmem>>, vector<4x512xbf16>
    tpu.vector_store %arg10[%c44, %c0_101], %126 {strides = array<i32>} : memref<108x512xbf16, #tpu.memory_space<vmem>>, vector<4x512xbf16>,
    %c0_102 = arith.constant 0 : index
    %c127 = arith.constant 127 : index
    %128 = vector.load %arg9[%c0_102, %c127] : memref<8x768xf32, #tpu.memory_space<vmem>>, vector<4x512xf32>
    %c4_103 = arith.constant 4 : index
    %c0_104 = arith.constant 0 : index
    %129 = vector.load %arg7[%c4_103, %c0_104] : memref<8x512xf32, #tpu.memory_space<vmem>>, vector<1x512xf32>
    %130 = vector.broadcast %129 : vector<1x512xf32> to vector<4x512xf32>
    %131 = arith.mulf %128, %130 : vector<4x512xf32>
    %132 = arith.truncf %131 : vector<4x512xf32> to vector<4x512xbf16>
    %c48 = arith.constant 48 : index
    %c0_105 = arith.constant 0 : index
    %133 = vector.load %arg10[%c48, %c0_105] : memref<108x512xbf16, #tpu.memory_space<vmem>>, vector<4x512xbf16>
    tpu.vector_store %arg10[%c48, %c0_105], %132 {strides = array<i32>} : memref<108x512xbf16, #tpu.memory_space<vmem>>, vector<4x512xbf16>,
    %c0_106 = arith.constant 0 : index
    %c128_107 = arith.constant 128 : index
    %134 = vector.load %arg9[%c0_106, %c128_107] : memref<8x768xf32, #tpu.memory_space<vmem>>, vector<4x512xf32>
    %135 = arith.truncf %134 : vector<4x512xf32> to vector<4x512xbf16>
    %c52 = arith.constant 52 : index
    %c0_108 = arith.constant 0 : index
    %136 = vector.load %arg10[%c52, %c0_108] : memref<108x512xbf16, #tpu.memory_space<vmem>>, vector<4x512xbf16>
    tpu.vector_store %arg10[%c52, %c0_108], %135 {strides = array<i32>} : memref<108x512xbf16, #tpu.memory_space<vmem>>, vector<4x512xbf16>,
    %c0_109 = arith.constant 0 : index
    %c129 = arith.constant 129 : index
    %137 = vector.load %arg9[%c0_109, %c129] : memref<8x768xf32, #tpu.memory_space<vmem>>, vector<4x512xf32>
    %c5_110 = arith.constant 5 : index
    %c0_111 = arith.constant 0 : index
    %138 = vector.load %arg7[%c5_110, %c0_111] : memref<8x512xf32, #tpu.memory_space<vmem>>, vector<1x512xf32>
    %139 = vector.broadcast %138 : vector<1x512xf32> to vector<4x512xf32>
    %140 = arith.mulf %137, %139 : vector<4x512xf32>
    %141 = arith.truncf %140 : vector<4x512xf32> to vector<4x512xbf16>
    %c56_112 = arith.constant 56 : index
    %c0_113 = arith.constant 0 : index
    %142 = vector.load %arg10[%c56_112, %c0_113] : memref<108x512xbf16, #tpu.memory_space<vmem>>, vector<4x512xbf16>
    tpu.vector_store %arg10[%c56_112, %c0_113], %141 {strides = array<i32>} : memref<108x512xbf16, #tpu.memory_space<vmem>>, vector<4x512xbf16>,
    %c0_114 = arith.constant 0 : index
    %c135 = arith.constant 135 : index
    %143 = vector.load %arg9[%c0_114, %c135] : memref<8x768xf32, #tpu.memory_space<vmem>>, vector<4x512xf32>
    %c3_115 = arith.constant 3 : index
    %c0_116 = arith.constant 0 : index
    %144 = vector.load %arg7[%c3_115, %c0_116] : memref<8x512xf32, #tpu.memory_space<vmem>>, vector<1x512xf32>
    %c4_117 = arith.constant 4 : index
    %c0_118 = arith.constant 0 : index
    %145 = vector.load %arg7[%c4_117, %c0_118] : memref<8x512xf32, #tpu.memory_space<vmem>>, vector<1x512xf32>
    %146 = arith.mulf %144, %145 : vector<1x512xf32>
    %147 = vector.broadcast %146 : vector<1x512xf32> to vector<4x512xf32>
    %148 = arith.mulf %143, %147 : vector<4x512xf32>
    %149 = arith.truncf %148 : vector<4x512xf32> to vector<4x512xbf16>
    %c60 = arith.constant 60 : index
    %c0_119 = arith.constant 0 : index
    %150 = vector.load %arg10[%c60, %c0_119] : memref<108x512xbf16, #tpu.memory_space<vmem>>, vector<4x512xbf16>
    tpu.vector_store %arg10[%c60, %c0_119], %149 {strides = array<i32>} : memref<108x512xbf16, #tpu.memory_space<vmem>>, vector<4x512xbf16>,
    %c0_120 = arith.constant 0 : index
    %c136 = arith.constant 136 : index
    %151 = vector.load %arg9[%c0_120, %c136] : memref<8x768xf32, #tpu.memory_space<vmem>>, vector<4x512xf32>
    %c3_121 = arith.constant 3 : index
    %c0_122 = arith.constant 0 : index
    %152 = vector.load %arg7[%c3_121, %c0_122] : memref<8x512xf32, #tpu.memory_space<vmem>>, vector<1x512xf32>
    %153 = vector.broadcast %152 : vector<1x512xf32> to vector<4x512xf32>
    %154 = arith.mulf %151, %153 : vector<4x512xf32>
    %155 = arith.truncf %154 : vector<4x512xf32> to vector<4x512xbf16>
    %c64_123 = arith.constant 64 : index
    %c0_124 = arith.constant 0 : index
    %156 = vector.load %arg10[%c64_123, %c0_124] : memref<108x512xbf16, #tpu.memory_space<vmem>>, vector<4x512xbf16>
    tpu.vector_store %arg10[%c64_123, %c0_124], %155 {strides = array<i32>} : memref<108x512xbf16, #tpu.memory_space<vmem>>, vector<4x512xbf16>,
    %c0_125 = arith.constant 0 : index
    %c137 = arith.constant 137 : index
    %157 = vector.load %arg9[%c0_125, %c137] : memref<8x768xf32, #tpu.memory_space<vmem>>, vector<4x512xf32>
    %c3_126 = arith.constant 3 : index
    %c0_127 = arith.constant 0 : index
    %158 = vector.load %arg7[%c3_126, %c0_127] : memref<8x512xf32, #tpu.memory_space<vmem>>, vector<1x512xf32>
    %c5_128 = arith.constant 5 : index
    %c0_129 = arith.constant 0 : index
    %159 = vector.load %arg7[%c5_128, %c0_129] : memref<8x512xf32, #tpu.memory_space<vmem>>, vector<1x512xf32>
    %160 = arith.mulf %158, %159 : vector<1x512xf32>
    %161 = vector.broadcast %160 : vector<1x512xf32> to vector<4x512xf32>
    %162 = arith.mulf %157, %161 : vector<4x512xf32>
    %163 = arith.truncf %162 : vector<4x512xf32> to vector<4x512xbf16>
    %c68 = arith.constant 68 : index
    %c0_130 = arith.constant 0 : index
    %164 = vector.load %arg10[%c68, %c0_130] : memref<108x512xbf16, #tpu.memory_space<vmem>>, vector<4x512xbf16>
    tpu.vector_store %arg10[%c68, %c0_130], %163 {strides = array<i32>} : memref<108x512xbf16, #tpu.memory_space<vmem>>, vector<4x512xbf16>,
    %c0_131 = arith.constant 0 : index
    %c183 = arith.constant 183 : index
    %165 = vector.load %arg9[%c0_131, %c183] : memref<8x768xf32, #tpu.memory_space<vmem>>, vector<4x512xf32>
    %c1 = arith.constant 1 : index
    %c0_132 = arith.constant 0 : index
    %166 = vector.load %arg7[%c1, %c0_132] : memref<8x512xf32, #tpu.memory_space<vmem>>, vector<1x512xf32>
    %c2_133 = arith.constant 2 : index
    %c0_134 = arith.constant 0 : index
    %167 = vector.load %arg7[%c2_133, %c0_134] : memref<8x512xf32, #tpu.memory_space<vmem>>, vector<1x512xf32>
    %168 = arith.mulf %166, %167 : vector<1x512xf32>
    %c4_135 = arith.constant 4 : index
    %c0_136 = arith.constant 0 : index
    %169 = vector.load %arg7[%c4_135, %c0_136] : memref<8x512xf32, #tpu.memory_space<vmem>>, vector<1x512xf32>
    %170 = arith.mulf %168, %169 : vector<1x512xf32>
    %171 = vector.broadcast %170 : vector<1x512xf32> to vector<4x512xf32>
    %172 = arith.mulf %165, %171 : vector<4x512xf32>
    %173 = arith.truncf %172 : vector<4x512xf32> to vector<4x512xbf16>
    %c72_137 = arith.constant 72 : index
    %c0_138 = arith.constant 0 : index
    %174 = vector.load %arg10[%c72_137, %c0_138] : memref<108x512xbf16, #tpu.memory_space<vmem>>, vector<4x512xbf16>
    tpu.vector_store %arg10[%c72_137, %c0_138], %173 {strides = array<i32>} : memref<108x512xbf16, #tpu.memory_space<vmem>>, vector<4x512xbf16>,
    %c0_139 = arith.constant 0 : index
    %c184 = arith.constant 184 : index
    %175 = vector.load %arg9[%c0_139, %c184] : memref<8x768xf32, #tpu.memory_space<vmem>>, vector<4x512xf32>
    %c1_140 = arith.constant 1 : index
    %c0_141 = arith.constant 0 : index
    %176 = vector.load %arg7[%c1_140, %c0_141] : memref<8x512xf32, #tpu.memory_space<vmem>>, vector<1x512xf32>
    %c2_142 = arith.constant 2 : index
    %c0_143 = arith.constant 0 : index
    %177 = vector.load %arg7[%c2_142, %c0_143] : memref<8x512xf32, #tpu.memory_space<vmem>>, vector<1x512xf32>
    %178 = arith.mulf %176, %177 : vector<1x512xf32>
    %179 = vector.broadcast %178 : vector<1x512xf32> to vector<4x512xf32>
    %180 = arith.mulf %175, %179 : vector<4x512xf32>
    %181 = arith.truncf %180 : vector<4x512xf32> to vector<4x512xbf16>
    %c76 = arith.constant 76 : index
    %c0_144 = arith.constant 0 : index
    %182 = vector.load %arg10[%c76, %c0_144] : memref<108x512xbf16, #tpu.memory_space<vmem>>, vector<4x512xbf16>
    tpu.vector_store %arg10[%c76, %c0_144], %181 {strides = array<i32>} : memref<108x512xbf16, #tpu.memory_space<vmem>>, vector<4x512xbf16>,
    %c0_145 = arith.constant 0 : index
    %c185 = arith.constant 185 : index
    %183 = vector.load %arg9[%c0_145, %c185] : memref<8x768xf32, #tpu.memory_space<vmem>>, vector<4x512xf32>
    %c1_146 = arith.constant 1 : index
    %c0_147 = arith.constant 0 : index
    %184 = vector.load %arg7[%c1_146, %c0_147] : memref<8x512xf32, #tpu.memory_space<vmem>>, vector<1x512xf32>
    %c2_148 = arith.constant 2 : index
    %c0_149 = arith.constant 0 : index
    %185 = vector.load %arg7[%c2_148, %c0_149] : memref<8x512xf32, #tpu.memory_space<vmem>>, vector<1x512xf32>
    %186 = arith.mulf %184, %185 : vector<1x512xf32>
    %c5_150 = arith.constant 5 : index
    %c0_151 = arith.constant 0 : index
    %187 = vector.load %arg7[%c5_150, %c0_151] : memref<8x512xf32, #tpu.memory_space<vmem>>, vector<1x512xf32>
    %188 = arith.mulf %186, %187 : vector<1x512xf32>
    %189 = vector.broadcast %188 : vector<1x512xf32> to vector<4x512xf32>
    %190 = arith.mulf %183, %189 : vector<4x512xf32>
    %191 = arith.truncf %190 : vector<4x512xf32> to vector<4x512xbf16>
    %c80 = arith.constant 80 : index
    %c0_152 = arith.constant 0 : index
    %192 = vector.load %arg10[%c80, %c0_152] : memref<108x512xbf16, #tpu.memory_space<vmem>>, vector<4x512xbf16>
    tpu.vector_store %arg10[%c80, %c0_152], %191 {strides = array<i32>} : memref<108x512xbf16, #tpu.memory_space<vmem>>, vector<4x512xbf16>,
    %c0_153 = arith.constant 0 : index
    %c191 = arith.constant 191 : index
    %193 = vector.load %arg9[%c0_153, %c191] : memref<8x768xf32, #tpu.memory_space<vmem>>, vector<4x512xf32>
    %c1_154 = arith.constant 1 : index
    %c0_155 = arith.constant 0 : index
    %194 = vector.load %arg7[%c1_154, %c0_155] : memref<8x512xf32, #tpu.memory_space<vmem>>, vector<1x512xf32>
    %c4_156 = arith.constant 4 : index
    %c0_157 = arith.constant 0 : index
    %195 = vector.load %arg7[%c4_156, %c0_157] : memref<8x512xf32, #tpu.memory_space<vmem>>, vector<1x512xf32>
    %196 = arith.mulf %194, %195 : vector<1x512xf32>
    %197 = vector.broadcast %196 : vector<1x512xf32> to vector<4x512xf32>
    %198 = arith.mulf %193, %197 : vector<4x512xf32>
    %199 = arith.truncf %198 : vector<4x512xf32> to vector<4x512xbf16>
    %c84 = arith.constant 84 : index
    %c0_158 = arith.constant 0 : index
    %200 = vector.load %arg10[%c84, %c0_158] : memref<108x512xbf16, #tpu.memory_space<vmem>>, vector<4x512xbf16>
    tpu.vector_store %arg10[%c84, %c0_158], %199 {strides = array<i32>} : memref<108x512xbf16, #tpu.memory_space<vmem>>, vector<4x512xbf16>,
    %c0_159 = arith.constant 0 : index
    %c192 = arith.constant 192 : index
    %201 = vector.load %arg9[%c0_159, %c192] : memref<8x768xf32, #tpu.memory_space<vmem>>, vector<4x512xf32>
    %c1_160 = arith.constant 1 : index
    %c0_161 = arith.constant 0 : index
    %202 = vector.load %arg7[%c1_160, %c0_161] : memref<8x512xf32, #tpu.memory_space<vmem>>, vector<1x512xf32>
    %203 = vector.broadcast %202 : vector<1x512xf32> to vector<4x512xf32>
    %204 = arith.mulf %201, %203 : vector<4x512xf32>
    %205 = arith.truncf %204 : vector<4x512xf32> to vector<4x512xbf16>
    %c88 = arith.constant 88 : index
    %c0_162 = arith.constant 0 : index
    %206 = vector.load %arg10[%c88, %c0_162] : memref<108x512xbf16, #tpu.memory_space<vmem>>, vector<4x512xbf16>
    tpu.vector_store %arg10[%c88, %c0_162], %205 {strides = array<i32>} : memref<108x512xbf16, #tpu.memory_space<vmem>>, vector<4x512xbf16>,
    %c0_163 = arith.constant 0 : index
    %c193 = arith.constant 193 : index
    %207 = vector.load %arg9[%c0_163, %c193] : memref<8x768xf32, #tpu.memory_space<vmem>>, vector<4x512xf32>
    %c1_164 = arith.constant 1 : index
    %c0_165 = arith.constant 0 : index
    %208 = vector.load %arg7[%c1_164, %c0_165] : memref<8x512xf32, #tpu.memory_space<vmem>>, vector<1x512xf32>
    %c5_166 = arith.constant 5 : index
    %c0_167 = arith.constant 0 : index
    %209 = vector.load %arg7[%c5_166, %c0_167] : memref<8x512xf32, #tpu.memory_space<vmem>>, vector<1x512xf32>
    %210 = arith.mulf %208, %209 : vector<1x512xf32>
    %211 = vector.broadcast %210 : vector<1x512xf32> to vector<4x512xf32>
    %212 = arith.mulf %207, %211 : vector<4x512xf32>
    %213 = arith.truncf %212 : vector<4x512xf32> to vector<4x512xbf16>
    %c92 = arith.constant 92 : index
    %c0_168 = arith.constant 0 : index
    %214 = vector.load %arg10[%c92, %c0_168] : memref<108x512xbf16, #tpu.memory_space<vmem>>, vector<4x512xbf16>
    tpu.vector_store %arg10[%c92, %c0_168], %213 {strides = array<i32>} : memref<108x512xbf16, #tpu.memory_space<vmem>>, vector<4x512xbf16>,
    %c0_169 = arith.constant 0 : index
    %c199 = arith.constant 199 : index
    %215 = vector.load %arg9[%c0_169, %c199] : memref<8x768xf32, #tpu.memory_space<vmem>>, vector<4x512xf32>
    %c1_170 = arith.constant 1 : index
    %c0_171 = arith.constant 0 : index
    %216 = vector.load %arg7[%c1_170, %c0_171] : memref<8x512xf32, #tpu.memory_space<vmem>>, vector<1x512xf32>
    %c3_172 = arith.constant 3 : index
    %c0_173 = arith.constant 0 : index
    %217 = vector.load %arg7[%c3_172, %c0_173] : memref<8x512xf32, #tpu.memory_space<vmem>>, vector<1x512xf32>
    %218 = arith.mulf %216, %217 : vector<1x512xf32>
    %c4_174 = arith.constant 4 : index
    %c0_175 = arith.constant 0 : index
    %219 = vector.load %arg7[%c4_174, %c0_175] : memref<8x512xf32, #tpu.memory_space<vmem>>, vector<1x512xf32>
    %220 = arith.mulf %218, %219 : vector<1x512xf32>
    %221 = vector.broadcast %220 : vector<1x512xf32> to vector<4x512xf32>
    %222 = arith.mulf %215, %221 : vector<4x512xf32>
    %223 = arith.truncf %222 : vector<4x512xf32> to vector<4x512xbf16>
    %c96 = arith.constant 96 : index
    %c0_176 = arith.constant 0 : index
    %224 = vector.load %arg10[%c96, %c0_176] : memref<108x512xbf16, #tpu.memory_space<vmem>>, vector<4x512xbf16>
    tpu.vector_store %arg10[%c96, %c0_176], %223 {strides = array<i32>} : memref<108x512xbf16, #tpu.memory_space<vmem>>, vector<4x512xbf16>,
    %c0_177 = arith.constant 0 : index
    %c200 = arith.constant 200 : index
    %225 = vector.load %arg9[%c0_177, %c200] : memref<8x768xf32, #tpu.memory_space<vmem>>, vector<4x512xf32>
    %c1_178 = arith.constant 1 : index
    %c0_179 = arith.constant 0 : index
    %226 = vector.load %arg7[%c1_178, %c0_179] : memref<8x512xf32, #tpu.memory_space<vmem>>, vector<1x512xf32>
    %c3_180 = arith.constant 3 : index
    %c0_181 = arith.constant 0 : index
    %227 = vector.load %arg7[%c3_180, %c0_181] : memref<8x512xf32, #tpu.memory_space<vmem>>, vector<1x512xf32>
    %228 = arith.mulf %226, %227 : vector<1x512xf32>
    %229 = vector.broadcast %228 : vector<1x512xf32> to vector<4x512xf32>
    %230 = arith.mulf %225, %229 : vector<4x512xf32>
    %231 = arith.truncf %230 : vector<4x512xf32> to vector<4x512xbf16>
    %c100 = arith.constant 100 : index
    %c0_182 = arith.constant 0 : index
    %232 = vector.load %arg10[%c100, %c0_182] : memref<108x512xbf16, #tpu.memory_space<vmem>>, vector<4x512xbf16>
    tpu.vector_store %arg10[%c100, %c0_182], %231 {strides = array<i32>} : memref<108x512xbf16, #tpu.memory_space<vmem>>, vector<4x512xbf16>,
    %c0_183 = arith.constant 0 : index
    %c201 = arith.constant 201 : index
    %233 = vector.load %arg9[%c0_183, %c201] : memref<8x768xf32, #tpu.memory_space<vmem>>, vector<4x512xf32>
    %c1_184 = arith.constant 1 : index
    %c0_185 = arith.constant 0 : index
    %234 = vector.load %arg7[%c1_184, %c0_185] : memref<8x512xf32, #tpu.memory_space<vmem>>, vector<1x512xf32>
    %c3_186 = arith.constant 3 : index
    %c0_187 = arith.constant 0 : index
    %235 = vector.load %arg7[%c3_186, %c0_187] : memref<8x512xf32, #tpu.memory_space<vmem>>, vector<1x512xf32>
    %236 = arith.mulf %234, %235 : vector<1x512xf32>
    %c5_188 = arith.constant 5 : index
    %c0_189 = arith.constant 0 : index
    %237 = vector.load %arg7[%c5_188, %c0_189] : memref<8x512xf32, #tpu.memory_space<vmem>>, vector<1x512xf32>
    %238 = arith.mulf %236, %237 : vector<1x512xf32>
    %239 = vector.broadcast %238 : vector<1x512xf32> to vector<4x512xf32>
    %240 = arith.mulf %233, %239 : vector<4x512xf32>
    %241 = arith.truncf %240 : vector<4x512xf32> to vector<4x512xbf16>
    %c104 = arith.constant 104 : index
    %c0_190 = arith.constant 0 : index
    %242 = vector.load %arg10[%c104, %c0_190] : memref<108x512xbf16, #tpu.memory_space<vmem>>, vector<4x512xbf16>
    tpu.vector_store %arg10[%c104, %c0_190], %241 {strides = array<i32>} : memref<108x512xbf16, #tpu.memory_space<vmem>>, vector<4x512xbf16>,
    %c0_191 = arith.constant 0 : index
    %c0_192 = arith.constant 0 : index
    %243 = vector.load %arg2[%c0_191, %c0_192] : memref<8x108xbf16, #tpu.memory_space<vmem>>, vector<8x108xbf16>
    %c0_193 = arith.constant 0 : index
    %c0_194 = arith.constant 0 : index
    %244 = vector.load %arg10[%c0_193, %c0_194] : memref<108x512xbf16, #tpu.memory_space<vmem>>, vector<108x512xbf16>
    %cst_195 = arith.constant dense<0.000000e+00> : vector<8x512xf32>
    %245 = tpu.matmul %243, %244, %cst_195 {dimension_numbers = #tpu.dot_dimension_numbers<[1], [0], [0], [1], [0, 0, 1, 1], [], []>} : vector<8x108xbf16>, vector<108x512xbf16>, vector<8x512xf32> -> vector<8x512xf32>
    %c0_196 = arith.constant 0 : index
    %c0_197 = arith.constant 0 : index
    %246 = vector.load %arg5[%c0_196, %c0_197] : memref<8x6xf32, #tpu.memory_space<vmem>>, vector<8x1xf32>
    %c0_198 = arith.constant 0 : index
    %c1_199 = arith.constant 1 : index
    %247 = vector.load %arg5[%c0_198, %c1_199] : memref<8x6xf32, #tpu.memory_space<vmem>>, vector<8x1xf32>
    %cst_200 = arith.constant dense<0.000000e+00> : vector<8xf32>
    %248 = vector.multi_reduction <add>, %245, %cst_200 [1] : vector<8x512xf32> to vector<8xf32>
    %249 = vector.shape_cast %248 : vector<8xf32> to vector<8x1xf32>
    %cst_201 = arith.constant 0.000000e+00 : f32
    %250 = vector.broadcast %cst_201 : f32 to vector<8x1xf32>
    %c0_202 = arith.constant 0 : index
    %c0_203 = arith.constant 0 : index
    %251 = vector.load %arg6[%c0_202, %c0_203] : memref<8x4xf32, #tpu.memory_space<vmem>>, vector<8x1xf32>
    %252 = arith.mulf %249, %251 : vector<8x1xf32>
    %253 = vector.shape_cast %252 : vector<8x1xf32> to vector<1x8x1xf32>
    %cst_204 = arith.constant dense<0.000000e+00> : vector<1xf32>
    %254 = vector.multi_reduction <add>, %253, %cst_204 [1, 2] : vector<1x8x1xf32> to vector<1xf32>
    %255 = vector.shape_cast %254 : vector<1xf32> to vector<1x1x1xf32>
    %256 = vector.extract %255[0, 0, 0] : f32 from vector<1x1x1xf32>
    %cst_205 = arith.constant 9.765625E-4 : f32
    %257 = arith.mulf %256, %cst_205 : f32
    %258 = vector.broadcast %257 : f32 to vector<8x1xf32>
    %259 = arith.mulf %251, %258 : vector<8x1xf32>
    %260 = arith.addf %250, %259 : vector<8x1xf32>
    %c0_206 = arith.constant 0 : index
    %c1_207 = arith.constant 1 : index
    %261 = vector.load %arg6[%c0_206, %c1_207] : memref<8x4xf32, #tpu.memory_space<vmem>>, vector<8x1xf32>
    %262 = arith.mulf %249, %261 : vector<8x1xf32>
    %263 = vector.shape_cast %262 : vector<8x1xf32> to vector<1x8x1xf32>
    %cst_208 = arith.constant dense<0.000000e+00> : vector<1xf32>
    %264 = vector.multi_reduction <add>, %263, %cst_208 [1, 2] : vector<1x8x1xf32> to vector<1xf32>
    %265 = vector.shape_cast %264 : vector<1xf32> to vector<1x1x1xf32>
    %266 = vector.extract %265[0, 0, 0] : f32 from vector<1x1x1xf32>
    %cst_209 = arith.constant 9.765625E-4 : f32
    %267 = arith.mulf %266, %cst_209 : f32
    %268 = vector.broadcast %267 : f32 to vector<8x1xf32>
    %269 = arith.mulf %261, %268 : vector<8x1xf32>
    %270 = arith.addf %260, %269 : vector<8x1xf32>
    %c0_210 = arith.constant 0 : index
    %c2_211 = arith.constant 2 : index
    %271 = vector.load %arg6[%c0_210, %c2_211] : memref<8x4xf32, #tpu.memory_space<vmem>>, vector<8x1xf32>
    %272 = arith.mulf %249, %271 : vector<8x1xf32>
    %273 = vector.shape_cast %272 : vector<8x1xf32> to vector<1x8x1xf32>
    %cst_212 = arith.constant dense<0.000000e+00> : vector<1xf32>
    %274 = vector.multi_reduction <add>, %273, %cst_212 [1, 2] : vector<1x8x1xf32> to vector<1xf32>
    %275 = vector.shape_cast %274 : vector<1xf32> to vector<1x1x1xf32>
    %276 = vector.extract %275[0, 0, 0] : f32 from vector<1x1x1xf32>
    %cst_213 = arith.constant 9.765625E-4 : f32
    %277 = arith.mulf %276, %cst_213 : f32
    %278 = vector.broadcast %277 : f32 to vector<8x1xf32>
    %279 = arith.mulf %271, %278 : vector<8x1xf32>
    %280 = arith.addf %270, %279 : vector<8x1xf32>
    %c0_214 = arith.constant 0 : index
    %c3_215 = arith.constant 3 : index
    %281 = vector.load %arg6[%c0_214, %c3_215] : memref<8x4xf32, #tpu.memory_space<vmem>>, vector<8x1xf32>
    %282 = arith.mulf %249, %281 : vector<8x1xf32>
    %283 = vector.shape_cast %282 : vector<8x1xf32> to vector<1x8x1xf32>
    %cst_216 = arith.constant dense<0.000000e+00> : vector<1xf32>
    %284 = vector.multi_reduction <add>, %283, %cst_216 [1, 2] : vector<1x8x1xf32> to vector<1xf32>
    %285 = vector.shape_cast %284 : vector<1xf32> to vector<1x1x1xf32>
    %286 = vector.extract %285[0, 0, 0] : f32 from vector<1x1x1xf32>
    %cst_217 = arith.constant 9.765625E-4 : f32
    %287 = arith.mulf %286, %cst_217 : f32
    %288 = vector.broadcast %287 : f32 to vector<8x1xf32>
    %289 = arith.mulf %281, %288 : vector<8x1xf32>
    %290 = arith.addf %280, %289 : vector<8x1xf32>
    %291 = vector.broadcast %290 : vector<8x1xf32> to vector<8x512xf32>
    %292 = arith.subf %245, %291 : vector<8x512xf32>
    %293 = arith.mulf %292, %292 : vector<8x512xf32>
    %cst_218 = arith.constant dense<0.000000e+00> : vector<8xf32>
    %294 = vector.multi_reduction <add>, %293, %cst_218 [1] : vector<8x512xf32> to vector<8xf32>
    %295 = vector.shape_cast %294 : vector<8xf32> to vector<8x1xf32>
    %cst_219 = arith.constant 0.000000e+00 : f32
    %296 = vector.broadcast %cst_219 : f32 to vector<8x1xf32>
    %c0_220 = arith.constant 0 : index
    %c0_221 = arith.constant 0 : index
    %297 = vector.load %arg6[%c0_220, %c0_221] : memref<8x4xf32, #tpu.memory_space<vmem>>, vector<8x1xf32>
    %298 = arith.mulf %295, %297 : vector<8x1xf32>
    %299 = vector.shape_cast %298 : vector<8x1xf32> to vector<1x8x1xf32>
    %cst_222 = arith.constant dense<0.000000e+00> : vector<1xf32>
    %300 = vector.multi_reduction <add>, %299, %cst_222 [1, 2] : vector<1x8x1xf32> to vector<1xf32>
    %301 = vector.shape_cast %300 : vector<1xf32> to vector<1x1x1xf32>
    %302 = vector.extract %301[0, 0, 0] : f32 from vector<1x1x1xf32>
    %cst_223 = arith.constant 9.765625E-4 : f32
    %303 = arith.mulf %302, %cst_223 : f32
    %304 = vector.broadcast %303 : f32 to vector<8x1xf32>
    %305 = arith.mulf %297, %304 : vector<8x1xf32>
    %306 = arith.addf %296, %305 : vector<8x1xf32>
    %c0_224 = arith.constant 0 : index
    %c1_225 = arith.constant 1 : index
    %307 = vector.load %arg6[%c0_224, %c1_225] : memref<8x4xf32, #tpu.memory_space<vmem>>, vector<8x1xf32>
    %308 = arith.mulf %295, %307 : vector<8x1xf32>
    %309 = vector.shape_cast %308 : vector<8x1xf32> to vector<1x8x1xf32>
    %cst_226 = arith.constant dense<0.000000e+00> : vector<1xf32>
    %310 = vector.multi_reduction <add>, %309, %cst_226 [1, 2] : vector<1x8x1xf32> to vector<1xf32>
    %311 = vector.shape_cast %310 : vector<1xf32> to vector<1x1x1xf32>
    %312 = vector.extract %311[0, 0, 0] : f32 from vector<1x1x1xf32>
    %cst_227 = arith.constant 9.765625E-4 : f32
    %313 = arith.mulf %312, %cst_227 : f32
    %314 = vector.broadcast %313 : f32 to vector<8x1xf32>
    %315 = arith.mulf %307, %314 : vector<8x1xf32>
    %316 = arith.addf %306, %315 : vector<8x1xf32>
    %c0_228 = arith.constant 0 : index
    %c2_229 = arith.constant 2 : index
    %317 = vector.load %arg6[%c0_228, %c2_229] : memref<8x4xf32, #tpu.memory_space<vmem>>, vector<8x1xf32>
    %318 = arith.mulf %295, %317 : vector<8x1xf32>
    %319 = vector.shape_cast %318 : vector<8x1xf32> to vector<1x8x1xf32>
    %cst_230 = arith.constant dense<0.000000e+00> : vector<1xf32>
    %320 = vector.multi_reduction <add>, %319, %cst_230 [1, 2] : vector<1x8x1xf32> to vector<1xf32>
    %321 = vector.shape_cast %320 : vector<1xf32> to vector<1x1x1xf32>
    %322 = vector.extract %321[0, 0, 0] : f32 from vector<1x1x1xf32>
    %cst_231 = arith.constant 9.765625E-4 : f32
    %323 = arith.mulf %322, %cst_231 : f32
    %324 = vector.broadcast %323 : f32 to vector<8x1xf32>
    %325 = arith.mulf %317, %324 : vector<8x1xf32>
    %326 = arith.addf %316, %325 : vector<8x1xf32>
    %c0_232 = arith.constant 0 : index
    %c3_233 = arith.constant 3 : index
    %327 = vector.load %arg6[%c0_232, %c3_233] : memref<8x4xf32, #tpu.memory_space<vmem>>, vector<8x1xf32>
    %328 = arith.mulf %295, %327 : vector<8x1xf32>
    %329 = vector.shape_cast %328 : vector<8x1xf32> to vector<1x8x1xf32>
    %cst_234 = arith.constant dense<0.000000e+00> : vector<1xf32>
    %330 = vector.multi_reduction <add>, %329, %cst_234 [1, 2] : vector<1x8x1xf32> to vector<1xf32>
    %331 = vector.shape_cast %330 : vector<1xf32> to vector<1x1x1xf32>
    %332 = vector.extract %331[0, 0, 0] : f32 from vector<1x1x1xf32>
    %cst_235 = arith.constant 9.765625E-4 : f32
    %333 = arith.mulf %332, %cst_235 : f32
    %334 = vector.broadcast %333 : f32 to vector<8x1xf32>
    %335 = arith.mulf %327, %334 : vector<8x1xf32>
    %336 = arith.addf %326, %335 : vector<8x1xf32>
    %cst_236 = arith.constant 9.99999974E-6 : f32
    %337 = vector.broadcast %cst_236 : f32 to vector<8x1xf32>
    %338 = arith.addf %336, %337 : vector<8x1xf32>
    %339 = math.rsqrt %338 : vector<8x1xf32>
    %340 = vector.broadcast %339 : vector<8x1xf32> to vector<8x512xf32>
    %341 = arith.mulf %292, %340 : vector<8x512xf32>
    %342 = vector.broadcast %246 : vector<8x1xf32> to vector<8x512xf32>
    %343 = arith.mulf %341, %342 : vector<8x512xf32>
    %344 = vector.broadcast %247 : vector<8x1xf32> to vector<8x512xf32>
    %345 = arith.addf %343, %344 : vector<8x512xf32>
    %c0_237 = arith.constant 0 : index
    %c128_238 = arith.constant 128 : index
    %346 = vector.load %arg9[%c0_237, %c128_238] : memref<8x768xf32, #tpu.memory_space<vmem>>, vector<8x512xf32>
    tpu.vector_store %arg9[%c0_237, %c128_238], %345 {strides = array<i32>} : memref<8x768xf32, #tpu.memory_space<vmem>>, vector<8x512xf32>,
    %c0_239 = arith.constant 0 : index
    %c55_240 = arith.constant 55 : index
    %347 = vector.load %arg9[%c0_239, %c55_240] : memref<8x768xf32, #tpu.memory_space<vmem>>, vector<8x512xf32>
    %c0_241 = arith.constant 0 : index
    %c0_242 = arith.constant 0 : index
    %348 = vector.load %arg7[%c0_241, %c0_242] : memref<8x512xf32, #tpu.memory_space<vmem>>, vector<1x512xf32>
    %c2_243 = arith.constant 2 : index
    %c0_244 = arith.constant 0 : index
    %349 = vector.load %arg7[%c2_243, %c0_244] : memref<8x512xf32, #tpu.memory_space<vmem>>, vector<1x512xf32>
    %350 = arith.mulf %348, %349 : vector<1x512xf32>
    %c4_245 = arith.constant 4 : index
    %c0_246 = arith.constant 0 : index
    %351 = vector.load %arg7[%c4_245, %c0_246] : memref<8x512xf32, #tpu.memory_space<vmem>>, vector<1x512xf32>
    %352 = arith.mulf %350, %351 : vector<1x512xf32>
    %353 = vector.broadcast %352 : vector<1x512xf32> to vector<8x512xf32>
    %354 = arith.mulf %347, %353 : vector<8x512xf32>
    %355 = arith.truncf %354 : vector<8x512xf32> to vector<8x512xbf16>
    %c0_247 = arith.constant 0 : index
    %c0_248 = arith.constant 0 : index
    %356 = vector.load %arg11[%c0_247, %c0_248] : memref<216x512xbf16, #tpu.memory_space<vmem>>, vector<8x512xbf16>
    tpu.vector_store %arg11[%c0_247, %c0_248], %355 {strides = array<i32>} : memref<216x512xbf16, #tpu.memory_space<vmem>>, vector<8x512xbf16>,
    %c0_249 = arith.constant 0 : index
    %c56_250 = arith.constant 56 : index
    %357 = vector.load %arg9[%c0_249, %c56_250] : memref<8x768xf32, #tpu.memory_space<vmem>>, vector<8x512xf32>
    %c0_251 = arith.constant 0 : index
    %c0_252 = arith.constant 0 : index
    %358 = vector.load %arg7[%c0_251, %c0_252] : memref<8x512xf32, #tpu.memory_space<vmem>>, vector<1x512xf32>
    %c2_253 = arith.constant 2 : index
    %c0_254 = arith.constant 0 : index
    %359 = vector.load %arg7[%c2_253, %c0_254] : memref<8x512xf32, #tpu.memory_space<vmem>>, vector<1x512xf32>
    %360 = arith.mulf %358, %359 : vector<1x512xf32>
    %361 = vector.broadcast %360 : vector<1x512xf32> to vector<8x512xf32>
    %362 = arith.mulf %357, %361 : vector<8x512xf32>
    %363 = arith.truncf %362 : vector<8x512xf32> to vector<8x512xbf16>
    %c8_255 = arith.constant 8 : index
    %c0_256 = arith.constant 0 : index
    %364 = vector.load %arg11[%c8_255, %c0_256] : memref<216x512xbf16, #tpu.memory_space<vmem>>, vector<8x512xbf16>
    tpu.vector_store %arg11[%c8_255, %c0_256], %363 {strides = array<i32>} : memref<216x512xbf16, #tpu.memory_space<vmem>>, vector<8x512xbf16>,
    %c0_257 = arith.constant 0 : index
    %c57_258 = arith.constant 57 : index
    %365 = vector.load %arg9[%c0_257, %c57_258] : memref<8x768xf32, #tpu.memory_space<vmem>>, vector<8x512xf32>
    %c0_259 = arith.constant 0 : index
    %c0_260 = arith.constant 0 : index
    %366 = vector.load %arg7[%c0_259, %c0_260] : memref<8x512xf32, #tpu.memory_space<vmem>>, vector<1x512xf32>
    %c2_261 = arith.constant 2 : index
    %c0_262 = arith.constant 0 : index
    %367 = vector.load %arg7[%c2_261, %c0_262] : memref<8x512xf32, #tpu.memory_space<vmem>>, vector<1x512xf32>
    %368 = arith.mulf %366, %367 : vector<1x512xf32>
    %c5_263 = arith.constant 5 : index
    %c0_264 = arith.constant 0 : index
    %369 = vector.load %arg7[%c5_263, %c0_264] : memref<8x512xf32, #tpu.memory_space<vmem>>, vector<1x512xf32>
    %370 = arith.mulf %368, %369 : vector<1x512xf32>
    %371 = vector.broadcast %370 : vector<1x512xf32> to vector<8x512xf32>
    %372 = arith.mulf %365, %371 : vector<8x512xf32>
    %373 = arith.truncf %372 : vector<8x512xf32> to vector<8x512xbf16>
    %c16_265 = arith.constant 16 : index
    %c0_266 = arith.constant 0 : index
    %374 = vector.load %arg11[%c16_265, %c0_266] : memref<216x512xbf16, #tpu.memory_space<vmem>>, vector<8x512xbf16>
    tpu.vector_store %arg11[%c16_265, %c0_266], %373 {strides = array<i32>} : memref<216x512xbf16, #tpu.memory_space<vmem>>, vector<8x512xbf16>,
    %c0_267 = arith.constant 0 : index
    %c63_268 = arith.constant 63 : index
    %375 = vector.load %arg9[%c0_267, %c63_268] : memref<8x768xf32, #tpu.memory_space<vmem>>, vector<8x512xf32>
    %c0_269 = arith.constant 0 : index
    %c0_270 = arith.constant 0 : index
    %376 = vector.load %arg7[%c0_269, %c0_270] : memref<8x512xf32, #tpu.memory_space<vmem>>, vector<1x512xf32>
    %c4_271 = arith.constant 4 : index
    %c0_272 = arith.constant 0 : index
    %377 = vector.load %arg7[%c4_271, %c0_272] : memref<8x512xf32, #tpu.memory_space<vmem>>, vector<1x512xf32>
    %378 = arith.mulf %376, %377 : vector<1x512xf32>
    %379 = vector.broadcast %378 : vector<1x512xf32> to vector<8x512xf32>
    %380 = arith.mulf %375, %379 : vector<8x512xf32>
    %381 = arith.truncf %380 : vector<8x512xf32> to vector<8x512xbf16>
    %c24_273 = arith.constant 24 : index
    %c0_274 = arith.constant 0 : index
    %382 = vector.load %arg11[%c24_273, %c0_274] : memref<216x512xbf16, #tpu.memory_space<vmem>>, vector<8x512xbf16>
    tpu.vector_store %arg11[%c24_273, %c0_274], %381 {strides = array<i32>} : memref<216x512xbf16, #tpu.memory_space<vmem>>, vector<8x512xbf16>,
    %c0_275 = arith.constant 0 : index
    %c64_276 = arith.constant 64 : index
    %383 = vector.load %arg9[%c0_275, %c64_276] : memref<8x768xf32, #tpu.memory_space<vmem>>, vector<8x512xf32>
    %c0_277 = arith.constant 0 : index
    %c0_278 = arith.constant 0 : index
    %384 = vector.load %arg7[%c0_277, %c0_278] : memref<8x512xf32, #tpu.memory_space<vmem>>, vector<1x512xf32>
    %385 = vector.broadcast %384 : vector<1x512xf32> to vector<8x512xf32>
    %386 = arith.mulf %383, %385 : vector<8x512xf32>
    %387 = arith.truncf %386 : vector<8x512xf32> to vector<8x512xbf16>
    %c32_279 = arith.constant 32 : index
    %c0_280 = arith.constant 0 : index
    %388 = vector.load %arg11[%c32_279, %c0_280] : memref<216x512xbf16, #tpu.memory_space<vmem>>, vector<8x512xbf16>
    tpu.vector_store %arg11[%c32_279, %c0_280], %387 {strides = array<i32>} : memref<216x512xbf16, #tpu.memory_space<vmem>>, vector<8x512xbf16>,
    %c0_281 = arith.constant 0 : index
    %c65_282 = arith.constant 65 : index
    %389 = vector.load %arg9[%c0_281, %c65_282] : memref<8x768xf32, #tpu.memory_space<vmem>>, vector<8x512xf32>
    %c0_283 = arith.constant 0 : index
    %c0_284 = arith.constant 0 : index
    %390 = vector.load %arg7[%c0_283, %c0_284] : memref<8x512xf32, #tpu.memory_space<vmem>>, vector<1x512xf32>
    %c5_285 = arith.constant 5 : index
    %c0_286 = arith.constant 0 : index
    %391 = vector.load %arg7[%c5_285, %c0_286] : memref<8x512xf32, #tpu.memory_space<vmem>>, vector<1x512xf32>
    %392 = arith.mulf %390, %391 : vector<1x512xf32>
    %393 = vector.broadcast %392 : vector<1x512xf32> to vector<8x512xf32>
    %394 = arith.mulf %389, %393 : vector<8x512xf32>
    %395 = arith.truncf %394 : vector<8x512xf32> to vector<8x512xbf16>
    %c40_287 = arith.constant 40 : index
    %c0_288 = arith.constant 0 : index
    %396 = vector.load %arg11[%c40_287, %c0_288] : memref<216x512xbf16, #tpu.memory_space<vmem>>, vector<8x512xbf16>
    tpu.vector_store %arg11[%c40_287, %c0_288], %395 {strides = array<i32>} : memref<216x512xbf16, #tpu.memory_space<vmem>>, vector<8x512xbf16>,
    %c0_289 = arith.constant 0 : index
    %c71_290 = arith.constant 71 : index
    %397 = vector.load %arg9[%c0_289, %c71_290] : memref<8x768xf32, #tpu.memory_space<vmem>>, vector<8x512xf32>
    %c0_291 = arith.constant 0 : index
    %c0_292 = arith.constant 0 : index
    %398 = vector.load %arg7[%c0_291, %c0_292] : memref<8x512xf32, #tpu.memory_space<vmem>>, vector<1x512xf32>
    %c3_293 = arith.constant 3 : index
    %c0_294 = arith.constant 0 : index
    %399 = vector.load %arg7[%c3_293, %c0_294] : memref<8x512xf32, #tpu.memory_space<vmem>>, vector<1x512xf32>
    %400 = arith.mulf %398, %399 : vector<1x512xf32>
    %c4_295 = arith.constant 4 : index
    %c0_296 = arith.constant 0 : index
    %401 = vector.load %arg7[%c4_295, %c0_296] : memref<8x512xf32, #tpu.memory_space<vmem>>, vector<1x512xf32>
    %402 = arith.mulf %400, %401 : vector<1x512xf32>
    %403 = vector.broadcast %402 : vector<1x512xf32> to vector<8x512xf32>
    %404 = arith.mulf %397, %403 : vector<8x512xf32>
    %405 = arith.truncf %404 : vector<8x512xf32> to vector<8x512xbf16>
    %c48_297 = arith.constant 48 : index
    %c0_298 = arith.constant 0 : index
    %406 = vector.load %arg11[%c48_297, %c0_298] : memref<216x512xbf16, #tpu.memory_space<vmem>>, vector<8x512xbf16>
    tpu.vector_store %arg11[%c48_297, %c0_298], %405 {strides = array<i32>} : memref<216x512xbf16, #tpu.memory_space<vmem>>, vector<8x512xbf16>,
    %c0_299 = arith.constant 0 : index
    %c72_300 = arith.constant 72 : index
    %407 = vector.load %arg9[%c0_299, %c72_300] : memref<8x768xf32, #tpu.memory_space<vmem>>, vector<8x512xf32>
    %c0_301 = arith.constant 0 : index
    %c0_302 = arith.constant 0 : index
    %408 = vector.load %arg7[%c0_301, %c0_302] : memref<8x512xf32, #tpu.memory_space<vmem>>, vector<1x512xf32>
    %c3_303 = arith.constant 3 : index
    %c0_304 = arith.constant 0 : index
    %409 = vector.load %arg7[%c3_303, %c0_304] : memref<8x512xf32, #tpu.memory_space<vmem>>, vector<1x512xf32>
    %410 = arith.mulf %408, %409 : vector<1x512xf32>
    %411 = vector.broadcast %410 : vector<1x512xf32> to vector<8x512xf32>
    %412 = arith.mulf %407, %411 : vector<8x512xf32>
    %413 = arith.truncf %412 : vector<8x512xf32> to vector<8x512xbf16>
    %c56_305 = arith.constant 56 : index
    %c0_306 = arith.constant 0 : index
    %414 = vector.load %arg11[%c56_305, %c0_306] : memref<216x512xbf16, #tpu.memory_space<vmem>>, vector<8x512xbf16>
    tpu.vector_store %arg11[%c56_305, %c0_306], %413 {strides = array<i32>} : memref<216x512xbf16, #tpu.memory_space<vmem>>, vector<8x512xbf16>,
    %c0_307 = arith.constant 0 : index
    %c73_308 = arith.constant 73 : index
    %415 = vector.load %arg9[%c0_307, %c73_308] : memref<8x768xf32, #tpu.memory_space<vmem>>, vector<8x512xf32>
    %c0_309 = arith.constant 0 : index
    %c0_310 = arith.constant 0 : index
    %416 = vector.load %arg7[%c0_309, %c0_310] : memref<8x512xf32, #tpu.memory_space<vmem>>, vector<1x512xf32>
    %c3_311 = arith.constant 3 : index
    %c0_312 = arith.constant 0 : index
    %417 = vector.load %arg7[%c3_311, %c0_312] : memref<8x512xf32, #tpu.memory_space<vmem>>, vector<1x512xf32>
    %418 = arith.mulf %416, %417 : vector<1x512xf32>
    %c5_313 = arith.constant 5 : index
    %c0_314 = arith.constant 0 : index
    %419 = vector.load %arg7[%c5_313, %c0_314] : memref<8x512xf32, #tpu.memory_space<vmem>>, vector<1x512xf32>
    %420 = arith.mulf %418, %419 : vector<1x512xf32>
    %421 = vector.broadcast %420 : vector<1x512xf32> to vector<8x512xf32>
    %422 = arith.mulf %415, %421 : vector<8x512xf32>
    %423 = arith.truncf %422 : vector<8x512xf32> to vector<8x512xbf16>
    %c64_315 = arith.constant 64 : index
    %c0_316 = arith.constant 0 : index
    %424 = vector.load %arg11[%c64_315, %c0_316] : memref<216x512xbf16, #tpu.memory_space<vmem>>, vector<8x512xbf16>
    tpu.vector_store %arg11[%c64_315, %c0_316], %423 {strides = array<i32>} : memref<216x512xbf16, #tpu.memory_space<vmem>>, vector<8x512xbf16>,
    %c0_317 = arith.constant 0 : index
    %c119_318 = arith.constant 119 : index
    %425 = vector.load %arg9[%c0_317, %c119_318] : memref<8x768xf32, #tpu.memory_space<vmem>>, vector<8x512xf32>
    %c2_319 = arith.constant 2 : index
    %c0_320 = arith.constant 0 : index
    %426 = vector.load %arg7[%c2_319, %c0_320] : memref<8x512xf32, #tpu.memory_space<vmem>>, vector<1x512xf32>
    %c4_321 = arith.constant 4 : index
    %c0_322 = arith.constant 0 : index
    %427 = vector.load %arg7[%c4_321, %c0_322] : memref<8x512xf32, #tpu.memory_space<vmem>>, vector<1x512xf32>
    %428 = arith.mulf %426, %427 : vector<1x512xf32>
    %429 = vector.broadcast %428 : vector<1x512xf32> to vector<8x512xf32>
    %430 = arith.mulf %425, %429 : vector<8x512xf32>
    %431 = arith.truncf %430 : vector<8x512xf32> to vector<8x512xbf16>
    %c72_323 = arith.constant 72 : index
    %c0_324 = arith.constant 0 : index
    %432 = vector.load %arg11[%c72_323, %c0_324] : memref<216x512xbf16, #tpu.memory_space<vmem>>, vector<8x512xbf16>
    tpu.vector_store %arg11[%c72_323, %c0_324], %431 {strides = array<i32>} : memref<216x512xbf16, #tpu.memory_space<vmem>>, vector<8x512xbf16>,
    %c0_325 = arith.constant 0 : index
    %c120_326 = arith.constant 120 : index
    %433 = vector.load %arg9[%c0_325, %c120_326] : memref<8x768xf32, #tpu.memory_space<vmem>>, vector<8x512xf32>
    %c2_327 = arith.constant 2 : index
    %c0_328 = arith.constant 0 : index
    %434 = vector.load %arg7[%c2_327, %c0_328] : memref<8x512xf32, #tpu.memory_space<vmem>>, vector<1x512xf32>
    %435 = vector.broadcast %434 : vector<1x512xf32> to vector<8x512xf32>
    %436 = arith.mulf %433, %435 : vector<8x512xf32>
    %437 = arith.truncf %436 : vector<8x512xf32> to vector<8x512xbf16>
    %c80_329 = arith.constant 80 : index
    %c0_330 = arith.constant 0 : index
    %438 = vector.load %arg11[%c80_329, %c0_330] : memref<216x512xbf16, #tpu.memory_space<vmem>>, vector<8x512xbf16>
    tpu.vector_store %arg11[%c80_329, %c0_330], %437 {strides = array<i32>} : memref<216x512xbf16, #tpu.memory_space<vmem>>, vector<8x512xbf16>,
    %c0_331 = arith.constant 0 : index
    %c121_332 = arith.constant 121 : index
    %439 = vector.load %arg9[%c0_331, %c121_332] : memref<8x768xf32, #tpu.memory_space<vmem>>, vector<8x512xf32>
    %c2_333 = arith.constant 2 : index
    %c0_334 = arith.constant 0 : index
    %440 = vector.load %arg7[%c2_333, %c0_334] : memref<8x512xf32, #tpu.memory_space<vmem>>, vector<1x512xf32>
    %c5_335 = arith.constant 5 : index
    %c0_336 = arith.constant 0 : index
    %441 = vector.load %arg7[%c5_335, %c0_336] : memref<8x512xf32, #tpu.memory_space<vmem>>, vector<1x512xf32>
    %442 = arith.mulf %440, %441 : vector<1x512xf32>
    %443 = vector.broadcast %442 : vector<1x512xf32> to vector<8x512xf32>
    %444 = arith.mulf %439, %443 : vector<8x512xf32>
    %445 = arith.truncf %444 : vector<8x512xf32> to vector<8x512xbf16>
    %c88_337 = arith.constant 88 : index
    %c0_338 = arith.constant 0 : index
    %446 = vector.load %arg11[%c88_337, %c0_338] : memref<216x512xbf16, #tpu.memory_space<vmem>>, vector<8x512xbf16>
    tpu.vector_store %arg11[%c88_337, %c0_338], %445 {strides = array<i32>} : memref<216x512xbf16, #tpu.memory_space<vmem>>, vector<8x512xbf16>,
    %c0_339 = arith.constant 0 : index
    %c127_340 = arith.constant 127 : index
    %447 = vector.load %arg9[%c0_339, %c127_340] : memref<8x768xf32, #tpu.memory_space<vmem>>, vector<8x512xf32>
    %c4_341 = arith.constant 4 : index
    %c0_342 = arith.constant 0 : index
    %448 = vector.load %arg7[%c4_341, %c0_342] : memref<8x512xf32, #tpu.memory_space<vmem>>, vector<1x512xf32>
    %449 = vector.broadcast %448 : vector<1x512xf32> to vector<8x512xf32>
    %450 = arith.mulf %447, %449 : vector<8x512xf32>
    %451 = arith.truncf %450 : vector<8x512xf32> to vector<8x512xbf16>
    %c96_343 = arith.constant 96 : index
    %c0_344 = arith.constant 0 : index
    %452 = vector.load %arg11[%c96_343, %c0_344] : memref<216x512xbf16, #tpu.memory_space<vmem>>, vector<8x512xbf16>
    tpu.vector_store %arg11[%c96_343, %c0_344], %451 {strides = array<i32>} : memref<216x512xbf16, #tpu.memory_space<vmem>>, vector<8x512xbf16>,
    %c0_345 = arith.constant 0 : index
    %c128_346 = arith.constant 128 : index
    %453 = vector.load %arg9[%c0_345, %c128_346] : memref<8x768xf32, #tpu.memory_space<vmem>>, vector<8x512xf32>
    %454 = arith.truncf %453 : vector<8x512xf32> to vector<8x512xbf16>
    %c104_347 = arith.constant 104 : index
    %c0_348 = arith.constant 0 : index
    %455 = vector.load %arg11[%c104_347, %c0_348] : memref<216x512xbf16, #tpu.memory_space<vmem>>, vector<8x512xbf16>
    tpu.vector_store %arg11[%c104_347, %c0_348], %454 {strides = array<i32>} : memref<216x512xbf16, #tpu.memory_space<vmem>>, vector<8x512xbf16>,
    %c0_349 = arith.constant 0 : index
    %c129_350 = arith.constant 129 : index
    %456 = vector.load %arg9[%c0_349, %c129_350] : memref<8x768xf32, #tpu.memory_space<vmem>>, vector<8x512xf32>
    %c5_351 = arith.constant 5 : index
    %c0_352 = arith.constant 0 : index
    %457 = vector.load %arg7[%c5_351, %c0_352] : memref<8x512xf32, #tpu.memory_space<vmem>>, vector<1x512xf32>
    %458 = vector.broadcast %457 : vector<1x512xf32> to vector<8x512xf32>
    %459 = arith.mulf %456, %458 : vector<8x512xf32>
    %460 = arith.truncf %459 : vector<8x512xf32> to vector<8x512xbf16>
    %c112 = arith.constant 112 : index
    %c0_353 = arith.constant 0 : index
    %461 = vector.load %arg11[%c112, %c0_353] : memref<216x512xbf16, #tpu.memory_space<vmem>>, vector<8x512xbf16>
    tpu.vector_store %arg11[%c112, %c0_353], %460 {strides = array<i32>} : memref<216x512xbf16, #tpu.memory_space<vmem>>, vector<8x512xbf16>,
    %c0_354 = arith.constant 0 : index
    %c135_355 = arith.constant 135 : index
    %462 = vector.load %arg9[%c0_354, %c135_355] : memref<8x768xf32, #tpu.memory_space<vmem>>, vector<8x512xf32>
    %c3_356 = arith.constant 3 : index
    %c0_357 = arith.constant 0 : index
    %463 = vector.load %arg7[%c3_356, %c0_357] : memref<8x512xf32, #tpu.memory_space<vmem>>, vector<1x512xf32>
    %c4_358 = arith.constant 4 : index
    %c0_359 = arith.constant 0 : index
    %464 = vector.load %arg7[%c4_358, %c0_359] : memref<8x512xf32, #tpu.memory_space<vmem>>, vector<1x512xf32>
    %465 = arith.mulf %463, %464 : vector<1x512xf32>
    %466 = vector.broadcast %465 : vector<1x512xf32> to vector<8x512xf32>
    %467 = arith.mulf %462, %466 : vector<8x512xf32>
    %468 = arith.truncf %467 : vector<8x512xf32> to vector<8x512xbf16>
    %c120_360 = arith.constant 120 : index
    %c0_361 = arith.constant 0 : index
    %469 = vector.load %arg11[%c120_360, %c0_361] : memref<216x512xbf16, #tpu.memory_space<vmem>>, vector<8x512xbf16>
    tpu.vector_store %arg11[%c120_360, %c0_361], %468 {strides = array<i32>} : memref<216x512xbf16, #tpu.memory_space<vmem>>, vector<8x512xbf16>,
    %c0_362 = arith.constant 0 : index
    %c136_363 = arith.constant 136 : index
    %470 = vector.load %arg9[%c0_362, %c136_363] : memref<8x768xf32, #tpu.memory_space<vmem>>, vector<8x512xf32>
    %c3_364 = arith.constant 3 : index
    %c0_365 = arith.constant 0 : index
    %471 = vector.load %arg7[%c3_364, %c0_365] : memref<8x512xf32, #tpu.memory_space<vmem>>, vector<1x512xf32>
    %472 = vector.broadcast %471 : vector<1x512xf32> to vector<8x512xf32>
    %473 = arith.mulf %470, %472 : vector<8x512xf32>
    %474 = arith.truncf %473 : vector<8x512xf32> to vector<8x512xbf16>
    %c128_366 = arith.constant 128 : index
    %c0_367 = arith.constant 0 : index
    %475 = vector.load %arg11[%c128_366, %c0_367] : memref<216x512xbf16, #tpu.memory_space<vmem>>, vector<8x512xbf16>
    tpu.vector_store %arg11[%c128_366, %c0_367], %474 {strides = array<i32>} : memref<216x512xbf16, #tpu.memory_space<vmem>>, vector<8x512xbf16>,
    %c0_368 = arith.constant 0 : index
    %c137_369 = arith.constant 137 : index
    %476 = vector.load %arg9[%c0_368, %c137_369] : memref<8x768xf32, #tpu.memory_space<vmem>>, vector<8x512xf32>
    %c3_370 = arith.constant 3 : index
    %c0_371 = arith.constant 0 : index
    %477 = vector.load %arg7[%c3_370, %c0_371] : memref<8x512xf32, #tpu.memory_space<vmem>>, vector<1x512xf32>
    %c5_372 = arith.constant 5 : index
    %c0_373 = arith.constant 0 : index
    %478 = vector.load %arg7[%c5_372, %c0_373] : memref<8x512xf32, #tpu.memory_space<vmem>>, vector<1x512xf32>
    %479 = arith.mulf %477, %478 : vector<1x512xf32>
    %480 = vector.broadcast %479 : vector<1x512xf32> to vector<8x512xf32>
    %481 = arith.mulf %476, %480 : vector<8x512xf32>
    %482 = arith.truncf %481 : vector<8x512xf32> to vector<8x512xbf16>
    %c136_374 = arith.constant 136 : index
    %c0_375 = arith.constant 0 : index
    %483 = vector.load %arg11[%c136_374, %c0_375] : memref<216x512xbf16, #tpu.memory_space<vmem>>, vector<8x512xbf16>
    tpu.vector_store %arg11[%c136_374, %c0_375], %482 {strides = array<i32>} : memref<216x512xbf16, #tpu.memory_space<vmem>>, vector<8x512xbf16>,
    %c0_376 = arith.constant 0 : index
    %c183_377 = arith.constant 183 : index
    %484 = vector.load %arg9[%c0_376, %c183_377] : memref<8x768xf32, #tpu.memory_space<vmem>>, vector<8x512xf32>
    %c1_378 = arith.constant 1 : index
    %c0_379 = arith.constant 0 : index
    %485 = vector.load %arg7[%c1_378, %c0_379] : memref<8x512xf32, #tpu.memory_space<vmem>>, vector<1x512xf32>
    %c2_380 = arith.constant 2 : index
    %c0_381 = arith.constant 0 : index
    %486 = vector.load %arg7[%c2_380, %c0_381] : memref<8x512xf32, #tpu.memory_space<vmem>>, vector<1x512xf32>
    %487 = arith.mulf %485, %486 : vector<1x512xf32>
    %c4_382 = arith.constant 4 : index
    %c0_383 = arith.constant 0 : index
    %488 = vector.load %arg7[%c4_382, %c0_383] : memref<8x512xf32, #tpu.memory_space<vmem>>, vector<1x512xf32>
    %489 = arith.mulf %487, %488 : vector<1x512xf32>
    %490 = vector.broadcast %489 : vector<1x512xf32> to vector<8x512xf32>
    %491 = arith.mulf %484, %490 : vector<8x512xf32>
    %492 = arith.truncf %491 : vector<8x512xf32> to vector<8x512xbf16>
    %c144 = arith.constant 144 : index
    %c0_384 = arith.constant 0 : index
    %493 = vector.load %arg11[%c144, %c0_384] : memref<216x512xbf16, #tpu.memory_space<vmem>>, vector<8x512xbf16>
    tpu.vector_store %arg11[%c144, %c0_384], %492 {strides = array<i32>} : memref<216x512xbf16, #tpu.memory_space<vmem>>, vector<8x512xbf16>,
    %c0_385 = arith.constant 0 : index
    %c184_386 = arith.constant 184 : index
    %494 = vector.load %arg9[%c0_385, %c184_386] : memref<8x768xf32, #tpu.memory_space<vmem>>, vector<8x512xf32>
    %c1_387 = arith.constant 1 : index
    %c0_388 = arith.constant 0 : index
    %495 = vector.load %arg7[%c1_387, %c0_388] : memref<8x512xf32, #tpu.memory_space<vmem>>, vector<1x512xf32>
    %c2_389 = arith.constant 2 : index
    %c0_390 = arith.constant 0 : index
    %496 = vector.load %arg7[%c2_389, %c0_390] : memref<8x512xf32, #tpu.memory_space<vmem>>, vector<1x512xf32>
    %497 = arith.mulf %495, %496 : vector<1x512xf32>
    %498 = vector.broadcast %497 : vector<1x512xf32> to vector<8x512xf32>
    %499 = arith.mulf %494, %498 : vector<8x512xf32>
    %500 = arith.truncf %499 : vector<8x512xf32> to vector<8x512xbf16>
    %c152 = arith.constant 152 : index
    %c0_391 = arith.constant 0 : index
    %501 = vector.load %arg11[%c152, %c0_391] : memref<216x512xbf16, #tpu.memory_space<vmem>>, vector<8x512xbf16>
    tpu.vector_store %arg11[%c152, %c0_391], %500 {strides = array<i32>} : memref<216x512xbf16, #tpu.memory_space<vmem>>, vector<8x512xbf16>,
    %c0_392 = arith.constant 0 : index
    %c185_393 = arith.constant 185 : index
    %502 = vector.load %arg9[%c0_392, %c185_393] : memref<8x768xf32, #tpu.memory_space<vmem>>, vector<8x512xf32>
    %c1_394 = arith.constant 1 : index
    %c0_395 = arith.constant 0 : index
    %503 = vector.load %arg7[%c1_394, %c0_395] : memref<8x512xf32, #tpu.memory_space<vmem>>, vector<1x512xf32>
    %c2_396 = arith.constant 2 : index
    %c0_397 = arith.constant 0 : index
    %504 = vector.load %arg7[%c2_396, %c0_397] : memref<8x512xf32, #tpu.memory_space<vmem>>, vector<1x512xf32>
    %505 = arith.mulf %503, %504 : vector<1x512xf32>
    %c5_398 = arith.constant 5 : index
    %c0_399 = arith.constant 0 : index
    %506 = vector.load %arg7[%c5_398, %c0_399] : memref<8x512xf32, #tpu.memory_space<vmem>>, vector<1x512xf32>
    %507 = arith.mulf %505, %506 : vector<1x512xf32>
    %508 = vector.broadcast %507 : vector<1x512xf32> to vector<8x512xf32>
    %509 = arith.mulf %502, %508 : vector<8x512xf32>
    %510 = arith.truncf %509 : vector<8x512xf32> to vector<8x512xbf16>
    %c160 = arith.constant 160 : index
    %c0_400 = arith.constant 0 : index
    %511 = vector.load %arg11[%c160, %c0_400] : memref<216x512xbf16, #tpu.memory_space<vmem>>, vector<8x512xbf16>
    tpu.vector_store %arg11[%c160, %c0_400], %510 {strides = array<i32>} : memref<216x512xbf16, #tpu.memory_space<vmem>>, vector<8x512xbf16>,
    %c0_401 = arith.constant 0 : index
    %c191_402 = arith.constant 191 : index
    %512 = vector.load %arg9[%c0_401, %c191_402] : memref<8x768xf32, #tpu.memory_space<vmem>>, vector<8x512xf32>
    %c1_403 = arith.constant 1 : index
    %c0_404 = arith.constant 0 : index
    %513 = vector.load %arg7[%c1_403, %c0_404] : memref<8x512xf32, #tpu.memory_space<vmem>>, vector<1x512xf32>
    %c4_405 = arith.constant 4 : index
    %c0_406 = arith.constant 0 : index
    %514 = vector.load %arg7[%c4_405, %c0_406] : memref<8x512xf32, #tpu.memory_space<vmem>>, vector<1x512xf32>
    %515 = arith.mulf %513, %514 : vector<1x512xf32>
    %516 = vector.broadcast %515 : vector<1x512xf32> to vector<8x512xf32>
    %517 = arith.mulf %512, %516 : vector<8x512xf32>
    %518 = arith.truncf %517 : vector<8x512xf32> to vector<8x512xbf16>
    %c168 = arith.constant 168 : index
    %c0_407 = arith.constant 0 : index
    %519 = vector.load %arg11[%c168, %c0_407] : memref<216x512xbf16, #tpu.memory_space<vmem>>, vector<8x512xbf16>
    tpu.vector_store %arg11[%c168, %c0_407], %518 {strides = array<i32>} : memref<216x512xbf16, #tpu.memory_space<vmem>>, vector<8x512xbf16>,
    %c0_408 = arith.constant 0 : index
    %c192_409 = arith.constant 192 : index
    %520 = vector.load %arg9[%c0_408, %c192_409] : memref<8x768xf32, #tpu.memory_space<vmem>>, vector<8x512xf32>
    %c1_410 = arith.constant 1 : index
    %c0_411 = arith.constant 0 : index
    %521 = vector.load %arg7[%c1_410, %c0_411] : memref<8x512xf32, #tpu.memory_space<vmem>>, vector<1x512xf32>
    %522 = vector.broadcast %521 : vector<1x512xf32> to vector<8x512xf32>
    %523 = arith.mulf %520, %522 : vector<8x512xf32>
    %524 = arith.truncf %523 : vector<8x512xf32> to vector<8x512xbf16>
    %c176 = arith.constant 176 : index
    %c0_412 = arith.constant 0 : index
    %525 = vector.load %arg11[%c176, %c0_412] : memref<216x512xbf16, #tpu.memory_space<vmem>>, vector<8x512xbf16>
    tpu.vector_store %arg11[%c176, %c0_412], %524 {strides = array<i32>} : memref<216x512xbf16, #tpu.memory_space<vmem>>, vector<8x512xbf16>,
    %c0_413 = arith.constant 0 : index
    %c193_414 = arith.constant 193 : index
    %526 = vector.load %arg9[%c0_413, %c193_414] : memref<8x768xf32, #tpu.memory_space<vmem>>, vector<8x512xf32>
    %c1_415 = arith.constant 1 : index
    %c0_416 = arith.constant 0 : index
    %527 = vector.load %arg7[%c1_415, %c0_416] : memref<8x512xf32, #tpu.memory_space<vmem>>, vector<1x512xf32>
    %c5_417 = arith.constant 5 : index
    %c0_418 = arith.constant 0 : index
    %528 = vector.load %arg7[%c5_417, %c0_418] : memref<8x512xf32, #tpu.memory_space<vmem>>, vector<1x512xf32>
    %529 = arith.mulf %527, %528 : vector<1x512xf32>
    %530 = vector.broadcast %529 : vector<1x512xf32> to vector<8x512xf32>
    %531 = arith.mulf %526, %530 : vector<8x512xf32>
    %532 = arith.truncf %531 : vector<8x512xf32> to vector<8x512xbf16>
    %c184_419 = arith.constant 184 : index
    %c0_420 = arith.constant 0 : index
    %533 = vector.load %arg11[%c184_419, %c0_420] : memref<216x512xbf16, #tpu.memory_space<vmem>>, vector<8x512xbf16>
    tpu.vector_store %arg11[%c184_419, %c0_420], %532 {strides = array<i32>} : memref<216x512xbf16, #tpu.memory_space<vmem>>, vector<8x512xbf16>,
    %c0_421 = arith.constant 0 : index
    %c199_422 = arith.constant 199 : index
    %534 = vector.load %arg9[%c0_421, %c199_422] : memref<8x768xf32, #tpu.memory_space<vmem>>, vector<8x512xf32>
    %c1_423 = arith.constant 1 : index
    %c0_424 = arith.constant 0 : index
    %535 = vector.load %arg7[%c1_423, %c0_424] : memref<8x512xf32, #tpu.memory_space<vmem>>, vector<1x512xf32>
    %c3_425 = arith.constant 3 : index
    %c0_426 = arith.constant 0 : index
    %536 = vector.load %arg7[%c3_425, %c0_426] : memref<8x512xf32, #tpu.memory_space<vmem>>, vector<1x512xf32>
    %537 = arith.mulf %535, %536 : vector<1x512xf32>
    %c4_427 = arith.constant 4 : index
    %c0_428 = arith.constant 0 : index
    %538 = vector.load %arg7[%c4_427, %c0_428] : memref<8x512xf32, #tpu.memory_space<vmem>>, vector<1x512xf32>
    %539 = arith.mulf %537, %538 : vector<1x512xf32>
    %540 = vector.broadcast %539 : vector<1x512xf32> to vector<8x512xf32>
    %541 = arith.mulf %534, %540 : vector<8x512xf32>
    %542 = arith.truncf %541 : vector<8x512xf32> to vector<8x512xbf16>
    %c192_429 = arith.constant 192 : index
    %c0_430 = arith.constant 0 : index
    %543 = vector.load %arg11[%c192_429, %c0_430] : memref<216x512xbf16, #tpu.memory_space<vmem>>, vector<8x512xbf16>
    tpu.vector_store %arg11[%c192_429, %c0_430], %542 {strides = array<i32>} : memref<216x512xbf16, #tpu.memory_space<vmem>>, vector<8x512xbf16>,
    %c0_431 = arith.constant 0 : index
    %c200_432 = arith.constant 200 : index
    %544 = vector.load %arg9[%c0_431, %c200_432] : memref<8x768xf32, #tpu.memory_space<vmem>>, vector<8x512xf32>
    %c1_433 = arith.constant 1 : index
    %c0_434 = arith.constant 0 : index
    %545 = vector.load %arg7[%c1_433, %c0_434] : memref<8x512xf32, #tpu.memory_space<vmem>>, vector<1x512xf32>
    %c3_435 = arith.constant 3 : index
    %c0_436 = arith.constant 0 : index
    %546 = vector.load %arg7[%c3_435, %c0_436] : memref<8x512xf32, #tpu.memory_space<vmem>>, vector<1x512xf32>
    %547 = arith.mulf %545, %546 : vector<1x512xf32>
    %548 = vector.broadcast %547 : vector<1x512xf32> to vector<8x512xf32>
    %549 = arith.mulf %544, %548 : vector<8x512xf32>
    %550 = arith.truncf %549 : vector<8x512xf32> to vector<8x512xbf16>
    %c200_437 = arith.constant 200 : index
    %c0_438 = arith.constant 0 : index
    %551 = vector.load %arg11[%c200_437, %c0_438] : memref<216x512xbf16, #tpu.memory_space<vmem>>, vector<8x512xbf16>
    tpu.vector_store %arg11[%c200_437, %c0_438], %550 {strides = array<i32>} : memref<216x512xbf16, #tpu.memory_space<vmem>>, vector<8x512xbf16>,
    %c0_439 = arith.constant 0 : index
    %c201_440 = arith.constant 201 : index
    %552 = vector.load %arg9[%c0_439, %c201_440] : memref<8x768xf32, #tpu.memory_space<vmem>>, vector<8x512xf32>
    %c1_441 = arith.constant 1 : index
    %c0_442 = arith.constant 0 : index
    %553 = vector.load %arg7[%c1_441, %c0_442] : memref<8x512xf32, #tpu.memory_space<vmem>>, vector<1x512xf32>
    %c3_443 = arith.constant 3 : index
    %c0_444 = arith.constant 0 : index
    %554 = vector.load %arg7[%c3_443, %c0_444] : memref<8x512xf32, #tpu.memory_space<vmem>>, vector<1x512xf32>
    %555 = arith.mulf %553, %554 : vector<1x512xf32>
    %c5_445 = arith.constant 5 : index
    %c0_446 = arith.constant 0 : index
    %556 = vector.load %arg7[%c5_445, %c0_446] : memref<8x512xf32, #tpu.memory_space<vmem>>, vector<1x512xf32>
    %557 = arith.mulf %555, %556 : vector<1x512xf32>
    %558 = vector.broadcast %557 : vector<1x512xf32> to vector<8x512xf32>
    %559 = arith.mulf %552, %558 : vector<8x512xf32>
    %560 = arith.truncf %559 : vector<8x512xf32> to vector<8x512xbf16>
    %c208 = arith.constant 208 : index
    %c0_447 = arith.constant 0 : index
    %561 = vector.load %arg11[%c208, %c0_447] : memref<216x512xbf16, #tpu.memory_space<vmem>>, vector<8x512xbf16>
    tpu.vector_store %arg11[%c208, %c0_447], %560 {strides = array<i32>} : memref<216x512xbf16, #tpu.memory_space<vmem>>, vector<8x512xbf16>,
    %c0_448 = arith.constant 0 : index
    %c0_449 = arith.constant 0 : index
    %562 = vector.load %arg3[%c0_448, %c0_449] : memref<8x216xbf16, #tpu.memory_space<vmem>>, vector<8x216xbf16>
    %c0_450 = arith.constant 0 : index
    %c0_451 = arith.constant 0 : index
    %563 = vector.load %arg11[%c0_450, %c0_451] : memref<216x512xbf16, #tpu.memory_space<vmem>>, vector<216x512xbf16>
    %cst_452 = arith.constant dense<0.000000e+00> : vector<8x512xf32>
    %564 = tpu.matmul %562, %563, %cst_452 {dimension_numbers = #tpu.dot_dimension_numbers<[1], [0], [0], [1], [0, 0, 1, 1], [], []>} : vector<8x216xbf16>, vector<216x512xbf16>, vector<8x512xf32> -> vector<8x512xf32>
    %c0_453 = arith.constant 0 : index
    %c2_454 = arith.constant 2 : index
    %565 = vector.load %arg5[%c0_453, %c2_454] : memref<8x6xf32, #tpu.memory_space<vmem>>, vector<8x1xf32>
    %c0_455 = arith.constant 0 : index
    %c3_456 = arith.constant 3 : index
    %566 = vector.load %arg5[%c0_455, %c3_456] : memref<8x6xf32, #tpu.memory_space<vmem>>, vector<8x1xf32>
    %cst_457 = arith.constant dense<0.000000e+00> : vector<8xf32>
    %567 = vector.multi_reduction <add>, %564, %cst_457 [1] : vector<8x512xf32> to vector<8xf32>
    %568 = vector.shape_cast %567 : vector<8xf32> to vector<8x1xf32>
    %cst_458 = arith.constant 0.000000e+00 : f32
    %569 = vector.broadcast %cst_458 : f32 to vector<8x1xf32>
    %c0_459 = arith.constant 0 : index
    %c0_460 = arith.constant 0 : index
    %570 = vector.load %arg6[%c0_459, %c0_460] : memref<8x4xf32, #tpu.memory_space<vmem>>, vector<8x1xf32>
    %571 = arith.mulf %568, %570 : vector<8x1xf32>
    %572 = vector.shape_cast %571 : vector<8x1xf32> to vector<1x8x1xf32>
    %cst_461 = arith.constant dense<0.000000e+00> : vector<1xf32>
    %573 = vector.multi_reduction <add>, %572, %cst_461 [1, 2] : vector<1x8x1xf32> to vector<1xf32>
    %574 = vector.shape_cast %573 : vector<1xf32> to vector<1x1x1xf32>
    %575 = vector.extract %574[0, 0, 0] : f32 from vector<1x1x1xf32>
    %cst_462 = arith.constant 9.765625E-4 : f32
    %576 = arith.mulf %575, %cst_462 : f32
    %577 = vector.broadcast %576 : f32 to vector<8x1xf32>
    %578 = arith.mulf %570, %577 : vector<8x1xf32>
    %579 = arith.addf %569, %578 : vector<8x1xf32>
    %c0_463 = arith.constant 0 : index
    %c1_464 = arith.constant 1 : index
    %580 = vector.load %arg6[%c0_463, %c1_464] : memref<8x4xf32, #tpu.memory_space<vmem>>, vector<8x1xf32>
    %581 = arith.mulf %568, %580 : vector<8x1xf32>
    %582 = vector.shape_cast %581 : vector<8x1xf32> to vector<1x8x1xf32>
    %cst_465 = arith.constant dense<0.000000e+00> : vector<1xf32>
    %583 = vector.multi_reduction <add>, %582, %cst_465 [1, 2] : vector<1x8x1xf32> to vector<1xf32>
    %584 = vector.shape_cast %583 : vector<1xf32> to vector<1x1x1xf32>
    %585 = vector.extract %584[0, 0, 0] : f32 from vector<1x1x1xf32>
    %cst_466 = arith.constant 9.765625E-4 : f32
    %586 = arith.mulf %585, %cst_466 : f32
    %587 = vector.broadcast %586 : f32 to vector<8x1xf32>
    %588 = arith.mulf %580, %587 : vector<8x1xf32>
    %589 = arith.addf %579, %588 : vector<8x1xf32>
    %c0_467 = arith.constant 0 : index
    %c2_468 = arith.constant 2 : index
    %590 = vector.load %arg6[%c0_467, %c2_468] : memref<8x4xf32, #tpu.memory_space<vmem>>, vector<8x1xf32>
    %591 = arith.mulf %568, %590 : vector<8x1xf32>
    %592 = vector.shape_cast %591 : vector<8x1xf32> to vector<1x8x1xf32>
    %cst_469 = arith.constant dense<0.000000e+00> : vector<1xf32>
    %593 = vector.multi_reduction <add>, %592, %cst_469 [1, 2] : vector<1x8x1xf32> to vector<1xf32>
    %594 = vector.shape_cast %593 : vector<1xf32> to vector<1x1x1xf32>
    %595 = vector.extract %594[0, 0, 0] : f32 from vector<1x1x1xf32>
    %cst_470 = arith.constant 9.765625E-4 : f32
    %596 = arith.mulf %595, %cst_470 : f32
    %597 = vector.broadcast %596 : f32 to vector<8x1xf32>
    %598 = arith.mulf %590, %597 : vector<8x1xf32>
    %599 = arith.addf %589, %598 : vector<8x1xf32>
    %c0_471 = arith.constant 0 : index
    %c3_472 = arith.constant 3 : index
    %600 = vector.load %arg6[%c0_471, %c3_472] : memref<8x4xf32, #tpu.memory_space<vmem>>, vector<8x1xf32>
    %601 = arith.mulf %568, %600 : vector<8x1xf32>
    %602 = vector.shape_cast %601 : vector<8x1xf32> to vector<1x8x1xf32>
    %cst_473 = arith.constant dense<0.000000e+00> : vector<1xf32>
    %603 = vector.multi_reduction <add>, %602, %cst_473 [1, 2] : vector<1x8x1xf32> to vector<1xf32>
    %604 = vector.shape_cast %603 : vector<1xf32> to vector<1x1x1xf32>
    %605 = vector.extract %604[0, 0, 0] : f32 from vector<1x1x1xf32>
    %cst_474 = arith.constant 9.765625E-4 : f32
    %606 = arith.mulf %605, %cst_474 : f32
    %607 = vector.broadcast %606 : f32 to vector<8x1xf32>
    %608 = arith.mulf %600, %607 : vector<8x1xf32>
    %609 = arith.addf %599, %608 : vector<8x1xf32>
    %610 = vector.broadcast %609 : vector<8x1xf32> to vector<8x512xf32>
    %611 = arith.subf %564, %610 : vector<8x512xf32>
    %612 = arith.mulf %611, %611 : vector<8x512xf32>
    %cst_475 = arith.constant dense<0.000000e+00> : vector<8xf32>
    %613 = vector.multi_reduction <add>, %612, %cst_475 [1] : vector<8x512xf32> to vector<8xf32>
    %614 = vector.shape_cast %613 : vector<8xf32> to vector<8x1xf32>
    %cst_476 = arith.constant 0.000000e+00 : f32
    %615 = vector.broadcast %cst_476 : f32 to vector<8x1xf32>
    %c0_477 = arith.constant 0 : index
    %c0_478 = arith.constant 0 : index
    %616 = vector.load %arg6[%c0_477, %c0_478] : memref<8x4xf32, #tpu.memory_space<vmem>>, vector<8x1xf32>
    %617 = arith.mulf %614, %616 : vector<8x1xf32>
    %618 = vector.shape_cast %617 : vector<8x1xf32> to vector<1x8x1xf32>
    %cst_479 = arith.constant dense<0.000000e+00> : vector<1xf32>
    %619 = vector.multi_reduction <add>, %618, %cst_479 [1, 2] : vector<1x8x1xf32> to vector<1xf32>
    %620 = vector.shape_cast %619 : vector<1xf32> to vector<1x1x1xf32>
    %621 = vector.extract %620[0, 0, 0] : f32 from vector<1x1x1xf32>
    %cst_480 = arith.constant 9.765625E-4 : f32
    %622 = arith.mulf %621, %cst_480 : f32
    %623 = vector.broadcast %622 : f32 to vector<8x1xf32>
    %624 = arith.mulf %616, %623 : vector<8x1xf32>
    %625 = arith.addf %615, %624 : vector<8x1xf32>
    %c0_481 = arith.constant 0 : index
    %c1_482 = arith.constant 1 : index
    %626 = vector.load %arg6[%c0_481, %c1_482] : memref<8x4xf32, #tpu.memory_space<vmem>>, vector<8x1xf32>
    %627 = arith.mulf %614, %626 : vector<8x1xf32>
    %628 = vector.shape_cast %627 : vector<8x1xf32> to vector<1x8x1xf32>
    %cst_483 = arith.constant dense<0.000000e+00> : vector<1xf32>
    %629 = vector.multi_reduction <add>, %628, %cst_483 [1, 2] : vector<1x8x1xf32> to vector<1xf32>
    %630 = vector.shape_cast %629 : vector<1xf32> to vector<1x1x1xf32>
    %631 = vector.extract %630[0, 0, 0] : f32 from vector<1x1x1xf32>
    %cst_484 = arith.constant 9.765625E-4 : f32
    %632 = arith.mulf %631, %cst_484 : f32
    %633 = vector.broadcast %632 : f32 to vector<8x1xf32>
    %634 = arith.mulf %626, %633 : vector<8x1xf32>
    %635 = arith.addf %625, %634 : vector<8x1xf32>
    %c0_485 = arith.constant 0 : index
    %c2_486 = arith.constant 2 : index
    %636 = vector.load %arg6[%c0_485, %c2_486] : memref<8x4xf32, #tpu.memory_space<vmem>>, vector<8x1xf32>
    %637 = arith.mulf %614, %636 : vector<8x1xf32>
    %638 = vector.shape_cast %637 : vector<8x1xf32> to vector<1x8x1xf32>
    %cst_487 = arith.constant dense<0.000000e+00> : vector<1xf32>
    %639 = vector.multi_reduction <add>, %638, %cst_487 [1, 2] : vector<1x8x1xf32> to vector<1xf32>
    %640 = vector.shape_cast %639 : vector<1xf32> to vector<1x1x1xf32>
    %641 = vector.extract %640[0, 0, 0] : f32 from vector<1x1x1xf32>
    %cst_488 = arith.constant 9.765625E-4 : f32
    %642 = arith.mulf %641, %cst_488 : f32
    %643 = vector.broadcast %642 : f32 to vector<8x1xf32>
    %644 = arith.mulf %636, %643 : vector<8x1xf32>
    %645 = arith.addf %635, %644 : vector<8x1xf32>
    %c0_489 = arith.constant 0 : index
    %c3_490 = arith.constant 3 : index
    %646 = vector.load %arg6[%c0_489, %c3_490] : memref<8x4xf32, #tpu.memory_space<vmem>>, vector<8x1xf32>
    %647 = arith.mulf %614, %646 : vector<8x1xf32>
    %648 = vector.shape_cast %647 : vector<8x1xf32> to vector<1x8x1xf32>
    %cst_491 = arith.constant dense<0.000000e+00> : vector<1xf32>
    %649 = vector.multi_reduction <add>, %648, %cst_491 [1, 2] : vector<1x8x1xf32> to vector<1xf32>
    %650 = vector.shape_cast %649 : vector<1xf32> to vector<1x1x1xf32>
    %651 = vector.extract %650[0, 0, 0] : f32 from vector<1x1x1xf32>
    %cst_492 = arith.constant 9.765625E-4 : f32
    %652 = arith.mulf %651, %cst_492 : f32
    %653 = vector.broadcast %652 : f32 to vector<8x1xf32>
    %654 = arith.mulf %646, %653 : vector<8x1xf32>
    %655 = arith.addf %645, %654 : vector<8x1xf32>
    %cst_493 = arith.constant 9.99999974E-6 : f32
    %656 = vector.broadcast %cst_493 : f32 to vector<8x1xf32>
    %657 = arith.addf %655, %656 : vector<8x1xf32>
    %658 = math.rsqrt %657 : vector<8x1xf32>
    %659 = vector.broadcast %658 : vector<8x1xf32> to vector<8x512xf32>
    %660 = arith.mulf %611, %659 : vector<8x512xf32>
    %661 = vector.broadcast %565 : vector<8x1xf32> to vector<8x512xf32>
    %662 = arith.mulf %660, %661 : vector<8x512xf32>
    %663 = vector.broadcast %566 : vector<8x1xf32> to vector<8x512xf32>
    %664 = arith.addf %662, %663 : vector<8x512xf32>
    %cst_494 = arith.constant 0.000000e+00 : f32
    %665 = vector.broadcast %cst_494 : f32 to vector<8x512xf32>
    %666 = arith.maximumf %664, %665 : vector<8x512xf32>
    %c0_495 = arith.constant 0 : index
    %c128_496 = arith.constant 128 : index
    %667 = vector.load %arg9[%c0_495, %c128_496] : memref<8x768xf32, #tpu.memory_space<vmem>>, vector<8x512xf32>
    tpu.vector_store %arg9[%c0_495, %c128_496], %666 {strides = array<i32>} : memref<8x768xf32, #tpu.memory_space<vmem>>, vector<8x512xf32>,
    %c0_497 = arith.constant 0 : index
    %c55_498 = arith.constant 55 : index
    %668 = vector.load %arg9[%c0_497, %c55_498] : memref<8x768xf32, #tpu.memory_space<vmem>>, vector<8x512xf32>
    %c0_499 = arith.constant 0 : index
    %c0_500 = arith.constant 0 : index
    %669 = vector.load %arg7[%c0_499, %c0_500] : memref<8x512xf32, #tpu.memory_space<vmem>>, vector<1x512xf32>
    %c2_501 = arith.constant 2 : index
    %c0_502 = arith.constant 0 : index
    %670 = vector.load %arg7[%c2_501, %c0_502] : memref<8x512xf32, #tpu.memory_space<vmem>>, vector<1x512xf32>
    %671 = arith.mulf %669, %670 : vector<1x512xf32>
    %c4_503 = arith.constant 4 : index
    %c0_504 = arith.constant 0 : index
    %672 = vector.load %arg7[%c4_503, %c0_504] : memref<8x512xf32, #tpu.memory_space<vmem>>, vector<1x512xf32>
    %673 = arith.mulf %671, %672 : vector<1x512xf32>
    %674 = vector.broadcast %673 : vector<1x512xf32> to vector<8x512xf32>
    %675 = arith.mulf %668, %674 : vector<8x512xf32>
    %676 = arith.truncf %675 : vector<8x512xf32> to vector<8x512xbf16>
    %c0_505 = arith.constant 0 : index
    %c0_506 = arith.constant 0 : index
    %677 = vector.load %arg11[%c0_505, %c0_506] : memref<216x512xbf16, #tpu.memory_space<vmem>>, vector<8x512xbf16>
    tpu.vector_store %arg11[%c0_505, %c0_506], %676 {strides = array<i32>} : memref<216x512xbf16, #tpu.memory_space<vmem>>, vector<8x512xbf16>,
    %c0_507 = arith.constant 0 : index
    %c56_508 = arith.constant 56 : index
    %678 = vector.load %arg9[%c0_507, %c56_508] : memref<8x768xf32, #tpu.memory_space<vmem>>, vector<8x512xf32>
    %c0_509 = arith.constant 0 : index
    %c0_510 = arith.constant 0 : index
    %679 = vector.load %arg7[%c0_509, %c0_510] : memref<8x512xf32, #tpu.memory_space<vmem>>, vector<1x512xf32>
    %c2_511 = arith.constant 2 : index
    %c0_512 = arith.constant 0 : index
    %680 = vector.load %arg7[%c2_511, %c0_512] : memref<8x512xf32, #tpu.memory_space<vmem>>, vector<1x512xf32>
    %681 = arith.mulf %679, %680 : vector<1x512xf32>
    %682 = vector.broadcast %681 : vector<1x512xf32> to vector<8x512xf32>
    %683 = arith.mulf %678, %682 : vector<8x512xf32>
    %684 = arith.truncf %683 : vector<8x512xf32> to vector<8x512xbf16>
    %c8_513 = arith.constant 8 : index
    %c0_514 = arith.constant 0 : index
    %685 = vector.load %arg11[%c8_513, %c0_514] : memref<216x512xbf16, #tpu.memory_space<vmem>>, vector<8x512xbf16>
    tpu.vector_store %arg11[%c8_513, %c0_514], %684 {strides = array<i32>} : memref<216x512xbf16, #tpu.memory_space<vmem>>, vector<8x512xbf16>,
    %c0_515 = arith.constant 0 : index
    %c57_516 = arith.constant 57 : index
    %686 = vector.load %arg9[%c0_515, %c57_516] : memref<8x768xf32, #tpu.memory_space<vmem>>, vector<8x512xf32>
    %c0_517 = arith.constant 0 : index
    %c0_518 = arith.constant 0 : index
    %687 = vector.load %arg7[%c0_517, %c0_518] : memref<8x512xf32, #tpu.memory_space<vmem>>, vector<1x512xf32>
    %c2_519 = arith.constant 2 : index
    %c0_520 = arith.constant 0 : index
    %688 = vector.load %arg7[%c2_519, %c0_520] : memref<8x512xf32, #tpu.memory_space<vmem>>, vector<1x512xf32>
    %689 = arith.mulf %687, %688 : vector<1x512xf32>
    %c5_521 = arith.constant 5 : index
    %c0_522 = arith.constant 0 : index
    %690 = vector.load %arg7[%c5_521, %c0_522] : memref<8x512xf32, #tpu.memory_space<vmem>>, vector<1x512xf32>
    %691 = arith.mulf %689, %690 : vector<1x512xf32>
    %692 = vector.broadcast %691 : vector<1x512xf32> to vector<8x512xf32>
    %693 = arith.mulf %686, %692 : vector<8x512xf32>
    %694 = arith.truncf %693 : vector<8x512xf32> to vector<8x512xbf16>
    %c16_523 = arith.constant 16 : index
    %c0_524 = arith.constant 0 : index
    %695 = vector.load %arg11[%c16_523, %c0_524] : memref<216x512xbf16, #tpu.memory_space<vmem>>, vector<8x512xbf16>
    tpu.vector_store %arg11[%c16_523, %c0_524], %694 {strides = array<i32>} : memref<216x512xbf16, #tpu.memory_space<vmem>>, vector<8x512xbf16>,
    %c0_525 = arith.constant 0 : index
    %c63_526 = arith.constant 63 : index
    %696 = vector.load %arg9[%c0_525, %c63_526] : memref<8x768xf32, #tpu.memory_space<vmem>>, vector<8x512xf32>
    %c0_527 = arith.constant 0 : index
    %c0_528 = arith.constant 0 : index
    %697 = vector.load %arg7[%c0_527, %c0_528] : memref<8x512xf32, #tpu.memory_space<vmem>>, vector<1x512xf32>
    %c4_529 = arith.constant 4 : index
    %c0_530 = arith.constant 0 : index
    %698 = vector.load %arg7[%c4_529, %c0_530] : memref<8x512xf32, #tpu.memory_space<vmem>>, vector<1x512xf32>
    %699 = arith.mulf %697, %698 : vector<1x512xf32>
    %700 = vector.broadcast %699 : vector<1x512xf32> to vector<8x512xf32>
    %701 = arith.mulf %696, %700 : vector<8x512xf32>
    %702 = arith.truncf %701 : vector<8x512xf32> to vector<8x512xbf16>
    %c24_531 = arith.constant 24 : index
    %c0_532 = arith.constant 0 : index
    %703 = vector.load %arg11[%c24_531, %c0_532] : memref<216x512xbf16, #tpu.memory_space<vmem>>, vector<8x512xbf16>
    tpu.vector_store %arg11[%c24_531, %c0_532], %702 {strides = array<i32>} : memref<216x512xbf16, #tpu.memory_space<vmem>>, vector<8x512xbf16>,
    %c0_533 = arith.constant 0 : index
    %c64_534 = arith.constant 64 : index
    %704 = vector.load %arg9[%c0_533, %c64_534] : memref<8x768xf32, #tpu.memory_space<vmem>>, vector<8x512xf32>
    %c0_535 = arith.constant 0 : index
    %c0_536 = arith.constant 0 : index
    %705 = vector.load %arg7[%c0_535, %c0_536] : memref<8x512xf32, #tpu.memory_space<vmem>>, vector<1x512xf32>
    %706 = vector.broadcast %705 : vector<1x512xf32> to vector<8x512xf32>
    %707 = arith.mulf %704, %706 : vector<8x512xf32>
    %708 = arith.truncf %707 : vector<8x512xf32> to vector<8x512xbf16>
    %c32_537 = arith.constant 32 : index
    %c0_538 = arith.constant 0 : index
    %709 = vector.load %arg11[%c32_537, %c0_538] : memref<216x512xbf16, #tpu.memory_space<vmem>>, vector<8x512xbf16>
    tpu.vector_store %arg11[%c32_537, %c0_538], %708 {strides = array<i32>} : memref<216x512xbf16, #tpu.memory_space<vmem>>, vector<8x512xbf16>,
    %c0_539 = arith.constant 0 : index
    %c65_540 = arith.constant 65 : index
    %710 = vector.load %arg9[%c0_539, %c65_540] : memref<8x768xf32, #tpu.memory_space<vmem>>, vector<8x512xf32>
    %c0_541 = arith.constant 0 : index
    %c0_542 = arith.constant 0 : index
    %711 = vector.load %arg7[%c0_541, %c0_542] : memref<8x512xf32, #tpu.memory_space<vmem>>, vector<1x512xf32>
    %c5_543 = arith.constant 5 : index
    %c0_544 = arith.constant 0 : index
    %712 = vector.load %arg7[%c5_543, %c0_544] : memref<8x512xf32, #tpu.memory_space<vmem>>, vector<1x512xf32>
    %713 = arith.mulf %711, %712 : vector<1x512xf32>
    %714 = vector.broadcast %713 : vector<1x512xf32> to vector<8x512xf32>
    %715 = arith.mulf %710, %714 : vector<8x512xf32>
    %716 = arith.truncf %715 : vector<8x512xf32> to vector<8x512xbf16>
    %c40_545 = arith.constant 40 : index
    %c0_546 = arith.constant 0 : index
    %717 = vector.load %arg11[%c40_545, %c0_546] : memref<216x512xbf16, #tpu.memory_space<vmem>>, vector<8x512xbf16>
    tpu.vector_store %arg11[%c40_545, %c0_546], %716 {strides = array<i32>} : memref<216x512xbf16, #tpu.memory_space<vmem>>, vector<8x512xbf16>,
    %c0_547 = arith.constant 0 : index
    %c71_548 = arith.constant 71 : index
    %718 = vector.load %arg9[%c0_547, %c71_548] : memref<8x768xf32, #tpu.memory_space<vmem>>, vector<8x512xf32>
    %c0_549 = arith.constant 0 : index
    %c0_550 = arith.constant 0 : index
    %719 = vector.load %arg7[%c0_549, %c0_550] : memref<8x512xf32, #tpu.memory_space<vmem>>, vector<1x512xf32>
    %c3_551 = arith.constant 3 : index
    %c0_552 = arith.constant 0 : index
    %720 = vector.load %arg7[%c3_551, %c0_552] : memref<8x512xf32, #tpu.memory_space<vmem>>, vector<1x512xf32>
    %721 = arith.mulf %719, %720 : vector<1x512xf32>
    %c4_553 = arith.constant 4 : index
    %c0_554 = arith.constant 0 : index
    %722 = vector.load %arg7[%c4_553, %c0_554] : memref<8x512xf32, #tpu.memory_space<vmem>>, vector<1x512xf32>
    %723 = arith.mulf %721, %722 : vector<1x512xf32>
    %724 = vector.broadcast %723 : vector<1x512xf32> to vector<8x512xf32>
    %725 = arith.mulf %718, %724 : vector<8x512xf32>
    %726 = arith.truncf %725 : vector<8x512xf32> to vector<8x512xbf16>
    %c48_555 = arith.constant 48 : index
    %c0_556 = arith.constant 0 : index
    %727 = vector.load %arg11[%c48_555, %c0_556] : memref<216x512xbf16, #tpu.memory_space<vmem>>, vector<8x512xbf16>
    tpu.vector_store %arg11[%c48_555, %c0_556], %726 {strides = array<i32>} : memref<216x512xbf16, #tpu.memory_space<vmem>>, vector<8x512xbf16>,
    %c0_557 = arith.constant 0 : index
    %c72_558 = arith.constant 72 : index
    %728 = vector.load %arg9[%c0_557, %c72_558] : memref<8x768xf32, #tpu.memory_space<vmem>>, vector<8x512xf32>
    %c0_559 = arith.constant 0 : index
    %c0_560 = arith.constant 0 : index
    %729 = vector.load %arg7[%c0_559, %c0_560] : memref<8x512xf32, #tpu.memory_space<vmem>>, vector<1x512xf32>
    %c3_561 = arith.constant 3 : index
    %c0_562 = arith.constant 0 : index
    %730 = vector.load %arg7[%c3_561, %c0_562] : memref<8x512xf32, #tpu.memory_space<vmem>>, vector<1x512xf32>
    %731 = arith.mulf %729, %730 : vector<1x512xf32>
    %732 = vector.broadcast %731 : vector<1x512xf32> to vector<8x512xf32>
    %733 = arith.mulf %728, %732 : vector<8x512xf32>
    %734 = arith.truncf %733 : vector<8x512xf32> to vector<8x512xbf16>
    %c56_563 = arith.constant 56 : index
    %c0_564 = arith.constant 0 : index
    %735 = vector.load %arg11[%c56_563, %c0_564] : memref<216x512xbf16, #tpu.memory_space<vmem>>, vector<8x512xbf16>
    tpu.vector_store %arg11[%c56_563, %c0_564], %734 {strides = array<i32>} : memref<216x512xbf16, #tpu.memory_space<vmem>>, vector<8x512xbf16>,
    %c0_565 = arith.constant 0 : index
    %c73_566 = arith.constant 73 : index
    %736 = vector.load %arg9[%c0_565, %c73_566] : memref<8x768xf32, #tpu.memory_space<vmem>>, vector<8x512xf32>
    %c0_567 = arith.constant 0 : index
    %c0_568 = arith.constant 0 : index
    %737 = vector.load %arg7[%c0_567, %c0_568] : memref<8x512xf32, #tpu.memory_space<vmem>>, vector<1x512xf32>
    %c3_569 = arith.constant 3 : index
    %c0_570 = arith.constant 0 : index
    %738 = vector.load %arg7[%c3_569, %c0_570] : memref<8x512xf32, #tpu.memory_space<vmem>>, vector<1x512xf32>
    %739 = arith.mulf %737, %738 : vector<1x512xf32>
    %c5_571 = arith.constant 5 : index
    %c0_572 = arith.constant 0 : index
    %740 = vector.load %arg7[%c5_571, %c0_572] : memref<8x512xf32, #tpu.memory_space<vmem>>, vector<1x512xf32>
    %741 = arith.mulf %739, %740 : vector<1x512xf32>
    %742 = vector.broadcast %741 : vector<1x512xf32> to vector<8x512xf32>
    %743 = arith.mulf %736, %742 : vector<8x512xf32>
    %744 = arith.truncf %743 : vector<8x512xf32> to vector<8x512xbf16>
    %c64_573 = arith.constant 64 : index
    %c0_574 = arith.constant 0 : index
    %745 = vector.load %arg11[%c64_573, %c0_574] : memref<216x512xbf16, #tpu.memory_space<vmem>>, vector<8x512xbf16>
    tpu.vector_store %arg11[%c64_573, %c0_574], %744 {strides = array<i32>} : memref<216x512xbf16, #tpu.memory_space<vmem>>, vector<8x512xbf16>,
    %c0_575 = arith.constant 0 : index
    %c119_576 = arith.constant 119 : index
    %746 = vector.load %arg9[%c0_575, %c119_576] : memref<8x768xf32, #tpu.memory_space<vmem>>, vector<8x512xf32>
    %c2_577 = arith.constant 2 : index
    %c0_578 = arith.constant 0 : index
    %747 = vector.load %arg7[%c2_577, %c0_578] : memref<8x512xf32, #tpu.memory_space<vmem>>, vector<1x512xf32>
    %c4_579 = arith.constant 4 : index
    %c0_580 = arith.constant 0 : index
    %748 = vector.load %arg7[%c4_579, %c0_580] : memref<8x512xf32, #tpu.memory_space<vmem>>, vector<1x512xf32>
    %749 = arith.mulf %747, %748 : vector<1x512xf32>
    %750 = vector.broadcast %749 : vector<1x512xf32> to vector<8x512xf32>
    %751 = arith.mulf %746, %750 : vector<8x512xf32>
    %752 = arith.truncf %751 : vector<8x512xf32> to vector<8x512xbf16>
    %c72_581 = arith.constant 72 : index
    %c0_582 = arith.constant 0 : index
    %753 = vector.load %arg11[%c72_581, %c0_582] : memref<216x512xbf16, #tpu.memory_space<vmem>>, vector<8x512xbf16>
    tpu.vector_store %arg11[%c72_581, %c0_582], %752 {strides = array<i32>} : memref<216x512xbf16, #tpu.memory_space<vmem>>, vector<8x512xbf16>,
    %c0_583 = arith.constant 0 : index
    %c120_584 = arith.constant 120 : index
    %754 = vector.load %arg9[%c0_583, %c120_584] : memref<8x768xf32, #tpu.memory_space<vmem>>, vector<8x512xf32>
    %c2_585 = arith.constant 2 : index
    %c0_586 = arith.constant 0 : index
    %755 = vector.load %arg7[%c2_585, %c0_586] : memref<8x512xf32, #tpu.memory_space<vmem>>, vector<1x512xf32>
    %756 = vector.broadcast %755 : vector<1x512xf32> to vector<8x512xf32>
    %757 = arith.mulf %754, %756 : vector<8x512xf32>
    %758 = arith.truncf %757 : vector<8x512xf32> to vector<8x512xbf16>
    %c80_587 = arith.constant 80 : index
    %c0_588 = arith.constant 0 : index
    %759 = vector.load %arg11[%c80_587, %c0_588] : memref<216x512xbf16, #tpu.memory_space<vmem>>, vector<8x512xbf16>
    tpu.vector_store %arg11[%c80_587, %c0_588], %758 {strides = array<i32>} : memref<216x512xbf16, #tpu.memory_space<vmem>>, vector<8x512xbf16>,
    %c0_589 = arith.constant 0 : index
    %c121_590 = arith.constant 121 : index
    %760 = vector.load %arg9[%c0_589, %c121_590] : memref<8x768xf32, #tpu.memory_space<vmem>>, vector<8x512xf32>
    %c2_591 = arith.constant 2 : index
    %c0_592 = arith.constant 0 : index
    %761 = vector.load %arg7[%c2_591, %c0_592] : memref<8x512xf32, #tpu.memory_space<vmem>>, vector<1x512xf32>
    %c5_593 = arith.constant 5 : index
    %c0_594 = arith.constant 0 : index
    %762 = vector.load %arg7[%c5_593, %c0_594] : memref<8x512xf32, #tpu.memory_space<vmem>>, vector<1x512xf32>
    %763 = arith.mulf %761, %762 : vector<1x512xf32>
    %764 = vector.broadcast %763 : vector<1x512xf32> to vector<8x512xf32>
    %765 = arith.mulf %760, %764 : vector<8x512xf32>
    %766 = arith.truncf %765 : vector<8x512xf32> to vector<8x512xbf16>
    %c88_595 = arith.constant 88 : index
    %c0_596 = arith.constant 0 : index
    %767 = vector.load %arg11[%c88_595, %c0_596] : memref<216x512xbf16, #tpu.memory_space<vmem>>, vector<8x512xbf16>
    tpu.vector_store %arg11[%c88_595, %c0_596], %766 {strides = array<i32>} : memref<216x512xbf16, #tpu.memory_space<vmem>>, vector<8x512xbf16>,
    %c0_597 = arith.constant 0 : index
    %c127_598 = arith.constant 127 : index
    %768 = vector.load %arg9[%c0_597, %c127_598] : memref<8x768xf32, #tpu.memory_space<vmem>>, vector<8x512xf32>
    %c4_599 = arith.constant 4 : index
    %c0_600 = arith.constant 0 : index
    %769 = vector.load %arg7[%c4_599, %c0_600] : memref<8x512xf32, #tpu.memory_space<vmem>>, vector<1x512xf32>
    %770 = vector.broadcast %769 : vector<1x512xf32> to vector<8x512xf32>
    %771 = arith.mulf %768, %770 : vector<8x512xf32>
    %772 = arith.truncf %771 : vector<8x512xf32> to vector<8x512xbf16>
    %c96_601 = arith.constant 96 : index
    %c0_602 = arith.constant 0 : index
    %773 = vector.load %arg11[%c96_601, %c0_602] : memref<216x512xbf16, #tpu.memory_space<vmem>>, vector<8x512xbf16>
    tpu.vector_store %arg11[%c96_601, %c0_602], %772 {strides = array<i32>} : memref<216x512xbf16, #tpu.memory_space<vmem>>, vector<8x512xbf16>,
    %c0_603 = arith.constant 0 : index
    %c128_604 = arith.constant 128 : index
    %774 = vector.load %arg9[%c0_603, %c128_604] : memref<8x768xf32, #tpu.memory_space<vmem>>, vector<8x512xf32>
    %775 = arith.truncf %774 : vector<8x512xf32> to vector<8x512xbf16>
    %c104_605 = arith.constant 104 : index
    %c0_606 = arith.constant 0 : index
    %776 = vector.load %arg11[%c104_605, %c0_606] : memref<216x512xbf16, #tpu.memory_space<vmem>>, vector<8x512xbf16>
    tpu.vector_store %arg11[%c104_605, %c0_606], %775 {strides = array<i32>} : memref<216x512xbf16, #tpu.memory_space<vmem>>, vector<8x512xbf16>,
    %c0_607 = arith.constant 0 : index
    %c129_608 = arith.constant 129 : index
    %777 = vector.load %arg9[%c0_607, %c129_608] : memref<8x768xf32, #tpu.memory_space<vmem>>, vector<8x512xf32>
    %c5_609 = arith.constant 5 : index
    %c0_610 = arith.constant 0 : index
    %778 = vector.load %arg7[%c5_609, %c0_610] : memref<8x512xf32, #tpu.memory_space<vmem>>, vector<1x512xf32>
    %779 = vector.broadcast %778 : vector<1x512xf32> to vector<8x512xf32>
    %780 = arith.mulf %777, %779 : vector<8x512xf32>
    %781 = arith.truncf %780 : vector<8x512xf32> to vector<8x512xbf16>
    %c112_611 = arith.constant 112 : index
    %c0_612 = arith.constant 0 : index
    %782 = vector.load %arg11[%c112_611, %c0_612] : memref<216x512xbf16, #tpu.memory_space<vmem>>, vector<8x512xbf16>
    tpu.vector_store %arg11[%c112_611, %c0_612], %781 {strides = array<i32>} : memref<216x512xbf16, #tpu.memory_space<vmem>>, vector<8x512xbf16>,
    %c0_613 = arith.constant 0 : index
    %c135_614 = arith.constant 135 : index
    %783 = vector.load %arg9[%c0_613, %c135_614] : memref<8x768xf32, #tpu.memory_space<vmem>>, vector<8x512xf32>
    %c3_615 = arith.constant 3 : index
    %c0_616 = arith.constant 0 : index
    %784 = vector.load %arg7[%c3_615, %c0_616] : memref<8x512xf32, #tpu.memory_space<vmem>>, vector<1x512xf32>
    %c4_617 = arith.constant 4 : index
    %c0_618 = arith.constant 0 : index
    %785 = vector.load %arg7[%c4_617, %c0_618] : memref<8x512xf32, #tpu.memory_space<vmem>>, vector<1x512xf32>
    %786 = arith.mulf %784, %785 : vector<1x512xf32>
    %787 = vector.broadcast %786 : vector<1x512xf32> to vector<8x512xf32>
    %788 = arith.mulf %783, %787 : vector<8x512xf32>
    %789 = arith.truncf %788 : vector<8x512xf32> to vector<8x512xbf16>
    %c120_619 = arith.constant 120 : index
    %c0_620 = arith.constant 0 : index
    %790 = vector.load %arg11[%c120_619, %c0_620] : memref<216x512xbf16, #tpu.memory_space<vmem>>, vector<8x512xbf16>
    tpu.vector_store %arg11[%c120_619, %c0_620], %789 {strides = array<i32>} : memref<216x512xbf16, #tpu.memory_space<vmem>>, vector<8x512xbf16>,
    %c0_621 = arith.constant 0 : index
    %c136_622 = arith.constant 136 : index
    %791 = vector.load %arg9[%c0_621, %c136_622] : memref<8x768xf32, #tpu.memory_space<vmem>>, vector<8x512xf32>
    %c3_623 = arith.constant 3 : index
    %c0_624 = arith.constant 0 : index
    %792 = vector.load %arg7[%c3_623, %c0_624] : memref<8x512xf32, #tpu.memory_space<vmem>>, vector<1x512xf32>
    %793 = vector.broadcast %792 : vector<1x512xf32> to vector<8x512xf32>
    %794 = arith.mulf %791, %793 : vector<8x512xf32>
    %795 = arith.truncf %794 : vector<8x512xf32> to vector<8x512xbf16>
    %c128_625 = arith.constant 128 : index
    %c0_626 = arith.constant 0 : index
    %796 = vector.load %arg11[%c128_625, %c0_626] : memref<216x512xbf16, #tpu.memory_space<vmem>>, vector<8x512xbf16>
    tpu.vector_store %arg11[%c128_625, %c0_626], %795 {strides = array<i32>} : memref<216x512xbf16, #tpu.memory_space<vmem>>, vector<8x512xbf16>,
    %c0_627 = arith.constant 0 : index
    %c137_628 = arith.constant 137 : index
    %797 = vector.load %arg9[%c0_627, %c137_628] : memref<8x768xf32, #tpu.memory_space<vmem>>, vector<8x512xf32>
    %c3_629 = arith.constant 3 : index
    %c0_630 = arith.constant 0 : index
    %798 = vector.load %arg7[%c3_629, %c0_630] : memref<8x512xf32, #tpu.memory_space<vmem>>, vector<1x512xf32>
    %c5_631 = arith.constant 5 : index
    %c0_632 = arith.constant 0 : index
    %799 = vector.load %arg7[%c5_631, %c0_632] : memref<8x512xf32, #tpu.memory_space<vmem>>, vector<1x512xf32>
    %800 = arith.mulf %798, %799 : vector<1x512xf32>
    %801 = vector.broadcast %800 : vector<1x512xf32> to vector<8x512xf32>
    %802 = arith.mulf %797, %801 : vector<8x512xf32>
    %803 = arith.truncf %802 : vector<8x512xf32> to vector<8x512xbf16>
    %c136_633 = arith.constant 136 : index
    %c0_634 = arith.constant 0 : index
    %804 = vector.load %arg11[%c136_633, %c0_634] : memref<216x512xbf16, #tpu.memory_space<vmem>>, vector<8x512xbf16>
    tpu.vector_store %arg11[%c136_633, %c0_634], %803 {strides = array<i32>} : memref<216x512xbf16, #tpu.memory_space<vmem>>, vector<8x512xbf16>,
    %c0_635 = arith.constant 0 : index
    %c183_636 = arith.constant 183 : index
    %805 = vector.load %arg9[%c0_635, %c183_636] : memref<8x768xf32, #tpu.memory_space<vmem>>, vector<8x512xf32>
    %c1_637 = arith.constant 1 : index
    %c0_638 = arith.constant 0 : index
    %806 = vector.load %arg7[%c1_637, %c0_638] : memref<8x512xf32, #tpu.memory_space<vmem>>, vector<1x512xf32>
    %c2_639 = arith.constant 2 : index
    %c0_640 = arith.constant 0 : index
    %807 = vector.load %arg7[%c2_639, %c0_640] : memref<8x512xf32, #tpu.memory_space<vmem>>, vector<1x512xf32>
    %808 = arith.mulf %806, %807 : vector<1x512xf32>
    %c4_641 = arith.constant 4 : index
    %c0_642 = arith.constant 0 : index
    %809 = vector.load %arg7[%c4_641, %c0_642] : memref<8x512xf32, #tpu.memory_space<vmem>>, vector<1x512xf32>
    %810 = arith.mulf %808, %809 : vector<1x512xf32>
    %811 = vector.broadcast %810 : vector<1x512xf32> to vector<8x512xf32>
    %812 = arith.mulf %805, %811 : vector<8x512xf32>
    %813 = arith.truncf %812 : vector<8x512xf32> to vector<8x512xbf16>
    %c144_643 = arith.constant 144 : index
    %c0_644 = arith.constant 0 : index
    %814 = vector.load %arg11[%c144_643, %c0_644] : memref<216x512xbf16, #tpu.memory_space<vmem>>, vector<8x512xbf16>
    tpu.vector_store %arg11[%c144_643, %c0_644], %813 {strides = array<i32>} : memref<216x512xbf16, #tpu.memory_space<vmem>>, vector<8x512xbf16>,
    %c0_645 = arith.constant 0 : index
    %c184_646 = arith.constant 184 : index
    %815 = vector.load %arg9[%c0_645, %c184_646] : memref<8x768xf32, #tpu.memory_space<vmem>>, vector<8x512xf32>
    %c1_647 = arith.constant 1 : index
    %c0_648 = arith.constant 0 : index
    %816 = vector.load %arg7[%c1_647, %c0_648] : memref<8x512xf32, #tpu.memory_space<vmem>>, vector<1x512xf32>
    %c2_649 = arith.constant 2 : index
    %c0_650 = arith.constant 0 : index
    %817 = vector.load %arg7[%c2_649, %c0_650] : memref<8x512xf32, #tpu.memory_space<vmem>>, vector<1x512xf32>
    %818 = arith.mulf %816, %817 : vector<1x512xf32>
    %819 = vector.broadcast %818 : vector<1x512xf32> to vector<8x512xf32>
    %820 = arith.mulf %815, %819 : vector<8x512xf32>
    %821 = arith.truncf %820 : vector<8x512xf32> to vector<8x512xbf16>
    %c152_651 = arith.constant 152 : index
    %c0_652 = arith.constant 0 : index
    %822 = vector.load %arg11[%c152_651, %c0_652] : memref<216x512xbf16, #tpu.memory_space<vmem>>, vector<8x512xbf16>
    tpu.vector_store %arg11[%c152_651, %c0_652], %821 {strides = array<i32>} : memref<216x512xbf16, #tpu.memory_space<vmem>>, vector<8x512xbf16>,
    %c0_653 = arith.constant 0 : index
    %c185_654 = arith.constant 185 : index
    %823 = vector.load %arg9[%c0_653, %c185_654] : memref<8x768xf32, #tpu.memory_space<vmem>>, vector<8x512xf32>
    %c1_655 = arith.constant 1 : index
    %c0_656 = arith.constant 0 : index
    %824 = vector.load %arg7[%c1_655, %c0_656] : memref<8x512xf32, #tpu.memory_space<vmem>>, vector<1x512xf32>
    %c2_657 = arith.constant 2 : index
    %c0_658 = arith.constant 0 : index
    %825 = vector.load %arg7[%c2_657, %c0_658] : memref<8x512xf32, #tpu.memory_space<vmem>>, vector<1x512xf32>
    %826 = arith.mulf %824, %825 : vector<1x512xf32>
    %c5_659 = arith.constant 5 : index
    %c0_660 = arith.constant 0 : index
    %827 = vector.load %arg7[%c5_659, %c0_660] : memref<8x512xf32, #tpu.memory_space<vmem>>, vector<1x512xf32>
    %828 = arith.mulf %826, %827 : vector<1x512xf32>
    %829 = vector.broadcast %828 : vector<1x512xf32> to vector<8x512xf32>
    %830 = arith.mulf %823, %829 : vector<8x512xf32>
    %831 = arith.truncf %830 : vector<8x512xf32> to vector<8x512xbf16>
    %c160_661 = arith.constant 160 : index
    %c0_662 = arith.constant 0 : index
    %832 = vector.load %arg11[%c160_661, %c0_662] : memref<216x512xbf16, #tpu.memory_space<vmem>>, vector<8x512xbf16>
    tpu.vector_store %arg11[%c160_661, %c0_662], %831 {strides = array<i32>} : memref<216x512xbf16, #tpu.memory_space<vmem>>, vector<8x512xbf16>,
    %c0_663 = arith.constant 0 : index
    %c191_664 = arith.constant 191 : index
    %833 = vector.load %arg9[%c0_663, %c191_664] : memref<8x768xf32, #tpu.memory_space<vmem>>, vector<8x512xf32>
    %c1_665 = arith.constant 1 : index
    %c0_666 = arith.constant 0 : index
    %834 = vector.load %arg7[%c1_665, %c0_666] : memref<8x512xf32, #tpu.memory_space<vmem>>, vector<1x512xf32>
    %c4_667 = arith.constant 4 : index
    %c0_668 = arith.constant 0 : index
    %835 = vector.load %arg7[%c4_667, %c0_668] : memref<8x512xf32, #tpu.memory_space<vmem>>, vector<1x512xf32>
    %836 = arith.mulf %834, %835 : vector<1x512xf32>
    %837 = vector.broadcast %836 : vector<1x512xf32> to vector<8x512xf32>
    %838 = arith.mulf %833, %837 : vector<8x512xf32>
    %839 = arith.truncf %838 : vector<8x512xf32> to vector<8x512xbf16>
    %c168_669 = arith.constant 168 : index
    %c0_670 = arith.constant 0 : index
    %840 = vector.load %arg11[%c168_669, %c0_670] : memref<216x512xbf16, #tpu.memory_space<vmem>>, vector<8x512xbf16>
    tpu.vector_store %arg11[%c168_669, %c0_670], %839 {strides = array<i32>} : memref<216x512xbf16, #tpu.memory_space<vmem>>, vector<8x512xbf16>,
    %c0_671 = arith.constant 0 : index
    %c192_672 = arith.constant 192 : index
    %841 = vector.load %arg9[%c0_671, %c192_672] : memref<8x768xf32, #tpu.memory_space<vmem>>, vector<8x512xf32>
    %c1_673 = arith.constant 1 : index
    %c0_674 = arith.constant 0 : index
    %842 = vector.load %arg7[%c1_673, %c0_674] : memref<8x512xf32, #tpu.memory_space<vmem>>, vector<1x512xf32>
    %843 = vector.broadcast %842 : vector<1x512xf32> to vector<8x512xf32>
    %844 = arith.mulf %841, %843 : vector<8x512xf32>
    %845 = arith.truncf %844 : vector<8x512xf32> to vector<8x512xbf16>
    %c176_675 = arith.constant 176 : index
    %c0_676 = arith.constant 0 : index
    %846 = vector.load %arg11[%c176_675, %c0_676] : memref<216x512xbf16, #tpu.memory_space<vmem>>, vector<8x512xbf16>
    tpu.vector_store %arg11[%c176_675, %c0_676], %845 {strides = array<i32>} : memref<216x512xbf16, #tpu.memory_space<vmem>>, vector<8x512xbf16>,
    %c0_677 = arith.constant 0 : index
    %c193_678 = arith.constant 193 : index
    %847 = vector.load %arg9[%c0_677, %c193_678] : memref<8x768xf32, #tpu.memory_space<vmem>>, vector<8x512xf32>
    %c1_679 = arith.constant 1 : index
    %c0_680 = arith.constant 0 : index
    %848 = vector.load %arg7[%c1_679, %c0_680] : memref<8x512xf32, #tpu.memory_space<vmem>>, vector<1x512xf32>
    %c5_681 = arith.constant 5 : index
    %c0_682 = arith.constant 0 : index
    %849 = vector.load %arg7[%c5_681, %c0_682] : memref<8x512xf32, #tpu.memory_space<vmem>>, vector<1x512xf32>
    %850 = arith.mulf %848, %849 : vector<1x512xf32>
    %851 = vector.broadcast %850 : vector<1x512xf32> to vector<8x512xf32>
    %852 = arith.mulf %847, %851 : vector<8x512xf32>
    %853 = arith.truncf %852 : vector<8x512xf32> to vector<8x512xbf16>
    %c184_683 = arith.constant 184 : index
    %c0_684 = arith.constant 0 : index
    %854 = vector.load %arg11[%c184_683, %c0_684] : memref<216x512xbf16, #tpu.memory_space<vmem>>, vector<8x512xbf16>
    tpu.vector_store %arg11[%c184_683, %c0_684], %853 {strides = array<i32>} : memref<216x512xbf16, #tpu.memory_space<vmem>>, vector<8x512xbf16>,
    %c0_685 = arith.constant 0 : index
    %c199_686 = arith.constant 199 : index
    %855 = vector.load %arg9[%c0_685, %c199_686] : memref<8x768xf32, #tpu.memory_space<vmem>>, vector<8x512xf32>
    %c1_687 = arith.constant 1 : index
    %c0_688 = arith.constant 0 : index
    %856 = vector.load %arg7[%c1_687, %c0_688] : memref<8x512xf32, #tpu.memory_space<vmem>>, vector<1x512xf32>
    %c3_689 = arith.constant 3 : index
    %c0_690 = arith.constant 0 : index
    %857 = vector.load %arg7[%c3_689, %c0_690] : memref<8x512xf32, #tpu.memory_space<vmem>>, vector<1x512xf32>
    %858 = arith.mulf %856, %857 : vector<1x512xf32>
    %c4_691 = arith.constant 4 : index
    %c0_692 = arith.constant 0 : index
    %859 = vector.load %arg7[%c4_691, %c0_692] : memref<8x512xf32, #tpu.memory_space<vmem>>, vector<1x512xf32>
    %860 = arith.mulf %858, %859 : vector<1x512xf32>
    %861 = vector.broadcast %860 : vector<1x512xf32> to vector<8x512xf32>
    %862 = arith.mulf %855, %861 : vector<8x512xf32>
    %863 = arith.truncf %862 : vector<8x512xf32> to vector<8x512xbf16>
    %c192_693 = arith.constant 192 : index
    %c0_694 = arith.constant 0 : index
    %864 = vector.load %arg11[%c192_693, %c0_694] : memref<216x512xbf16, #tpu.memory_space<vmem>>, vector<8x512xbf16>
    tpu.vector_store %arg11[%c192_693, %c0_694], %863 {strides = array<i32>} : memref<216x512xbf16, #tpu.memory_space<vmem>>, vector<8x512xbf16>,
    %c0_695 = arith.constant 0 : index
    %c200_696 = arith.constant 200 : index
    %865 = vector.load %arg9[%c0_695, %c200_696] : memref<8x768xf32, #tpu.memory_space<vmem>>, vector<8x512xf32>
    %c1_697 = arith.constant 1 : index
    %c0_698 = arith.constant 0 : index
    %866 = vector.load %arg7[%c1_697, %c0_698] : memref<8x512xf32, #tpu.memory_space<vmem>>, vector<1x512xf32>
    %c3_699 = arith.constant 3 : index
    %c0_700 = arith.constant 0 : index
    %867 = vector.load %arg7[%c3_699, %c0_700] : memref<8x512xf32, #tpu.memory_space<vmem>>, vector<1x512xf32>
    %868 = arith.mulf %866, %867 : vector<1x512xf32>
    %869 = vector.broadcast %868 : vector<1x512xf32> to vector<8x512xf32>
    %870 = arith.mulf %865, %869 : vector<8x512xf32>
    %871 = arith.truncf %870 : vector<8x512xf32> to vector<8x512xbf16>
    %c200_701 = arith.constant 200 : index
    %c0_702 = arith.constant 0 : index
    %872 = vector.load %arg11[%c200_701, %c0_702] : memref<216x512xbf16, #tpu.memory_space<vmem>>, vector<8x512xbf16>
    tpu.vector_store %arg11[%c200_701, %c0_702], %871 {strides = array<i32>} : memref<216x512xbf16, #tpu.memory_space<vmem>>, vector<8x512xbf16>,
    %c0_703 = arith.constant 0 : index
    %c201_704 = arith.constant 201 : index
    %873 = vector.load %arg9[%c0_703, %c201_704] : memref<8x768xf32, #tpu.memory_space<vmem>>, vector<8x512xf32>
    %c1_705 = arith.constant 1 : index
    %c0_706 = arith.constant 0 : index
    %874 = vector.load %arg7[%c1_705, %c0_706] : memref<8x512xf32, #tpu.memory_space<vmem>>, vector<1x512xf32>
    %c3_707 = arith.constant 3 : index
    %c0_708 = arith.constant 0 : index
    %875 = vector.load %arg7[%c3_707, %c0_708] : memref<8x512xf32, #tpu.memory_space<vmem>>, vector<1x512xf32>
    %876 = arith.mulf %874, %875 : vector<1x512xf32>
    %c5_709 = arith.constant 5 : index
    %c0_710 = arith.constant 0 : index
    %877 = vector.load %arg7[%c5_709, %c0_710] : memref<8x512xf32, #tpu.memory_space<vmem>>, vector<1x512xf32>
    %878 = arith.mulf %876, %877 : vector<1x512xf32>
    %879 = vector.broadcast %878 : vector<1x512xf32> to vector<8x512xf32>
    %880 = arith.mulf %873, %879 : vector<8x512xf32>
    %881 = arith.truncf %880 : vector<8x512xf32> to vector<8x512xbf16>
    %c208_711 = arith.constant 208 : index
    %c0_712 = arith.constant 0 : index
    %882 = vector.load %arg11[%c208_711, %c0_712] : memref<216x512xbf16, #tpu.memory_space<vmem>>, vector<8x512xbf16>
    tpu.vector_store %arg11[%c208_711, %c0_712], %881 {strides = array<i32>} : memref<216x512xbf16, #tpu.memory_space<vmem>>, vector<8x512xbf16>,
    %c0_713 = arith.constant 0 : index
    %c0_714 = arith.constant 0 : index
    %883 = vector.load %arg4[%c0_713, %c0_714] : memref<8x216xbf16, #tpu.memory_space<vmem>>, vector<8x216xbf16>
    %c0_715 = arith.constant 0 : index
    %c0_716 = arith.constant 0 : index
    %884 = vector.load %arg11[%c0_715, %c0_716] : memref<216x512xbf16, #tpu.memory_space<vmem>>, vector<216x512xbf16>
    %cst_717 = arith.constant dense<0.000000e+00> : vector<8x512xf32>
    %885 = tpu.matmul %883, %884, %cst_717 {dimension_numbers = #tpu.dot_dimension_numbers<[1], [0], [0], [1], [0, 0, 1, 1], [], []>} : vector<8x216xbf16>, vector<216x512xbf16>, vector<8x512xf32> -> vector<8x512xf32>
    %c0_718 = arith.constant 0 : index
    %c4_719 = arith.constant 4 : index
    %886 = vector.load %arg5[%c0_718, %c4_719] : memref<8x6xf32, #tpu.memory_space<vmem>>, vector<8x1xf32>
    %c0_720 = arith.constant 0 : index
    %c5_721 = arith.constant 5 : index
    %887 = vector.load %arg5[%c0_720, %c5_721] : memref<8x6xf32, #tpu.memory_space<vmem>>, vector<8x1xf32>
    %cst_722 = arith.constant dense<0.000000e+00> : vector<8xf32>
    %888 = vector.multi_reduction <add>, %885, %cst_722 [1] : vector<8x512xf32> to vector<8xf32>
    %889 = vector.shape_cast %888 : vector<8xf32> to vector<8x1xf32>
    %cst_723 = arith.constant 0.000000e+00 : f32
    %890 = vector.broadcast %cst_723 : f32 to vector<8x1xf32>
    %c0_724 = arith.constant 0 : index
    %c0_725 = arith.constant 0 : index
    %891 = vector.load %arg6[%c0_724, %c0_725] : memref<8x4xf32, #tpu.memory_space<vmem>>, vector<8x1xf32>
    %892 = arith.mulf %889, %891 : vector<8x1xf32>
    %893 = vector.shape_cast %892 : vector<8x1xf32> to vector<1x8x1xf32>
    %cst_726 = arith.constant dense<0.000000e+00> : vector<1xf32>
    %894 = vector.multi_reduction <add>, %893, %cst_726 [1, 2] : vector<1x8x1xf32> to vector<1xf32>
    %895 = vector.shape_cast %894 : vector<1xf32> to vector<1x1x1xf32>
    %896 = vector.extract %895[0, 0, 0] : f32 from vector<1x1x1xf32>
    %cst_727 = arith.constant 9.765625E-4 : f32
    %897 = arith.mulf %896, %cst_727 : f32
    %898 = vector.broadcast %897 : f32 to vector<8x1xf32>
    %899 = arith.mulf %891, %898 : vector<8x1xf32>
    %900 = arith.addf %890, %899 : vector<8x1xf32>
    %c0_728 = arith.constant 0 : index
    %c1_729 = arith.constant 1 : index
    %901 = vector.load %arg6[%c0_728, %c1_729] : memref<8x4xf32, #tpu.memory_space<vmem>>, vector<8x1xf32>
    %902 = arith.mulf %889, %901 : vector<8x1xf32>
    %903 = vector.shape_cast %902 : vector<8x1xf32> to vector<1x8x1xf32>
    %cst_730 = arith.constant dense<0.000000e+00> : vector<1xf32>
    %904 = vector.multi_reduction <add>, %903, %cst_730 [1, 2] : vector<1x8x1xf32> to vector<1xf32>
    %905 = vector.shape_cast %904 : vector<1xf32> to vector<1x1x1xf32>
    %906 = vector.extract %905[0, 0, 0] : f32 from vector<1x1x1xf32>
    %cst_731 = arith.constant 9.765625E-4 : f32
    %907 = arith.mulf %906, %cst_731 : f32
    %908 = vector.broadcast %907 : f32 to vector<8x1xf32>
    %909 = arith.mulf %901, %908 : vector<8x1xf32>
    %910 = arith.addf %900, %909 : vector<8x1xf32>
    %c0_732 = arith.constant 0 : index
    %c2_733 = arith.constant 2 : index
    %911 = vector.load %arg6[%c0_732, %c2_733] : memref<8x4xf32, #tpu.memory_space<vmem>>, vector<8x1xf32>
    %912 = arith.mulf %889, %911 : vector<8x1xf32>
    %913 = vector.shape_cast %912 : vector<8x1xf32> to vector<1x8x1xf32>
    %cst_734 = arith.constant dense<0.000000e+00> : vector<1xf32>
    %914 = vector.multi_reduction <add>, %913, %cst_734 [1, 2] : vector<1x8x1xf32> to vector<1xf32>
    %915 = vector.shape_cast %914 : vector<1xf32> to vector<1x1x1xf32>
    %916 = vector.extract %915[0, 0, 0] : f32 from vector<1x1x1xf32>
    %cst_735 = arith.constant 9.765625E-4 : f32
    %917 = arith.mulf %916, %cst_735 : f32
    %918 = vector.broadcast %917 : f32 to vector<8x1xf32>
    %919 = arith.mulf %911, %918 : vector<8x1xf32>
    %920 = arith.addf %910, %919 : vector<8x1xf32>
    %c0_736 = arith.constant 0 : index
    %c3_737 = arith.constant 3 : index
    %921 = vector.load %arg6[%c0_736, %c3_737] : memref<8x4xf32, #tpu.memory_space<vmem>>, vector<8x1xf32>
    %922 = arith.mulf %889, %921 : vector<8x1xf32>
    %923 = vector.shape_cast %922 : vector<8x1xf32> to vector<1x8x1xf32>
    %cst_738 = arith.constant dense<0.000000e+00> : vector<1xf32>
    %924 = vector.multi_reduction <add>, %923, %cst_738 [1, 2] : vector<1x8x1xf32> to vector<1xf32>
    %925 = vector.shape_cast %924 : vector<1xf32> to vector<1x1x1xf32>
    %926 = vector.extract %925[0, 0, 0] : f32 from vector<1x1x1xf32>
    %cst_739 = arith.constant 9.765625E-4 : f32
    %927 = arith.mulf %926, %cst_739 : f32
    %928 = vector.broadcast %927 : f32 to vector<8x1xf32>
    %929 = arith.mulf %921, %928 : vector<8x1xf32>
    %930 = arith.addf %920, %929 : vector<8x1xf32>
    %931 = vector.broadcast %930 : vector<8x1xf32> to vector<8x512xf32>
    %932 = arith.subf %885, %931 : vector<8x512xf32>
    %933 = arith.mulf %932, %932 : vector<8x512xf32>
    %cst_740 = arith.constant dense<0.000000e+00> : vector<8xf32>
    %934 = vector.multi_reduction <add>, %933, %cst_740 [1] : vector<8x512xf32> to vector<8xf32>
    %935 = vector.shape_cast %934 : vector<8xf32> to vector<8x1xf32>
    %cst_741 = arith.constant 0.000000e+00 : f32
    %936 = vector.broadcast %cst_741 : f32 to vector<8x1xf32>
    %c0_742 = arith.constant 0 : index
    %c0_743 = arith.constant 0 : index
    %937 = vector.load %arg6[%c0_742, %c0_743] : memref<8x4xf32, #tpu.memory_space<vmem>>, vector<8x1xf32>
    %938 = arith.mulf %935, %937 : vector<8x1xf32>
    %939 = vector.shape_cast %938 : vector<8x1xf32> to vector<1x8x1xf32>
    %cst_744 = arith.constant dense<0.000000e+00> : vector<1xf32>
    %940 = vector.multi_reduction <add>, %939, %cst_744 [1, 2] : vector<1x8x1xf32> to vector<1xf32>
    %941 = vector.shape_cast %940 : vector<1xf32> to vector<1x1x1xf32>
    %942 = vector.extract %941[0, 0, 0] : f32 from vector<1x1x1xf32>
    %cst_745 = arith.constant 9.765625E-4 : f32
    %943 = arith.mulf %942, %cst_745 : f32
    %944 = vector.broadcast %943 : f32 to vector<8x1xf32>
    %945 = arith.mulf %937, %944 : vector<8x1xf32>
    %946 = arith.addf %936, %945 : vector<8x1xf32>
    %c0_746 = arith.constant 0 : index
    %c1_747 = arith.constant 1 : index
    %947 = vector.load %arg6[%c0_746, %c1_747] : memref<8x4xf32, #tpu.memory_space<vmem>>, vector<8x1xf32>
    %948 = arith.mulf %935, %947 : vector<8x1xf32>
    %949 = vector.shape_cast %948 : vector<8x1xf32> to vector<1x8x1xf32>
    %cst_748 = arith.constant dense<0.000000e+00> : vector<1xf32>
    %950 = vector.multi_reduction <add>, %949, %cst_748 [1, 2] : vector<1x8x1xf32> to vector<1xf32>
    %951 = vector.shape_cast %950 : vector<1xf32> to vector<1x1x1xf32>
    %952 = vector.extract %951[0, 0, 0] : f32 from vector<1x1x1xf32>
    %cst_749 = arith.constant 9.765625E-4 : f32
    %953 = arith.mulf %952, %cst_749 : f32
    %954 = vector.broadcast %953 : f32 to vector<8x1xf32>
    %955 = arith.mulf %947, %954 : vector<8x1xf32>
    %956 = arith.addf %946, %955 : vector<8x1xf32>
    %c0_750 = arith.constant 0 : index
    %c2_751 = arith.constant 2 : index
    %957 = vector.load %arg6[%c0_750, %c2_751] : memref<8x4xf32, #tpu.memory_space<vmem>>, vector<8x1xf32>
    %958 = arith.mulf %935, %957 : vector<8x1xf32>
    %959 = vector.shape_cast %958 : vector<8x1xf32> to vector<1x8x1xf32>
    %cst_752 = arith.constant dense<0.000000e+00> : vector<1xf32>
    %960 = vector.multi_reduction <add>, %959, %cst_752 [1, 2] : vector<1x8x1xf32> to vector<1xf32>
    %961 = vector.shape_cast %960 : vector<1xf32> to vector<1x1x1xf32>
    %962 = vector.extract %961[0, 0, 0] : f32 from vector<1x1x1xf32>
    %cst_753 = arith.constant 9.765625E-4 : f32
    %963 = arith.mulf %962, %cst_753 : f32
    %964 = vector.broadcast %963 : f32 to vector<8x1xf32>
    %965 = arith.mulf %957, %964 : vector<8x1xf32>
    %966 = arith.addf %956, %965 : vector<8x1xf32>
    %c0_754 = arith.constant 0 : index
    %c3_755 = arith.constant 3 : index
    %967 = vector.load %arg6[%c0_754, %c3_755] : memref<8x4xf32, #tpu.memory_space<vmem>>, vector<8x1xf32>
    %968 = arith.mulf %935, %967 : vector<8x1xf32>
    %969 = vector.shape_cast %968 : vector<8x1xf32> to vector<1x8x1xf32>
    %cst_756 = arith.constant dense<0.000000e+00> : vector<1xf32>
    %970 = vector.multi_reduction <add>, %969, %cst_756 [1, 2] : vector<1x8x1xf32> to vector<1xf32>
    %971 = vector.shape_cast %970 : vector<1xf32> to vector<1x1x1xf32>
    %972 = vector.extract %971[0, 0, 0] : f32 from vector<1x1x1xf32>
    %cst_757 = arith.constant 9.765625E-4 : f32
    %973 = arith.mulf %972, %cst_757 : f32
    %974 = vector.broadcast %973 : f32 to vector<8x1xf32>
    %975 = arith.mulf %967, %974 : vector<8x1xf32>
    %976 = arith.addf %966, %975 : vector<8x1xf32>
    %cst_758 = arith.constant 9.99999974E-6 : f32
    %977 = vector.broadcast %cst_758 : f32 to vector<8x1xf32>
    %978 = arith.addf %976, %977 : vector<8x1xf32>
    %979 = math.rsqrt %978 : vector<8x1xf32>
    %980 = vector.broadcast %979 : vector<8x1xf32> to vector<8x512xf32>
    %981 = arith.mulf %932, %980 : vector<8x512xf32>
    %982 = vector.broadcast %886 : vector<8x1xf32> to vector<8x512xf32>
    %983 = arith.mulf %981, %982 : vector<8x512xf32>
    %984 = vector.broadcast %887 : vector<8x1xf32> to vector<8x512xf32>
    %985 = arith.addf %983, %984 : vector<8x512xf32>
    %986 = arith.addf %345, %985 : vector<8x512xf32>
    %cst_759 = arith.constant 0.000000e+00 : f32
    %987 = vector.broadcast %cst_759 : f32 to vector<8x512xf32>
    %988 = arith.maximumf %986, %987 : vector<8x512xf32>
    %c0_760 = arith.constant 0 : index
    %c0_761 = arith.constant 0 : index
    %c0_762 = arith.constant 0 : index
    %989 = vector.load %arg8[%c0_760, %c0_761, %c0_762] : memref<1x8x512xf32, #tpu.memory_space<vmem>>, vector<1x8x512xf32>
    %990 = vector.shape_cast %989 : vector<1x8x512xf32> to vector<8x512xf32>
    %991 = vector.shape_cast %988 : vector<8x512xf32> to vector<1x8x512xf32>
    tpu.vector_store %arg8[%c0_760, %c0_761, %c0_762], %991 {strides = array<i32>} : memref<1x8x512xf32, #tpu.memory_space<vmem>>, vector<1x8x512xf32>,
    return
  }
  func.func @transform_0(%arg0: i32) -> (i32, i32, i32) {
    %c0_i32 = arith.constant 0 : i32
    %c0_i32_0 = arith.constant 0 : i32
    %c0_i32_1 = arith.constant 0 : i32
    return %arg0, %c0_i32, %c0_i32_0 : i32, i32, i32
  }
  func.func @transform_1(%arg0: i32) -> (i32, i32) {
    %c0_i32 = arith.constant 0 : i32
    %c0_i32_0 = arith.constant 0 : i32
    %c0_i32_1 = arith.constant 0 : i32
    return %c0_i32, %c0_i32_0 : i32, i32
  }
  func.func @transform_2(%arg0: i32) -> (i32, i32) {
    %c0_i32 = arith.constant 0 : i32
    %c0_i32_0 = arith.constant 0 : i32
    %c0_i32_1 = arith.constant 0 : i32
    return %c0_i32, %c0_i32_0 : i32, i32
  }
  func.func @transform_3(%arg0: i32) -> (i32, i32) {
    %c0_i32 = arith.constant 0 : i32
    %c0_i32_0 = arith.constant 0 : i32
    %c0_i32_1 = arith.constant 0 : i32
    return %c0_i32, %c0_i32_0 : i32, i32
  }
  func.func @transform_4(%arg0: i32) -> (i32, i32) {
    %c0_i32 = arith.constant 0 : i32
    %c0_i32_0 = arith.constant 0 : i32
    %c0_i32_1 = arith.constant 0 : i32
    return %c0_i32, %c0_i32_0 : i32, i32
  }
  func.func @transform_5(%arg0: i32) -> (i32, i32) {
    %c0_i32 = arith.constant 0 : i32
    %c0_i32_0 = arith.constant 0 : i32
    %c0_i32_1 = arith.constant 0 : i32
    return %c0_i32, %c0_i32_0 : i32, i32
  }
  func.func @transform_6(%arg0: i32) -> (i32, i32) {
    %c0_i32 = arith.constant 0 : i32
    %c0_i32_0 = arith.constant 0 : i32
    %c0_i32_1 = arith.constant 0 : i32
    return %c0_i32, %c0_i32_0 : i32, i32
  }
  func.func @transform_7(%arg0: i32) -> (i32, i32, i32) {
    %c0_i32 = arith.constant 0 : i32
    %c0_i32_0 = arith.constant 0 : i32
    %c0_i32_1 = arith.constant 0 : i32
    return %arg0, %c0_i32, %c0_i32_0 : i32, i32, i32
  }
}

</mosaic_0001>

<llo_original>
// kernel: tpu_custom_call.1
$region0: #{tpu_custom_call.1}
  #allocation0 [shape = 'u32[]', space=smem, size = 0x4, offset = 0x4, fixed_abs, tag = 'smem constant byte address 0x4 - core index']
  #allocation1 [shape = 'u32[144,128]{1,0:T(1,128)}', space=vmem, size = 0x12000, scoped, tag = 'internal scratch']
  #allocation2 [shape = 'f32[8,768]{1,0:T(8,128)}', space=vmem, size = 0x6000, scoped, tag = 'scratch operand']
  #allocation3 [shape = 'bf16[108,512]{1,0:T(8,128)(2,1)}', space=vmem, size = 0x1c000, scoped, tag = 'scratch operand']
  #allocation4 [shape = 'bf16[216,512]{1,0:T(8,128)(2,1)}', space=vmem, size = 0x36000, scoped, tag = 'scratch operand']
  %s0 = inlined_call_operand.hbm [shape: f32[2,32,512], index: 0, kind: input, shape index: {}]
  %s1 = inlined_call_operand.hbm [shape: bf16[8,108], index: 1, kind: input, shape index: {}]
  %s2 = inlined_call_operand.hbm [shape: bf16[8,216], index: 2, kind: input, shape index: {}]
  %s3 = inlined_call_operand.hbm [shape: bf16[8,216], index: 3, kind: input, shape index: {}]
  %s4 = inlined_call_operand.hbm [shape: f32[8,6], index: 4, kind: input, shape index: {}]
  %s5 = inlined_call_operand.vmem [shape: f32[8,4], index: 5, kind: input, shape index: {}]
  %s6 = inlined_call_operand.vmem [shape: f32[8,512], index: 6, kind: input, shape index: {}]
  %s7 = inlined_call_operand.hbm [shape: f32[2,8,512], index: 7, kind: output, shape index: {}]
  %s8 = sld [smem:[#allocation0]]
  $region81: #{tpu_custom_call.1} parent=0
    _
  %s10 = ssub.s32 1, %s8
  %s11 = scalar_select 0, %s10, %s8
  $region1: #{tpu_custom_call.1} parent=0
    #allocation5 [shape = 'u8[131072]{0}', space=vmem, size = 0x20000, scoped, tag = 'input window, operand 0']
    #allocation6 [shape = 's32[2]{0}', space=sflag, size = 0x8, scoped, tag = 'scoped memory for tpu_custom_call.1']
    #allocation7 [shape = 's32[2]{0}', space=sflag, size = 0x8, scoped, tag = 'scoped memory for tpu_custom_call.1']
    #allocation8 [shape = 'u8[2048]{0}', space=vmem, size = 0x800, scoped, tag = 'input window, operand 1, single buffered']
    #allocation9 [shape = 's32[1]{0}', space=sflag, size = 0x4, scoped, tag = 'scoped memory for tpu_custom_call.1']
    #allocation10 [shape = 'u8[4096]{0}', space=vmem, size = 0x1000, scoped, tag = 'input window, operand 2, single buffered']
    #allocation11 [shape = 'u8[4096]{0}', space=vmem, size = 0x1000, scoped, tag = 'input window, operand 3, single buffered']
    #allocation12 [shape = 's32[1]{0}', space=sflag, size = 0x4, scoped, tag = 'scoped memory for tpu_custom_call.1']
    #allocation13 [shape = 'u8[4096]{0}', space=vmem, size = 0x1000, scoped, tag = 'input window, operand 4, single buffered']
    #allocation14 [shape = 'u8[32768]{0}', space=vmem, size = 0x8000, scoped, tag = 'output window, operand 0']
    %12 = vsyncpa [#allocation6], 0
    %s13 = scalar_lea.sflag [#allocation6], 1
    %14 = vsyncpa %s13, 0
    %15 = vsyncpa [#allocation9], 0
    %16 = vsyncpa [#allocation12], 0
    %17 = vsyncpa [#allocation7], 0
    %s18 = scalar_lea.sflag [#allocation7], 1
    %19 = vsyncpa %s18, 0
    loop: start=0, step=1, limit=4
    $region2: #{tpu_custom_call.1} parent=1 // loop_pre_header
      _
    $region3: #{tpu_custom_call.1} parent=1 // loop_header
      %s21 = sphi 0, %s25
      %p22 = scmp.ge.s32.totalorder %s21, 4
      %s31 = sphi 0, %s33
      %s34 = sphi 0, %s31
      %s35 = sphi 0, %s34
      %s51 = sphi 0, %s35
      %s55 = sphi 0, %s55
      %s57 = sphi 0, %s55
      %s58 = sphi 0, %s57
      %s72 = sphi 0, %s58
      %s76 = sphi 0, %s76
      %s78 = sphi 0, %s76
      %s79 = sphi 0, %s78
      %s93 = sphi 0, %s79
      %s97 = sphi 0, %s97
      %s99 = sphi 0, %s97
      %s100 = sphi 0, %s99
      %s114 = sphi 0, %s100
      %s118 = sphi 0, %s118
      %s120 = sphi 0, %s118
      %s121 = sphi 0, %s120
      %s135 = sphi 0, %s121
      %s139 = sphi 0, %s139
      %s141 = sphi 0, %s139
      %s142 = sphi 0, %s141
      %s156 = sphi 0, %s142
      %s160 = sphi 0, %s160
      %s162 = sphi 0, %s160
      %s163 = sphi 0, %s162
      %s177 = sphi 0, %s163
      %s183 = sphi 0, %s185
      %s186 = sphi 0, %s183
      %s187 = sphi 0, %s186
      %s203 = sphi 0, %s187
    $region4: #{tpu_custom_call.1} parent=1 // loop_header_branch
      %24 = sbr.rel (%p22) target = $region8
    $region5: #{tpu_custom_call.1} parent=1 // loop_body
      %s26 = ssub.s32 %s21, 1
      %s27 = ssub.s32 %s21, 2
      %s28 = sadd.s32 %s21, 1
      %s29 = ssub.s32 %s21, %s28
      %p30 = scmp.eq.s32.totalorder %s29, 0
      %s32 = sadd.s32 %s31, 1
      %s33 = scalar_select %p30, %s31, %s32
      %p36 = pneg %p30
      %p37 = scmp.eq.s32.totalorder %s21, 1
      %p38 = por %p36, %p37
      %p39 = scmp.ne.s32.totalorder %s31, %s34
      %p40 = scmp.eq.s32.totalorder %s21, 0
      %p41 = por %p39, %p40
      %p42 = scmp.ne.s32.totalorder %s31, %s34
      %p43 = scmp.eq.s32.totalorder %s26, 1
      %p44 = por %p42, %p43
      %p45 = scmp.ne.s32.totalorder %s34, %s35
      %p46 = scmp.eq.s32.totalorder %s26, 0
      %p47 = por %p45, %p46
      %p48 = scmp.ne.s32.totalorder %s34, %s35
      %p49 = scmp.eq.s32.totalorder %s27, 1
      %p50 = por %p48, %p49
      %p52 = scmp.ne.s32.totalorder %s35, %s51
      %p53 = scmp.eq.s32.totalorder %s27, 0
      %p54 = por %p52, %p53
      %s56 = sadd.s32 %s55, 1
      %p59 = scmp.eq.s32.totalorder %s21, 1
      %p60 = scmp.ne.s32.totalorder %s55, %s57
      %p61 = scmp.eq.s32.totalorder %s21, 0
      %p62 = por %p60, %p61
      %p63 = scmp.ne.s32.totalorder %s55, %s57
      %p64 = scmp.eq.s32.totalorder %s26, 1
      %p65 = por %p63, %p64
      %p66 = scmp.ne.s32.totalorder %s57, %s58
      %p67 = scmp.eq.s32.totalorder %s26, 0
      %p68 = por %p66, %p67
      %p69 = scmp.ne.s32.totalorder %s57, %s58
      %p70 = scmp.eq.s32.totalorder %s27, 1
      %p71 = por %p69, %p70
      %p73 = scmp.ne.s32.totalorder %s58, %s72
      %p74 = scmp.eq.s32.totalorder %s27, 0
      %p75 = por %p73, %p74
      %s77 = sadd.s32 %s76, 1
      %p80 = scmp.eq.s32.totalorder %s21, 1
      %p81 = scmp.ne.s32.totalorder %s76, %s78
      %p82 = scmp.eq.s32.totalorder %s21, 0
      %p83 = por %p81, %p82
      %p84 = scmp.ne.s32.totalorder %s76, %s78
      %p85 = scmp.eq.s32.totalorder %s26, 1
      %p86 = por %p84, %p85
      %p87 = scmp.ne.s32.totalorder %s78, %s79
      %p88 = scmp.eq.s32.totalorder %s26, 0
      %p89 = por %p87, %p88
      %p90 = scmp.ne.s32.totalorder %s78, %s79
      %p91 = scmp.eq.s32.totalorder %s27, 1
      %p92 = por %p90, %p91
      %p94 = scmp.ne.s32.totalorder %s79, %s93
      %p95 = scmp.eq.s32.totalorder %s27, 0
      %p96 = por %p94, %p95
      %s98 = sadd.s32 %s97, 1
      %p101 = scmp.eq.s32.totalorder %s21, 1
      %p102 = scmp.ne.s32.totalorder %s97, %s99
      %p103 = scmp.eq.s32.totalorder %s21, 0
      %p104 = por %p102, %p103
      %p105 = scmp.ne.s32.totalorder %s97, %s99
      %p106 = scmp.eq.s32.totalorder %s26, 1
      %p107 = por %p105, %p106
      %p108 = scmp.ne.s32.totalorder %s99, %s100
      %p109 = scmp.eq.s32.totalorder %s26, 0
      %p110 = por %p108, %p109
      %p111 = scmp.ne.s32.totalorder %s99, %s100
      %p112 = scmp.eq.s32.totalorder %s27, 1
      %p113 = por %p111, %p112
      %p115 = scmp.ne.s32.totalorder %s100, %s114
      %p116 = scmp.eq.s32.totalorder %s27, 0
      %p117 = por %p115, %p116
      %s119 = sadd.s32 %s118, 1
      %p122 = scmp.eq.s32.totalorder %s21, 1
      %p123 = scmp.ne.s32.totalorder %s118, %s120
      %p124 = scmp.eq.s32.totalorder %s21, 0
      %p125 = por %p123, %p124
      %p126 = scmp.ne.s32.totalorder %s118, %s120
      %p127 = scmp.eq.s32.totalorder %s26, 1
      %p128 = por %p126, %p127
      %p129 = scmp.ne.s32.totalorder %s120, %s121
      %p130 = scmp.eq.s32.totalorder %s26, 0
      %p131 = por %p129, %p130
      %p132 = scmp.ne.s32.totalorder %s120, %s121
      %p133 = scmp.eq.s32.totalorder %s27, 1
      %p134 = por %p132, %p133
      %p136 = scmp.ne.s32.totalorder %s121, %s135
      %p137 = scmp.eq.s32.totalorder %s27, 0
      %p138 = por %p136, %p137
      %s140 = sadd.s32 %s139, 1
      %p143 = scmp.eq.s32.totalorder %s21, 1
      %p144 = scmp.ne.s32.totalorder %s139, %s141
      %p145 = scmp.eq.s32.totalorder %s21, 0
      %p146 = por %p144, %p145
      %p147 = scmp.ne.s32.totalorder %s139, %s141
      %p148 = scmp.eq.s32.totalorder %s26, 1
      %p149 = por %p147, %p148
      %p150 = scmp.ne.s32.totalorder %s141, %s142
      %p151 = scmp.eq.s32.totalorder %s26, 0
      %p152 = por %p150, %p151
      %p153 = scmp.ne.s32.totalorder %s141, %s142
      %p154 = scmp.eq.s32.totalorder %s27, 1
      %p155 = por %p153, %p154
      %p157 = scmp.ne.s32.totalorder %s142, %s156
      %p158 = scmp.eq.s32.totalorder %s27, 0
      %p159 = por %p157, %p158
      %s161 = sadd.s32 %s160, 1
      %p164 = scmp.eq.s32.totalorder %s21, 1
      %p165 = scmp.ne.s32.totalorder %s160, %s162
      %p166 = scmp.eq.s32.totalorder %s21, 0
      %p167 = por %p165, %p166
      %p168 = scmp.ne.s32.totalorder %s160, %s162
      %p169 = scmp.eq.s32.totalorder %s26, 1
      %p170 = por %p168, %p169
      %p171 = scmp.ne.s32.totalorder %s162, %s163
      %p172 = scmp.eq.s32.totalorder %s26, 0
      %p173 = por %p171, %p172
      %p174 = scmp.ne.s32.totalorder %s162, %s163
      %p175 = scmp.eq.s32.totalorder %s27, 1
      %p176 = por %p174, %p175
      %p178 = scmp.ne.s32.totalorder %s163, %s177
      %p179 = scmp.eq.s32.totalorder %s27, 0
      %p180 = por %p178, %p179
      %s181 = ssub.s32 %s21, %s28
      %p182 = scmp.eq.s32.totalorder %s181, 0
      %s184 = sadd.s32 %s183, 1
      %s185 = scalar_select %p182, %s183, %s184
      %p188 = pneg %p182
      %p189 = scmp.eq.s32.totalorder %s21, 1
      %p190 = por %p188, %p189
      %p191 = scmp.ne.s32.totalorder %s183, %s186
      %p192 = scmp.eq.s32.totalorder %s21, 0
      %p193 = por %p191, %p192
      %p194 = scmp.ne.s32.totalorder %s183, %s186
      %p195 = scmp.eq.s32.totalorder %s26, 1
      %p196 = por %p194, %p195
      %p197 = scmp.ne.s32.totalorder %s186, %s187
      %p198 = scmp.eq.s32.totalorder %s26, 0
      %p199 = por %p197, %p198
      %p200 = scmp.ne.s32.totalorder %s186, %s187
      %p201 = scmp.eq.s32.totalorder %s27, 1
      %p202 = por %p200, %p201
      %p204 = scmp.ne.s32.totalorder %s187, %s203
      %p205 = scmp.eq.s32.totalorder %s27, 0
      %p206 = por %p204, %p205
      %p207 = scmp.le.s32.totalorder 1, %s21
      %p208 = scmp.lt.s32.totalorder %s21, 3
      %p209 = pnand %p207, %p208
      %p210 = pneg %p209
      // Predicated region
      $region9: #{tpu_custom_call.1} parent=5 // pred_check
        _
      $region10: #{tpu_custom_call.1} parent=5 // pred_check_branch
        %212 = sbr.rel (%p209) target = $region12
      $region11: #{tpu_custom_call.1} parent=5 // pred_region
        %s213 = ssub.s32 %s21, 1
        // Predicated region
        $region13: #{tpu_custom_call.1} parent=11 // pred_check
          %p214 = pneg %p68
        $region14: #{tpu_custom_call.1} parent=11 // pred_check_branch
          %216 = sbr.rel (%p214) target = $region16
        $region15: #{tpu_custom_call.1} parent=11 // pred_region
          %s218 = ssub.s32 64, 64
          %219 = vsyncadd [#allocation9], %s218
          %s221 = sshll.u32 [#allocation8], 4
          %s222 = int_to_ptr.vmem [resolvable:$true] %s221
          %224 = dma.hbm_to_vmem [thread:$0]  %s1, 64, %s222, [#allocation9]
        $region16: #{tpu_custom_call.1} parent=11 // pred_fallthru
          _
        // Predicated region
        $region17: #{tpu_custom_call.1} parent=11 // pred_check
          %p225 = pneg %p89
        $region18: #{tpu_custom_call.1} parent=11 // pred_check_branch
          %227 = sbr.rel (%p225) target = $region20
        $region19: #{tpu_custom_call.1} parent=11 // pred_region
          %s229 = ssub.s32 128, 128
          %230 = vsyncadd [#allocation9], %s229
          %s232 = sshll.u32 [#allocation10], 4
          %s233 = int_to_ptr.vmem [resolvable:$true] %s232
          %235 = dma.hbm_to_vmem [thread:$0]  %s2, 128, %s233, [#allocation9]
        $region20: #{tpu_custom_call.1} parent=11 // pred_fallthru
          _
        // Predicated region
        $region21: #{tpu_custom_call.1} parent=11 // pred_check
          %p236 = pneg %p110
        $region22: #{tpu_custom_call.1} parent=11 // pred_check_branch
          %238 = sbr.rel (%p236) target = $region24
        $region23: #{tpu_custom_call.1} parent=11 // pred_region
          %s240 = ssub.s32 128, 128
          %241 = vsyncadd [#allocation12], %s240
          %s243 = sshll.u32 [#allocation11], 4
          %s244 = int_to_ptr.vmem [resolvable:$true] %s243
          %246 = dma.hbm_to_vmem [thread:$0]  %s3, 128, %s244, [#allocation12]
        $region24: #{tpu_custom_call.1} parent=11 // pred_fallthru
          _
        // Predicated region
        $region25: #{tpu_custom_call.1} parent=11 // pred_check
          %p247 = pneg %p131
        $region26: #{tpu_custom_call.1} parent=11 // pred_check_branch
          %249 = sbr.rel (%p247) target = $region28
        $region27: #{tpu_custom_call.1} parent=11 // pred_region
          %s251 = ssub.s32 128, 128
          %252 = vsyncadd [#allocation12], %s251
          %s254 = sshll.u32 [#allocation13], 4
          %s255 = int_to_ptr.vmem [resolvable:$true] %s254
          %257 = dma.hbm_to_vmem [thread:$0]  %s4, 128, %s255, [#allocation12]
        $region28: #{tpu_custom_call.1} parent=11 // pred_fallthru
          _
        // Predicated region
        $region29: #{tpu_custom_call.1} parent=11 // pred_check
          %p258 = pneg %p152
        $region30: #{tpu_custom_call.1} parent=11 // pred_check_branch
          %260 = sbr.rel (%p258) target = $region32
        $region31: #{tpu_custom_call.1} parent=11 // pred_region
          _
        $region32: #{tpu_custom_call.1} parent=11 // pred_fallthru
          _
        // Predicated region
        $region33: #{tpu_custom_call.1} parent=11 // pred_check
          %p261 = pneg %p173
        $region34: #{tpu_custom_call.1} parent=11 // pred_check_branch
          %263 = sbr.rel (%p261) target = $region36
        $region35: #{tpu_custom_call.1} parent=11 // pred_region
          _
        $region36: #{tpu_custom_call.1} parent=11 // pred_fallthru
          _
      $region12: #{tpu_custom_call.1} parent=5 // pred_fallthru
        _
      %p264 = scmp.lt.s32.totalorder %s21, 2
      // Predicated region
      $region37: #{tpu_custom_call.1} parent=5 // pred_check
        %p265 = pneg %p264
      $region38: #{tpu_custom_call.1} parent=5 // pred_check_branch
        %267 = sbr.rel (%p265) target = $region40
      $region39: #{tpu_custom_call.1} parent=5 // pred_region
        // Predicated region
        $region41: #{tpu_custom_call.1} parent=39 // pred_check
          %p268 = pneg %p41
        $region42: #{tpu_custom_call.1} parent=39 // pred_check_branch
          %270 = sbr.rel (%p268) target = $region44
        $region43: #{tpu_custom_call.1} parent=39 // pred_region
          %s271 = sand.u32 %s31, 1
          %s272 = scalar_lea.sflag [#allocation6], %s271
          %s273 = sand.u32 %s31, 1
          %s274 = smul.addr %s273, 128
          %s275 = scalar_lea.vmem [#allocation5], %s274
          %s277 = ssub.s32 2048, 2048
          %278 = vsyncadd %s272, %s277
          %s279 = smul.addr %s21, 16
          %s280 = smul.addr %s279, 128
          %s281 = scalar_lea.hbm %s0, %s280
          %s282 = sshll.u32 %s275, 4
          %s283 = int_to_ptr.vmem [resolvable:$true] %s282
          %288 = dma.hbm_to_vmem [thread:$0]  %s281, 2048, %s283, %s272, 512, 512, 32
        $region44: #{tpu_custom_call.1} parent=39 // pred_fallthru
          _
      $region40: #{tpu_custom_call.1} parent=5 // pred_fallthru
        _
      %p289 = scmp.le.s32.totalorder 1, %s21
      %p290 = scmp.lt.s32.totalorder %s21, 3
      %p291 = pnand %p289, %p290
      %p292 = pneg %p291
      // Predicated region
      $region45: #{tpu_custom_call.1} parent=5 // pred_check
        _
      $region46: #{tpu_custom_call.1} parent=5 // pred_check_branch
        %294 = sbr.rel (%p291) target = $region48
      $region47: #{tpu_custom_call.1} parent=5 // pred_region
        %s295 = ssub.s32 %s21, 1
        %s296 = sand.u32 %s34, 1
        %s297 = scalar_lea.sflag [#allocation6], %s296
        %s298 = sand.u32 %s34, 1
        %s299 = smul.addr %s298, 128
        %s300 = scalar_lea.vmem [#allocation5], %s299
        // Predicated region
        $region49: #{tpu_custom_call.1} parent=47 // pred_check
          %p301 = pneg %p47
        $region50: #{tpu_custom_call.1} parent=47 // pred_check_branch
          %303 = sbr.rel (%p301) target = $region52
        $region51: #{tpu_custom_call.1} parent=47 // pred_region
          %304 = dma.done %s297, 2048
        $region52: #{tpu_custom_call.1} parent=47 // pred_fallthru
          _
        // Predicated region
        $region53: #{tpu_custom_call.1} parent=47 // pred_check
          %p305 = pneg %p68
        $region54: #{tpu_custom_call.1} parent=47 // pred_check_branch
          %307 = sbr.rel (%p305) target = $region56
        $region55: #{tpu_custom_call.1} parent=47 // pred_region
          %308 = dma.done [#allocation9], 64
        $region56: #{tpu_custom_call.1} parent=47 // pred_fallthru
          _
        // Predicated region
        $region57: #{tpu_custom_call.1} parent=47 // pred_check
          %p309 = pneg %p89
        $region58: #{tpu_custom_call.1} parent=47 // pred_check_branch
          %311 = sbr.rel (%p309) target = $region60
        $region59: #{tpu_custom_call.1} parent=47 // pred_region
          %312 = dma.done [#allocation9], 128
        $region60: #{tpu_custom_call.1} parent=47 // pred_fallthru
          _
        // Predicated region
        $region61: #{tpu_custom_call.1} parent=47 // pred_check
          %p313 = pneg %p110
        $region62: #{tpu_custom_call.1} parent=47 // pred_check_branch
          %315 = sbr.rel (%p313) target = $region64
        $region63: #{tpu_custom_call.1} parent=47 // pred_region
          %316 = dma.done [#allocation12], 128
        $region64: #{tpu_custom_call.1} parent=47 // pred_fallthru
          _
        // Predicated region
        $region65: #{tpu_custom_call.1} parent=47 // pred_check
          %p317 = pneg %p131
        $region66: #{tpu_custom_call.1} parent=47 // pred_check_branch
          %319 = sbr.rel (%p317) target = $region68
        $region67: #{tpu_custom_call.1} parent=47 // pred_region
          %320 = dma.done [#allocation12], 128
        $region68: #{tpu_custom_call.1} parent=47 // pred_fallthru
          _
        %s321 = sand.u32 %s34, 1
        %s322 = scalar_lea.sflag [#allocation6], %s321
        %s323 = sand.u32 %s34, 1
        %s324 = smul.addr %s323, 128
        %s325 = scalar_lea.vmem [#allocation5], %s324
        %p326 = pneg %p47
        %p327 = pneg %p44
        %p328 = pneg %p68
        %p329 = pneg %p65
        %p330 = pneg %p89
        %p331 = pneg %p86
        %p332 = pneg %p110
        %p333 = pneg %p107
        %p334 = pneg %p131
        %p335 = pneg %p128
        %p336 = pneg %p152
        %p337 = pneg %p149
        %p338 = pneg %p173
        %p339 = pneg %p170
        %p340 = pneg %p199
        %p341 = pneg %p196
        %s342 = sand.u32 %s186, 1
        %s343 = scalar_lea.sflag [#allocation7], %s342
        %s344 = sand.u32 %s186, 1
        %s345 = smul.addr %s344, 32
        %s346 = scalar_lea.vmem [#allocation14], %s345
        %348 = vst [vmem:[#allocation2] sm:$0xff] 0.0
        %349 = vst [vmem:[#allocation2 + $0x28] sm:$0xff] 0.0
        %v350 = vld [vmem:[%s300] sm:$0xf]
        %v351 = vld [vmem:[%s300 + $0x8] sm:$0xf]
        %v352 = vld [vmem:[%s300 + $0x10] sm:$0xf]
        %v353 = vld [vmem:[%s300 + $0x18] sm:$0xf]
        %v354 = vld [vmem:[%s300] sm:$0xf0]
        %v355 = vld [vmem:[%s300 + $0x8] sm:$0xf0]
        %v356 = vld [vmem:[%s300 + $0x10] sm:$0xf0]
        %v357 = vld [vmem:[%s300 + $0x18] sm:$0xf0]
        %v362 = vrot.slane %v354, 4
        %v363 = vrot.slane %v355, 4
        %v364 = vrot.slane %v356, 4
        %v365 = vrot.slane %v357, 4
        %v370 = vmax.f32 %v350, %v362
        %v371 = vmax.f32 %v351, %v363
        %v372 = vmax.f32 %v352, %v364
        %v373 = vmax.f32 %v353, %v365
        %v374 = vld [vmem:[%s300 + $0x20] sm:$0xf]
        %v375 = vld [vmem:[%s300 + $0x28] sm:$0xf]
        %v376 = vld [vmem:[%s300 + $0x30] sm:$0xf]
        %v377 = vld [vmem:[%s300 + $0x38] sm:$0xf]
        %v378 = vmax.f32 %v370, %v374
        %v379 = vmax.f32 %v371, %v375
        %v380 = vmax.f32 %v372, %v376
        %v381 = vmax.f32 %v373, %v377
        %v382 = vld [vmem:[%s300 + $0x20] sm:$0xf0]
        %v383 = vld [vmem:[%s300 + $0x28] sm:$0xf0]
        %v384 = vld [vmem:[%s300 + $0x30] sm:$0xf0]
        %v385 = vld [vmem:[%s300 + $0x38] sm:$0xf0]
        %v390 = vrot.slane %v382, 4
        %v391 = vrot.slane %v383, 4
        %v392 = vrot.slane %v384, 4
        %v393 = vrot.slane %v385, 4
        %v398 = vmax.f32 %v378, %v390
        %v399 = vmax.f32 %v379, %v391
        %v400 = vmax.f32 %v380, %v392
        %v401 = vmax.f32 %v381, %v393
        %v402 = vld [vmem:[%s300 + $0x40] sm:$0xf]
        %v403 = vld [vmem:[%s300 + $0x48] sm:$0xf]
        %v404 = vld [vmem:[%s300 + $0x50] sm:$0xf]
        %v405 = vld [vmem:[%s300 + $0x58] sm:$0xf]
        %v406 = vmax.f32 %v398, %v402
        %v407 = vmax.f32 %v399, %v403
        %v408 = vmax.f32 %v400, %v404
        %v409 = vmax.f32 %v401, %v405
        %v410 = vld [vmem:[%s300 + $0x40] sm:$0xf0]
        %v411 = vld [vmem:[%s300 + $0x48] sm:$0xf0]
        %v412 = vld [vmem:[%s300 + $0x50] sm:$0xf0]
        %v413 = vld [vmem:[%s300 + $0x58] sm:$0xf0]
        %v418 = vrot.slane %v410, 4
        %v419 = vrot.slane %v411, 4
        %v420 = vrot.slane %v412, 4
        %v421 = vrot.slane %v413, 4
        %v426 = vmax.f32 %v406, %v418
        %v427 = vmax.f32 %v407, %v419
        %v428 = vmax.f32 %v408, %v420
        %v429 = vmax.f32 %v409, %v421
        %v430 = vld [vmem:[%s300 + $0x60] sm:$0xf]
        %v431 = vld [vmem:[%s300 + $0x68] sm:$0xf]
        %v432 = vld [vmem:[%s300 + $0x70] sm:$0xf]
        %v433 = vld [vmem:[%s300 + $0x78] sm:$0xf]
        %v434 = vmax.f32 %v426, %v430
        %v435 = vmax.f32 %v427, %v431
        %v436 = vmax.f32 %v428, %v432
        %v437 = vmax.f32 %v429, %v433
        %v438 = vld [vmem:[%s300 + $0x60] sm:$0xf0]
        %v439 = vld [vmem:[%s300 + $0x68] sm:$0xf0]
        %v440 = vld [vmem:[%s300 + $0x70] sm:$0xf0]
        %v441 = vld [vmem:[%s300 + $0x78] sm:$0xf0]
        %v446 = vrot.slane %v438, 4
        %v447 = vrot.slane %v439, 4
        %v448 = vrot.slane %v440, 4
        %v449 = vrot.slane %v441, 4
        %v454 = vmax.f32 %v434, %v446
        %v455 = vmax.f32 %v435, %v447
        %v456 = vmax.f32 %v436, %v448
        %v457 = vmax.f32 %v437, %v449
        %458 = vst [vmem:[#allocation2 + $0x8] sm:$0xf] %v454
        %459 = vst [vmem:[#allocation2 + $0x10] sm:$0xf] %v455
        %460 = vst [vmem:[#allocation2 + $0x18] sm:$0xf] %v456
        %461 = vst [vmem:[#allocation2 + $0x20] sm:$0xf] %v457
        %v462 = vld [vmem:[#allocation2] sm:$0xf]
        %v463 = vld [vmem:[#allocation2 + $0x8] sm:$0xf]
        %v464 = vld [vmem:[#allocation2 + $0x10] sm:$0xf]
        %v465 = vld [vmem:[#allocation2 + $0x18] sm:$0xf]
        %v466 = vld [vmem:[#allocation2 + $0x20] sm:$0xf]
        %v467 = vld [vmem:[%s6] ss:$8 sm:$0xf]
        %s468 = scalar_lea.vmem %s6, 2
        %v469 = vld [vmem:[%s468] ss:$8 sm:$0xf]
        %v470 = vmul.f32 %v467, %v469
        %s471 = scalar_lea.vmem %s6, 4
        %v472 = vld [vmem:[%s471] ss:$8 sm:$0xf]
        %v473 = vmul.f32 %v470, %v472
        %v475 = vlaneseq
        %v476 = vshrl.u32 %v475, 7
        %v477 = vsub.s32 0, %v476
        %v478 = vrot.slane %v473, %v477
        %v479 = vlaneseq
        %v480 = vshrl.u32 %v479, 7
        %v481 = vsub.s32 1, %v480
        %v482 = vrot.slane %v473, %v481
        %v483 = vlaneseq
        %v484 = vshrl.u32 %v483, 7
        %v485 = vsub.s32 2, %v484
        %v486 = vrot.slane %v473, %v485
        %v487 = vlaneseq
        %v488 = vshrl.u32 %v487, 7
        %v489 = vsub.s32 3, %v488
        %v490 = vrot.slane %v473, %v489
        %491 = vrot.lane.b32.xlu0 %v478, 55
        %v492 = vpop.permute.xlu0 %491
        %493 = vrot.lane.b32.xlu0 %v482, 55
        %v494 = vpop.permute.xlu0 %493
        %495 = vrot.lane.b32.xlu0 %v486, 55
        %v496 = vpop.permute.xlu0 %495
        %497 = vrot.lane.b32.xlu0 %v490, 55
        %v498 = vpop.permute.xlu0 %497
        %vm499 = vcmask 449536
        %v500 = vsel %vm499, %v492, %v494
        %v501 = vsel %vm499, %v494, %v496
        %v502 = vsel %vm499, %v496, %v498
        %v508 = vmul.f32 %v462, %v492
        %v509 = vmul.f32 %v463, %v500
        %v510 = vmul.f32 %v464, %v501
        %v511 = vmul.f32 %v465, %v502
        %v512 = vmul.f32 %v466, %v498
        %v513 = vpack.c.bf16 %v508, %v508
        %v514 = vpack.c.bf16 %v509, %v509
        %v515 = vpack.c.bf16 %v510, %v510
        %v516 = vpack.c.bf16 %v511, %v511
        %v517 = vpack.c.bf16 %v512, %v512
        %v523 = vunpack.c.l.b16 %v513
        %v524 = vunpack.c.l.b16 %v514
        %v525 = vunpack.c.l.b16 %v515
        %v526 = vunpack.c.l.b16 %v516
        %v527 = vunpack.c.l.b16 %v517
        %v528 = vpack.c.b16 %v524, %v523
        %v529 = vpack.c.b16 %v526, %v525
        %v530 = vpack.c.b16 %v527, %v527
        %531 = vrot.lane.b32.xlu0 %v528, 73
        %v532 = vpop.permute.xlu0 %531
        %533 = vrot.lane.b32.xlu0 %v529, 73
        %v534 = vpop.permute.xlu0 %533
        %535 = vrot.lane.b32.xlu0 %v530, 73
        %v536 = vpop.permute.xlu0 %535
        %v537 = vrot.slane %v532, 4
        %v538 = vrot.slane %v534, 4
        %v539 = vrot.slane %v536, 4
        %vm540 = vcmask 1043456
        %v541 = vsel %vm540, %v537, %v538
        %vm542 = vcmask 596992
        %v543 = vsel %vm542, %v532, %v541
        %v544 = vsel %vm540, %v538, %v539
        %v545 = vsel %vm542, %v534, %v544
        %548 = vst [vmem:[#allocation3] sm:$0x33] %v543
        %549 = vst [vmem:[#allocation3 + $0x8] sm:$0x33] %v545
        %v550 = vld [vmem:[#allocation2] sm:$0xf]
        %v551 = vld [vmem:[#allocation2 + $0x8] sm:$0xf]
        %v552 = vld [vmem:[#allocation2 + $0x10] sm:$0xf]
        %v553 = vld [vmem:[#allocation2 + $0x18] sm:$0xf]
        %v554 = vld [vmem:[#allocation2 + $0x20] sm:$0xf]
        %v555 = vld [vmem:[%s6] ss:$8 sm:$0xf]
        %v556 = vld [vmem:[%s468] ss:$8 sm:$0xf]
        %v557 = vmul.f32 %v555, %v556
        %v559 = vlaneseq
        %v560 = vshrl.u32 %v559, 7
        %v561 = vsub.s32 0, %v560
        %v562 = vrot.slane %v557, %v561
        %v563 = vlaneseq
        %v564 = vshrl.u32 %v563, 7
        %v565 = vsub.s32 1, %v564
        %v566 = vrot.slane %v557, %v565
        %v567 = vlaneseq
        %v568 = vshrl.u32 %v567, 7
        %v569 = vsub.s32 2, %v568
        %v570 = vrot.slane %v557, %v569
        %v571 = vlaneseq
        %v572 = vshrl.u32 %v571, 7
        %v573 = vsub.s32 3, %v572
        %v574 = vrot.slane %v557, %v573
        %575 = vrot.lane.b32.xlu0 %v562, 56
        %v576 = vpop.permute.xlu0 %575
        %577 = vrot.lane.b32.xlu0 %v566, 56
        %v578 = vpop.permute.xlu0 %577
        %579 = vrot.lane.b32.xlu0 %v570, 56
        %v580 = vpop.permute.xlu0 %579
        %581 = vrot.lane.b32.xlu0 %v574, 56
        %v582 = vpop.permute.xlu0 %581
        %vm583 = vcmask 457728
        %v584 = vsel %vm583, %v576, %v578
        %v585 = vsel %vm583, %v578, %v580
        %v586 = vsel %vm583, %v580, %v582
        %v592 = vmul.f32 %v550, %v576
        %v593 = vmul.f32 %v551, %v584
        %v594 = vmul.f32 %v552, %v585
        %v595 = vmul.f32 %v553, %v586
        %v596 = vmul.f32 %v554, %v582
        %v597 = vpack.c.bf16 %v592, %v592
        %v598 = vpack.c.bf16 %v593, %v593
        %v599 = vpack.c.bf16 %v594, %v594
        %v600 = vpack.c.bf16 %v595, %v595
        %v601 = vpack.c.bf16 %v596, %v596
        %v607 = vunpack.c.l.b16 %v597
        %v608 = vunpack.c.l.b16 %v598
        %v609 = vunpack.c.l.b16 %v599
        %v610 = vunpack.c.l.b16 %v600
        %v611 = vunpack.c.l.b16 %v601
        %v612 = vpack.c.b16 %v608, %v607
        %v613 = vpack.c.b16 %v610, %v609
        %v614 = vpack.c.b16 %v611, %v611
        %v615 = vrot.slane %v612, 6
        %v616 = vrot.slane %v613, 6
        %v617 = vrot.slane %v614, 6
        %618 = vrot.lane.b32.xlu0 %v615, 72
        %v619 = vpop.permute.xlu0 %618
        %620 = vrot.lane.b32.xlu0 %v616, 72
        %v621 = vpop.permute.xlu0 %620
        %622 = vrot.lane.b32.xlu0 %v617, 72
        %v623 = vpop.permute.xlu0 %622
        %v624 = vrot.slane %v619, 4
        %v625 = vrot.slane %v621, 4
        %v626 = vrot.slane %v623, 4
        %v627 = vsel %vm540, %v624, %v625
        %vm628 = vcmask 588800
        %v629 = vsel %vm628, %v619, %v627
        %v630 = vsel %vm540, %v625, %v626
        %v631 = vsel %vm628, %v621, %v630
        %634 = vst [vmem:[#allocation3] sm:$0xcc] %v629
        %635 = vst [vmem:[#allocation3 + $0x8] sm:$0xcc] %v631
        %v636 = vld [vmem:[#allocation2] sm:$0xf]
        %v637 = vld [vmem:[#allocation2 + $0x8] sm:$0xf]
        %v638 = vld [vmem:[#allocation2 + $0x10] sm:$0xf]
        %v639 = vld [vmem:[#allocation2 + $0x18] sm:$0xf]
        %v640 = vld [vmem:[#allocation2 + $0x20] sm:$0xf]
        %v641 = vld [vmem:[%s6] ss:$8 sm:$0xf]
        %v642 = vld [vmem:[%s468] ss:$8 sm:$0xf]
        %v643 = vmul.f32 %v641, %v642
        %s644 = scalar_lea.vmem %s6, 5
        %v645 = vld [vmem:[%s644] ss:$8 sm:$0xf]
        %v646 = vmul.f32 %v643, %v645
        %v648 = vlaneseq
        %v649 = vshrl.u32 %v648, 7
        %v650 = vsub.s32 0, %v649
        %v651 = vrot.slane %v646, %v650
        %v652 = vlaneseq
        %v653 = vshrl.u32 %v652, 7
        %v654 = vsub.s32 1, %v653
        %v655 = vrot.slane %v646, %v654
        %v656 = vlaneseq
        %v657 = vshrl.u32 %v656, 7
        %v658 = vsub.s32 2, %v657
        %v659 = vrot.slane %v646, %v658
        %v660 = vlaneseq
        %v661 = vshrl.u32 %v660, 7
        %v662 = vsub.s32 3, %v661
        %v663 = vrot.slane %v646, %v662
        %664 = vrot.lane.b32.xlu0 %v651, 57
        %v665 = vpop.permute.xlu0 %664
        %666 = vrot.lane.b32.xlu0 %v655, 57
        %v667 = vpop.permute.xlu0 %666
        %668 = vrot.lane.b32.xlu0 %v659, 57
        %v669 = vpop.permute.xlu0 %668
        %670 = vrot.lane.b32.xlu0 %v663, 57
        %v671 = vpop.permute.xlu0 %670
        %vm672 = vcmask 465920
        %v673 = vsel %vm672, %v665, %v667
        %v674 = vsel %vm672, %v667, %v669
        %v675 = vsel %vm672, %v669, %v671
        %v681 = vmul.f32 %v636, %v665
        %v682 = vmul.f32 %v637, %v673
        %v683 = vmul.f32 %v638, %v674
        %v684 = vmul.f32 %v639, %v675
        %v685 = vmul.f32 %v640, %v671
        %v686 = vpack.c.bf16 %v681, %v681
        %v687 = vpack.c.bf16 %v682, %v682
        %v688 = vpack.c.bf16 %v683, %v683
        %v689 = vpack.c.bf16 %v684, %v684
        %v690 = vpack.c.bf16 %v685, %v685
        %v696 = vunpack.c.l.b16 %v686
        %v697 = vunpack.c.l.b16 %v687
        %v698 = vunpack.c.l.b16 %v688
        %v699 = vunpack.c.l.b16 %v689
        %v700 = vunpack.c.l.b16 %v690
        %v701 = vpack.c.b16 %v697, %v696
        %v702 = vpack.c.b16 %v699, %v698
        %v703 = vpack.c.b16 %v700, %v700
        %704 = vrot.lane.b32.xlu0 %v701, 71
        %v705 = vpop.permute.xlu0 %704
        %706 = vrot.lane.b32.xlu0 %v702, 71
        %v707 = vpop.permute.xlu0 %706
        %708 = vrot.lane.b32.xlu0 %v703, 71
        %v709 = vpop.permute.xlu0 %708
        %v710 = vrot.slane %v705, 4
        %v711 = vrot.slane %v707, 4
        %v712 = vrot.slane %v709, 4
        %v713 = vsel %vm540, %v710, %v711
        %vm714 = vcmask 580608
        %v715 = vsel %vm714, %v705, %v713
        %v716 = vsel %vm540, %v711, %v712
        %v717 = vsel %vm714, %v707, %v716
        %720 = vst [vmem:[#allocation3 + $0x10] sm:$0x33] %v715
        %721 = vst [vmem:[#allocation3 + $0x18] sm:$0x33] %v717
        %v722 = vld [vmem:[#allocation2] sm:$0xf]
        %v723 = vld [vmem:[#allocation2 + $0x8] sm:$0xf]
        %v724 = vld [vmem:[#allocation2 + $0x10] sm:$0xf]
        %v725 = vld [vmem:[#allocation2 + $0x18] sm:$0xf]
        %v726 = vld [vmem:[#allocation2 + $0x20] sm:$0xf]
        %v727 = vld [vmem:[%s6] ss:$8 sm:$0xf]
        %v728 = vld [vmem:[%s471] ss:$8 sm:$0xf]
        %v729 = vmul.f32 %v727, %v728
        %v731 = vlaneseq
        %v732 = vshrl.u32 %v731, 7
        %v733 = vsub.s32 0, %v732
        %v734 = vrot.slane %v729, %v733
        %v735 = vlaneseq
        %v736 = vshrl.u32 %v735, 7
        %v737 = vsub.s32 1, %v736
        %v738 = vrot.slane %v729, %v737
        %v739 = vlaneseq
        %v740 = vshrl.u32 %v739, 7
        %v741 = vsub.s32 2, %v740
        %v742 = vrot.slane %v729, %v741
        %v743 = vlaneseq
        %v744 = vshrl.u32 %v743, 7
        %v745 = vsub.s32 3, %v744
        %v746 = vrot.slane %v729, %v745
        %747 = vrot.lane.b32.xlu0 %v734, 63
        %v748 = vpop.permute.xlu0 %747
        %749 = vrot.lane.b32.xlu0 %v738, 63
        %v750 = vpop.permute.xlu0 %749
        %751 = vrot.lane.b32.xlu0 %v742, 63
        %v752 = vpop.permute.xlu0 %751
        %753 = vrot.lane.b32.xlu0 %v746, 63
        %v754 = vpop.permute.xlu0 %753
        %vm755 = vcmask 515072
        %v756 = vsel %vm755, %v748, %v750
        %v757 = vsel %vm755, %v750, %v752
        %v758 = vsel %vm755, %v752, %v754
        %v764 = vmul.f32 %v722, %v748
        %v765 = vmul.f32 %v723, %v756
        %v766 = vmul.f32 %v724, %v757
        %v767 = vmul.f32 %v725, %v758
        %v768 = vmul.f32 %v726, %v754
        %v769 = vpack.c.bf16 %v764, %v764
        %v770 = vpack.c.bf16 %v765, %v765
        %v771 = vpack.c.bf16 %v766, %v766
        %v772 = vpack.c.bf16 %v767, %v767
        %v773 = vpack.c.bf16 %v768, %v768
        %v779 = vunpack.c.l.b16 %v769
        %v780 = vunpack.c.l.b16 %v770
        %v781 = vunpack.c.l.b16 %v771
        %v782 = vunpack.c.l.b16 %v772
        %v783 = vunpack.c.l.b16 %v773
        %v784 = vpack.c.b16 %v780, %v779
        %v785 = vpack.c.b16 %v782, %v781
        %v786 = vpack.c.b16 %v783, %v783
        %v787 = vrot.slane %v784, 6
        %v788 = vrot.slane %v785, 6
        %v789 = vrot.slane %v786, 6
        %790 = vrot.lane.b32.xlu0 %v787, 65
        %v791 = vpop.permute.xlu0 %790
        %792 = vrot.lane.b32.xlu0 %v788, 65
        %v793 = vpop.permute.xlu0 %792
        %794 = vrot.lane.b32.xlu0 %v789, 65
        %v795 = vpop.permute.xlu0 %794
        %v796 = vrot.slane %v791, 4
        %v797 = vrot.slane %v793, 4
        %v798 = vrot.slane %v795, 4
        %v799 = vsel %vm540, %v796, %v797
        %vm800 = vcmask 531456
        %v801 = vsel %vm800, %v791, %v799
        %v802 = vsel %vm540, %v797, %v798
        %v803 = vsel %vm800, %v793, %v802
        %806 = vst [vmem:[#allocation3 + $0x10] sm:$0xcc] %v801
        %807 = vst [vmem:[#allocation3 + $0x18] sm:$0xcc] %v803
        %v808 = vld [vmem:[#allocation2] sm:$0xf]
        %v809 = vld [vmem:[#allocation2 + $0x8] sm:$0xf]
        %v810 = vld [vmem:[#allocation2 + $0x10] sm:$0xf]
        %v811 = vld [vmem:[#allocation2 + $0x18] sm:$0xf]
        %v812 = vld [vmem:[#allocation2 + $0x20] sm:$0xf]
        %v813 = vld [vmem:[%s6] ss:$8 sm:$0xf]
        %v815 = vlaneseq
        %v816 = vshrl.u32 %v815, 7
        %v817 = vsub.s32 0, %v816
        %v818 = vrot.slane %v813, %v817
        %v819 = vlaneseq
        %v820 = vshrl.u32 %v819, 7
        %v821 = vsub.s32 1, %v820
        %v822 = vrot.slane %v813, %v821
        %v823 = vlaneseq
        %v824 = vshrl.u32 %v823, 7
        %v825 = vsub.s32 2, %v824
        %v826 = vrot.slane %v813, %v825
        %v827 = vlaneseq
        %v828 = vshrl.u32 %v827, 7
        %v829 = vsub.s32 3, %v828
        %v830 = vrot.slane %v813, %v829
        %831 = vrot.lane.b32.xlu0 %v818, 64
        %v832 = vpop.permute.xlu0 %831
        %833 = vrot.lane.b32.xlu0 %v822, 64
        %v834 = vpop.permute.xlu0 %833
        %835 = vrot.lane.b32.xlu0 %v826, 64
        %v836 = vpop.permute.xlu0 %835
        %837 = vrot.lane.b32.xlu0 %v830, 64
        %v838 = vpop.permute.xlu0 %837
        %vm839 = vcmask 523264
        %v840 = vsel %vm839, %v832, %v834
        %v841 = vsel %vm839, %v834, %v836
        %v842 = vsel %vm839, %v836, %v838
        %v848 = vmul.f32 %v808, %v832
        %v849 = vmul.f32 %v809, %v840
        %v850 = vmul.f32 %v810, %v841
        %v851 = vmul.f32 %v811, %v842
        %v852 = vmul.f32 %v812, %v838
        %v853 = vpack.c.bf16 %v848, %v848
        %v854 = vpack.c.bf16 %v849, %v849
        %v855 = vpack.c.bf16 %v850, %v850
        %v856 = vpack.c.bf16 %v851, %v851
        %v857 = vpack.c.bf16 %v852, %v852
        %v863 = vunpack.c.l.b16 %v853
        %v864 = vunpack.c.l.b16 %v854
        %v865 = vunpack.c.l.b16 %v855
        %v866 = vunpack.c.l.b16 %v856
        %v867 = vunpack.c.l.b16 %v857
        %v868 = vpack.c.b16 %v864, %v863
        %v869 = vpack.c.b16 %v866, %v865
        %v870 = vpack.c.b16 %v867, %v867
        %871 = vrot.lane.b32.xlu0 %v868, 64
        %v872 = vpop.permute.xlu0 %871
        %873 = vrot.lane.b32.xlu0 %v869, 64
        %v874 = vpop.permute.xlu0 %873
        %875 = vrot.lane.b32.xlu0 %v870, 64
        %v876 = vpop.permute.xlu0 %875
        %v877 = vrot.slane %v872, 4
        %v878 = vrot.slane %v874, 4
        %v879 = vrot.slane %v876, 4
        %v880 = vsel %vm540, %v877, %v878
        %vm881 = vcmask 523264
        %v882 = vsel %vm881, %v872, %v880
        %v883 = vsel %vm540, %v878, %v879
        %v884 = vsel %vm881, %v874, %v883
        %887 = vst [vmem:[#allocation3 + $0x20] sm:$0x33] %v882
        %888 = vst [vmem:[#allocation3 + $0x28] sm:$0x33] %v884
        %v889 = vld [vmem:[#allocation2] sm:$0xf]
        %v890 = vld [vmem:[#allocation2 + $0x8] sm:$0xf]
        %v891 = vld [vmem:[#allocation2 + $0x10] sm:$0xf]
        %v892 = vld [vmem:[#allocation2 + $0x18] sm:$0xf]
        %v893 = vld [vmem:[#allocation2 + $0x20] sm:$0xf]
        %v894 = vld [vmem:[%s6] ss:$8 sm:$0xf]
        %v895 = vld [vmem:[%s644] ss:$8 sm:$0xf]
        %v896 = vmul.f32 %v894, %v895
        %v898 = vlaneseq
        %v899 = vshrl.u32 %v898, 7
        %v900 = vsub.s32 0, %v899
        %v901 = vrot.slane %v896, %v900
        %v902 = vlaneseq
        %v903 = vshrl.u32 %v902, 7
        %v904 = vsub.s32 1, %v903
        %v905 = vrot.slane %v896, %v904
        %v906 = vlaneseq
        %v907 = vshrl.u32 %v906, 7
        %v908 = vsub.s32 2, %v907
        %v909 = vrot.slane %v896, %v908
        %v910 = vlaneseq
        %v911 = vshrl.u32 %v910, 7
        %v912 = vsub.s32 3, %v911
        %v913 = vrot.slane %v896, %v912
        %914 = vrot.lane.b32.xlu0 %v901, 65
        %v915 = vpop.permute.xlu0 %914
        %916 = vrot.lane.b32.xlu0 %v905, 65
        %v917 = vpop.permute.xlu0 %916
        %918 = vrot.lane.b32.xlu0 %v909, 65
        %v919 = vpop.permute.xlu0 %918
        %920 = vrot.lane.b32.xlu0 %v913, 65
        %v921 = vpop.permute.xlu0 %920
        %vm922 = vcmask 531456
        %v923 = vsel %vm922, %v915, %v917
        %v924 = vsel %vm922, %v917, %v919
        %v925 = vsel %vm922, %v919, %v921
        %v931 = vmul.f32 %v889, %v915
        %v932 = vmul.f32 %v890, %v923
        %v933 = vmul.f32 %v891, %v924
        %v934 = vmul.f32 %v892, %v925
        %v935 = vmul.f32 %v893, %v921
        %v936 = vpack.c.bf16 %v931, %v931
        %v937 = vpack.c.bf16 %v932, %v932
        %v938 = vpack.c.bf16 %v933, %v933
        %v939 = vpack.c.bf16 %v934, %v934
        %v940 = vpack.c.bf16 %v935, %v935
        %v946 = vunpack.c.l.b16 %v936
        %v947 = vunpack.c.l.b16 %v937
        %v948 = vunpack.c.l.b16 %v938
        %v949 = vunpack.c.l.b16 %v939
        %v950 = vunpack.c.l.b16 %v940
        %v951 = vpack.c.b16 %v947, %v946
        %v952 = vpack.c.b16 %v949, %v948
        %v953 = vpack.c.b16 %v950, %v950
        %v954 = vrot.slane %v951, 6
        %v955 = vrot.slane %v952, 6
        %v956 = vrot.slane %v953, 6
        %957 = vrot.lane.b32.xlu0 %v954, 63
        %v958 = vpop.permute.xlu0 %957
        %959 = vrot.lane.b32.xlu0 %v955, 63
        %v960 = vpop.permute.xlu0 %959
        %961 = vrot.lane.b32.xlu0 %v956, 63
        %v962 = vpop.permute.xlu0 %961
        %v963 = vrot.slane %v958, 4
        %v964 = vrot.slane %v960, 4
        %v965 = vrot.slane %v962, 4
        %v966 = vsel %vm540, %v963, %v964
        %vm967 = vcmask 515072
        %v968 = vsel %vm967, %v958, %v966
        %v969 = vsel %vm540, %v964, %v965
        %v970 = vsel %vm967, %v960, %v969
        %973 = vst [vmem:[#allocation3 + $0x20] sm:$0xcc] %v968
        %974 = vst [vmem:[#allocation3 + $0x28] sm:$0xcc] %v970
        %v975 = vld [vmem:[#allocation2] sm:$0xf]
        %v976 = vld [vmem:[#allocation2 + $0x8] sm:$0xf]
        %v977 = vld [vmem:[#allocation2 + $0x10] sm:$0xf]
        %v978 = vld [vmem:[#allocation2 + $0x18] sm:$0xf]
        %v979 = vld [vmem:[#allocation2 + $0x20] sm:$0xf]
        %v980 = vld [vmem:[%s6] ss:$8 sm:$0xf]
        %s981 = scalar_lea.vmem %s6, 3
        %v982 = vld [vmem:[%s981] ss:$8 sm:$0xf]
        %v983 = vmul.f32 %v980, %v982
        %v984 = vld [vmem:[%s471] ss:$8 sm:$0xf]
        %v985 = vmul.f32 %v983, %v984
        %v987 = vlaneseq
        %v988 = vshrl.u32 %v987, 7
        %v989 = vsub.s32 0, %v988
        %v990 = vrot.slane %v985, %v989
        %v991 = vlaneseq
        %v992 = vshrl.u32 %v991, 7
        %v993 = vsub.s32 1, %v992
        %v994 = vrot.slane %v985, %v993
        %v995 = vlaneseq
        %v996 = vshrl.u32 %v995, 7
        %v997 = vsub.s32 2, %v996
        %v998 = vrot.slane %v985, %v997
        %v999 = vlaneseq
        %v1000 = vshrl.u32 %v999, 7
        %v1001 = vsub.s32 3, %v1000
        %v1002 = vrot.slane %v985, %v1001
        %1003 = vrot.lane.b32.xlu0 %v990, 71
        %v1004 = vpop.permute.xlu0 %1003
        %1005 = vrot.lane.b32.xlu0 %v994, 71
        %v1006 = vpop.permute.xlu0 %1005
        %1007 = vrot.lane.b32.xlu0 %v998, 71
        %v1008 = vpop.permute.xlu0 %1007
        %1009 = vrot.lane.b32.xlu0 %v1002, 71
        %v1010 = vpop.permute.xlu0 %1009
        %vm1011 = vcmask 580608
        %v1012 = vsel %vm1011, %v1004, %v1006
        %v1013 = vsel %vm1011, %v1006, %v1008
        %v1014 = vsel %vm1011, %v1008, %v1010
        %v1020 = vmul.f32 %v975, %v1004
        %v1021 = vmul.f32 %v976, %v1012
        %v1022 = vmul.f32 %v977, %v1013
        %v1023 = vmul.f32 %v978, %v1014
        %v1024 = vmul.f32 %v979, %v1010
        %v1025 = vpack.c.bf16 %v1020, %v1020
        %v1026 = vpack.c.bf16 %v1021, %v1021
        %v1027 = vpack.c.bf16 %v1022, %v1022
        %v1028 = vpack.c.bf16 %v1023, %v1023
        %v1029 = vpack.c.bf16 %v1024, %v1024
        %v1035 = vunpack.c.l.b16 %v1025
        %v1036 = vunpack.c.l.b16 %v1026
        %v1037 = vunpack.c.l.b16 %v1027
        %v1038 = vunpack.c.l.b16 %v1028
        %v1039 = vunpack.c.l.b16 %v1029
        %v1040 = vpack.c.b16 %v1036, %v1035
        %v1041 = vpack.c.b16 %v1038, %v1037
        %v1042 = vpack.c.b16 %v1039, %v1039
        %1043 = vrot.lane.b32.xlu0 %v1040, 57
        %v1044 = vpop.permute.xlu0 %1043
        %1045 = vrot.lane.b32.xlu0 %v1041, 57
        %v1046 = vpop.permute.xlu0 %1045
        %1047 = vrot.lane.b32.xlu0 %v1042, 57
        %v1048 = vpop.permute.xlu0 %1047
        %v1049 = vrot.slane %v1044, 4
        %v1050 = vrot.slane %v1046, 4
        %v1051 = vrot.slane %v1048, 4
        %v1052 = vsel %vm540, %v1049, %v1050
        %vm1053 = vcmask 465920
        %v1054 = vsel %vm1053, %v1044, %v1052
        %v1055 = vsel %vm540, %v1050, %v1051
        %v1056 = vsel %vm1053, %v1046, %v1055
        %1059 = vst [vmem:[#allocation3 + $0x30] sm:$0x33] %v1054
        %1060 = vst [vmem:[#allocation3 + $0x38] sm:$0x33] %v1056
        %v1061 = vld [vmem:[#allocation2] sm:$0xf]
        %v1062 = vld [vmem:[#allocation2 + $0x8] sm:$0xf]
        %v1063 = vld [vmem:[#allocation2 + $0x10] sm:$0xf]
        %v1064 = vld [vmem:[#allocation2 + $0x18] sm:$0xf]
        %v1065 = vld [vmem:[#allocation2 + $0x20] sm:$0xf]
        %v1066 = vld [vmem:[%s6] ss:$8 sm:$0xf]
        %v1067 = vld [vmem:[%s981] ss:$8 sm:$0xf]
        %v1068 = vmul.f32 %v1066, %v1067
        %v1070 = vlaneseq
        %v1071 = vshrl.u32 %v1070, 7
        %v1072 = vsub.s32 0, %v1071
        %v1073 = vrot.slane %v1068, %v1072
        %v1074 = vlaneseq
        %v1075 = vshrl.u32 %v1074, 7
        %v1076 = vsub.s32 1, %v1075
        %v1077 = vrot.slane %v1068, %v1076
        %v1078 = vlaneseq
        %v1079 = vshrl.u32 %v1078, 7
        %v1080 = vsub.s32 2, %v1079
        %v1081 = vrot.slane %v1068, %v1080
        %v1082 = vlaneseq
        %v1083 = vshrl.u32 %v1082, 7
        %v1084 = vsub.s32 3, %v1083
        %v1085 = vrot.slane %v1068, %v1084
        %1086 = vrot.lane.b32.xlu0 %v1073, 72
        %v1087 = vpop.permute.xlu0 %1086
        %1088 = vrot.lane.b32.xlu0 %v1077, 72
        %v1089 = vpop.permute.xlu0 %1088
        %1090 = vrot.lane.b32.xlu0 %v1081, 72
        %v1091 = vpop.permute.xlu0 %1090
        %1092 = vrot.lane.b32.xlu0 %v1085, 72
        %v1093 = vpop.permute.xlu0 %1092
        %vm1094 = vcmask 588800
        %v1095 = vsel %vm1094, %v1087, %v1089
        %v1096 = vsel %vm1094, %v1089, %v1091
        %v1097 = vsel %vm1094, %v1091, %v1093
        %v1103 = vmul.f32 %v1061, %v1087
        %v1104 = vmul.f32 %v1062, %v1095
        %v1105 = vmul.f32 %v1063, %v1096
        %v1106 = vmul.f32 %v1064, %v1097
        %v1107 = vmul.f32 %v1065, %v1093
        %v1108 = vpack.c.bf16 %v1103, %v1103
        %v1109 = vpack.c.bf16 %v1104, %v1104
        %v1110 = vpack.c.bf16 %v1105, %v1105
        %v1111 = vpack.c.bf16 %v1106, %v1106
        %v1112 = vpack.c.bf16 %v1107, %v1107
        %v1118 = vunpack.c.l.b16 %v1108
        %v1119 = vunpack.c.l.b16 %v1109
        %v1120 = vunpack.c.l.b16 %v1110
        %v1121 = vunpack.c.l.b16 %v1111
        %v1122 = vunpack.c.l.b16 %v1112
        %v1123 = vpack.c.b16 %v1119, %v1118
        %v1124 = vpack.c.b16 %v1121, %v1120
        %v1125 = vpack.c.b16 %v1122, %v1122
        %v1126 = vrot.slane %v1123, 6
        %v1127 = vrot.slane %v1124, 6
        %v1128 = vrot.slane %v1125, 6
        %1129 = vrot.lane.b32.xlu0 %v1126, 56
        %v1130 = vpop.permute.xlu0 %1129
        %1131 = vrot.lane.b32.xlu0 %v1127, 56
        %v1132 = vpop.permute.xlu0 %1131
        %1133 = vrot.lane.b32.xlu0 %v1128, 56
        %v1134 = vpop.permute.xlu0 %1133
        %v1135 = vrot.slane %v1130, 4
        %v1136 = vrot.slane %v1132, 4
        %v1137 = vrot.slane %v1134, 4
        %v1138 = vsel %vm540, %v1135, %v1136
        %vm1139 = vcmask 457728
        %v1140 = vsel %vm1139, %v1130, %v1138
        %v1141 = vsel %vm540, %v1136, %v1137
        %v1142 = vsel %vm1139, %v1132, %v1141
        %1145 = vst [vmem:[#allocation3 + $0x30] sm:$0xcc] %v1140
        %1146 = vst [vmem:[#allocation3 + $0x38] sm:$0xcc] %v1142
        %v1147 = vld [vmem:[#allocation2] sm:$0xf]
        %v1148 = vld [vmem:[#allocation2 + $0x8] sm:$0xf]
        %v1149 = vld [vmem:[#allocation2 + $0x10] sm:$0xf]
        %v1150 = vld [vmem:[#allocation2 + $0x18] sm:$0xf]
        %v1151 = vld [vmem:[#allocation2 + $0x20] sm:$0xf]
        %v1152 = vld [vmem:[%s6] ss:$8 sm:$0xf]
        %v1153 = vld [vmem:[%s981] ss:$8 sm:$0xf]
        %v1154 = vmul.f32 %v1152, %v1153
        %v1155 = vld [vmem:[%s644] ss:$8 sm:$0xf]
        %v1156 = vmul.f32 %v1154, %v1155
        %v1158 = vlaneseq
        %v1159 = vshrl.u32 %v1158, 7
        %v1160 = vsub.s32 0, %v1159
        %v1161 = vrot.slane %v1156, %v1160
        %v1162 = vlaneseq
        %v1163 = vshrl.u32 %v1162, 7
        %v1164 = vsub.s32 1, %v1163
        %v1165 = vrot.slane %v1156, %v1164
        %v1166 = vlaneseq
        %v1167 = vshrl.u32 %v1166, 7
        %v1168 = vsub.s32 2, %v1167
        %v1169 = vrot.slane %v1156, %v1168
        %v1170 = vlaneseq
        %v1171 = vshrl.u32 %v1170, 7
        %v1172 = vsub.s32 3, %v1171
        %v1173 = vrot.slane %v1156, %v1172
        %1174 = vrot.lane.b32.xlu0 %v1161, 73
        %v1175 = vpop.permute.xlu0 %1174
        %1176 = vrot.lane.b32.xlu0 %v1165, 73
        %v1177 = vpop.permute.xlu0 %1176
        %1178 = vrot.lane.b32.xlu0 %v1169, 73
        %v1179 = vpop.permute.xlu0 %1178
        %1180 = vrot.lane.b32.xlu0 %v1173, 73
        %v1181 = vpop.permute.xlu0 %1180
        %vm1182 = vcmask 596992
        %v1183 = vsel %vm1182, %v1175, %v1177
        %v1184 = vsel %vm1182, %v1177, %v1179
        %v1185 = vsel %vm1182, %v1179, %v1181
        %v1191 = vmul.f32 %v1147, %v1175
        %v1192 = vmul.f32 %v1148, %v1183
        %v1193 = vmul.f32 %v1149, %v1184
        %v1194 = vmul.f32 %v1150, %v1185
        %v1195 = vmul.f32 %v1151, %v1181
        %v1196 = vpack.c.bf16 %v1191, %v1191
        %v1197 = vpack.c.bf16 %v1192, %v1192
        %v1198 = vpack.c.bf16 %v1193, %v1193
        %v1199 = vpack.c.bf16 %v1194, %v1194
        %v1200 = vpack.c.bf16 %v1195, %v1195
        %v1206 = vunpack.c.l.b16 %v1196
        %v1207 = vunpack.c.l.b16 %v1197
        %v1208 = vunpack.c.l.b16 %v1198
        %v1209 = vunpack.c.l.b16 %v1199
        %v1210 = vunpack.c.l.b16 %v1200
        %v1211 = vpack.c.b16 %v1207, %v1206
        %v1212 = vpack.c.b16 %v1209, %v1208
        %v1213 = vpack.c.b16 %v1210, %v1210
        %1214 = vrot.lane.b32.xlu0 %v1211, 55
        %v1215 = vpop.permute.xlu0 %1214
        %1216 = vrot.lane.b32.xlu0 %v1212, 55
        %v1217 = vpop.permute.xlu0 %1216
        %1218 = vrot.lane.b32.xlu0 %v1213, 55
        %v1219 = vpop.permute.xlu0 %1218
        %v1220 = vrot.slane %v1215, 4
        %v1221 = vrot.slane %v1217, 4
        %v1222 = vrot.slane %v1219, 4
        %v1223 = vsel %vm540, %v1220, %v1221
        %vm1224 = vcmask 449536
        %v1225 = vsel %vm1224, %v1215, %v1223
        %v1226 = vsel %vm540, %v1221, %v1222
        %v1227 = vsel %vm1224, %v1217, %v1226
        %1230 = vst [vmem:[#allocation3 + $0x40] sm:$0x33] %v1225
        %1231 = vst [vmem:[#allocation3 + $0x48] sm:$0x33] %v1227
        %v1232 = vld [vmem:[#allocation2] sm:$0xf]
        %v1233 = vld [vmem:[#allocation2 + $0x8] sm:$0xf]
        %v1234 = vld [vmem:[#allocation2 + $0x10] sm:$0xf]
        %v1235 = vld [vmem:[#allocation2 + $0x18] sm:$0xf]
        %v1236 = vld [vmem:[#allocation2 + $0x20] sm:$0xf]
        %v1237 = vld [vmem:[%s468] ss:$8 sm:$0xf]
        %v1238 = vld [vmem:[%s471] ss:$8 sm:$0xf]
        %v1239 = vmul.f32 %v1237, %v1238
        %v1241 = vlaneseq
        %v1242 = vshrl.u32 %v1241, 7
        %v1243 = vsub.s32 0, %v1242
        %v1244 = vrot.slane %v1239, %v1243
        %v1245 = vlaneseq
        %v1246 = vshrl.u32 %v1245, 7
        %v1247 = vsub.s32 1, %v1246
        %v1248 = vrot.slane %v1239, %v1247
        %v1249 = vlaneseq
        %v1250 = vshrl.u32 %v1249, 7
        %v1251 = vsub.s32 2, %v1250
        %v1252 = vrot.slane %v1239, %v1251
        %v1253 = vlaneseq
        %v1254 = vshrl.u32 %v1253, 7
        %v1255 = vsub.s32 3, %v1254
        %v1256 = vrot.slane %v1239, %v1255
        %1257 = vrot.lane.b32.xlu0 %v1244, 119
        %v1258 = vpop.permute.xlu0 %1257
        %1259 = vrot.lane.b32.xlu0 %v1248, 119
        %v1260 = vpop.permute.xlu0 %1259
        %1261 = vrot.lane.b32.xlu0 %v1252, 119
        %v1262 = vpop.permute.xlu0 %1261
        %1263 = vrot.lane.b32.xlu0 %v1256, 119
        %v1264 = vpop.permute.xlu0 %1263
        %vm1265 = vcmask 973824
        %v1266 = vsel %vm1265, %v1258, %v1260
        %v1267 = vsel %vm1265, %v1260, %v1262
        %v1268 = vsel %vm1265, %v1262, %v1264
        %v1274 = vmul.f32 %v1232, %v1258
        %v1275 = vmul.f32 %v1233, %v1266
        %v1276 = vmul.f32 %v1234, %v1267
        %v1277 = vmul.f32 %v1235, %v1268
        %v1278 = vmul.f32 %v1236, %v1264
        %v1279 = vpack.c.bf16 %v1274, %v1274
        %v1280 = vpack.c.bf16 %v1275, %v1275
        %v1281 = vpack.c.bf16 %v1276, %v1276
        %v1282 = vpack.c.bf16 %v1277, %v1277
        %v1283 = vpack.c.bf16 %v1278, %v1278
        %v1289 = vunpack.c.l.b16 %v1279
        %v1290 = vunpack.c.l.b16 %v1280
        %v1291 = vunpack.c.l.b16 %v1281
        %v1292 = vunpack.c.l.b16 %v1282
        %v1293 = vunpack.c.l.b16 %v1283
        %v1294 = vpack.c.b16 %v1290, %v1289
        %v1295 = vpack.c.b16 %v1292, %v1291
        %v1296 = vpack.c.b16 %v1293, %v1293
        %v1297 = vrot.slane %v1294, 6
        %v1298 = vrot.slane %v1295, 6
        %v1299 = vrot.slane %v1296, 6
        %1300 = vrot.lane.b32.xlu0 %v1297, 9
        %v1301 = vpop.permute.xlu0 %1300
        %1302 = vrot.lane.b32.xlu0 %v1298, 9
        %v1303 = vpop.permute.xlu0 %1302
        %1304 = vrot.lane.b32.xlu0 %v1299, 9
        %v1305 = vpop.permute.xlu0 %1304
        %v1306 = vrot.slane %v1301, 4
        %v1307 = vrot.slane %v1303, 4
        %v1308 = vrot.slane %v1305, 4
        %v1309 = vsel %vm540, %v1306, %v1307
        %vm1310 = vcmask 72704
        %v1311 = vsel %vm1310, %v1301, %v1309
        %v1312 = vsel %vm540, %v1307, %v1308
        %v1313 = vsel %vm1310, %v1303, %v1312
        %1316 = vst [vmem:[#allocation3 + $0x40] sm:$0xcc] %v1311
        %1317 = vst [vmem:[#allocation3 + $0x48] sm:$0xcc] %v1313
        %v1318 = vld [vmem:[#allocation2] sm:$0xf]
        %v1319 = vld [vmem:[#allocation2 + $0x8] sm:$0xf]
        %v1320 = vld [vmem:[#allocation2 + $0x10] sm:$0xf]
        %v1321 = vld [vmem:[#allocation2 + $0x18] sm:$0xf]
        %v1322 = vld [vmem:[#allocation2 + $0x20] sm:$0xf]
        %v1323 = vld [vmem:[%s468] ss:$8 sm:$0xf]
        %v1325 = vlaneseq
        %v1326 = vshrl.u32 %v1325, 7
        %v1327 = vsub.s32 0, %v1326
        %v1328 = vrot.slane %v1323, %v1327
        %v1329 = vlaneseq
        %v1330 = vshrl.u32 %v1329, 7
        %v1331 = vsub.s32 1, %v1330
        %v1332 = vrot.slane %v1323, %v1331
        %v1333 = vlaneseq
        %v1334 = vshrl.u32 %v1333, 7
        %v1335 = vsub.s32 2, %v1334
        %v1336 = vrot.slane %v1323, %v1335
        %v1337 = vlaneseq
        %v1338 = vshrl.u32 %v1337, 7
        %v1339 = vsub.s32 3, %v1338
        %v1340 = vrot.slane %v1323, %v1339
        %1341 = vrot.lane.b32.xlu0 %v1328, 120
        %v1342 = vpop.permute.xlu0 %1341
        %1343 = vrot.lane.b32.xlu0 %v1332, 120
        %v1344 = vpop.permute.xlu0 %1343
        %1345 = vrot.lane.b32.xlu0 %v1336, 120
        %v1346 = vpop.permute.xlu0 %1345
        %1347 = vrot.lane.b32.xlu0 %v1340, 120
        %v1348 = vpop.permute.xlu0 %1347
        %vm1349 = vcmask 982016
        %v1350 = vsel %vm1349, %v1342, %v1344
        %v1351 = vsel %vm1349, %v1344, %v1346
        %v1352 = vsel %vm1349, %v1346, %v1348
        %v1358 = vmul.f32 %v1318, %v1342
        %v1359 = vmul.f32 %v1319, %v1350
        %v1360 = vmul.f32 %v1320, %v1351
        %v1361 = vmul.f32 %v1321, %v1352
        %v1362 = vmul.f32 %v1322, %v1348
        %v1363 = vpack.c.bf16 %v1358, %v1358
        %v1364 = vpack.c.bf16 %v1359, %v1359
        %v1365 = vpack.c.bf16 %v1360, %v1360
        %v1366 = vpack.c.bf16 %v1361, %v1361
        %v1367 = vpack.c.bf16 %v1362, %v1362
        %v1373 = vunpack.c.l.b16 %v1363
        %v1374 = vunpack.c.l.b16 %v1364
        %v1375 = vunpack.c.l.b16 %v1365
        %v1376 = vunpack.c.l.b16 %v1366
        %v1377 = vunpack.c.l.b16 %v1367
        %v1378 = vpack.c.b16 %v1374, %v1373
        %v1379 = vpack.c.b16 %v1376, %v1375
        %v1380 = vpack.c.b16 %v1377, %v1377
        %1381 = vrot.lane.b32.xlu0 %v1378, 8
        %v1382 = vpop.permute.xlu0 %1381
        %1383 = vrot.lane.b32.xlu0 %v1379, 8
        %v1384 = vpop.permute.xlu0 %1383
        %1385 = vrot.lane.b32.xlu0 %v1380, 8
        %v1386 = vpop.permute.xlu0 %1385
        %v1387 = vrot.slane %v1382, 4
        %v1388 = vrot.slane %v1384, 4
        %v1389 = vrot.slane %v1386, 4
        %v1390 = vsel %vm540, %v1387, %v1388
        %vm1391 = vcmask 64512
        %v1392 = vsel %vm1391, %v1382, %v1390
        %v1393 = vsel %vm540, %v1388, %v1389
        %v1394 = vsel %vm1391, %v1384, %v1393
        %1397 = vst [vmem:[#allocation3 + $0x50] sm:$0x33] %v1392
        %1398 = vst [vmem:[#allocation3 + $0x58] sm:$0x33] %v1394
        %v1399 = vld [vmem:[#allocation2] sm:$0xf]
        %v1400 = vld [vmem:[#allocation2 + $0x8] sm:$0xf]
        %v1401 = vld [vmem:[#allocation2 + $0x10] sm:$0xf]
        %v1402 = vld [vmem:[#allocation2 + $0x18] sm:$0xf]
        %v1403 = vld [vmem:[#allocation2 + $0x20] sm:$0xf]
        %v1404 = vld [vmem:[%s468] ss:$8 sm:$0xf]
        %v1405 = vld [vmem:[%s644] ss:$8 sm:$0xf]
        %v1406 = vmul.f32 %v1404, %v1405
        %v1408 = vlaneseq
        %v1409 = vshrl.u32 %v1408, 7
        %v1410 = vsub.s32 0, %v1409
        %v1411 = vrot.slane %v1406, %v1410
        %v1412 = vlaneseq
        %v1413 = vshrl.u32 %v1412, 7
        %v1414 = vsub.s32 1, %v1413
        %v1415 = vrot.slane %v1406, %v1414
        %v1416 = vlaneseq
        %v1417 = vshrl.u32 %v1416, 7
        %v1418 = vsub.s32 2, %v1417
        %v1419 = vrot.slane %v1406, %v1418
        %v1420 = vlaneseq
        %v1421 = vshrl.u32 %v1420, 7
        %v1422 = vsub.s32 3, %v1421
        %v1423 = vrot.slane %v1406, %v1422
        %1424 = vrot.lane.b32.xlu0 %v1411, 121
        %v1425 = vpop.permute.xlu0 %1424
        %1426 = vrot.lane.b32.xlu0 %v1415, 121
        %v1427 = vpop.permute.xlu0 %1426
        %1428 = vrot.lane.b32.xlu0 %v1419, 121
        %v1429 = vpop.permute.xlu0 %1428
        %1430 = vrot.lane.b32.xlu0 %v1423, 121
        %v1431 = vpop.permute.xlu0 %1430
        %vm1432 = vcmask 990208
        %v1433 = vsel %vm1432, %v1425, %v1427
        %v1434 = vsel %vm1432, %v1427, %v1429
        %v1435 = vsel %vm1432, %v1429, %v1431
        %v1441 = vmul.f32 %v1399, %v1425
        %v1442 = vmul.f32 %v1400, %v1433
        %v1443 = vmul.f32 %v1401, %v1434
        %v1444 = vmul.f32 %v1402, %v1435
        %v1445 = vmul.f32 %v1403, %v1431
        %v1446 = vpack.c.bf16 %v1441, %v1441
        %v1447 = vpack.c.bf16 %v1442, %v1442
        %v1448 = vpack.c.bf16 %v1443, %v1443
        %v1449 = vpack.c.bf16 %v1444, %v1444
        %v1450 = vpack.c.bf16 %v1445, %v1445
        %v1456 = vunpack.c.l.b16 %v1446
        %v1457 = vunpack.c.l.b16 %v1447
        %v1458 = vunpack.c.l.b16 %v1448
        %v1459 = vunpack.c.l.b16 %v1449
        %v1460 = vunpack.c.l.b16 %v1450
        %v1461 = vpack.c.b16 %v1457, %v1456
        %v1462 = vpack.c.b16 %v1459, %v1458
        %v1463 = vpack.c.b16 %v1460, %v1460
        %v1464 = vrot.slane %v1461, 6
        %v1465 = vrot.slane %v1462, 6
        %v1466 = vrot.slane %v1463, 6
        %1467 = vrot.lane.b32.xlu0 %v1464, 7
        %v1468 = vpop.permute.xlu0 %1467
        %1469 = vrot.lane.b32.xlu0 %v1465, 7
        %v1470 = vpop.permute.xlu0 %1469
        %1471 = vrot.lane.b32.xlu0 %v1466, 7
        %v1472 = vpop.permute.xlu0 %1471
        %v1473 = vrot.slane %v1468, 4
        %v1474 = vrot.slane %v1470, 4
        %v1475 = vrot.slane %v1472, 4
        %v1476 = vsel %vm540, %v1473, %v1474
        %vm1477 = vcmask 56320
        %v1478 = vsel %vm1477, %v1468, %v1476
        %v1479 = vsel %vm540, %v1474, %v1475
        %v1480 = vsel %vm1477, %v1470, %v1479
        %1483 = vst [vmem:[#allocation3 + $0x50] sm:$0xcc] %v1478
        %1484 = vst [vmem:[#allocation3 + $0x58] sm:$0xcc] %v1480
        %v1485 = vld [vmem:[#allocation2] sm:$0xf]
        %v1486 = vld [vmem:[#allocation2 + $0x8] sm:$0xf]
        %v1487 = vld [vmem:[#allocation2 + $0x10] sm:$0xf]
        %v1488 = vld [vmem:[#allocation2 + $0x18] sm:$0xf]
        %v1489 = vld [vmem:[#allocation2 + $0x20] sm:$0xf]
        %v1490 = vld [vmem:[%s471] ss:$8 sm:$0xf]
        %v1492 = vlaneseq
        %v1493 = vshrl.u32 %v1492, 7
        %v1494 = vsub.s32 0, %v1493
        %v1495 = vrot.slane %v1490, %v1494
        %v1496 = vlaneseq
        %v1497 = vshrl.u32 %v1496, 7
        %v1498 = vsub.s32 1, %v1497
        %v1499 = vrot.slane %v1490, %v1498
        %v1500 = vlaneseq
        %v1501 = vshrl.u32 %v1500, 7
        %v1502 = vsub.s32 2, %v1501
        %v1503 = vrot.slane %v1490, %v1502
        %v1504 = vlaneseq
        %v1505 = vshrl.u32 %v1504, 7
        %v1506 = vsub.s32 3, %v1505
        %v1507 = vrot.slane %v1490, %v1506
        %1508 = vrot.lane.b32.xlu0 %v1495, 127
        %v1509 = vpop.permute.xlu0 %1508
        %1510 = vrot.lane.b32.xlu0 %v1499, 127
        %v1511 = vpop.permute.xlu0 %1510
        %1512 = vrot.lane.b32.xlu0 %v1503, 127
        %v1513 = vpop.permute.xlu0 %1512
        %1514 = vrot.lane.b32.xlu0 %v1507, 127
        %v1515 = vpop.permute.xlu0 %1514
        %vm1516 = vcmask 1039360
        %v1517 = vsel %vm1516, %v1509, %v1511
        %v1518 = vsel %vm1516, %v1511, %v1513
        %v1519 = vsel %vm1516, %v1513, %v1515
        %v1525 = vmul.f32 %v1485, %v1509
        %v1526 = vmul.f32 %v1486, %v1517
        %v1527 = vmul.f32 %v1487, %v1518
        %v1528 = vmul.f32 %v1488, %v1519
        %v1529 = vmul.f32 %v1489, %v1515
        %v1530 = vpack.c.bf16 %v1525, %v1525
        %v1531 = vpack.c.bf16 %v1526, %v1526
        %v1532 = vpack.c.bf16 %v1527, %v1527
        %v1533 = vpack.c.bf16 %v1528, %v1528
        %v1534 = vpack.c.bf16 %v1529, %v1529
        %v1540 = vunpack.c.l.b16 %v1530
        %v1541 = vunpack.c.l.b16 %v1531
        %v1542 = vunpack.c.l.b16 %v1532
        %v1543 = vunpack.c.l.b16 %v1533
        %v1544 = vunpack.c.l.b16 %v1534
        %v1545 = vpack.c.b16 %v1541, %v1540
        %v1546 = vpack.c.b16 %v1543, %v1542
        %v1547 = vpack.c.b16 %v1544, %v1544
        %1548 = vrot.lane.b32.xlu0 %v1545, 1
        %v1549 = vpop.permute.xlu0 %1548
        %1550 = vrot.lane.b32.xlu0 %v1546, 1
        %v1551 = vpop.permute.xlu0 %1550
        %1552 = vrot.lane.b32.xlu0 %v1547, 1
        %v1553 = vpop.permute.xlu0 %1552
        %v1554 = vrot.slane %v1549, 4
        %v1555 = vrot.slane %v1551, 4
        %v1556 = vrot.slane %v1553, 4
        %v1557 = vsel %vm540, %v1554, %v1555
        %vm1558 = vcmask 7168
        %v1559 = vsel %vm1558, %v1549, %v1557
        %v1560 = vsel %vm540, %v1555, %v1556
        %v1561 = vsel %vm1558, %v1551, %v1560
        %1564 = vst [vmem:[#allocation3 + $0x60] sm:$0x33] %v1559
        %1565 = vst [vmem:[#allocation3 + $0x68] sm:$0x33] %v1561
        %v1566 = vld [vmem:[#allocation2 + $0x8] sm:$0xf]
        %v1567 = vld [vmem:[#allocation2 + $0x10] sm:$0xf]
        %v1568 = vld [vmem:[#allocation2 + $0x18] sm:$0xf]
        %v1569 = vld [vmem:[#allocation2 + $0x20] sm:$0xf]
        %v1570 = vpack.c.bf16 %v1566, %v1566
        %v1571 = vpack.c.bf16 %v1567, %v1567
        %v1572 = vpack.c.bf16 %v1568, %v1568
        %v1573 = vpack.c.bf16 %v1569, %v1569
        %v1578 = vunpack.c.l.b16 %v1570
        %v1579 = vunpack.c.l.b16 %v1571
        %v1580 = vunpack.c.l.b16 %v1572
        %v1581 = vunpack.c.l.b16 %v1573
        %v1582 = vpack.c.b16 %v1579, %v1578
        %v1583 = vpack.c.b16 %v1581, %v1580
        %v1584 = vrot.slane %v1582, 6
        %v1585 = vrot.slane %v1583, 6
        %1588 = vst [vmem:[#allocation3 + $0x60] sm:$0xcc] %v1584
        %1589 = vst [vmem:[#allocation3 + $0x68] sm:$0xcc] %v1585
        %v1590 = vld [vmem:[#allocation2 + $0x8] sm:$0xf]
        %v1591 = vld [vmem:[#allocation2 + $0x10] sm:$0xf]
        %v1592 = vld [vmem:[#allocation2 + $0x18] sm:$0xf]
        %v1593 = vld [vmem:[#allocation2 + $0x20] sm:$0xf]
        %v1594 = vld [vmem:[#allocation2 + $0x28] sm:$0xf]
        %v1595 = vld [vmem:[%s644] ss:$8 sm:$0xf]
        %v1597 = vlaneseq
        %v1598 = vshrl.u32 %v1597, 7
        %v1599 = vsub.s32 0, %v1598
        %v1600 = vrot.slane %v1595, %v1599
        %v1601 = vlaneseq
        %v1602 = vshrl.u32 %v1601, 7
        %v1603 = vsub.s32 1, %v1602
        %v1604 = vrot.slane %v1595, %v1603
        %v1605 = vlaneseq
        %v1606 = vshrl.u32 %v1605, 7
        %v1607 = vsub.s32 2, %v1606
        %v1608 = vrot.slane %v1595, %v1607
        %v1609 = vlaneseq
        %v1610 = vshrl.u32 %v1609, 7
        %v1611 = vsub.s32 3, %v1610
        %v1612 = vrot.slane %v1595, %v1611
        %1613 = vrot.lane.b32.xlu0 %v1600, 1
        %v1614 = vpop.permute.xlu0 %1613
        %1615 = vrot.lane.b32.xlu0 %v1604, 1
        %v1616 = vpop.permute.xlu0 %1615
        %1617 = vrot.lane.b32.xlu0 %v1608, 1
        %v1618 = vpop.permute.xlu0 %1617
        %1619 = vrot.lane.b32.xlu0 %v1612, 1
        %v1620 = vpop.permute.xlu0 %1619
        %vm1621 = vcmask 7168
        %v1622 = vsel %vm1621, %v1614, %v1616
        %v1623 = vsel %vm1621, %v1616, %v1618
        %v1624 = vsel %vm1621, %v1618, %v1620
        %v1630 = vmul.f32 %v1590, %v1614
        %v1631 = vmul.f32 %v1591, %v1622
        %v1632 = vmul.f32 %v1592, %v1623
        %v1633 = vmul.f32 %v1593, %v1624
        %v1634 = vmul.f32 %v1594, %v1620
        %v1635 = vpack.c.bf16 %v1630, %v1630
        %v1636 = vpack.c.bf16 %v1631, %v1631
        %v1637 = vpack.c.bf16 %v1632, %v1632
        %v1638 = vpack.c.bf16 %v1633, %v1633
        %v1639 = vpack.c.bf16 %v1634, %v1634
        %v1645 = vunpack.c.l.b16 %v1635
        %v1646 = vunpack.c.l.b16 %v1636
        %v1647 = vunpack.c.l.b16 %v1637
        %v1648 = vunpack.c.l.b16 %v1638
        %v1649 = vunpack.c.l.b16 %v1639
        %v1650 = vpack.c.b16 %v1646, %v1645
        %v1651 = vpack.c.b16 %v1648, %v1647
        %v1652 = vpack.c.b16 %v1649, %v1649
        %1653 = vrot.lane.b32.xlu0 %v1650, 127
        %v1654 = vpop.permute.xlu0 %1653
        %1655 = vrot.lane.b32.xlu0 %v1651, 127
        %v1656 = vpop.permute.xlu0 %1655
        %1657 = vrot.lane.b32.xlu0 %v1652, 127
        %v1658 = vpop.permute.xlu0 %1657
        %v1659 = vrot.slane %v1654, 4
        %v1660 = vrot.slane %v1656, 4
        %v1661 = vrot.slane %v1658, 4
        %v1662 = vsel %vm540, %v1659, %v1660
        %vm1663 = vcmask 1039360
        %v1664 = vsel %vm1663, %v1654, %v1662
        %v1665 = vsel %vm540, %v1660, %v1661
        %v1666 = vsel %vm1663, %v1656, %v1665
        %1669 = vst [vmem:[#allocation3 + $0x70] sm:$0x33] %v1664
        %1670 = vst [vmem:[#allocation3 + $0x78] sm:$0x33] %v1666
        %v1671 = vld [vmem:[#allocation2 + $0x8] sm:$0xf]
        %v1672 = vld [vmem:[#allocation2 + $0x10] sm:$0xf]
        %v1673 = vld [vmem:[#allocation2 + $0x18] sm:$0xf]
        %v1674 = vld [vmem:[#allocation2 + $0x20] sm:$0xf]
        %v1675 = vld [vmem:[#allocation2 + $0x28] sm:$0xf]
        %v1676 = vld [vmem:[%s981] ss:$8 sm:$0xf]
        %v1677 = vld [vmem:[%s471] ss:$8 sm:$0xf]
        %v1678 = vmul.f32 %v1676, %v1677
        %v1680 = vlaneseq
        %v1681 = vshrl.u32 %v1680, 7
        %v1682 = vsub.s32 0, %v1681
        %v1683 = vrot.slane %v1678, %v1682
        %v1684 = vlaneseq
        %v1685 = vshrl.u32 %v1684, 7
        %v1686 = vsub.s32 1, %v1685
        %v1687 = vrot.slane %v1678, %v1686
        %v1688 = vlaneseq
        %v1689 = vshrl.u32 %v1688, 7
        %v1690 = vsub.s32 2, %v1689
        %v1691 = vrot.slane %v1678, %v1690
        %v1692 = vlaneseq
        %v1693 = vshrl.u32 %v1692, 7
        %v1694 = vsub.s32 3, %v1693
        %v1695 = vrot.slane %v1678, %v1694
        %1696 = vrot.lane.b32.xlu0 %v1683, 7
        %v1697 = vpop.permute.xlu0 %1696
        %1698 = vrot.lane.b32.xlu0 %v1687, 7
        %v1699 = vpop.permute.xlu0 %1698
        %1700 = vrot.lane.b32.xlu0 %v1691, 7
        %v1701 = vpop.permute.xlu0 %1700
        %1702 = vrot.lane.b32.xlu0 %v1695, 7
        %v1703 = vpop.permute.xlu0 %1702
        %vm1704 = vcmask 56320
        %v1705 = vsel %vm1704, %v1697, %v1699
        %v1706 = vsel %vm1704, %v1699, %v1701
        %v1707 = vsel %vm1704, %v1701, %v1703
        %v1713 = vmul.f32 %v1671, %v1697
        %v1714 = vmul.f32 %v1672, %v1705
        %v1715 = vmul.f32 %v1673, %v1706
        %v1716 = vmul.f32 %v1674, %v1707
        %v1717 = vmul.f32 %v1675, %v1703
        %v1718 = vpack.c.bf16 %v1713, %v1713
        %v1719 = vpack.c.bf16 %v1714, %v1714
        %v1720 = vpack.c.bf16 %v1715, %v1715
        %v1721 = vpack.c.bf16 %v1716, %v1716
        %v1722 = vpack.c.bf16 %v1717, %v1717
        %v1728 = vunpack.c.l.b16 %v1718
        %v1729 = vunpack.c.l.b16 %v1719
        %v1730 = vunpack.c.l.b16 %v1720
        %v1731 = vunpack.c.l.b16 %v1721
        %v1732 = vunpack.c.l.b16 %v1722
        %v1733 = vpack.c.b16 %v1729, %v1728
        %v1734 = vpack.c.b16 %v1731, %v1730
        %v1735 = vpack.c.b16 %v1732, %v1732
        %v1736 = vrot.slane %v1733, 6
        %v1737 = vrot.slane %v1734, 6
        %v1738 = vrot.slane %v1735, 6
        %1739 = vrot.lane.b32.xlu0 %v1736, 121
        %v1740 = vpop.permute.xlu0 %1739
        %1741 = vrot.lane.b32.xlu0 %v1737, 121
        %v1742 = vpop.permute.xlu0 %1741
        %1743 = vrot.lane.b32.xlu0 %v1738, 121
        %v1744 = vpop.permute.xlu0 %1743
        %v1745 = vrot.slane %v1740, 4
        %v1746 = vrot.slane %v1742, 4
        %v1747 = vrot.slane %v1744, 4
        %v1748 = vsel %vm540, %v1745, %v1746
        %vm1749 = vcmask 990208
        %v1750 = vsel %vm1749, %v1740, %v1748
        %v1751 = vsel %vm540, %v1746, %v1747
        %v1752 = vsel %vm1749, %v1742, %v1751
        %1755 = vst [vmem:[#allocation3 + $0x70] sm:$0xcc] %v1750
        %1756 = vst [vmem:[#allocation3 + $0x78] sm:$0xcc] %v1752
        %v1757 = vld [vmem:[#allocation2 + $0x8] sm:$0xf]
        %v1758 = vld [vmem:[#allocation2 + $0x10] sm:$0xf]
        %v1759 = vld [vmem:[#allocation2 + $0x18] sm:$0xf]
        %v1760 = vld [vmem:[#allocation2 + $0x20] sm:$0xf]
        %v1761 = vld [vmem:[#allocation2 + $0x28] sm:$0xf]
        %v1762 = vld [vmem:[%s981] ss:$8 sm:$0xf]
        %v1764 = vlaneseq
        %v1765 = vshrl.u32 %v1764, 7
        %v1766 = vsub.s32 0, %v1765
        %v1767 = vrot.slane %v1762, %v1766
        %v1768 = vlaneseq
        %v1769 = vshrl.u32 %v1768, 7
        %v1770 = vsub.s32 1, %v1769
        %v1771 = vrot.slane %v1762, %v1770
        %v1772 = vlaneseq
        %v1773 = vshrl.u32 %v1772, 7
        %v1774 = vsub.s32 2, %v1773
        %v1775 = vrot.slane %v1762, %v1774
        %v1776 = vlaneseq
        %v1777 = vshrl.u32 %v1776, 7
        %v1778 = vsub.s32 3, %v1777
        %v1779 = vrot.slane %v1762, %v1778
        %1780 = vrot.lane.b32.xlu0 %v1767, 8
        %v1781 = vpop.permute.xlu0 %1780
        %1782 = vrot.lane.b32.xlu0 %v1771, 8
        %v1783 = vpop.permute.xlu0 %1782
        %1784 = vrot.lane.b32.xlu0 %v1775, 8
        %v1785 = vpop.permute.xlu0 %1784
        %1786 = vrot.lane.b32.xlu0 %v1779, 8
        %v1787 = vpop.permute.xlu0 %1786
        %vm1788 = vcmask 64512
        %v1789 = vsel %vm1788, %v1781, %v1783
        %v1790 = vsel %vm1788, %v1783, %v1785
        %v1791 = vsel %vm1788, %v1785, %v1787
        %v1797 = vmul.f32 %v1757, %v1781
        %v1798 = vmul.f32 %v1758, %v1789
        %v1799 = vmul.f32 %v1759, %v1790
        %v1800 = vmul.f32 %v1760, %v1791
        %v1801 = vmul.f32 %v1761, %v1787
        %v1802 = vpack.c.bf16 %v1797, %v1797
        %v1803 = vpack.c.bf16 %v1798, %v1798
        %v1804 = vpack.c.bf16 %v1799, %v1799
        %v1805 = vpack.c.bf16 %v1800, %v1800
        %v1806 = vpack.c.bf16 %v1801, %v1801
        %v1812 = vunpack.c.l.b16 %v1802
        %v1813 = vunpack.c.l.b16 %v1803
        %v1814 = vunpack.c.l.b16 %v1804
        %v1815 = vunpack.c.l.b16 %v1805
        %v1816 = vunpack.c.l.b16 %v1806
        %v1817 = vpack.c.b16 %v1813, %v1812
        %v1818 = vpack.c.b16 %v1815, %v1814
        %v1819 = vpack.c.b16 %v1816, %v1816
        %1820 = vrot.lane.b32.xlu0 %v1817, 120
        %v1821 = vpop.permute.xlu0 %1820
        %1822 = vrot.lane.b32.xlu0 %v1818, 120
        %v1823 = vpop.permute.xlu0 %1822
        %1824 = vrot.lane.b32.xlu0 %v1819, 120
        %v1825 = vpop.permute.xlu0 %1824
        %v1826 = vrot.slane %v1821, 4
        %v1827 = vrot.slane %v1823, 4
        %v1828 = vrot.slane %v1825, 4
        %v1829 = vsel %vm540, %v1826, %v1827
        %vm1830 = vcmask 982016
        %v1831 = vsel %vm1830, %v1821, %v1829
        %v1832 = vsel %vm540, %v1827, %v1828
        %v1833 = vsel %vm1830, %v1823, %v1832
        %1836 = vst [vmem:[#allocation3 + $0x80] sm:$0x33] %v1831
        %1837 = vst [vmem:[#allocation3 + $0x88] sm:$0x33] %v1833
        %v1838 = vld [vmem:[#allocation2 + $0x8] sm:$0xf]
        %v1839 = vld [vmem:[#allocation2 + $0x10] sm:$0xf]
        %v1840 = vld [vmem:[#allocation2 + $0x18] sm:$0xf]
        %v1841 = vld [vmem:[#allocation2 + $0x20] sm:$0xf]
        %v1842 = vld [vmem:[#allocation2 + $0x28] sm:$0xf]
        %v1843 = vld [vmem:[%s981] ss:$8 sm:$0xf]
        %v1844 = vld [vmem:[%s644] ss:$8 sm:$0xf]
        %v1845 = vmul.f32 %v1843, %v1844
        %v1847 = vlaneseq
        %v1848 = vshrl.u32 %v1847, 7
        %v1849 = vsub.s32 0, %v1848
        %v1850 = vrot.slane %v1845, %v1849
        %v1851 = vlaneseq
        %v1852 = vshrl.u32 %v1851, 7
        %v1853 = vsub.s32 1, %v1852
        %v1854 = vrot.slane %v1845, %v1853
        %v1855 = vlaneseq
        %v1856 = vshrl.u32 %v1855, 7
        %v1857 = vsub.s32 2, %v1856
        %v1858 = vrot.slane %v1845, %v1857
        %v1859 = vlaneseq
        %v1860 = vshrl.u32 %v1859, 7
        %v1861 = vsub.s32 3, %v1860
        %v1862 = vrot.slane %v1845, %v1861
        %1863 = vrot.lane.b32.xlu0 %v1850, 9
        %v1864 = vpop.permute.xlu0 %1863
        %1865 = vrot.lane.b32.xlu0 %v1854, 9
        %v1866 = vpop.permute.xlu0 %1865
        %1867 = vrot.lane.b32.xlu0 %v1858, 9
        %v1868 = vpop.permute.xlu0 %1867
        %1869 = vrot.lane.b32.xlu0 %v1862, 9
        %v1870 = vpop.permute.xlu0 %1869
        %vm1871 = vcmask 72704
        %v1872 = vsel %vm1871, %v1864, %v1866
        %v1873 = vsel %vm1871, %v1866, %v1868
        %v1874 = vsel %vm1871, %v1868, %v1870
        %v1880 = vmul.f32 %v1838, %v1864
        %v1881 = vmul.f32 %v1839, %v1872
        %v1882 = vmul.f32 %v1840, %v1873
        %v1883 = vmul.f32 %v1841, %v1874
        %v1884 = vmul.f32 %v1842, %v1870
        %v1885 = vpack.c.bf16 %v1880, %v1880
        %v1886 = vpack.c.bf16 %v1881, %v1881
        %v1887 = vpack.c.bf16 %v1882, %v1882
        %v1888 = vpack.c.bf16 %v1883, %v1883
        %v1889 = vpack.c.bf16 %v1884, %v1884
        %v1895 = vunpack.c.l.b16 %v1885
        %v1896 = vunpack.c.l.b16 %v1886
        %v1897 = vunpack.c.l.b16 %v1887
        %v1898 = vunpack.c.l.b16 %v1888
        %v1899 = vunpack.c.l.b16 %v1889
        %v1900 = vpack.c.b16 %v1896, %v1895
        %v1901 = vpack.c.b16 %v1898, %v1897
        %v1902 = vpack.c.b16 %v1899, %v1899
        %v1903 = vrot.slane %v1900, 6
        %v1904 = vrot.slane %v1901, 6
        %v1905 = vrot.slane %v1902, 6
        %1906 = vrot.lane.b32.xlu0 %v1903, 119
        %v1907 = vpop.permute.xlu0 %1906
        %1908 = vrot.lane.b32.xlu0 %v1904, 119
        %v1909 = vpop.permute.xlu0 %1908
        %1910 = vrot.lane.b32.xlu0 %v1905, 119
        %v1911 = vpop.permute.xlu0 %1910
        %v1912 = vrot.slane %v1907, 4
        %v1913 = vrot.slane %v1909, 4
        %v1914 = vrot.slane %v1911, 4
        %v1915 = vsel %vm540, %v1912, %v1913
        %vm1916 = vcmask 973824
        %v1917 = vsel %vm1916, %v1907, %v1915
        %v1918 = vsel %vm540, %v1913, %v1914
        %v1919 = vsel %vm1916, %v1909, %v1918
        %1922 = vst [vmem:[#allocation3 + $0x80] sm:$0xcc] %v1917
        %1923 = vst [vmem:[#allocation3 + $0x88] sm:$0xcc] %v1919
        %v1924 = vld [vmem:[#allocation2 + $0x8] sm:$0xf]
        %v1925 = vld [vmem:[#allocation2 + $0x10] sm:$0xf]
        %v1926 = vld [vmem:[#allocation2 + $0x18] sm:$0xf]
        %v1927 = vld [vmem:[#allocation2 + $0x20] sm:$0xf]
        %v1928 = vld [vmem:[#allocation2 + $0x28] sm:$0xf]
        %s1929 = scalar_lea.vmem %s6, 1
        %v1930 = vld [vmem:[%s1929] ss:$8 sm:$0xf]
        %v1931 = vld [vmem:[%s468] ss:$8 sm:$0xf]
        %v1932 = vmul.f32 %v1930, %v1931
        %v1933 = vld [vmem:[%s471] ss:$8 sm:$0xf]
        %v1934 = vmul.f32 %v1932, %v1933
        %v1936 = vlaneseq
        %v1937 = vshrl.u32 %v1936, 7
        %v1938 = vsub.s32 0, %v1937
        %v1939 = vrot.slane %v1934, %v1938
        %v1940 = vlaneseq
        %v1941 = vshrl.u32 %v1940, 7
        %v1942 = vsub.s32 1, %v1941
        %v1943 = vrot.slane %v1934, %v1942
        %v1944 = vlaneseq
        %v1945 = vshrl.u32 %v1944, 7
        %v1946 = vsub.s32 2, %v1945
        %v1947 = vrot.slane %v1934, %v1946
        %v1948 = vlaneseq
        %v1949 = vshrl.u32 %v1948, 7
        %v1950 = vsub.s32 3, %v1949
        %v1951 = vrot.slane %v1934, %v1950
        %1952 = vrot.lane.b32.xlu0 %v1939, 55
        %v1953 = vpop.permute.xlu0 %1952
        %1954 = vrot.lane.b32.xlu0 %v1943, 55
        %v1955 = vpop.permute.xlu0 %1954
        %1956 = vrot.lane.b32.xlu0 %v1947, 55
        %v1957 = vpop.permute.xlu0 %1956
        %1958 = vrot.lane.b32.xlu0 %v1951, 55
        %v1959 = vpop.permute.xlu0 %1958
        %v1960 = vsel %vm499, %v1953, %v1955
        %v1961 = vsel %vm499, %v1955, %v1957
        %v1962 = vsel %vm499, %v1957, %v1959
        %v1968 = vmul.f32 %v1924, %v1953
        %v1969 = vmul.f32 %v1925, %v1960
        %v1970 = vmul.f32 %v1926, %v1961
        %v1971 = vmul.f32 %v1927, %v1962
        %v1972 = vmul.f32 %v1928, %v1959
        %v1973 = vpack.c.bf16 %v1968, %v1968
        %v1974 = vpack.c.bf16 %v1969, %v1969
        %v1975 = vpack.c.bf16 %v1970, %v1970
        %v1976 = vpack.c.bf16 %v1971, %v1971
        %v1977 = vpack.c.bf16 %v1972, %v1972
        %v1983 = vunpack.c.l.b16 %v1973
        %v1984 = vunpack.c.l.b16 %v1974
        %v1985 = vunpack.c.l.b16 %v1975
        %v1986 = vunpack.c.l.b16 %v1976
        %v1987 = vunpack.c.l.b16 %v1977
        %v1988 = vpack.c.b16 %v1984, %v1983
        %v1989 = vpack.c.b16 %v1986, %v1985
        %v1990 = vpack.c.b16 %v1987, %v1987
        %1991 = vrot.lane.b32.xlu0 %v1988, 73
        %v1992 = vpop.permute.xlu0 %1991
        %1993 = vrot.lane.b32.xlu0 %v1989, 73
        %v1994 = vpop.permute.xlu0 %1993
        %1995 = vrot.lane.b32.xlu0 %v1990, 73
        %v1996 = vpop.permute.xlu0 %1995
        %v1997 = vrot.slane %v1992, 4
        %v1998 = vrot.slane %v1994, 4
        %v1999 = vrot.slane %v1996, 4
        %v2000 = vsel %vm540, %v1997, %v1998
        %v2001 = vsel %vm542, %v1992, %v2000
        %v2002 = vsel %vm540, %v1998, %v1999
        %v2003 = vsel %vm542, %v1994, %v2002
        %2006 = vst [vmem:[#allocation3 + $0x90] sm:$0x33] %v2001
        %2007 = vst [vmem:[#allocation3 + $0x98] sm:$0x33] %v2003
        %v2008 = vld [vmem:[#allocation2 + $0x8] sm:$0xf]
        %v2009 = vld [vmem:[#allocation2 + $0x10] sm:$0xf]
        %v2010 = vld [vmem:[#allocation2 + $0x18] sm:$0xf]
        %v2011 = vld [vmem:[#allocation2 + $0x20] sm:$0xf]
        %v2012 = vld [vmem:[#allocation2 + $0x28] sm:$0xf]
        %v2013 = vld [vmem:[%s1929] ss:$8 sm:$0xf]
        %v2014 = vld [vmem:[%s468] ss:$8 sm:$0xf]
        %v2015 = vmul.f32 %v2013, %v2014
        %v2017 = vlaneseq
        %v2018 = vshrl.u32 %v2017, 7
        %v2019 = vsub.s32 0, %v2018
        %v2020 = vrot.slane %v2015, %v2019
        %v2021 = vlaneseq
        %v2022 = vshrl.u32 %v2021, 7
        %v2023 = vsub.s32 1, %v2022
        %v2024 = vrot.slane %v2015, %v2023
        %v2025 = vlaneseq
        %v2026 = vshrl.u32 %v2025, 7
        %v2027 = vsub.s32 2, %v2026
        %v2028 = vrot.slane %v2015, %v2027
        %v2029 = vlaneseq
        %v2030 = vshrl.u32 %v2029, 7
        %v2031 = vsub.s32 3, %v2030
        %v2032 = vrot.slane %v2015, %v2031
        %2033 = vrot.lane.b32.xlu0 %v2020, 56
        %v2034 = vpop.permute.xlu0 %2033
        %2035 = vrot.lane.b32.xlu0 %v2024, 56
        %v2036 = vpop.permute.xlu0 %2035
        %2037 = vrot.lane.b32.xlu0 %v2028, 56
        %v2038 = vpop.permute.xlu0 %2037
        %2039 = vrot.lane.b32.xlu0 %v2032, 56
        %v2040 = vpop.permute.xlu0 %2039
        %v2041 = vsel %vm583, %v2034, %v2036
        %v2042 = vsel %vm583, %v2036, %v2038
        %v2043 = vsel %vm583, %v2038, %v2040
        %v2049 = vmul.f32 %v2008, %v2034
        %v2050 = vmul.f32 %v2009, %v2041
        %v2051 = vmul.f32 %v2010, %v2042
        %v2052 = vmul.f32 %v2011, %v2043
        %v2053 = vmul.f32 %v2012, %v2040
        %v2054 = vpack.c.bf16 %v2049, %v2049
        %v2055 = vpack.c.bf16 %v2050, %v2050
        %v2056 = vpack.c.bf16 %v2051, %v2051
        %v2057 = vpack.c.bf16 %v2052, %v2052
        %v2058 = vpack.c.bf16 %v2053, %v2053
        %v2064 = vunpack.c.l.b16 %v2054
        %v2065 = vunpack.c.l.b16 %v2055
        %v2066 = vunpack.c.l.b16 %v2056
        %v2067 = vunpack.c.l.b16 %v2057
        %v2068 = vunpack.c.l.b16 %v2058
        %v2069 = vpack.c.b16 %v2065, %v2064
        %v2070 = vpack.c.b16 %v2067, %v2066
        %v2071 = vpack.c.b16 %v2068, %v2068
        %v2072 = vrot.slane %v2069, 6
        %v2073 = vrot.slane %v2070, 6
        %v2074 = vrot.slane %v2071, 6
        %2075 = vrot.lane.b32.xlu0 %v2072, 72
        %v2076 = vpop.permute.xlu0 %2075
        %2077 = vrot.lane.b32.xlu0 %v2073, 72
        %v2078 = vpop.permute.xlu0 %2077
        %2079 = vrot.lane.b32.xlu0 %v2074, 72
        %v2080 = vpop.permute.xlu0 %2079
        %v2081 = vrot.slane %v2076, 4
        %v2082 = vrot.slane %v2078, 4
        %v2083 = vrot.slane %v2080, 4
        %v2084 = vsel %vm540, %v2081, %v2082
        %v2085 = vsel %vm628, %v2076, %v2084
        %v2086 = vsel %vm540, %v2082, %v2083
        %v2087 = vsel %vm628, %v2078, %v2086
        %2090 = vst [vmem:[#allocation3 + $0x90] sm:$0xcc] %v2085
        %2091 = vst [vmem:[#allocation3 + $0x98] sm:$0xcc] %v2087
        %v2092 = vld [vmem:[#allocation2 + $0x8] sm:$0xf]
        %v2093 = vld [vmem:[#allocation2 + $0x10] sm:$0xf]
        %v2094 = vld [vmem:[#allocation2 + $0x18] sm:$0xf]
        %v2095 = vld [vmem:[#allocation2 + $0x20] sm:$0xf]
        %v2096 = vld [vmem:[#allocation2 + $0x28] sm:$0xf]
        %v2097 = vld [vmem:[%s1929] ss:$8 sm:$0xf]
        %v2098 = vld [vmem:[%s468] ss:$8 sm:$0xf]
        %v2099 = vmul.f32 %v2097, %v2098
        %v2100 = vld [vmem:[%s644] ss:$8 sm:$0xf]
        %v2101 = vmul.f32 %v2099, %v2100
        %v2103 = vlaneseq
        %v2104 = vshrl.u32 %v2103, 7
        %v2105 = vsub.s32 0, %v2104
        %v2106 = vrot.slane %v2101, %v2105
        %v2107 = vlaneseq
        %v2108 = vshrl.u32 %v2107, 7
        %v2109 = vsub.s32 1, %v2108
        %v2110 = vrot.slane %v2101, %v2109
        %v2111 = vlaneseq
        %v2112 = vshrl.u32 %v2111, 7
        %v2113 = vsub.s32 2, %v2112
        %v2114 = vrot.slane %v2101, %v2113
        %v2115 = vlaneseq
        %v2116 = vshrl.u32 %v2115, 7
        %v2117 = vsub.s32 3, %v2116
        %v2118 = vrot.slane %v2101, %v2117
        %2119 = vrot.lane.b32.xlu0 %v2106, 57
        %v2120 = vpop.permute.xlu0 %2119
        %2121 = vrot.lane.b32.xlu0 %v2110, 57
        %v2122 = vpop.permute.xlu0 %2121
        %2123 = vrot.lane.b32.xlu0 %v2114, 57
        %v2124 = vpop.permute.xlu0 %2123
        %2125 = vrot.lane.b32.xlu0 %v2118, 57
        %v2126 = vpop.permute.xlu0 %2125
        %v2127 = vsel %vm672, %v2120, %v2122
        %v2128 = vsel %vm672, %v2122, %v2124
        %v2129 = vsel %vm672, %v2124, %v2126
        %v2135 = vmul.f32 %v2092, %v2120
        %v2136 = vmul.f32 %v2093, %v2127
        %v2137 = vmul.f32 %v2094, %v2128
        %v2138 = vmul.f32 %v2095, %v2129
        %v2139 = vmul.f32 %v2096, %v2126
        %v2140 = vpack.c.bf16 %v2135, %v2135
        %v2141 = vpack.c.bf16 %v2136, %v2136
        %v2142 = vpack.c.bf16 %v2137, %v2137
        %v2143 = vpack.c.bf16 %v2138, %v2138
        %v2144 = vpack.c.bf16 %v2139, %v2139
        %v2150 = vunpack.c.l.b16 %v2140
        %v2151 = vunpack.c.l.b16 %v2141
        %v2152 = vunpack.c.l.b16 %v2142
        %v2153 = vunpack.c.l.b16 %v2143
        %v2154 = vunpack.c.l.b16 %v2144
        %v2155 = vpack.c.b16 %v2151, %v2150
        %v2156 = vpack.c.b16 %v2153, %v2152
        %v2157 = vpack.c.b16 %v2154, %v2154
        %2158 = vrot.lane.b32.xlu0 %v2155, 71
        %v2159 = vpop.permute.xlu0 %2158
        %2160 = vrot.lane.b32.xlu0 %v2156, 71
        %v2161 = vpop.permute.xlu0 %2160
        %2162 = vrot.lane.b32.xlu0 %v2157, 71
        %v2163 = vpop.permute.xlu0 %2162
        %v2164 = vrot.slane %v2159, 4
        %v2165 = vrot.slane %v2161, 4
        %v2166 = vrot.slane %v2163, 4
        %v2167 = vsel %vm540, %v2164, %v2165
        %v2168 = vsel %vm714, %v2159, %v2167
        %v2169 = vsel %vm540, %v2165, %v2166
        %v2170 = vsel %vm714, %v2161, %v2169
        %2173 = vst [vmem:[#allocation3 + $0xa0] sm:$0x33] %v2168
        %2174 = vst [vmem:[#allocation3 + $0xa8] sm:$0x33] %v2170
        %v2175 = vld [vmem:[#allocation2 + $0x8] sm:$0xf]
        %v2176 = vld [vmem:[#allocation2 + $0x10] sm:$0xf]
        %v2177 = vld [vmem:[#allocation2 + $0x18] sm:$0xf]
        %v2178 = vld [vmem:[#allocation2 + $0x20] sm:$0xf]
        %v2179 = vld [vmem:[#allocation2 + $0x28] sm:$0xf]
        %v2180 = vld [vmem:[%s1929] ss:$8 sm:$0xf]
        %v2181 = vld [vmem:[%s471] ss:$8 sm:$0xf]
        %v2182 = vmul.f32 %v2180, %v2181
        %v2184 = vlaneseq
        %v2185 = vshrl.u32 %v2184, 7
        %v2186 = vsub.s32 0, %v2185
        %v2187 = vrot.slane %v2182, %v2186
        %v2188 = vlaneseq
        %v2189 = vshrl.u32 %v2188, 7
        %v2190 = vsub.s32 1, %v2189
        %v2191 = vrot.slane %v2182, %v2190
        %v2192 = vlaneseq
        %v2193 = vshrl.u32 %v2192, 7
        %v2194 = vsub.s32 2, %v2193
        %v2195 = vrot.slane %v2182, %v2194
        %v2196 = vlaneseq
        %v2197 = vshrl.u32 %v2196, 7
        %v2198 = vsub.s32 3, %v2197
        %v2199 = vrot.slane %v2182, %v2198
        %2200 = vrot.lane.b32.xlu0 %v2187, 63
        %v2201 = vpop.permute.xlu0 %2200
        %2202 = vrot.lane.b32.xlu0 %v2191, 63
        %v2203 = vpop.permute.xlu0 %2202
        %2204 = vrot.lane.b32.xlu0 %v2195, 63
        %v2205 = vpop.permute.xlu0 %2204
        %2206 = vrot.lane.b32.xlu0 %v2199, 63
        %v2207 = vpop.permute.xlu0 %2206
        %v2208 = vsel %vm755, %v2201, %v2203
        %v2209 = vsel %vm755, %v2203, %v2205
        %v2210 = vsel %vm755, %v2205, %v2207
        %v2216 = vmul.f32 %v2175, %v2201
        %v2217 = vmul.f32 %v2176, %v2208
        %v2218 = vmul.f32 %v2177, %v2209
        %v2219 = vmul.f32 %v2178, %v2210
        %v2220 = vmul.f32 %v2179, %v2207
        %v2221 = vpack.c.bf16 %v2216, %v2216
        %v2222 = vpack.c.bf16 %v2217, %v2217
        %v2223 = vpack.c.bf16 %v2218, %v2218
        %v2224 = vpack.c.bf16 %v2219, %v2219
        %v2225 = vpack.c.bf16 %v2220, %v2220
        %v2231 = vunpack.c.l.b16 %v2221
        %v2232 = vunpack.c.l.b16 %v2222
        %v2233 = vunpack.c.l.b16 %v2223
        %v2234 = vunpack.c.l.b16 %v2224
        %v2235 = vunpack.c.l.b16 %v2225
        %v2236 = vpack.c.b16 %v2232, %v2231
        %v2237 = vpack.c.b16 %v2234, %v2233
        %v2238 = vpack.c.b16 %v2235, %v2235
        %v2239 = vrot.slane %v2236, 6
        %v2240 = vrot.slane %v2237, 6
        %v2241 = vrot.slane %v2238, 6
        %2242 = vrot.lane.b32.xlu0 %v2239, 65
        %v2243 = vpop.permute.xlu0 %2242
        %2244 = vrot.lane.b32.xlu0 %v2240, 65
        %v2245 = vpop.permute.xlu0 %2244
        %2246 = vrot.lane.b32.xlu0 %v2241, 65
        %v2247 = vpop.permute.xlu0 %2246
        %v2248 = vrot.slane %v2243, 4
        %v2249 = vrot.slane %v2245, 4
        %v2250 = vrot.slane %v2247, 4
        %v2251 = vsel %vm540, %v2248, %v2249
        %v2252 = vsel %vm800, %v2243, %v2251
        %v2253 = vsel %vm540, %v2249, %v2250
        %v2254 = vsel %vm800, %v2245, %v2253
        %2257 = vst [vmem:[#allocation3 + $0xa0] sm:$0xcc] %v2252
        %2258 = vst [vmem:[#allocation3 + $0xa8] sm:$0xcc] %v2254
        %v2259 = vld [vmem:[#allocation2 + $0x8] sm:$0xf]
        %v2260 = vld [vmem:[#allocation2 + $0x10] sm:$0xf]
        %v2261 = vld [vmem:[#allocation2 + $0x18] sm:$0xf]
        %v2262 = vld [vmem:[#allocation2 + $0x20] sm:$0xf]
        %v2263 = vld [vmem:[#allocation2 + $0x28] sm:$0xf]
        %v2264 = vld [vmem:[%s1929] ss:$8 sm:$0xf]
        %v2266 = vlaneseq
        %v2267 = vshrl.u32 %v2266, 7
        %v2268 = vsub.s32 0, %v2267
        %v2269 = vrot.slane %v2264, %v2268
        %v2270 = vlaneseq
        %v2271 = vshrl.u32 %v2270, 7
        %v2272 = vsub.s32 1, %v2271
        %v2273 = vrot.slane %v2264, %v2272
        %v2274 = vlaneseq
        %v2275 = vshrl.u32 %v2274, 7
        %v2276 = vsub.s32 2, %v2275
        %v2277 = vrot.slane %v2264, %v2276
        %v2278 = vlaneseq
        %v2279 = vshrl.u32 %v2278, 7
        %v2280 = vsub.s32 3, %v2279
        %v2281 = vrot.slane %v2264, %v2280
        %2282 = vrot.lane.b32.xlu0 %v2269, 64
        %v2283 = vpop.permute.xlu0 %2282
        %2284 = vrot.lane.b32.xlu0 %v2273, 64
        %v2285 = vpop.permute.xlu0 %2284
        %2286 = vrot.lane.b32.xlu0 %v2277, 64
        %v2287 = vpop.permute.xlu0 %2286
        %2288 = vrot.lane.b32.xlu0 %v2281, 64
        %v2289 = vpop.permute.xlu0 %2288
        %v2290 = vsel %vm839, %v2283, %v2285
        %v2291 = vsel %vm839, %v2285, %v2287
        %v2292 = vsel %vm839, %v2287, %v2289
        %v2298 = vmul.f32 %v2259, %v2283
        %v2299 = vmul.f32 %v2260, %v2290
        %v2300 = vmul.f32 %v2261, %v2291
        %v2301 = vmul.f32 %v2262, %v2292
        %v2302 = vmul.f32 %v2263, %v2289
        %v2303 = vpack.c.bf16 %v2298, %v2298
        %v2304 = vpack.c.bf16 %v2299, %v2299
        %v2305 = vpack.c.bf16 %v2300, %v2300
        %v2306 = vpack.c.bf16 %v2301, %v2301
        %v2307 = vpack.c.bf16 %v2302, %v2302
        %v2313 = vunpack.c.l.b16 %v2303
        %v2314 = vunpack.c.l.b16 %v2304
        %v2315 = vunpack.c.l.b16 %v2305
        %v2316 = vunpack.c.l.b16 %v2306
        %v2317 = vunpack.c.l.b16 %v2307
        %v2318 = vpack.c.b16 %v2314, %v2313
        %v2319 = vpack.c.b16 %v2316, %v2315
        %v2320 = vpack.c.b16 %v2317, %v2317
        %2321 = vrot.lane.b32.xlu0 %v2318, 64
        %v2322 = vpop.permute.xlu0 %2321
        %2323 = vrot.lane.b32.xlu0 %v2319, 64
        %v2324 = vpop.permute.xlu0 %2323
        %2325 = vrot.lane.b32.xlu0 %v2320, 64
        %v2326 = vpop.permute.xlu0 %2325
        %v2327 = vrot.slane %v2322, 4
        %v2328 = vrot.slane %v2324, 4
        %v2329 = vrot.slane %v2326, 4
        %v2330 = vsel %vm540, %v2327, %v2328
        %v2331 = vsel %vm881, %v2322, %v2330
        %v2332 = vsel %vm540, %v2328, %v2329
        %v2333 = vsel %vm881, %v2324, %v2332
        %2336 = vst [vmem:[#allocation3 + $0xb0] sm:$0x33] %v2331
        %2337 = vst [vmem:[#allocation3 + $0xb8] sm:$0x33] %v2333
        %v2338 = vld [vmem:[#allocation2 + $0x8] sm:$0xf]
        %v2339 = vld [vmem:[#allocation2 + $0x10] sm:$0xf]
        %v2340 = vld [vmem:[#allocation2 + $0x18] sm:$0xf]
        %v2341 = vld [vmem:[#allocation2 + $0x20] sm:$0xf]
        %v2342 = vld [vmem:[#allocation2 + $0x28] sm:$0xf]
        %v2343 = vld [vmem:[%s1929] ss:$8 sm:$0xf]
        %v2344 = vld [vmem:[%s644] ss:$8 sm:$0xf]
        %v2345 = vmul.f32 %v2343, %v2344
        %v2347 = vlaneseq
        %v2348 = vshrl.u32 %v2347, 7
        %v2349 = vsub.s32 0, %v2348
        %v2350 = vrot.slane %v2345, %v2349
        %v2351 = vlaneseq
        %v2352 = vshrl.u32 %v2351, 7
        %v2353 = vsub.s32 1, %v2352
        %v2354 = vrot.slane %v2345, %v2353
        %v2355 = vlaneseq
        %v2356 = vshrl.u32 %v2355, 7
        %v2357 = vsub.s32 2, %v2356
        %v2358 = vrot.slane %v2345, %v2357
        %v2359 = vlaneseq
        %v2360 = vshrl.u32 %v2359, 7
        %v2361 = vsub.s32 3, %v2360
        %v2362 = vrot.slane %v2345, %v2361
        %2363 = vrot.lane.b32.xlu0 %v2350, 65
        %v2364 = vpop.permute.xlu0 %2363
        %2365 = vrot.lane.b32.xlu0 %v2354, 65
        %v2366 = vpop.permute.xlu0 %2365
        %2367 = vrot.lane.b32.xlu0 %v2358, 65
        %v2368 = vpop.permute.xlu0 %2367
        %2369 = vrot.lane.b32.xlu0 %v2362, 65
        %v2370 = vpop.permute.xlu0 %2369
        %v2371 = vsel %vm922, %v2364, %v2366
        %v2372 = vsel %vm922, %v2366, %v2368
        %v2373 = vsel %vm922, %v2368, %v2370
        %v2379 = vmul.f32 %v2338, %v2364
        %v2380 = vmul.f32 %v2339, %v2371
        %v2381 = vmul.f32 %v2340, %v2372
        %v2382 = vmul.f32 %v2341, %v2373
        %v2383 = vmul.f32 %v2342, %v2370
        %v2384 = vpack.c.bf16 %v2379, %v2379
        %v2385 = vpack.c.bf16 %v2380, %v2380
        %v2386 = vpack.c.bf16 %v2381, %v2381
        %v2387 = vpack.c.bf16 %v2382, %v2382
        %v2388 = vpack.c.bf16 %v2383, %v2383
        %v2394 = vunpack.c.l.b16 %v2384
        %v2395 = vunpack.c.l.b16 %v2385
        %v2396 = vunpack.c.l.b16 %v2386
        %v2397 = vunpack.c.l.b16 %v2387
        %v2398 = vunpack.c.l.b16 %v2388
        %v2399 = vpack.c.b16 %v2395, %v2394
        %v2400 = vpack.c.b16 %v2397, %v2396
        %v2401 = vpack.c.b16 %v2398, %v2398
        %v2402 = vrot.slane %v2399, 6
        %v2403 = vrot.slane %v2400, 6
        %v2404 = vrot.slane %v2401, 6
        %2405 = vrot.lane.b32.xlu0 %v2402, 63
        %v2406 = vpop.permute.xlu0 %2405
        %2407 = vrot.lane.b32.xlu0 %v2403, 63
        %v2408 = vpop.permute.xlu0 %2407
        %2409 = vrot.lane.b32.xlu0 %v2404, 63
        %v2410 = vpop.permute.xlu0 %2409
        %v2411 = vrot.slane %v2406, 4
        %v2412 = vrot.slane %v2408, 4
        %v2413 = vrot.slane %v2410, 4
        %v2414 = vsel %vm540, %v2411, %v2412
        %v2415 = vsel %vm967, %v2406, %v2414
        %v2416 = vsel %vm540, %v2412, %v2413
        %v2417 = vsel %vm967, %v2408, %v2416
        %2420 = vst [vmem:[#allocation3 + $0xb0] sm:$0xcc] %v2415
        %2421 = vst [vmem:[#allocation3 + $0xb8] sm:$0xcc] %v2417
        %v2422 = vld [vmem:[#allocation2 + $0x8] sm:$0xf]
        %v2423 = vld [vmem:[#allocation2 + $0x10] sm:$0xf]
        %v2424 = vld [vmem:[#allocation2 + $0x18] sm:$0xf]
        %v2425 = vld [vmem:[#allocation2 + $0x20] sm:$0xf]
        %v2426 = vld [vmem:[#allocation2 + $0x28] sm:$0xf]
        %v2427 = vld [vmem:[%s1929] ss:$8 sm:$0xf]
        %v2428 = vld [vmem:[%s981] ss:$8 sm:$0xf]
        %v2429 = vmul.f32 %v2427, %v2428
        %v2430 = vld [vmem:[%s471] ss:$8 sm:$0xf]
        %v2431 = vmul.f32 %v2429, %v2430
        %v2433 = vlaneseq
        %v2434 = vshrl.u32 %v2433, 7
        %v2435 = vsub.s32 0, %v2434
        %v2436 = vrot.slane %v2431, %v2435
        %v2437 = vlaneseq
        %v2438 = vshrl.u32 %v2437, 7
        %v2439 = vsub.s32 1, %v2438
        %v2440 = vrot.slane %v2431, %v2439
        %v2441 = vlaneseq
        %v2442 = vshrl.u32 %v2441, 7
        %v2443 = vsub.s32 2, %v2442
        %v2444 = vrot.slane %v2431, %v2443
        %v2445 = vlaneseq
        %v2446 = vshrl.u32 %v2445, 7
        %v2447 = vsub.s32 3, %v2446
        %v2448 = vrot.slane %v2431, %v2447
        %2449 = vrot.lane.b32.xlu0 %v2436, 71
        %v2450 = vpop.permute.xlu0 %2449
        %2451 = vrot.lane.b32.xlu0 %v2440, 71
        %v2452 = vpop.permute.xlu0 %2451
        %2453 = vrot.lane.b32.xlu0 %v2444, 71
        %v2454 = vpop.permute.xlu0 %2453
        %2455 = vrot.lane.b32.xlu0 %v2448, 71
        %v2456 = vpop.permute.xlu0 %2455
        %v2457 = vsel %vm1011, %v2450, %v2452
        %v2458 = vsel %vm1011, %v2452, %v2454
        %v2459 = vsel %vm1011, %v2454, %v2456
        %v2465 = vmul.f32 %v2422, %v2450
        %v2466 = vmul.f32 %v2423, %v2457
        %v2467 = vmul.f32 %v2424, %v2458
        %v2468 = vmul.f32 %v2425, %v2459
        %v2469 = vmul.f32 %v2426, %v2456
        %v2470 = vpack.c.bf16 %v2465, %v2465
        %v2471 = vpack.c.bf16 %v2466, %v2466
        %v2472 = vpack.c.bf16 %v2467, %v2467
        %v2473 = vpack.c.bf16 %v2468, %v2468
        %v2474 = vpack.c.bf16 %v2469, %v2469
        %v2480 = vunpack.c.l.b16 %v2470
        %v2481 = vunpack.c.l.b16 %v2471
        %v2482 = vunpack.c.l.b16 %v2472
        %v2483 = vunpack.c.l.b16 %v2473
        %v2484 = vunpack.c.l.b16 %v2474
        %v2485 = vpack.c.b16 %v2481, %v2480
        %v2486 = vpack.c.b16 %v2483, %v2482
        %v2487 = vpack.c.b16 %v2484, %v2484
        %2488 = vrot.lane.b32.xlu0 %v2485, 57
        %v2489 = vpop.permute.xlu0 %2488
        %2490 = vrot.lane.b32.xlu0 %v2486, 57
        %v2491 = vpop.permute.xlu0 %2490
        %2492 = vrot.lane.b32.xlu0 %v2487, 57
        %v2493 = vpop.permute.xlu0 %2492
        %v2494 = vrot.slane %v2489, 4
        %v2495 = vrot.slane %v2491, 4
        %v2496 = vrot.slane %v2493, 4
        %v2497 = vsel %vm540, %v2494, %v2495
        %v2498 = vsel %vm1053, %v2489, %v2497
        %v2499 = vsel %vm540, %v2495, %v2496
        %v2500 = vsel %vm1053, %v2491, %v2499
        %2503 = vst [vmem:[#allocation3 + $0xc0] sm:$0x33] %v2498
        %2504 = vst [vmem:[#allocation3 + $0xc8] sm:$0x33] %v2500
        %v2505 = vld [vmem:[#allocation2 + $0x8] sm:$0xf]
        %v2506 = vld [vmem:[#allocation2 + $0x10] sm:$0xf]
        %v2507 = vld [vmem:[#allocation2 + $0x18] sm:$0xf]
        %v2508 = vld [vmem:[#allocation2 + $0x20] sm:$0xf]
        %v2509 = vld [vmem:[#allocation2 + $0x28] sm:$0xf]
        %v2510 = vld [vmem:[%s1929] ss:$8 sm:$0xf]
        %v2511 = vld [vmem:[%s981] ss:$8 sm:$0xf]
        %v2512 = vmul.f32 %v2510, %v2511
        %v2514 = vlaneseq
        %v2515 = vshrl.u32 %v2514, 7
        %v2516 = vsub.s32 0, %v2515
        %v2517 = vrot.slane %v2512, %v2516
        %v2518 = vlaneseq
        %v2519 = vshrl.u32 %v2518, 7
        %v2520 = vsub.s32 1, %v2519
        %v2521 = vrot.slane %v2512, %v2520
        %v2522 = vlaneseq
        %v2523 = vshrl.u32 %v2522, 7
        %v2524 = vsub.s32 2, %v2523
        %v2525 = vrot.slane %v2512, %v2524
        %v2526 = vlaneseq
        %v2527 = vshrl.u32 %v2526, 7
        %v2528 = vsub.s32 3, %v2527
        %v2529 = vrot.slane %v2512, %v2528
        %2530 = vrot.lane.b32.xlu0 %v2517, 72
        %v2531 = vpop.permute.xlu0 %2530
        %2532 = vrot.lane.b32.xlu0 %v2521, 72
        %v2533 = vpop.permute.xlu0 %2532
        %2534 = vrot.lane.b32.xlu0 %v2525, 72
        %v2535 = vpop.permute.xlu0 %2534
        %2536 = vrot.lane.b32.xlu0 %v2529, 72
        %v2537 = vpop.permute.xlu0 %2536
        %v2538 = vsel %vm1094, %v2531, %v2533
        %v2539 = vsel %vm1094, %v2533, %v2535
        %v2540 = vsel %vm1094, %v2535, %v2537
        %v2546 = vmul.f32 %v2505, %v2531
        %v2547 = vmul.f32 %v2506, %v2538
        %v2548 = vmul.f32 %v2507, %v2539
        %v2549 = vmul.f32 %v2508, %v2540
        %v2550 = vmul.f32 %v2509, %v2537
        %v2551 = vpack.c.bf16 %v2546, %v2546
        %v2552 = vpack.c.bf16 %v2547, %v2547
        %v2553 = vpack.c.bf16 %v2548, %v2548
        %v2554 = vpack.c.bf16 %v2549, %v2549
        %v2555 = vpack.c.bf16 %v2550, %v2550
        %v2561 = vunpack.c.l.b16 %v2551
        %v2562 = vunpack.c.l.b16 %v2552
        %v2563 = vunpack.c.l.b16 %v2553
        %v2564 = vunpack.c.l.b16 %v2554
        %v2565 = vunpack.c.l.b16 %v2555
        %v2566 = vpack.c.b16 %v2562, %v2561
        %v2567 = vpack.c.b16 %v2564, %v2563
        %v2568 = vpack.c.b16 %v2565, %v2565
        %v2569 = vrot.slane %v2566, 6
        %v2570 = vrot.slane %v2567, 6
        %v2571 = vrot.slane %v2568, 6
        %2572 = vrot.lane.b32.xlu0 %v2569, 56
        %v2573 = vpop.permute.xlu0 %2572
        %2574 = vrot.lane.b32.xlu0 %v2570, 56
        %v2575 = vpop.permute.xlu0 %2574
        %2576 = vrot.lane.b32.xlu0 %v2571, 56
        %v2577 = vpop.permute.xlu0 %2576
        %v2578 = vrot.slane %v2573, 4
        %v2579 = vrot.slane %v2575, 4
        %v2580 = vrot.slane %v2577, 4
        %v2581 = vsel %vm540, %v2578, %v2579
        %v2582 = vsel %vm1139, %v2573, %v2581
        %v2583 = vsel %vm540, %v2579, %v2580
        %v2584 = vsel %vm1139, %v2575, %v2583
        %2587 = vst [vmem:[#allocation3 + $0xc0] sm:$0xcc] %v2582
        %2588 = vst [vmem:[#allocation3 + $0xc8] sm:$0xcc] %v2584
        %v2589 = vld [vmem:[#allocation2 + $0x8] sm:$0xf]
        %v2590 = vld [vmem:[#allocation2 + $0x10] sm:$0xf]
        %v2591 = vld [vmem:[#allocation2 + $0x18] sm:$0xf]
        %v2592 = vld [vmem:[#allocation2 + $0x20] sm:$0xf]
        %v2593 = vld [vmem:[#allocation2 + $0x28] sm:$0xf]
        %v2594 = vld [vmem:[%s1929] ss:$8 sm:$0xf]
        %v2595 = vld [vmem:[%s981] ss:$8 sm:$0xf]
        %v2596 = vmul.f32 %v2594, %v2595
        %v2597 = vld [vmem:[%s644] ss:$8 sm:$0xf]
        %v2598 = vmul.f32 %v2596, %v2597
        %v2600 = vlaneseq
        %v2601 = vshrl.u32 %v2600, 7
        %v2602 = vsub.s32 0, %v2601
        %v2603 = vrot.slane %v2598, %v2602
        %v2604 = vlaneseq
        %v2605 = vshrl.u32 %v2604, 7
        %v2606 = vsub.s32 1, %v2605
        %v2607 = vrot.slane %v2598, %v2606
        %v2608 = vlaneseq
        %v2609 = vshrl.u32 %v2608, 7
        %v2610 = vsub.s32 2, %v2609
        %v2611 = vrot.slane %v2598, %v2610
        %v2612 = vlaneseq
        %v2613 = vshrl.u32 %v2612, 7
        %v2614 = vsub.s32 3, %v2613
        %v2615 = vrot.slane %v2598, %v2614
        %2616 = vrot.lane.b32.xlu0 %v2603, 73
        %v2617 = vpop.permute.xlu0 %2616
        %2618 = vrot.lane.b32.xlu0 %v2607, 73
        %v2619 = vpop.permute.xlu0 %2618
        %2620 = vrot.lane.b32.xlu0 %v2611, 73
        %v2621 = vpop.permute.xlu0 %2620
        %2622 = vrot.lane.b32.xlu0 %v2615, 73
        %v2623 = vpop.permute.xlu0 %2622
        %v2624 = vsel %vm1182, %v2617, %v2619
        %v2625 = vsel %vm1182, %v2619, %v2621
        %v2626 = vsel %vm1182, %v2621, %v2623
        %v2632 = vmul.f32 %v2589, %v2617
        %v2633 = vmul.f32 %v2590, %v2624
        %v2634 = vmul.f32 %v2591, %v2625
        %v2635 = vmul.f32 %v2592, %v2626
        %v2636 = vmul.f32 %v2593, %v2623
        %v2637 = vpack.c.bf16 %v2632, %v2632
        %v2638 = vpack.c.bf16 %v2633, %v2633
        %v2639 = vpack.c.bf16 %v2634, %v2634
        %v2640 = vpack.c.bf16 %v2635, %v2635
        %v2641 = vpack.c.bf16 %v2636, %v2636
        %v2647 = vunpack.c.l.b16 %v2637
        %v2648 = vunpack.c.l.b16 %v2638
        %v2649 = vunpack.c.l.b16 %v2639
        %v2650 = vunpack.c.l.b16 %v2640
        %v2651 = vunpack.c.l.b16 %v2641
        %v2652 = vpack.c.b16 %v2648, %v2647
        %v2653 = vpack.c.b16 %v2650, %v2649
        %v2654 = vpack.c.b16 %v2651, %v2651
        %2655 = vrot.lane.b32.xlu0 %v2652, 55
        %v2656 = vpop.permute.xlu0 %2655
        %2657 = vrot.lane.b32.xlu0 %v2653, 55
        %v2658 = vpop.permute.xlu0 %2657
        %2659 = vrot.lane.b32.xlu0 %v2654, 55
        %v2660 = vpop.permute.xlu0 %2659
        %v2661 = vrot.slane %v2656, 4
        %v2662 = vrot.slane %v2658, 4
        %v2663 = vrot.slane %v2660, 4
        %v2664 = vsel %vm540, %v2661, %v2662
        %v2665 = vsel %vm1224, %v2656, %v2664
        %v2666 = vsel %vm540, %v2662, %v2663
        %v2667 = vsel %vm1224, %v2658, %v2666
        %2670 = vst [vmem:[#allocation3 + $0xd0] sm:$0x33] %v2665
        %2671 = vst [vmem:[#allocation3 + $0xd8] sm:$0x33] %v2667
        %v2672 = vld [vmem:[#allocation8] sm:$0xf]
        %v2673 = vld [vmem:[#allocation3] sm:$0xff]
        %v2674 = vld [vmem:[#allocation3 + $0x8] sm:$0xff]
        %v2675 = vld [vmem:[#allocation3 + $0x10] sm:$0xff]
        %v2676 = vld [vmem:[#allocation3 + $0x18] sm:$0xff]
        %v2677 = vld [vmem:[#allocation3 + $0x20] sm:$0xff]
        %v2678 = vld [vmem:[#allocation3 + $0x28] sm:$0xff]
        %v2679 = vld [vmem:[#allocation3 + $0x30] sm:$0xff]
        %v2680 = vld [vmem:[#allocation3 + $0x38] sm:$0xff]
        %v2681 = vld [vmem:[#allocation3 + $0x40] sm:$0xff]
        %v2682 = vld [vmem:[#allocation3 + $0x48] sm:$0xff]
        %v2683 = vld [vmem:[#allocation3 + $0x50] sm:$0xff]
        %v2684 = vld [vmem:[#allocation3 + $0x58] sm:$0xff]
        %v2685 = vld [vmem:[#allocation3 + $0x60] sm:$0xff]
        %v2686 = vld [vmem:[#allocation3 + $0x68] sm:$0xff]
        %v2687 = vld [vmem:[#allocation3 + $0x70] sm:$0xff]
        %v2688 = vld [vmem:[#allocation3 + $0x78] sm:$0xff]
        %v2689 = vld [vmem:[#allocation3 + $0x80] sm:$0xff]
        %v2690 = vld [vmem:[#allocation3 + $0x88] sm:$0xff]
        %v2691 = vld [vmem:[#allocation3 + $0x90] sm:$0xff]
        %v2692 = vld [vmem:[#allocation3 + $0x98] sm:$0xff]
        %v2693 = vld [vmem:[#allocation3 + $0xa0] sm:$0xff]
        %v2694 = vld [vmem:[#allocation3 + $0xa8] sm:$0xff]
        %v2695 = vld [vmem:[#allocation3 + $0xb0] sm:$0xff]
        %v2696 = vld [vmem:[#allocation3 + $0xb8] sm:$0xff]
        %v2697 = vld [vmem:[#allocation3 + $0xc0] sm:$0xff]
        %v2698 = vld [vmem:[#allocation3 + $0xc8] sm:$0xff]
        %v2699 = vld [vmem:[#allocation3 + $0xd0] sm:$0x33]
        %v2700 = vld [vmem:[#allocation3 + $0xd8] sm:$0x33]
        %v2729 = vunpack.c.l.b16 %v2673
        %v2730 = vunpack.c.h.b16 %v2673
        %v2731 = vunpack.c.l.b16 %v2674
        %v2732 = vunpack.c.h.b16 %v2674
        %v2733 = vunpack.c.l.b16 %v2675
        %v2734 = vunpack.c.h.b16 %v2675
        %v2735 = vunpack.c.l.b16 %v2676
        %v2736 = vunpack.c.h.b16 %v2676
        %v2737 = vunpack.c.l.b16 %v2677
        %v2738 = vunpack.c.h.b16 %v2677
        %v2739 = vunpack.c.l.b16 %v2678
        %v2740 = vunpack.c.h.b16 %v2678
        %v2741 = vunpack.c.l.b16 %v2679
        %v2742 = vunpack.c.h.b16 %v2679
        %v2743 = vunpack.c.l.b16 %v2680
        %v2744 = vunpack.c.h.b16 %v2680
        %v2745 = vunpack.c.l.b16 %v2681
        %v2746 = vunpack.c.h.b16 %v2681
        %v2747 = vunpack.c.l.b16 %v2682
        %v2748 = vunpack.c.h.b16 %v2682
        %v2749 = vunpack.c.l.b16 %v2683
        %v2750 = vunpack.c.h.b16 %v2683
        %v2751 = vunpack.c.l.b16 %v2684
        %v2752 = vunpack.c.h.b16 %v2684
        %v2753 = vunpack.c.l.b16 %v2685
        %v2754 = vunpack.c.h.b16 %v2685
        %v2755 = vunpack.c.l.b16 %v2686
        %v2756 = vunpack.c.h.b16 %v2686
        %v2757 = vunpack.c.l.b16 %v2687
        %v2758 = vunpack.c.h.b16 %v2687
        %v2759 = vunpack.c.l.b16 %v2688
        %v2760 = vunpack.c.h.b16 %v2688
        %v2761 = vunpack.c.l.b16 %v2689
        %v2762 = vunpack.c.h.b16 %v2689
        %v2763 = vunpack.c.l.b16 %v2690
        %v2764 = vunpack.c.h.b16 %v2690
        %v2765 = vunpack.c.l.b16 %v2691
        %v2766 = vunpack.c.h.b16 %v2691
        %v2767 = vunpack.c.l.b16 %v2692
        %v2768 = vunpack.c.h.b16 %v2692
        %v2769 = vunpack.c.l.b16 %v2693
        %v2770 = vunpack.c.h.b16 %v2693
        %v2771 = vunpack.c.l.b16 %v2694
        %v2772 = vunpack.c.h.b16 %v2694
        %v2773 = vunpack.c.l.b16 %v2695
        %v2774 = vunpack.c.h.b16 %v2695
        %v2775 = vunpack.c.l.b16 %v2696
        %v2776 = vunpack.c.h.b16 %v2696
        %v2777 = vunpack.c.l.b16 %v2697
        %v2778 = vunpack.c.h.b16 %v2697
        %v2779 = vunpack.c.l.b16 %v2698
        %v2780 = vunpack.c.h.b16 %v2698
        %v2781 = vunpack.c.l.b16 %v2699
        %v2782 = vunpack.c.h.b16 %v2699
        %v2783 = vunpack.c.l.b16 %v2700
        %v2784 = vunpack.c.h.b16 %v2700
        %v2785 = vpack.c.b16 %v2733, %v2729
        %v2786 = vpack.c.b16 %v2734, %v2730
        %v2787 = vpack.c.b16 %v2735, %v2731
        %v2788 = vpack.c.b16 %v2736, %v2732
        %v2789 = vpack.c.b16 %v2741, %v2737
        %v2790 = vpack.c.b16 %v2742, %v2738
        %v2791 = vpack.c.b16 %v2743, %v2739
        %v2792 = vpack.c.b16 %v2744, %v2740
        %v2793 = vpack.c.b16 %v2749, %v2745
        %v2794 = vpack.c.b16 %v2750, %v2746
        %v2795 = vpack.c.b16 %v2751, %v2747
        %v2796 = vpack.c.b16 %v2752, %v2748
        %v2797 = vpack.c.b16 %v2757, %v2753
        %v2798 = vpack.c.b16 %v2758, %v2754
        %v2799 = vpack.c.b16 %v2759, %v2755
        %v2800 = vpack.c.b16 %v2760, %v2756
        %v2801 = vpack.c.b16 %v2765, %v2761
        %v2802 = vpack.c.b16 %v2766, %v2762
        %v2803 = vpack.c.b16 %v2767, %v2763
        %v2804 = vpack.c.b16 %v2768, %v2764
        %v2805 = vpack.c.b16 %v2773, %v2769
        %v2806 = vpack.c.b16 %v2774, %v2770
        %v2807 = vpack.c.b16 %v2775, %v2771
        %v2808 = vpack.c.b16 %v2776, %v2772
        %v2809 = vpack.c.b16 %v2781, %v2777
        %v2810 = vpack.c.b16 %v2782, %v2778
        %v2811 = vpack.c.b16 %v2783, %v2779
        %v2812 = vpack.c.b16 %v2784, %v2780
        %vm2837 = vcmask 883712
        %v2839 = vsel %vm2837, %v2672, 0
        %vm2841 = vcmask 1045504
        %v2843 = vsel %vm2841, %v2809, 0
        %v2846 = vsel %vm2841, %v2810, 0
        %v2849 = vsel %vm2841, %v2811, 0
        %v2852 = vsel %vm2841, %v2812, 0
        %2854 = vmatprep.subr.bf16.mxu0 %v2786
        %2855 = vmatpush1.bf16.msra.mxu0 %v2785
        %2856 = vmatprep.subr.bf16.mxu0 %v2790
        %2857 = vmatpush1.bf16.msra.mxu0 %v2789
        %2858 = vmatprep.subr.bf16.mxu0 %v2794
        %2859 = vmatpush1.bf16.msra.mxu0 %v2793
        %2860 = vmatprep.subr.bf16.mxu0 %v2798
        %2861 = vmatpush1.bf16.msra.mxu0 %v2797
        %2862 = vmatprep.subr.bf16.mxu0 %v2802
        %2863 = vmatpush1.bf16.msra.mxu0 %v2801
        %2864 = vmatprep.subr.bf16.mxu0 %v2806
        %2865 = vmatpush1.bf16.msra.mxu0 %v2805
        %2866 = vmatprep.subr.bf16.mxu0 %v2846
        %2867 = vmatpush1.bf16.msra.mxu0 %v2843
        %2868 = vmatprep.subr.bf16.mxu0 0
        %2869 = vmatpush1.bf16.msra.mxu0 0
        %2870 = vmatprep.subr.bf16.mxu0 0
        %2871 = vmatpush1.bf16.msra.mxu0 0
        %2872 = vmatprep.subr.bf16.mxu0 0
        %2873 = vmatpush1.bf16.msra.mxu0 0
        %2874 = vmatprep.subr.bf16.mxu0 0
        %2875 = vmatpush1.bf16.msra.mxu0 0
        %2876 = vmatprep.subr.bf16.mxu0 0
        %2877 = vmatpush1.bf16.msra.mxu0 0
        %2878 = vmatprep.subr.bf16.mxu0 0
        %2879 = vmatpush1.bf16.msra.mxu0 0
        %2880 = vmatprep.subr.bf16.mxu0 0
        %2881 = vmatpush1.bf16.msra.mxu0 0
        %2882 = vmatprep.subr.bf16.mxu0 0
        %2883 = vmatpush1.bf16.msra.mxu0 0
        %2884 = vmatprep.subr.bf16.mxu0 0
        %2885 = vmatpush1.bf16.msra.mxu0 0
        %2886 = vmatprep.mubr.bf16.mxu0 0
        %2887 = vmatmul.mubr.bf16.gmra.mrb[0].mxu0 %v2839
        %v2888 = vpop.f32.mrb[0].mxu0
        %v2889 = vadd.f32 0.0, %v2888
        %v2890 = vpop.f32.mrb[0].mxu0
        %v2891 = vadd.f32 0.0, %v2890
        %v2892 = vpop.f32.mrb[0].mxu0
        %v2893 = vpop.f32.mrb[0].mxu0
        %2894 = vdwg.mxu0
        %2895 = vmatprep.subr.bf16.mxu0 %v2788
        %2896 = vmatpush1.bf16.msra.mxu0 %v2787
        %2897 = vmatprep.subr.bf16.mxu0 %v2792
        %2898 = vmatpush1.bf16.msra.mxu0 %v2791
        %2899 = vmatprep.subr.bf16.mxu0 %v2796
        %2900 = vmatpush1.bf16.msra.mxu0 %v2795
        %2901 = vmatprep.subr.bf16.mxu0 %v2800
        %2902 = vmatpush1.bf16.msra.mxu0 %v2799
        %2903 = vmatprep.subr.bf16.mxu0 %v2804
        %2904 = vmatpush1.bf16.msra.mxu0 %v2803
        %2905 = vmatprep.subr.bf16.mxu0 %v2808
        %2906 = vmatpush1.bf16.msra.mxu0 %v2807
        %2907 = vmatprep.subr.bf16.mxu0 %v2852
        %2908 = vmatpush1.bf16.msra.mxu0 %v2849
        %2909 = vmatprep.subr.bf16.mxu0 0
        %2910 = vmatpush1.bf16.msra.mxu0 0
        %2911 = vmatprep.subr.bf16.mxu0 0
        %2912 = vmatpush1.bf16.msra.mxu0 0
        %2913 = vmatprep.subr.bf16.mxu0 0
        %2914 = vmatpush1.bf16.msra.mxu0 0
        %2915 = vmatprep.subr.bf16.mxu0 0
        %2916 = vmatpush1.bf16.msra.mxu0 0
        %2917 = vmatprep.subr.bf16.mxu0 0
        %2918 = vmatpush1.bf16.msra.mxu0 0
        %2919 = vmatprep.subr.bf16.mxu0 0
        %2920 = vmatpush1.bf16.msra.mxu0 0
        %2921 = vmatprep.subr.bf16.mxu0 0
        %2922 = vmatpush1.bf16.msra.mxu0 0
        %2923 = vmatprep.subr.bf16.mxu0 0
        %2924 = vmatpush1.bf16.msra.mxu0 0
        %2925 = vmatprep.subr.bf16.mxu0 0
        %2926 = vmatpush1.bf16.msra.mxu0 0
        %2927 = vmatprep.mubr.bf16.mxu0 0
        %2928 = vmatmul.mubr.bf16.gmra.mrb[0].mxu0 %v2839
        %v2929 = vpop.f32.mrb[0].mxu0
        %v2930 = vadd.f32 0.0, %v2929
        %v2931 = vpop.f32.mrb[0].mxu0
        %v2932 = vadd.f32 0.0, %v2931
        %v2933 = vpop.f32.mrb[0].mxu0
        %v2934 = vpop.f32.mrb[0].mxu0
        %2935 = vdwg.mxu0
        %v2936 = vld [vmem:[#allocation13] sm:$0xff]
        %v2937 = vadd.f32 %v2889, %v2891
        %v2938 = vadd.f32 %v2937, %v2930
        %v2939 = vadd.f32 %v2938, %v2932
        %2940 = vadd.xlane.f32.xlu0 %v2939
        %v2941 = vpop.xlane.xlu0 %2940
        %v2942 = vld [vmem:[%s5] sm:$0xff]
        %v2943 = vmul.f32 %v2941, %v2942
        %v2944 = vsel %vm1621, %v2943, 0.0
        %2945 = vadd.xlane.f32.xlu0 %v2944
        %v2946 = vpop.xlane.xlu0 %2945
        %v2947 = vrot.slane %v2946, 4
        %v2948 = vadd.f32 %v2946, %v2947
        %v2949 = vrot.slane %v2948, 2
        %v2950 = vadd.f32 %v2948, %v2949
        %v2951 = vrot.slane %v2950, 1
        %v2952 = vadd.f32 %v2950, %v2951
        %s2953 = vtos %v2952
        %s2954 = smul.f32 %s2953, 0.0009765625
        %v2955 = vstv %s2954
        %v2956 = vmul.f32 %v2942, %v2955
        %v2957 = vadd.f32 %v2956, 0.0
        %2959 = vrot.lane.b32.xlu0 %v2943, 127
        %v2960 = vpop.permute.xlu0 %2959
        %v2962 = vsel %vm1621, %v2960, 0.0
        %2963 = vadd.xlane.f32.xlu0 %v2962
        %v2964 = vpop.xlane.xlu0 %2963
        %v2965 = vrot.slane %v2964, 4
        %v2966 = vadd.f32 %v2964, %v2965
        %v2967 = vrot.slane %v2966, 2
        %v2968 = vadd.f32 %v2966, %v2967
        %v2969 = vrot.slane %v2968, 1
        %v2970 = vadd.f32 %v2968, %v2969
        %s2971 = vtos %v2970
        %s2972 = smul.f32 %s2971, 0.0009765625
        %v2973 = vstv %s2972
        %v2974 = vmul.f32 %v2942, %v2973
        %2976 = vrot.lane.b32.xlu0 %v2974, 127
        %v2977 = vpop.permute.xlu0 %2976
        %v2979 = vadd.f32 %v2957, %v2977
        %2980 = vrot.lane.b32.xlu0 %v2943, 126
        %v2981 = vpop.permute.xlu0 %2980
        %v2983 = vsel %vm1621, %v2981, 0.0
        %2984 = vadd.xlane.f32.xlu0 %v2983
        %v2985 = vpop.xlane.xlu0 %2984
        %v2986 = vrot.slane %v2985, 4
        %v2987 = vadd.f32 %v2985, %v2986
        %v2988 = vrot.slane %v2987, 2
        %v2989 = vadd.f32 %v2987, %v2988
        %v2990 = vrot.slane %v2989, 1
        %v2991 = vadd.f32 %v2989, %v2990
        %s2992 = vtos %v2991
        %s2993 = smul.f32 %s2992, 0.0009765625
        %v2994 = vstv %s2993
        %v2995 = vmul.f32 %v2942, %v2994
        %2997 = vrot.lane.b32.xlu0 %v2995, 126
        %v2998 = vpop.permute.xlu0 %2997
        %v3000 = vadd.f32 %v2979, %v2998
        %3001 = vrot.lane.b32.xlu0 %v2943, 125
        %v3002 = vpop.permute.xlu0 %3001
        %v3004 = vsel %vm1621, %v3002, 0.0
        %3005 = vadd.xlane.f32.xlu0 %v3004
        %v3006 = vpop.xlane.xlu0 %3005
        %v3007 = vrot.slane %v3006, 4
        %v3008 = vadd.f32 %v3006, %v3007
        %v3009 = vrot.slane %v3008, 2
        %v3010 = vadd.f32 %v3008, %v3009
        %v3011 = vrot.slane %v3010, 1
        %v3012 = vadd.f32 %v3010, %v3011
        %s3013 = vtos %v3012
        %s3014 = smul.f32 %s3013, 0.0009765625
        %v3015 = vstv %s3014
        %v3016 = vmul.f32 %v2942, %v3015
        %3018 = vrot.lane.b32.xlu0 %v3016, 125
        %v3019 = vpop.permute.xlu0 %3018
        %v3021 = vadd.f32 %v3000, %v3019
        %3023 = vset.pattern.permute.xlu0 0
        %3024 = vperm.xlu0 %3023, %v3021
        %v3025 = vpop.permute.xlu0 %3024
        %v3027 = vsub.f32 %v2889, %v3025
        %v3028 = vsub.f32 %v2891, %v3025
        %v3029 = vsub.f32 %v2930, %v3025
        %v3030 = vsub.f32 %v2932, %v3025
        %v3031 = vmul.f32 %v3027, %v3027
        %v3032 = vmul.f32 %v3028, %v3028
        %v3033 = vmul.f32 %v3029, %v3029
        %v3034 = vmul.f32 %v3030, %v3030
        %v3035 = vadd.f32 %v3031, %v3032
        %v3036 = vadd.f32 %v3035, %v3033
        %v3037 = vadd.f32 %v3036, %v3034
        %3038 = vadd.xlane.f32.xlu0 %v3037
        %v3039 = vpop.xlane.xlu0 %3038
        %v3040 = vmul.f32 %v3039, %v2942
        %v3041 = vsel %vm1621, %v3040, 0.0
        %3042 = vadd.xlane.f32.xlu0 %v3041
        %v3043 = vpop.xlane.xlu0 %3042
        %v3044 = vrot.slane %v3043, 4
        %v3045 = vadd.f32 %v3043, %v3044
        %v3046 = vrot.slane %v3045, 2
        %v3047 = vadd.f32 %v3045, %v3046
        %v3048 = vrot.slane %v3047, 1
        %v3049 = vadd.f32 %v3047, %v3048
        %s3050 = vtos %v3049
        %s3051 = smul.f32 %s3050, 0.0009765625
        %v3052 = vstv %s3051
        %v3053 = vmul.f32 %v2942, %v3052
        %v3054 = vadd.f32 %v3053, 0.0
        %3056 = vrot.lane.b32.xlu0 %v3040, 127
        %v3057 = vpop.permute.xlu0 %3056
        %v3059 = vsel %vm1621, %v3057, 0.0
        %3060 = vadd.xlane.f32.xlu0 %v3059
        %v3061 = vpop.xlane.xlu0 %3060
        %v3062 = vrot.slane %v3061, 4
        %v3063 = vadd.f32 %v3061, %v3062
        %v3064 = vrot.slane %v3063, 2
        %v3065 = vadd.f32 %v3063, %v3064
        %v3066 = vrot.slane %v3065, 1
        %v3067 = vadd.f32 %v3065, %v3066
        %s3068 = vtos %v3067
        %s3069 = smul.f32 %s3068, 0.0009765625
        %v3070 = vstv %s3069
        %v3071 = vmul.f32 %v2942, %v3070
        %3073 = vrot.lane.b32.xlu0 %v3071, 127
        %v3074 = vpop.permute.xlu0 %3073
        %v3076 = vadd.f32 %v3054, %v3074
        %3077 = vrot.lane.b32.xlu0 %v3040, 126
        %v3078 = vpop.permute.xlu0 %3077
        %v3080 = vsel %vm1621, %v3078, 0.0
        %3081 = vadd.xlane.f32.xlu0 %v3080
        %v3082 = vpop.xlane.xlu0 %3081
        %v3083 = vrot.slane %v3082, 4
        %v3084 = vadd.f32 %v3082, %v3083
        %v3085 = vrot.slane %v3084, 2
        %v3086 = vadd.f32 %v3084, %v3085
        %v3087 = vrot.slane %v3086, 1
        %v3088 = vadd.f32 %v3086, %v3087
        %s3089 = vtos %v3088
        %s3090 = smul.f32 %s3089, 0.0009765625
        %v3091 = vstv %s3090
        %v3092 = vmul.f32 %v2942, %v3091
        %3094 = vrot.lane.b32.xlu0 %v3092, 126
        %v3095 = vpop.permute.xlu0 %3094
        %v3097 = vadd.f32 %v3076, %v3095
        %3098 = vrot.lane.b32.xlu0 %v3040, 125
        %v3099 = vpop.permute.xlu0 %3098
        %v3101 = vsel %vm1621, %v3099, 0.0
        %3102 = vadd.xlane.f32.xlu0 %v3101
        %v3103 = vpop.xlane.xlu0 %3102
        %v3104 = vrot.slane %v3103, 4
        %v3105 = vadd.f32 %v3103, %v3104
        %v3106 = vrot.slane %v3105, 2
        %v3107 = vadd.f32 %v3105, %v3106
        %v3108 = vrot.slane %v3107, 1
        %v3109 = vadd.f32 %v3107, %v3108
        %s3110 = vtos %v3109
        %s3111 = smul.f32 %s3110, 0.0009765625
        %v3112 = vstv %s3111
        %v3113 = vmul.f32 %v2942, %v3112
        %3115 = vrot.lane.b32.xlu0 %v3113, 125
        %v3116 = vpop.permute.xlu0 %3115
        %v3118 = vadd.f32 %v3097, %v3116
        %v3119 = vadd.f32 %v3118, 1e-05
        %v3120 = vrsqrt.pop %v3119
        %3122 = vset.pattern.permute.xlu0 0
        %3123 = vperm.xlu0 %3122, %v3120
        %v3124 = vpop.permute.xlu0 %3123
        %v3126 = vmul.f32 %v3027, %v3124
        %v3127 = vmul.f32 %v3028, %v3124
        %v3128 = vmul.f32 %v3029, %v3124
        %v3129 = vmul.f32 %v3030, %v3124
        %3131 = vset.pattern.permute.xlu0 0
        %3132 = vperm.xlu0 %3131, %v2936
        %v3133 = vpop.permute.xlu0 %3132
        %v3135 = vmul.f32 %v3126, %v3133
        %v3136 = vmul.f32 %v3127, %v3133
        %v3137 = vmul.f32 %v3128, %v3133
        %v3138 = vmul.f32 %v3129, %v3133
        %3139 = vset.pattern.permute.xlu0 1
        %3140 = vperm.xlu0 %3139, %v2936
        %v3141 = vpop.permute.xlu0 %3140
        %v3143 = vadd.f32 %v3135, %v3141
        %v3144 = vadd.f32 %v3136, %v3141
        %v3145 = vadd.f32 %v3137, %v3141
        %v3146 = vadd.f32 %v3138, %v3141
        %3147 = vst [vmem:[#allocation2 + $0x8] sm:$0xff] %v3143
        %3148 = vst [vmem:[#allocation2 + $0x10] sm:$0xff] %v3144
        %3149 = vst [vmem:[#allocation2 + $0x18] sm:$0xff] %v3145
        %3150 = vst [vmem:[#allocation2 + $0x20] sm:$0xff] %v3146
        %v3151 = vld [vmem:[#allocation2] sm:$0xff]
        %v3152 = vld [vmem:[#allocation2 + $0x8] sm:$0xff]
        %v3153 = vld [vmem:[#allocation2 + $0x10] sm:$0xff]
        %v3154 = vld [vmem:[#allocation2 + $0x18] sm:$0xff]
        %v3155 = vld [vmem:[#allocation2 + $0x20] sm:$0xff]
        %v3156 = vld [vmem:[%s6] ss:$8 sm:$0xf]
        %v3157 = vld [vmem:[%s468] ss:$8 sm:$0xf]
        %v3158 = vmul.f32 %v3156, %v3157
        %v3159 = vld [vmem:[%s471] ss:$8 sm:$0xf]
        %v3160 = vmul.f32 %v3158, %v3159
        %v3162 = vlaneseq
        %v3163 = vshrl.u32 %v3162, 7
        %v3164 = vsub.s32 0, %v3163
        %v3165 = vrot.slane %v3160, %v3164
        %v3166 = vlaneseq
        %v3167 = vshrl.u32 %v3166, 7
        %v3168 = vsub.s32 1, %v3167
        %v3169 = vrot.slane %v3160, %v3168
        %v3170 = vlaneseq
        %v3171 = vshrl.u32 %v3170, 7
        %v3172 = vsub.s32 2, %v3171
        %v3173 = vrot.slane %v3160, %v3172
        %v3174 = vlaneseq
        %v3175 = vshrl.u32 %v3174, 7
        %v3176 = vsub.s32 3, %v3175
        %v3177 = vrot.slane %v3160, %v3176
        %3178 = vrot.lane.b32.xlu0 %v3165, 55
        %v3179 = vpop.permute.xlu0 %3178
        %3180 = vrot.lane.b32.xlu0 %v3169, 55
        %v3181 = vpop.permute.xlu0 %3180
        %3182 = vrot.lane.b32.xlu0 %v3173, 55
        %v3183 = vpop.permute.xlu0 %3182
        %3184 = vrot.lane.b32.xlu0 %v3177, 55
        %v3185 = vpop.permute.xlu0 %3184
        %v3186 = vsel %vm499, %v3179, %v3181
        %v3187 = vsel %vm499, %v3181, %v3183
        %v3188 = vsel %vm499, %v3183, %v3185
        %v3194 = vmul.f32 %v3151, %v3179
        %v3195 = vmul.f32 %v3152, %v3186
        %v3196 = vmul.f32 %v3153, %v3187
        %v3197 = vmul.f32 %v3154, %v3188
        %v3198 = vmul.f32 %v3155, %v3185
        %v3199 = vpack.c.bf16 %v3194, %v3194
        %v3200 = vpack.c.bf16 %v3195, %v3195
        %v3201 = vpack.c.bf16 %v3196, %v3196
        %v3202 = vpack.c.bf16 %v3197, %v3197
        %v3203 = vpack.c.bf16 %v3198, %v3198
        %v3209 = vunpack.c.l.b16 %v3199
        %v3210 = vunpack.c.l.b16 %v3200
        %v3211 = vunpack.c.l.b16 %v3201
        %v3212 = vunpack.c.l.b16 %v3202
        %v3213 = vunpack.c.l.b16 %v3203
        %v3214 = vpack.c.b16 %v3210, %v3209
        %v3215 = vpack.c.b16 %v3212, %v3211
        %v3216 = vpack.c.b16 %v3213, %v3213
        %3217 = vrot.lane.b32.xlu0 %v3214, 73
        %v3218 = vpop.permute.xlu0 %3217
        %3219 = vrot.lane.b32.xlu0 %v3215, 73
        %v3220 = vpop.permute.xlu0 %3219
        %3221 = vrot.lane.b32.xlu0 %v3216, 73
        %v3222 = vpop.permute.xlu0 %3221
        %v3223 = vrot.slane %v3218, 4
        %v3224 = vrot.slane %v3220, 4
        %v3225 = vrot.slane %v3222, 4
        %v3226 = vsel %vm540, %v3223, %v3224
        %v3227 = vsel %vm542, %v3218, %v3226
        %v3228 = vsel %vm540, %v3224, %v3225
        %v3229 = vsel %vm542, %v3220, %v3228
        %3232 = vst [vmem:[#allocation4] sm:$0xff] %v3227
        %3233 = vst [vmem:[#allocation4 + $0x8] sm:$0xff] %v3229
        %v3234 = vld [vmem:[#allocation2] sm:$0xff]
        %v3235 = vld [vmem:[#allocation2 + $0x8] sm:$0xff]
        %v3236 = vld [vmem:[#allocation2 + $0x10] sm:$0xff]
        %v3237 = vld [vmem:[#allocation2 + $0x18] sm:$0xff]
        %v3238 = vld [vmem:[#allocation2 + $0x20] sm:$0xff]
        %v3239 = vld [vmem:[%s6] ss:$8 sm:$0xf]
        %v3240 = vld [vmem:[%s468] ss:$8 sm:$0xf]
        %v3241 = vmul.f32 %v3239, %v3240
        %v3243 = vlaneseq
        %v3244 = vshrl.u32 %v3243, 7
        %v3245 = vsub.s32 0, %v3244
        %v3246 = vrot.slane %v3241, %v3245
        %v3247 = vlaneseq
        %v3248 = vshrl.u32 %v3247, 7
        %v3249 = vsub.s32 1, %v3248
        %v3250 = vrot.slane %v3241, %v3249
        %v3251 = vlaneseq
        %v3252 = vshrl.u32 %v3251, 7
        %v3253 = vsub.s32 2, %v3252
        %v3254 = vrot.slane %v3241, %v3253
        %v3255 = vlaneseq
        %v3256 = vshrl.u32 %v3255, 7
        %v3257 = vsub.s32 3, %v3256
        %v3258 = vrot.slane %v3241, %v3257
        %3259 = vrot.lane.b32.xlu0 %v3246, 56
        %v3260 = vpop.permute.xlu0 %3259
        %3261 = vrot.lane.b32.xlu0 %v3250, 56
        %v3262 = vpop.permute.xlu0 %3261
        %3263 = vrot.lane.b32.xlu0 %v3254, 56
        %v3264 = vpop.permute.xlu0 %3263
        %3265 = vrot.lane.b32.xlu0 %v3258, 56
        %v3266 = vpop.permute.xlu0 %3265
        %v3267 = vsel %vm583, %v3260, %v3262
        %v3268 = vsel %vm583, %v3262, %v3264
        %v3269 = vsel %vm583, %v3264, %v3266
        %v3275 = vmul.f32 %v3234, %v3260
        %v3276 = vmul.f32 %v3235, %v3267
        %v3277 = vmul.f32 %v3236, %v3268
        %v3278 = vmul.f32 %v3237, %v3269
        %v3279 = vmul.f32 %v3238, %v3266
        %v3280 = vpack.c.bf16 %v3275, %v3275
        %v3281 = vpack.c.bf16 %v3276, %v3276
        %v3282 = vpack.c.bf16 %v3277, %v3277
        %v3283 = vpack.c.bf16 %v3278, %v3278
        %v3284 = vpack.c.bf16 %v3279, %v3279
        %v3290 = vunpack.c.l.b16 %v3280
        %v3291 = vunpack.c.l.b16 %v3281
        %v3292 = vunpack.c.l.b16 %v3282
        %v3293 = vunpack.c.l.b16 %v3283
        %v3294 = vunpack.c.l.b16 %v3284
        %v3295 = vpack.c.b16 %v3291, %v3290
        %v3296 = vpack.c.b16 %v3293, %v3292
        %v3297 = vpack.c.b16 %v3294, %v3294
        %3298 = vrot.lane.b32.xlu0 %v3295, 72
        %v3299 = vpop.permute.xlu0 %3298
        %3300 = vrot.lane.b32.xlu0 %v3296, 72
        %v3301 = vpop.permute.xlu0 %3300
        %3302 = vrot.lane.b32.xlu0 %v3297, 72
        %v3303 = vpop.permute.xlu0 %3302
        %v3304 = vrot.slane %v3299, 4
        %v3305 = vrot.slane %v3301, 4
        %v3306 = vrot.slane %v3303, 4
        %v3307 = vsel %vm540, %v3304, %v3305
        %v3308 = vsel %vm628, %v3299, %v3307
        %v3309 = vsel %vm540, %v3305, %v3306
        %v3310 = vsel %vm628, %v3301, %v3309
        %3313 = vst [vmem:[#allocation4 + $0x10] sm:$0xff] %v3308
        %3314 = vst [vmem:[#allocation4 + $0x18] sm:$0xff] %v3310
        %v3315 = vld [vmem:[#allocation2] sm:$0xff]
        %v3316 = vld [vmem:[#allocation2 + $0x8] sm:$0xff]
        %v3317 = vld [vmem:[#allocation2 + $0x10] sm:$0xff]
        %v3318 = vld [vmem:[#allocation2 + $0x18] sm:$0xff]
        %v3319 = vld [vmem:[#allocation2 + $0x20] sm:$0xff]
        %v3320 = vld [vmem:[%s6] ss:$8 sm:$0xf]
        %v3321 = vld [vmem:[%s468] ss:$8 sm:$0xf]
        %v3322 = vmul.f32 %v3320, %v3321
        %v3323 = vld [vmem:[%s644] ss:$8 sm:$0xf]
        %v3324 = vmul.f32 %v3322, %v3323
        %v3326 = vlaneseq
        %v3327 = vshrl.u32 %v3326, 7
        %v3328 = vsub.s32 0, %v3327
        %v3329 = vrot.slane %v3324, %v3328
        %v3330 = vlaneseq
        %v3331 = vshrl.u32 %v3330, 7
        %v3332 = vsub.s32 1, %v3331
        %v3333 = vrot.slane %v3324, %v3332
        %v3334 = vlaneseq
        %v3335 = vshrl.u32 %v3334, 7
        %v3336 = vsub.s32 2, %v3335
        %v3337 = vrot.slane %v3324, %v3336
        %v3338 = vlaneseq
        %v3339 = vshrl.u32 %v3338, 7
        %v3340 = vsub.s32 3, %v3339
        %v3341 = vrot.slane %v3324, %v3340
        %3342 = vrot.lane.b32.xlu0 %v3329, 57
        %v3343 = vpop.permute.xlu0 %3342
        %3344 = vrot.lane.b32.xlu0 %v3333, 57
        %v3345 = vpop.permute.xlu0 %3344
        %3346 = vrot.lane.b32.xlu0 %v3337, 57
        %v3347 = vpop.permute.xlu0 %3346
        %3348 = vrot.lane.b32.xlu0 %v3341, 57
        %v3349 = vpop.permute.xlu0 %3348
        %v3350 = vsel %vm672, %v3343, %v3345
        %v3351 = vsel %vm672, %v3345, %v3347
        %v3352 = vsel %vm672, %v3347, %v3349
        %v3358 = vmul.f32 %v3315, %v3343
        %v3359 = vmul.f32 %v3316, %v3350
        %v3360 = vmul.f32 %v3317, %v3351
        %v3361 = vmul.f32 %v3318, %v3352
        %v3362 = vmul.f32 %v3319, %v3349
        %v3363 = vpack.c.bf16 %v3358, %v3358
        %v3364 = vpack.c.bf16 %v3359, %v3359
        %v3365 = vpack.c.bf16 %v3360, %v3360
        %v3366 = vpack.c.bf16 %v3361, %v3361
        %v3367 = vpack.c.bf16 %v3362, %v3362
        %v3373 = vunpack.c.l.b16 %v3363
        %v3374 = vunpack.c.l.b16 %v3364
        %v3375 = vunpack.c.l.b16 %v3365
        %v3376 = vunpack.c.l.b16 %v3366
        %v3377 = vunpack.c.l.b16 %v3367
        %v3378 = vpack.c.b16 %v3374, %v3373
        %v3379 = vpack.c.b16 %v3376, %v3375
        %v3380 = vpack.c.b16 %v3377, %v3377
        %3381 = vrot.lane.b32.xlu0 %v3378, 71
        %v3382 = vpop.permute.xlu0 %3381
        %3383 = vrot.lane.b32.xlu0 %v3379, 71
        %v3384 = vpop.permute.xlu0 %3383
        %3385 = vrot.lane.b32.xlu0 %v3380, 71
        %v3386 = vpop.permute.xlu0 %3385
        %v3387 = vrot.slane %v3382, 4
        %v3388 = vrot.slane %v3384, 4
        %v3389 = vrot.slane %v3386, 4
        %v3390 = vsel %vm540, %v3387, %v3388
        %v3391 = vsel %vm714, %v3382, %v3390
        %v3392 = vsel %vm540, %v3388, %v3389
        %v3393 = vsel %vm714, %v3384, %v3392
        %3396 = vst [vmem:[#allocation4 + $0x20] sm:$0xff] %v3391
        %3397 = vst [vmem:[#allocation4 + $0x28] sm:$0xff] %v3393
        %v3398 = vld [vmem:[#allocation2] sm:$0xff]
        %v3399 = vld [vmem:[#allocation2 + $0x8] sm:$0xff]
        %v3400 = vld [vmem:[#allocation2 + $0x10] sm:$0xff]
        %v3401 = vld [vmem:[#allocation2 + $0x18] sm:$0xff]
        %v3402 = vld [vmem:[#allocation2 + $0x20] sm:$0xff]
        %v3403 = vld [vmem:[%s6] ss:$8 sm:$0xf]
        %v3404 = vld [vmem:[%s471] ss:$8 sm:$0xf]
        %v3405 = vmul.f32 %v3403, %v3404
        %v3407 = vlaneseq
        %v3408 = vshrl.u32 %v3407, 7
        %v3409 = vsub.s32 0, %v3408
        %v3410 = vrot.slane %v3405, %v3409
        %v3411 = vlaneseq
        %v3412 = vshrl.u32 %v3411, 7
        %v3413 = vsub.s32 1, %v3412
        %v3414 = vrot.slane %v3405, %v3413
        %v3415 = vlaneseq
        %v3416 = vshrl.u32 %v3415, 7
        %v3417 = vsub.s32 2, %v3416
        %v3418 = vrot.slane %v3405, %v3417
        %v3419 = vlaneseq
        %v3420 = vshrl.u32 %v3419, 7
        %v3421 = vsub.s32 3, %v3420
        %v3422 = vrot.slane %v3405, %v3421
        %3423 = vrot.lane.b32.xlu0 %v3410, 63
        %v3424 = vpop.permute.xlu0 %3423
        %3425 = vrot.lane.b32.xlu0 %v3414, 63
        %v3426 = vpop.permute.xlu0 %3425
        %3427 = vrot.lane.b32.xlu0 %v3418, 63
        %v3428 = vpop.permute.xlu0 %3427
        %3429 = vrot.lane.b32.xlu0 %v3422, 63
        %v3430 = vpop.permute.xlu0 %3429
        %v3431 = vsel %vm755, %v3424, %v3426
        %v3432 = vsel %vm755, %v3426, %v3428
        %v3433 = vsel %vm755, %v3428, %v3430
        %v3439 = vmul.f32 %v3398, %v3424
        %v3440 = vmul.f32 %v3399, %v3431
        %v3441 = vmul.f32 %v3400, %v3432
        %v3442 = vmul.f32 %v3401, %v3433
        %v3443 = vmul.f32 %v3402, %v3430
        %v3444 = vpack.c.bf16 %v3439, %v3439
        %v3445 = vpack.c.bf16 %v3440, %v3440
        %v3446 = vpack.c.bf16 %v3441, %v3441
        %v3447 = vpack.c.bf16 %v3442, %v3442
        %v3448 = vpack.c.bf16 %v3443, %v3443
        %v3454 = vunpack.c.l.b16 %v3444
        %v3455 = vunpack.c.l.b16 %v3445
        %v3456 = vunpack.c.l.b16 %v3446
        %v3457 = vunpack.c.l.b16 %v3447
        %v3458 = vunpack.c.l.b16 %v3448
        %v3459 = vpack.c.b16 %v3455, %v3454
        %v3460 = vpack.c.b16 %v3457, %v3456
        %v3461 = vpack.c.b16 %v3458, %v3458
        %3462 = vrot.lane.b32.xlu0 %v3459, 65
        %v3463 = vpop.permute.xlu0 %3462
        %3464 = vrot.lane.b32.xlu0 %v3460, 65
        %v3465 = vpop.permute.xlu0 %3464
        %3466 = vrot.lane.b32.xlu0 %v3461, 65
        %v3467 = vpop.permute.xlu0 %3466
        %v3468 = vrot.slane %v3463, 4
        %v3469 = vrot.slane %v3465, 4
        %v3470 = vrot.slane %v3467, 4
        %v3471 = vsel %vm540, %v3468, %v3469
        %v3472 = vsel %vm800, %v3463, %v3471
        %v3473 = vsel %vm540, %v3469, %v3470
        %v3474 = vsel %vm800, %v3465, %v3473
        %3477 = vst [vmem:[#allocation4 + $0x30] sm:$0xff] %v3472
        %3478 = vst [vmem:[#allocation4 + $0x38] sm:$0xff] %v3474
        %v3479 = vld [vmem:[#allocation2] sm:$0xff]
        %v3480 = vld [vmem:[#allocation2 + $0x8] sm:$0xff]
        %v3481 = vld [vmem:[#allocation2 + $0x10] sm:$0xff]
        %v3482 = vld [vmem:[#allocation2 + $0x18] sm:$0xff]
        %v3483 = vld [vmem:[#allocation2 + $0x20] sm:$0xff]
        %v3484 = vld [vmem:[%s6] ss:$8 sm:$0xf]
        %v3486 = vlaneseq
        %v3487 = vshrl.u32 %v3486, 7
        %v3488 = vsub.s32 0, %v3487
        %v3489 = vrot.slane %v3484, %v3488
        %v3490 = vlaneseq
        %v3491 = vshrl.u32 %v3490, 7
        %v3492 = vsub.s32 1, %v3491
        %v3493 = vrot.slane %v3484, %v3492
        %v3494 = vlaneseq
        %v3495 = vshrl.u32 %v3494, 7
        %v3496 = vsub.s32 2, %v3495
        %v3497 = vrot.slane %v3484, %v3496
        %v3498 = vlaneseq
        %v3499 = vshrl.u32 %v3498, 7
        %v3500 = vsub.s32 3, %v3499
        %v3501 = vrot.slane %v3484, %v3500
        %3502 = vrot.lane.b32.xlu0 %v3489, 64
        %v3503 = vpop.permute.xlu0 %3502
        %3504 = vrot.lane.b32.xlu0 %v3493, 64
        %v3505 = vpop.permute.xlu0 %3504
        %3506 = vrot.lane.b32.xlu0 %v3497, 64
        %v3507 = vpop.permute.xlu0 %3506
        %3508 = vrot.lane.b32.xlu0 %v3501, 64
        %v3509 = vpop.permute.xlu0 %3508
        %v3510 = vsel %vm839, %v3503, %v3505
        %v3511 = vsel %vm839, %v3505, %v3507
        %v3512 = vsel %vm839, %v3507, %v3509
        %v3518 = vmul.f32 %v3479, %v3503
        %v3519 = vmul.f32 %v3480, %v3510
        %v3520 = vmul.f32 %v3481, %v3511
        %v3521 = vmul.f32 %v3482, %v3512
        %v3522 = vmul.f32 %v3483, %v3509
        %v3523 = vpack.c.bf16 %v3518, %v3518
        %v3524 = vpack.c.bf16 %v3519, %v3519
        %v3525 = vpack.c.bf16 %v3520, %v3520
        %v3526 = vpack.c.bf16 %v3521, %v3521
        %v3527 = vpack.c.bf16 %v3522, %v3522
        %v3533 = vunpack.c.l.b16 %v3523
        %v3534 = vunpack.c.l.b16 %v3524
        %v3535 = vunpack.c.l.b16 %v3525
        %v3536 = vunpack.c.l.b16 %v3526
        %v3537 = vunpack.c.l.b16 %v3527
        %v3538 = vpack.c.b16 %v3534, %v3533
        %v3539 = vpack.c.b16 %v3536, %v3535
        %v3540 = vpack.c.b16 %v3537, %v3537
        %3541 = vrot.lane.b32.xlu0 %v3538, 64
        %v3542 = vpop.permute.xlu0 %3541
        %3543 = vrot.lane.b32.xlu0 %v3539, 64
        %v3544 = vpop.permute.xlu0 %3543
        %3545 = vrot.lane.b32.xlu0 %v3540, 64
        %v3546 = vpop.permute.xlu0 %3545
        %v3547 = vrot.slane %v3542, 4
        %v3548 = vrot.slane %v3544, 4
        %v3549 = vrot.slane %v3546, 4
        %v3550 = vsel %vm540, %v3547, %v3548
        %v3551 = vsel %vm881, %v3542, %v3550
        %v3552 = vsel %vm540, %v3548, %v3549
        %v3553 = vsel %vm881, %v3544, %v3552
        %3556 = vst [vmem:[#allocation4 + $0x40] sm:$0xff] %v3551
        %3557 = vst [vmem:[#allocation4 + $0x48] sm:$0xff] %v3553
        %v3558 = vld [vmem:[#allocation2] sm:$0xff]
        %v3559 = vld [vmem:[#allocation2 + $0x8] sm:$0xff]
        %v3560 = vld [vmem:[#allocation2 + $0x10] sm:$0xff]
        %v3561 = vld [vmem:[#allocation2 + $0x18] sm:$0xff]
        %v3562 = vld [vmem:[#allocation2 + $0x20] sm:$0xff]
        %v3563 = vld [vmem:[%s6] ss:$8 sm:$0xf]
        %v3564 = vld [vmem:[%s644] ss:$8 sm:$0xf]
        %v3565 = vmul.f32 %v3563, %v3564
        %v3567 = vlaneseq
        %v3568 = vshrl.u32 %v3567, 7
        %v3569 = vsub.s32 0, %v3568
        %v3570 = vrot.slane %v3565, %v3569
        %v3571 = vlaneseq
        %v3572 = vshrl.u32 %v3571, 7
        %v3573 = vsub.s32 1, %v3572
        %v3574 = vrot.slane %v3565, %v3573
        %v3575 = vlaneseq
        %v3576 = vshrl.u32 %v3575, 7
        %v3577 = vsub.s32 2, %v3576
        %v3578 = vrot.slane %v3565, %v3577
        %v3579 = vlaneseq
        %v3580 = vshrl.u32 %v3579, 7
        %v3581 = vsub.s32 3, %v3580
        %v3582 = vrot.slane %v3565, %v3581
        %3583 = vrot.lane.b32.xlu0 %v3570, 65
        %v3584 = vpop.permute.xlu0 %3583
        %3585 = vrot.lane.b32.xlu0 %v3574, 65
        %v3586 = vpop.permute.xlu0 %3585
        %3587 = vrot.lane.b32.xlu0 %v3578, 65
        %v3588 = vpop.permute.xlu0 %3587
        %3589 = vrot.lane.b32.xlu0 %v3582, 65
        %v3590 = vpop.permute.xlu0 %3589
        %v3591 = vsel %vm922, %v3584, %v3586
        %v3592 = vsel %vm922, %v3586, %v3588
        %v3593 = vsel %vm922, %v3588, %v3590
        %v3599 = vmul.f32 %v3558, %v3584
        %v3600 = vmul.f32 %v3559, %v3591
        %v3601 = vmul.f32 %v3560, %v3592
        %v3602 = vmul.f32 %v3561, %v3593
        %v3603 = vmul.f32 %v3562, %v3590
        %v3604 = vpack.c.bf16 %v3599, %v3599
        %v3605 = vpack.c.bf16 %v3600, %v3600
        %v3606 = vpack.c.bf16 %v3601, %v3601
        %v3607 = vpack.c.bf16 %v3602, %v3602
        %v3608 = vpack.c.bf16 %v3603, %v3603
        %v3614 = vunpack.c.l.b16 %v3604
        %v3615 = vunpack.c.l.b16 %v3605
        %v3616 = vunpack.c.l.b16 %v3606
        %v3617 = vunpack.c.l.b16 %v3607
        %v3618 = vunpack.c.l.b16 %v3608
        %v3619 = vpack.c.b16 %v3615, %v3614
        %v3620 = vpack.c.b16 %v3617, %v3616
        %v3621 = vpack.c.b16 %v3618, %v3618
        %3622 = vrot.lane.b32.xlu0 %v3619, 63
        %v3623 = vpop.permute.xlu0 %3622
        %3624 = vrot.lane.b32.xlu0 %v3620, 63
        %v3625 = vpop.permute.xlu0 %3624
        %3626 = vrot.lane.b32.xlu0 %v3621, 63
        %v3627 = vpop.permute.xlu0 %3626
        %v3628 = vrot.slane %v3623, 4
        %v3629 = vrot.slane %v3625, 4
        %v3630 = vrot.slane %v3627, 4
        %v3631 = vsel %vm540, %v3628, %v3629
        %v3632 = vsel %vm967, %v3623, %v3631
        %v3633 = vsel %vm540, %v3629, %v3630
        %v3634 = vsel %vm967, %v3625, %v3633
        %3637 = vst [vmem:[#allocation4 + $0x50] sm:$0xff] %v3632
        %3638 = vst [vmem:[#allocation4 + $0x58] sm:$0xff] %v3634
        %v3639 = vld [vmem:[#allocation2] sm:$0xff]
        %v3640 = vld [vmem:[#allocation2 + $0x8] sm:$0xff]
        %v3641 = vld [vmem:[#allocation2 + $0x10] sm:$0xff]
        %v3642 = vld [vmem:[#allocation2 + $0x18] sm:$0xff]
        %v3643 = vld [vmem:[#allocation2 + $0x20] sm:$0xff]
        %v3644 = vld [vmem:[%s6] ss:$8 sm:$0xf]
        %v3645 = vld [vmem:[%s981] ss:$8 sm:$0xf]
        %v3646 = vmul.f32 %v3644, %v3645
        %v3647 = vld [vmem:[%s471] ss:$8 sm:$0xf]
        %v3648 = vmul.f32 %v3646, %v3647
        %v3650 = vlaneseq
        %v3651 = vshrl.u32 %v3650, 7
        %v3652 = vsub.s32 0, %v3651
        %v3653 = vrot.slane %v3648, %v3652
        %v3654 = vlaneseq
        %v3655 = vshrl.u32 %v3654, 7
        %v3656 = vsub.s32 1, %v3655
        %v3657 = vrot.slane %v3648, %v3656
        %v3658 = vlaneseq
        %v3659 = vshrl.u32 %v3658, 7
        %v3660 = vsub.s32 2, %v3659
        %v3661 = vrot.slane %v3648, %v3660
        %v3662 = vlaneseq
        %v3663 = vshrl.u32 %v3662, 7
        %v3664 = vsub.s32 3, %v3663
        %v3665 = vrot.slane %v3648, %v3664
        %3666 = vrot.lane.b32.xlu0 %v3653, 71
        %v3667 = vpop.permute.xlu0 %3666
        %3668 = vrot.lane.b32.xlu0 %v3657, 71
        %v3669 = vpop.permute.xlu0 %3668
        %3670 = vrot.lane.b32.xlu0 %v3661, 71
        %v3671 = vpop.permute.xlu0 %3670
        %3672 = vrot.lane.b32.xlu0 %v3665, 71
        %v3673 = vpop.permute.xlu0 %3672
        %v3674 = vsel %vm1011, %v3667, %v3669
        %v3675 = vsel %vm1011, %v3669, %v3671
        %v3676 = vsel %vm1011, %v3671, %v3673
        %v3682 = vmul.f32 %v3639, %v3667
        %v3683 = vmul.f32 %v3640, %v3674
        %v3684 = vmul.f32 %v3641, %v3675
        %v3685 = vmul.f32 %v3642, %v3676
        %v3686 = vmul.f32 %v3643, %v3673
        %v3687 = vpack.c.bf16 %v3682, %v3682
        %v3688 = vpack.c.bf16 %v3683, %v3683
        %v3689 = vpack.c.bf16 %v3684, %v3684
        %v3690 = vpack.c.bf16 %v3685, %v3685
        %v3691 = vpack.c.bf16 %v3686, %v3686
        %v3697 = vunpack.c.l.b16 %v3687
        %v3698 = vunpack.c.l.b16 %v3688
        %v3699 = vunpack.c.l.b16 %v3689
        %v3700 = vunpack.c.l.b16 %v3690
        %v3701 = vunpack.c.l.b16 %v3691
        %v3702 = vpack.c.b16 %v3698, %v3697
        %v3703 = vpack.c.b16 %v3700, %v3699
        %v3704 = vpack.c.b16 %v3701, %v3701
        %3705 = vrot.lane.b32.xlu0 %v3702, 57
        %v3706 = vpop.permute.xlu0 %3705
        %3707 = vrot.lane.b32.xlu0 %v3703, 57
        %v3708 = vpop.permute.xlu0 %3707
        %3709 = vrot.lane.b32.xlu0 %v3704, 57
        %v3710 = vpop.permute.xlu0 %3709
        %v3711 = vrot.slane %v3706, 4
        %v3712 = vrot.slane %v3708, 4
        %v3713 = vrot.slane %v3710, 4
        %v3714 = vsel %vm540, %v3711, %v3712
        %v3715 = vsel %vm1053, %v3706, %v3714
        %v3716 = vsel %vm540, %v3712, %v3713
        %v3717 = vsel %vm1053, %v3708, %v3716
        %3720 = vst [vmem:[#allocation4 + $0x60] sm:$0xff] %v3715
        %3721 = vst [vmem:[#allocation4 + $0x68] sm:$0xff] %v3717
        %v3722 = vld [vmem:[#allocation2] sm:$0xff]
        %v3723 = vld [vmem:[#allocation2 + $0x8] sm:$0xff]
        %v3724 = vld [vmem:[#allocation2 + $0x10] sm:$0xff]
        %v3725 = vld [vmem:[#allocation2 + $0x18] sm:$0xff]
        %v3726 = vld [vmem:[#allocation2 + $0x20] sm:$0xff]
        %v3727 = vld [vmem:[%s6] ss:$8 sm:$0xf]
        %v3728 = vld [vmem:[%s981] ss:$8 sm:$0xf]
        %v3729 = vmul.f32 %v3727, %v3728
        %v3731 = vlaneseq
        %v3732 = vshrl.u32 %v3731, 7
        %v3733 = vsub.s32 0, %v3732
        %v3734 = vrot.slane %v3729, %v3733
        %v3735 = vlaneseq
        %v3736 = vshrl.u32 %v3735, 7
        %v3737 = vsub.s32 1, %v3736
        %v3738 = vrot.slane %v3729, %v3737
        %v3739 = vlaneseq
        %v3740 = vshrl.u32 %v3739, 7
        %v3741 = vsub.s32 2, %v3740
        %v3742 = vrot.slane %v3729, %v3741
        %v3743 = vlaneseq
        %v3744 = vshrl.u32 %v3743, 7
        %v3745 = vsub.s32 3, %v3744
        %v3746 = vrot.slane %v3729, %v3745
        %3747 = vrot.lane.b32.xlu0 %v3734, 72
        %v3748 = vpop.permute.xlu0 %3747
        %3749 = vrot.lane.b32.xlu0 %v3738, 72
        %v3750 = vpop.permute.xlu0 %3749
        %3751 = vrot.lane.b32.xlu0 %v3742, 72
        %v3752 = vpop.permute.xlu0 %3751
        %3753 = vrot.lane.b32.xlu0 %v3746, 72
        %v3754 = vpop.permute.xlu0 %3753
        %v3755 = vsel %vm1094, %v3748, %v3750
        %v3756 = vsel %vm1094, %v3750, %v3752
        %v3757 = vsel %vm1094, %v3752, %v3754
        %v3763 = vmul.f32 %v3722, %v3748
        %v3764 = vmul.f32 %v3723, %v3755
        %v3765 = vmul.f32 %v3724, %v3756
        %v3766 = vmul.f32 %v3725, %v3757
        %v3767 = vmul.f32 %v3726, %v3754
        %v3768 = vpack.c.bf16 %v3763, %v3763
        %v3769 = vpack.c.bf16 %v3764, %v3764
        %v3770 = vpack.c.bf16 %v3765, %v3765
        %v3771 = vpack.c.bf16 %v3766, %v3766
        %v3772 = vpack.c.bf16 %v3767, %v3767
        %v3778 = vunpack.c.l.b16 %v3768
        %v3779 = vunpack.c.l.b16 %v3769
        %v3780 = vunpack.c.l.b16 %v3770
        %v3781 = vunpack.c.l.b16 %v3771
        %v3782 = vunpack.c.l.b16 %v3772
        %v3783 = vpack.c.b16 %v3779, %v3778
        %v3784 = vpack.c.b16 %v3781, %v3780
        %v3785 = vpack.c.b16 %v3782, %v3782
        %3786 = vrot.lane.b32.xlu0 %v3783, 56
        %v3787 = vpop.permute.xlu0 %3786
        %3788 = vrot.lane.b32.xlu0 %v3784, 56
        %v3789 = vpop.permute.xlu0 %3788
        %3790 = vrot.lane.b32.xlu0 %v3785, 56
        %v3791 = vpop.permute.xlu0 %3790
        %v3792 = vrot.slane %v3787, 4
        %v3793 = vrot.slane %v3789, 4
        %v3794 = vrot.slane %v3791, 4
        %v3795 = vsel %vm540, %v3792, %v3793
        %v3796 = vsel %vm1139, %v3787, %v3795
        %v3797 = vsel %vm540, %v3793, %v3794
        %v3798 = vsel %vm1139, %v3789, %v3797
        %3801 = vst [vmem:[#allocation4 + $0x70] sm:$0xff] %v3796
        %3802 = vst [vmem:[#allocation4 + $0x78] sm:$0xff] %v3798
        %v3803 = vld [vmem:[#allocation2] sm:$0xff]
        %v3804 = vld [vmem:[#allocation2 + $0x8] sm:$0xff]
        %v3805 = vld [vmem:[#allocation2 + $0x10] sm:$0xff]
        %v3806 = vld [vmem:[#allocation2 + $0x18] sm:$0xff]
        %v3807 = vld [vmem:[#allocation2 + $0x20] sm:$0xff]
        %v3808 = vld [vmem:[%s6] ss:$8 sm:$0xf]
        %v3809 = vld [vmem:[%s981] ss:$8 sm:$0xf]
        %v3810 = vmul.f32 %v3808, %v3809
        %v3811 = vld [vmem:[%s644] ss:$8 sm:$0xf]
        %v3812 = vmul.f32 %v3810, %v3811
        %v3814 = vlaneseq
        %v3815 = vshrl.u32 %v3814, 7
        %v3816 = vsub.s32 0, %v3815
        %v3817 = vrot.slane %v3812, %v3816
        %v3818 = vlaneseq
        %v3819 = vshrl.u32 %v3818, 7
        %v3820 = vsub.s32 1, %v3819
        %v3821 = vrot.slane %v3812, %v3820
        %v3822 = vlaneseq
        %v3823 = vshrl.u32 %v3822, 7
        %v3824 = vsub.s32 2, %v3823
        %v3825 = vrot.slane %v3812, %v3824
        %v3826 = vlaneseq
        %v3827 = vshrl.u32 %v3826, 7
        %v3828 = vsub.s32 3, %v3827
        %v3829 = vrot.slane %v3812, %v3828
        %3830 = vrot.lane.b32.xlu0 %v3817, 73
        %v3831 = vpop.permute.xlu0 %3830
        %3832 = vrot.lane.b32.xlu0 %v3821, 73
        %v3833 = vpop.permute.xlu0 %3832
        %3834 = vrot.lane.b32.xlu0 %v3825, 73
        %v3835 = vpop.permute.xlu0 %3834
        %3836 = vrot.lane.b32.xlu0 %v3829, 73
        %v3837 = vpop.permute.xlu0 %3836
        %v3838 = vsel %vm1182, %v3831, %v3833
        %v3839 = vsel %vm1182, %v3833, %v3835
        %v3840 = vsel %vm1182, %v3835, %v3837
        %v3846 = vmul.f32 %v3803, %v3831
        %v3847 = vmul.f32 %v3804, %v3838
        %v3848 = vmul.f32 %v3805, %v3839
        %v3849 = vmul.f32 %v3806, %v3840
        %v3850 = vmul.f32 %v3807, %v3837
        %v3851 = vpack.c.bf16 %v3846, %v3846
        %v3852 = vpack.c.bf16 %v3847, %v3847
        %v3853 = vpack.c.bf16 %v3848, %v3848
        %v3854 = vpack.c.bf16 %v3849, %v3849
        %v3855 = vpack.c.bf16 %v3850, %v3850
        %v3861 = vunpack.c.l.b16 %v3851
        %v3862 = vunpack.c.l.b16 %v3852
        %v3863 = vunpack.c.l.b16 %v3853
        %v3864 = vunpack.c.l.b16 %v3854
        %v3865 = vunpack.c.l.b16 %v3855
        %v3866 = vpack.c.b16 %v3862, %v3861
        %v3867 = vpack.c.b16 %v3864, %v3863
        %v3868 = vpack.c.b16 %v3865, %v3865
        %3869 = vrot.lane.b32.xlu0 %v3866, 55
        %v3870 = vpop.permute.xlu0 %3869
        %3871 = vrot.lane.b32.xlu0 %v3867, 55
        %v3872 = vpop.permute.xlu0 %3871
        %3873 = vrot.lane.b32.xlu0 %v3868, 55
        %v3874 = vpop.permute.xlu0 %3873
        %v3875 = vrot.slane %v3870, 4
        %v3876 = vrot.slane %v3872, 4
        %v3877 = vrot.slane %v3874, 4
        %v3878 = vsel %vm540, %v3875, %v3876
        %v3879 = vsel %vm1224, %v3870, %v3878
        %v3880 = vsel %vm540, %v3876, %v3877
        %v3881 = vsel %vm1224, %v3872, %v3880
        %3884 = vst [vmem:[#allocation4 + $0x80] sm:$0xff] %v3879
        %3885 = vst [vmem:[#allocation4 + $0x88] sm:$0xff] %v3881
        %v3886 = vld [vmem:[#allocation2] sm:$0xff]
        %v3887 = vld [vmem:[#allocation2 + $0x8] sm:$0xff]
        %v3888 = vld [vmem:[#allocation2 + $0x10] sm:$0xff]
        %v3889 = vld [vmem:[#allocation2 + $0x18] sm:$0xff]
        %v3890 = vld [vmem:[#allocation2 + $0x20] sm:$0xff]
        %v3891 = vld [vmem:[%s468] ss:$8 sm:$0xf]
        %v3892 = vld [vmem:[%s471] ss:$8 sm:$0xf]
        %v3893 = vmul.f32 %v3891, %v3892
        %v3895 = vlaneseq
        %v3896 = vshrl.u32 %v3895, 7
        %v3897 = vsub.s32 0, %v3896
        %v3898 = vrot.slane %v3893, %v3897
        %v3899 = vlaneseq
        %v3900 = vshrl.u32 %v3899, 7
        %v3901 = vsub.s32 1, %v3900
        %v3902 = vrot.slane %v3893, %v3901
        %v3903 = vlaneseq
        %v3904 = vshrl.u32 %v3903, 7
        %v3905 = vsub.s32 2, %v3904
        %v3906 = vrot.slane %v3893, %v3905
        %v3907 = vlaneseq
        %v3908 = vshrl.u32 %v3907, 7
        %v3909 = vsub.s32 3, %v3908
        %v3910 = vrot.slane %v3893, %v3909
        %3911 = vrot.lane.b32.xlu0 %v3898, 119
        %v3912 = vpop.permute.xlu0 %3911
        %3913 = vrot.lane.b32.xlu0 %v3902, 119
        %v3914 = vpop.permute.xlu0 %3913
        %3915 = vrot.lane.b32.xlu0 %v3906, 119
        %v3916 = vpop.permute.xlu0 %3915
        %3917 = vrot.lane.b32.xlu0 %v3910, 119
        %v3918 = vpop.permute.xlu0 %3917
        %v3919 = vsel %vm1265, %v3912, %v3914
        %v3920 = vsel %vm1265, %v3914, %v3916
        %v3921 = vsel %vm1265, %v3916, %v3918
        %v3927 = vmul.f32 %v3886, %v3912
        %v3928 = vmul.f32 %v3887, %v3919
        %v3929 = vmul.f32 %v3888, %v3920
        %v3930 = vmul.f32 %v3889, %v3921
        %v3931 = vmul.f32 %v3890, %v3918
        %v3932 = vpack.c.bf16 %v3927, %v3927
        %v3933 = vpack.c.bf16 %v3928, %v3928
        %v3934 = vpack.c.bf16 %v3929, %v3929
        %v3935 = vpack.c.bf16 %v3930, %v3930
        %v3936 = vpack.c.bf16 %v3931, %v3931
        %v3942 = vunpack.c.l.b16 %v3932
        %v3943 = vunpack.c.l.b16 %v3933
        %v3944 = vunpack.c.l.b16 %v3934
        %v3945 = vunpack.c.l.b16 %v3935
        %v3946 = vunpack.c.l.b16 %v3936
        %v3947 = vpack.c.b16 %v3943, %v3942
        %v3948 = vpack.c.b16 %v3945, %v3944
        %v3949 = vpack.c.b16 %v3946, %v3946
        %3950 = vrot.lane.b32.xlu0 %v3947, 9
        %v3951 = vpop.permute.xlu0 %3950
        %3952 = vrot.lane.b32.xlu0 %v3948, 9
        %v3953 = vpop.permute.xlu0 %3952
        %3954 = vrot.lane.b32.xlu0 %v3949, 9
        %v3955 = vpop.permute.xlu0 %3954
        %v3956 = vrot.slane %v3951, 4
        %v3957 = vrot.slane %v3953, 4
        %v3958 = vrot.slane %v3955, 4
        %v3959 = vsel %vm540, %v3956, %v3957
        %v3960 = vsel %vm1310, %v3951, %v3959
        %v3961 = vsel %vm540, %v3957, %v3958
        %v3962 = vsel %vm1310, %v3953, %v3961
        %3965 = vst [vmem:[#allocation4 + $0x90] sm:$0xff] %v3960
        %3966 = vst [vmem:[#allocation4 + $0x98] sm:$0xff] %v3962
        %v3967 = vld [vmem:[#allocation2] sm:$0xff]
        %v3968 = vld [vmem:[#allocation2 + $0x8] sm:$0xff]
        %v3969 = vld [vmem:[#allocation2 + $0x10] sm:$0xff]
        %v3970 = vld [vmem:[#allocation2 + $0x18] sm:$0xff]
        %v3971 = vld [vmem:[#allocation2 + $0x20] sm:$0xff]
        %v3972 = vld [vmem:[%s468] ss:$8 sm:$0xf]
        %v3974 = vlaneseq
        %v3975 = vshrl.u32 %v3974, 7
        %v3976 = vsub.s32 0, %v3975
        %v3977 = vrot.slane %v3972, %v3976
        %v3978 = vlaneseq
        %v3979 = vshrl.u32 %v3978, 7
        %v3980 = vsub.s32 1, %v3979
        %v3981 = vrot.slane %v3972, %v3980
        %v3982 = vlaneseq
        %v3983 = vshrl.u32 %v3982, 7
        %v3984 = vsub.s32 2, %v3983
        %v3985 = vrot.slane %v3972, %v3984
        %v3986 = vlaneseq
        %v3987 = vshrl.u32 %v3986, 7
        %v3988 = vsub.s32 3, %v3987
        %v3989 = vrot.slane %v3972, %v3988
        %3990 = vrot.lane.b32.xlu0 %v3977, 120
        %v3991 = vpop.permute.xlu0 %3990
        %3992 = vrot.lane.b32.xlu0 %v3981, 120
        %v3993 = vpop.permute.xlu0 %3992
        %3994 = vrot.lane.b32.xlu0 %v3985, 120
        %v3995 = vpop.permute.xlu0 %3994
        %3996 = vrot.lane.b32.xlu0 %v3989, 120
        %v3997 = vpop.permute.xlu0 %3996
        %v3998 = vsel %vm1349, %v3991, %v3993
        %v3999 = vsel %vm1349, %v3993, %v3995
        %v4000 = vsel %vm1349, %v3995, %v3997
        %v4006 = vmul.f32 %v3967, %v3991
        %v4007 = vmul.f32 %v3968, %v3998
        %v4008 = vmul.f32 %v3969, %v3999
        %v4009 = vmul.f32 %v3970, %v4000
        %v4010 = vmul.f32 %v3971, %v3997
        %v4011 = vpack.c.bf16 %v4006, %v4006
        %v4012 = vpack.c.bf16 %v4007, %v4007
        %v4013 = vpack.c.bf16 %v4008, %v4008
        %v4014 = vpack.c.bf16 %v4009, %v4009
        %v4015 = vpack.c.bf16 %v4010, %v4010
        %v4021 = vunpack.c.l.b16 %v4011
        %v4022 = vunpack.c.l.b16 %v4012
        %v4023 = vunpack.c.l.b16 %v4013
        %v4024 = vunpack.c.l.b16 %v4014
        %v4025 = vunpack.c.l.b16 %v4015
        %v4026 = vpack.c.b16 %v4022, %v4021
        %v4027 = vpack.c.b16 %v4024, %v4023
        %v4028 = vpack.c.b16 %v4025, %v4025
        %4029 = vrot.lane.b32.xlu0 %v4026, 8
        %v4030 = vpop.permute.xlu0 %4029
        %4031 = vrot.lane.b32.xlu0 %v4027, 8
        %v4032 = vpop.permute.xlu0 %4031
        %4033 = vrot.lane.b32.xlu0 %v4028, 8
        %v4034 = vpop.permute.xlu0 %4033
        %v4035 = vrot.slane %v4030, 4
        %v4036 = vrot.slane %v4032, 4
        %v4037 = vrot.slane %v4034, 4
        %v4038 = vsel %vm540, %v4035, %v4036
        %v4039 = vsel %vm1391, %v4030, %v4038
        %v4040 = vsel %vm540, %v4036, %v4037
        %v4041 = vsel %vm1391, %v4032, %v4040
        %4044 = vst [vmem:[#allocation4 + $0xa0] sm:$0xff] %v4039
        %4045 = vst [vmem:[#allocation4 + $0xa8] sm:$0xff] %v4041
        %v4046 = vld [vmem:[#allocation2] sm:$0xff]
        %v4047 = vld [vmem:[#allocation2 + $0x8] sm:$0xff]
        %v4048 = vld [vmem:[#allocation2 + $0x10] sm:$0xff]
        %v4049 = vld [vmem:[#allocation2 + $0x18] sm:$0xff]
        %v4050 = vld [vmem:[#allocation2 + $0x20] sm:$0xff]
        %v4051 = vld [vmem:[%s468] ss:$8 sm:$0xf]
        %v4052 = vld [vmem:[%s644] ss:$8 sm:$0xf]
        %v4053 = vmul.f32 %v4051, %v4052
        %v4055 = vlaneseq
        %v4056 = vshrl.u32 %v4055, 7
        %v4057 = vsub.s32 0, %v4056
        %v4058 = vrot.slane %v4053, %v4057
        %v4059 = vlaneseq
        %v4060 = vshrl.u32 %v4059, 7
        %v4061 = vsub.s32 1, %v4060
        %v4062 = vrot.slane %v4053, %v4061
        %v4063 = vlaneseq
        %v4064 = vshrl.u32 %v4063, 7
        %v4065 = vsub.s32 2, %v4064
        %v4066 = vrot.slane %v4053, %v4065
        %v4067 = vlaneseq
        %v4068 = vshrl.u32 %v4067, 7
        %v4069 = vsub.s32 3, %v4068
        %v4070 = vrot.slane %v4053, %v4069
        %4071 = vrot.lane.b32.xlu0 %v4058, 121
        %v4072 = vpop.permute.xlu0 %4071
        %4073 = vrot.lane.b32.xlu0 %v4062, 121
        %v4074 = vpop.permute.xlu0 %4073
        %4075 = vrot.lane.b32.xlu0 %v4066, 121
        %v4076 = vpop.permute.xlu0 %4075
        %4077 = vrot.lane.b32.xlu0 %v4070, 121
        %v4078 = vpop.permute.xlu0 %4077
        %v4079 = vsel %vm1432, %v4072, %v4074
        %v4080 = vsel %vm1432, %v4074, %v4076
        %v4081 = vsel %vm1432, %v4076, %v4078
        %v4087 = vmul.f32 %v4046, %v4072
        %v4088 = vmul.f32 %v4047, %v4079
        %v4089 = vmul.f32 %v4048, %v4080
        %v4090 = vmul.f32 %v4049, %v4081
        %v4091 = vmul.f32 %v4050, %v4078
        %v4092 = vpack.c.bf16 %v4087, %v4087
        %v4093 = vpack.c.bf16 %v4088, %v4088
        %v4094 = vpack.c.bf16 %v4089, %v4089
        %v4095 = vpack.c.bf16 %v4090, %v4090
        %v4096 = vpack.c.bf16 %v4091, %v4091
        %v4102 = vunpack.c.l.b16 %v4092
        %v4103 = vunpack.c.l.b16 %v4093
        %v4104 = vunpack.c.l.b16 %v4094
        %v4105 = vunpack.c.l.b16 %v4095
        %v4106 = vunpack.c.l.b16 %v4096
        %v4107 = vpack.c.b16 %v4103, %v4102
        %v4108 = vpack.c.b16 %v4105, %v4104
        %v4109 = vpack.c.b16 %v4106, %v4106
        %4110 = vrot.lane.b32.xlu0 %v4107, 7
        %v4111 = vpop.permute.xlu0 %4110
        %4112 = vrot.lane.b32.xlu0 %v4108, 7
        %v4113 = vpop.permute.xlu0 %4112
        %4114 = vrot.lane.b32.xlu0 %v4109, 7
        %v4115 = vpop.permute.xlu0 %4114
        %v4116 = vrot.slane %v4111, 4
        %v4117 = vrot.slane %v4113, 4
        %v4118 = vrot.slane %v4115, 4
        %v4119 = vsel %vm540, %v4116, %v4117
        %v4120 = vsel %vm1477, %v4111, %v4119
        %v4121 = vsel %vm540, %v4117, %v4118
        %v4122 = vsel %vm1477, %v4113, %v4121
        %4125 = vst [vmem:[#allocation4 + $0xb0] sm:$0xff] %v4120
        %4126 = vst [vmem:[#allocation4 + $0xb8] sm:$0xff] %v4122
        %v4127 = vld [vmem:[#allocation2] sm:$0xff]
        %v4128 = vld [vmem:[#allocation2 + $0x8] sm:$0xff]
        %v4129 = vld [vmem:[#allocation2 + $0x10] sm:$0xff]
        %v4130 = vld [vmem:[#allocation2 + $0x18] sm:$0xff]
        %v4131 = vld [vmem:[#allocation2 + $0x20] sm:$0xff]
        %v4132 = vld [vmem:[%s471] ss:$8 sm:$0xf]
        %v4134 = vlaneseq
        %v4135 = vshrl.u32 %v4134, 7
        %v4136 = vsub.s32 0, %v4135
        %v4137 = vrot.slane %v4132, %v4136
        %v4138 = vlaneseq
        %v4139 = vshrl.u32 %v4138, 7
        %v4140 = vsub.s32 1, %v4139
        %v4141 = vrot.slane %v4132, %v4140
        %v4142 = vlaneseq
        %v4143 = vshrl.u32 %v4142, 7
        %v4144 = vsub.s32 2, %v4143
        %v4145 = vrot.slane %v4132, %v4144
        %v4146 = vlaneseq
        %v4147 = vshrl.u32 %v4146, 7
        %v4148 = vsub.s32 3, %v4147
        %v4149 = vrot.slane %v4132, %v4148
        %4150 = vrot.lane.b32.xlu0 %v4137, 127
        %v4151 = vpop.permute.xlu0 %4150
        %4152 = vrot.lane.b32.xlu0 %v4141, 127
        %v4153 = vpop.permute.xlu0 %4152
        %4154 = vrot.lane.b32.xlu0 %v4145, 127
        %v4155 = vpop.permute.xlu0 %4154
        %4156 = vrot.lane.b32.xlu0 %v4149, 127
        %v4157 = vpop.permute.xlu0 %4156
        %v4158 = vsel %vm1516, %v4151, %v4153
        %v4159 = vsel %vm1516, %v4153, %v4155
        %v4160 = vsel %vm1516, %v4155, %v4157
        %v4166 = vmul.f32 %v4127, %v4151
        %v4167 = vmul.f32 %v4128, %v4158
        %v4168 = vmul.f32 %v4129, %v4159
        %v4169 = vmul.f32 %v4130, %v4160
        %v4170 = vmul.f32 %v4131, %v4157
        %v4171 = vpack.c.bf16 %v4166, %v4166
        %v4172 = vpack.c.bf16 %v4167, %v4167
        %v4173 = vpack.c.bf16 %v4168, %v4168
        %v4174 = vpack.c.bf16 %v4169, %v4169
        %v4175 = vpack.c.bf16 %v4170, %v4170
        %v4181 = vunpack.c.l.b16 %v4171
        %v4182 = vunpack.c.l.b16 %v4172
        %v4183 = vunpack.c.l.b16 %v4173
        %v4184 = vunpack.c.l.b16 %v4174
        %v4185 = vunpack.c.l.b16 %v4175
        %v4186 = vpack.c.b16 %v4182, %v4181
        %v4187 = vpack.c.b16 %v4184, %v4183
        %v4188 = vpack.c.b16 %v4185, %v4185
        %4189 = vrot.lane.b32.xlu0 %v4186, 1
        %v4190 = vpop.permute.xlu0 %4189
        %4191 = vrot.lane.b32.xlu0 %v4187, 1
        %v4192 = vpop.permute.xlu0 %4191
        %4193 = vrot.lane.b32.xlu0 %v4188, 1
        %v4194 = vpop.permute.xlu0 %4193
        %v4195 = vrot.slane %v4190, 4
        %v4196 = vrot.slane %v4192, 4
        %v4197 = vrot.slane %v4194, 4
        %v4198 = vsel %vm540, %v4195, %v4196
        %v4199 = vsel %vm1558, %v4190, %v4198
        %v4200 = vsel %vm540, %v4196, %v4197
        %v4201 = vsel %vm1558, %v4192, %v4200
        %4204 = vst [vmem:[#allocation4 + $0xc0] sm:$0xff] %v4199
        %4205 = vst [vmem:[#allocation4 + $0xc8] sm:$0xff] %v4201
        %v4206 = vld [vmem:[#allocation2 + $0x8] sm:$0xff]
        %v4207 = vld [vmem:[#allocation2 + $0x10] sm:$0xff]
        %v4208 = vld [vmem:[#allocation2 + $0x18] sm:$0xff]
        %v4209 = vld [vmem:[#allocation2 + $0x20] sm:$0xff]
        %v4210 = vpack.c.bf16 %v4206, %v4206
        %v4211 = vpack.c.bf16 %v4207, %v4207
        %v4212 = vpack.c.bf16 %v4208, %v4208
        %v4213 = vpack.c.bf16 %v4209, %v4209
        %v4218 = vunpack.c.l.b16 %v4210
        %v4219 = vunpack.c.l.b16 %v4211
        %v4220 = vunpack.c.l.b16 %v4212
        %v4221 = vunpack.c.l.b16 %v4213
        %v4222 = vpack.c.b16 %v4219, %v4218
        %v4223 = vpack.c.b16 %v4221, %v4220
        %4226 = vst [vmem:[#allocation4 + $0xd0] sm:$0xff] %v4222
        %4227 = vst [vmem:[#allocation4 + $0xd8] sm:$0xff] %v4223
        %v4228 = vld [vmem:[#allocation2 + $0x8] sm:$0xff]
        %v4229 = vld [vmem:[#allocation2 + $0x10] sm:$0xff]
        %v4230 = vld [vmem:[#allocation2 + $0x18] sm:$0xff]
        %v4231 = vld [vmem:[#allocation2 + $0x20] sm:$0xff]
        %v4232 = vld [vmem:[#allocation2 + $0x28] sm:$0xff]
        %v4233 = vld [vmem:[%s644] ss:$8 sm:$0xf]
        %v4235 = vlaneseq
        %v4236 = vshrl.u32 %v4235, 7
        %v4237 = vsub.s32 0, %v4236
        %v4238 = vrot.slane %v4233, %v4237
        %v4239 = vlaneseq
        %v4240 = vshrl.u32 %v4239, 7
        %v4241 = vsub.s32 1, %v4240
        %v4242 = vrot.slane %v4233, %v4241
        %v4243 = vlaneseq
        %v4244 = vshrl.u32 %v4243, 7
        %v4245 = vsub.s32 2, %v4244
        %v4246 = vrot.slane %v4233, %v4245
        %v4247 = vlaneseq
        %v4248 = vshrl.u32 %v4247, 7
        %v4249 = vsub.s32 3, %v4248
        %v4250 = vrot.slane %v4233, %v4249
        %4251 = vrot.lane.b32.xlu0 %v4238, 1
        %v4252 = vpop.permute.xlu0 %4251
        %4253 = vrot.lane.b32.xlu0 %v4242, 1
        %v4254 = vpop.permute.xlu0 %4253
        %4255 = vrot.lane.b32.xlu0 %v4246, 1
        %v4256 = vpop.permute.xlu0 %4255
        %4257 = vrot.lane.b32.xlu0 %v4250, 1
        %v4258 = vpop.permute.xlu0 %4257
        %v4259 = vsel %vm1621, %v4252, %v4254
        %v4260 = vsel %vm1621, %v4254, %v4256
        %v4261 = vsel %vm1621, %v4256, %v4258
        %v4267 = vmul.f32 %v4228, %v4252
        %v4268 = vmul.f32 %v4229, %v4259
        %v4269 = vmul.f32 %v4230, %v4260
        %v4270 = vmul.f32 %v4231, %v4261
        %v4271 = vmul.f32 %v4232, %v4258
        %v4272 = vpack.c.bf16 %v4267, %v4267
        %v4273 = vpack.c.bf16 %v4268, %v4268
        %v4274 = vpack.c.bf16 %v4269, %v4269
        %v4275 = vpack.c.bf16 %v4270, %v4270
        %v4276 = vpack.c.bf16 %v4271, %v4271
        %v4282 = vunpack.c.l.b16 %v4272
        %v4283 = vunpack.c.l.b16 %v4273
        %v4284 = vunpack.c.l.b16 %v4274
        %v4285 = vunpack.c.l.b16 %v4275
        %v4286 = vunpack.c.l.b16 %v4276
        %v4287 = vpack.c.b16 %v4283, %v4282
        %v4288 = vpack.c.b16 %v4285, %v4284
        %v4289 = vpack.c.b16 %v4286, %v4286
        %4290 = vrot.lane.b32.xlu0 %v4287, 127
        %v4291 = vpop.permute.xlu0 %4290
        %4292 = vrot.lane.b32.xlu0 %v4288, 127
        %v4293 = vpop.permute.xlu0 %4292
        %4294 = vrot.lane.b32.xlu0 %v4289, 127
        %v4295 = vpop.permute.xlu0 %4294
        %v4296 = vrot.slane %v4291, 4
        %v4297 = vrot.slane %v4293, 4
        %v4298 = vrot.slane %v4295, 4
        %v4299 = vsel %vm540, %v4296, %v4297
        %v4300 = vsel %vm1663, %v4291, %v4299
        %v4301 = vsel %vm540, %v4297, %v4298
        %v4302 = vsel %vm1663, %v4293, %v4301
        %4305 = vst [vmem:[#allocation4 + $0xe0] sm:$0xff] %v4300
        %4306 = vst [vmem:[#allocation4 + $0xe8] sm:$0xff] %v4302
        %v4307 = vld [vmem:[#allocation2 + $0x8] sm:$0xff]
        %v4308 = vld [vmem:[#allocation2 + $0x10] sm:$0xff]
        %v4309 = vld [vmem:[#allocation2 + $0x18] sm:$0xff]
        %v4310 = vld [vmem:[#allocation2 + $0x20] sm:$0xff]
        %v4311 = vld [vmem:[#allocation2 + $0x28] sm:$0xff]
        %v4312 = vld [vmem:[%s981] ss:$8 sm:$0xf]
        %v4313 = vld [vmem:[%s471] ss:$8 sm:$0xf]
        %v4314 = vmul.f32 %v4312, %v4313
        %v4316 = vlaneseq
        %v4317 = vshrl.u32 %v4316, 7
        %v4318 = vsub.s32 0, %v4317
        %v4319 = vrot.slane %v4314, %v4318
        %v4320 = vlaneseq
        %v4321 = vshrl.u32 %v4320, 7
        %v4322 = vsub.s32 1, %v4321
        %v4323 = vrot.slane %v4314, %v4322
        %v4324 = vlaneseq
        %v4325 = vshrl.u32 %v4324, 7
        %v4326 = vsub.s32 2, %v4325
        %v4327 = vrot.slane %v4314, %v4326
        %v4328 = vlaneseq
        %v4329 = vshrl.u32 %v4328, 7
        %v4330 = vsub.s32 3, %v4329
        %v4331 = vrot.slane %v4314, %v4330
        %4332 = vrot.lane.b32.xlu0 %v4319, 7
        %v4333 = vpop.permute.xlu0 %4332
        %4334 = vrot.lane.b32.xlu0 %v4323, 7
        %v4335 = vpop.permute.xlu0 %4334
        %4336 = vrot.lane.b32.xlu0 %v4327, 7
        %v4337 = vpop.permute.xlu0 %4336
        %4338 = vrot.lane.b32.xlu0 %v4331, 7
        %v4339 = vpop.permute.xlu0 %4338
        %v4340 = vsel %vm1704, %v4333, %v4335
        %v4341 = vsel %vm1704, %v4335, %v4337
        %v4342 = vsel %vm1704, %v4337, %v4339
        %v4348 = vmul.f32 %v4307, %v4333
        %v4349 = vmul.f32 %v4308, %v4340
        %v4350 = vmul.f32 %v4309, %v4341
        %v4351 = vmul.f32 %v4310, %v4342
        %v4352 = vmul.f32 %v4311, %v4339
        %v4353 = vpack.c.bf16 %v4348, %v4348
        %v4354 = vpack.c.bf16 %v4349, %v4349
        %v4355 = vpack.c.bf16 %v4350, %v4350
        %v4356 = vpack.c.bf16 %v4351, %v4351
        %v4357 = vpack.c.bf16 %v4352, %v4352
        %v4363 = vunpack.c.l.b16 %v4353
        %v4364 = vunpack.c.l.b16 %v4354
        %v4365 = vunpack.c.l.b16 %v4355
        %v4366 = vunpack.c.l.b16 %v4356
        %v4367 = vunpack.c.l.b16 %v4357
        %v4368 = vpack.c.b16 %v4364, %v4363
        %v4369 = vpack.c.b16 %v4366, %v4365
        %v4370 = vpack.c.b16 %v4367, %v4367
        %4371 = vrot.lane.b32.xlu0 %v4368, 121
        %v4372 = vpop.permute.xlu0 %4371
        %4373 = vrot.lane.b32.xlu0 %v4369, 121
        %v4374 = vpop.permute.xlu0 %4373
        %4375 = vrot.lane.b32.xlu0 %v4370, 121
        %v4376 = vpop.permute.xlu0 %4375
        %v4377 = vrot.slane %v4372, 4
        %v4378 = vrot.slane %v4374, 4
        %v4379 = vrot.slane %v4376, 4
        %v4380 = vsel %vm540, %v4377, %v4378
        %v4381 = vsel %vm1749, %v4372, %v4380
        %v4382 = vsel %vm540, %v4378, %v4379
        %v4383 = vsel %vm1749, %v4374, %v4382
        %4386 = vst [vmem:[#allocation4 + $0xf0] sm:$0xff] %v4381
        %4387 = vst [vmem:[#allocation4 + $0xf8] sm:$0xff] %v4383
        %v4388 = vld [vmem:[#allocation2 + $0x8] sm:$0xff]
        %v4389 = vld [vmem:[#allocation2 + $0x10] sm:$0xff]
        %v4390 = vld [vmem:[#allocation2 + $0x18] sm:$0xff]
        %v4391 = vld [vmem:[#allocation2 + $0x20] sm:$0xff]
        %v4392 = vld [vmem:[#allocation2 + $0x28] sm:$0xff]
        %v4393 = vld [vmem:[%s981] ss:$8 sm:$0xf]
        %v4395 = vlaneseq
        %v4396 = vshrl.u32 %v4395, 7
        %v4397 = vsub.s32 0, %v4396
        %v4398 = vrot.slane %v4393, %v4397
        %v4399 = vlaneseq
        %v4400 = vshrl.u32 %v4399, 7
        %v4401 = vsub.s32 1, %v4400
        %v4402 = vrot.slane %v4393, %v4401
        %v4403 = vlaneseq
        %v4404 = vshrl.u32 %v4403, 7
        %v4405 = vsub.s32 2, %v4404
        %v4406 = vrot.slane %v4393, %v4405
        %v4407 = vlaneseq
        %v4408 = vshrl.u32 %v4407, 7
        %v4409 = vsub.s32 3, %v4408
        %v4410 = vrot.slane %v4393, %v4409
        %4411 = vrot.lane.b32.xlu0 %v4398, 8
        %v4412 = vpop.permute.xlu0 %4411
        %4413 = vrot.lane.b32.xlu0 %v4402, 8
        %v4414 = vpop.permute.xlu0 %4413
        %4415 = vrot.lane.b32.xlu0 %v4406, 8
        %v4416 = vpop.permute.xlu0 %4415
        %4417 = vrot.lane.b32.xlu0 %v4410, 8
        %v4418 = vpop.permute.xlu0 %4417
        %v4419 = vsel %vm1788, %v4412, %v4414
        %v4420 = vsel %vm1788, %v4414, %v4416
        %v4421 = vsel %vm1788, %v4416, %v4418
        %v4427 = vmul.f32 %v4388, %v4412
        %v4428 = vmul.f32 %v4389, %v4419
        %v4429 = vmul.f32 %v4390, %v4420
        %v4430 = vmul.f32 %v4391, %v4421
        %v4431 = vmul.f32 %v4392, %v4418
        %v4432 = vpack.c.bf16 %v4427, %v4427
        %v4433 = vpack.c.bf16 %v4428, %v4428
        %v4434 = vpack.c.bf16 %v4429, %v4429
        %v4435 = vpack.c.bf16 %v4430, %v4430
        %v4436 = vpack.c.bf16 %v4431, %v4431
        %v4442 = vunpack.c.l.b16 %v4432
        %v4443 = vunpack.c.l.b16 %v4433
        %v4444 = vunpack.c.l.b16 %v4434
        %v4445 = vunpack.c.l.b16 %v4435
        %v4446 = vunpack.c.l.b16 %v4436
        %v4447 = vpack.c.b16 %v4443, %v4442
        %v4448 = vpack.c.b16 %v4445, %v4444
        %v4449 = vpack.c.b16 %v4446, %v4446
        %4450 = vrot.lane.b32.xlu0 %v4447, 120
        %v4451 = vpop.permute.xlu0 %4450
        %4452 = vrot.lane.b32.xlu0 %v4448, 120
        %v4453 = vpop.permute.xlu0 %4452
        %4454 = vrot.lane.b32.xlu0 %v4449, 120
        %v4455 = vpop.permute.xlu0 %4454
        %v4456 = vrot.slane %v4451, 4
        %v4457 = vrot.slane %v4453, 4
        %v4458 = vrot.slane %v4455, 4
        %v4459 = vsel %vm540, %v4456, %v4457
        %v4460 = vsel %vm1830, %v4451, %v4459
        %v4461 = vsel %vm540, %v4457, %v4458
        %v4462 = vsel %vm1830, %v4453, %v4461
        %4465 = vst [vmem:[#allocation4 + $0x100] sm:$0xff] %v4460
        %4466 = vst [vmem:[#allocation4 + $0x108] sm:$0xff] %v4462
        %v4467 = vld [vmem:[#allocation2 + $0x8] sm:$0xff]
        %v4468 = vld [vmem:[#allocation2 + $0x10] sm:$0xff]
        %v4469 = vld [vmem:[#allocation2 + $0x18] sm:$0xff]
        %v4470 = vld [vmem:[#allocation2 + $0x20] sm:$0xff]
        %v4471 = vld [vmem:[#allocation2 + $0x28] sm:$0xff]
        %v4472 = vld [vmem:[%s981] ss:$8 sm:$0xf]
        %v4473 = vld [vmem:[%s644] ss:$8 sm:$0xf]
        %v4474 = vmul.f32 %v4472, %v4473
        %v4476 = vlaneseq
        %v4477 = vshrl.u32 %v4476, 7
        %v4478 = vsub.s32 0, %v4477
        %v4479 = vrot.slane %v4474, %v4478
        %v4480 = vlaneseq
        %v4481 = vshrl.u32 %v4480, 7
        %v4482 = vsub.s32 1, %v4481
        %v4483 = vrot.slane %v4474, %v4482
        %v4484 = vlaneseq
        %v4485 = vshrl.u32 %v4484, 7
        %v4486 = vsub.s32 2, %v4485
        %v4487 = vrot.slane %v4474, %v4486
        %v4488 = vlaneseq
        %v4489 = vshrl.u32 %v4488, 7
        %v4490 = vsub.s32 3, %v4489
        %v4491 = vrot.slane %v4474, %v4490
        %4492 = vrot.lane.b32.xlu0 %v4479, 9
        %v4493 = vpop.permute.xlu0 %4492
        %4494 = vrot.lane.b32.xlu0 %v4483, 9
        %v4495 = vpop.permute.xlu0 %4494
        %4496 = vrot.lane.b32.xlu0 %v4487, 9
        %v4497 = vpop.permute.xlu0 %4496
        %4498 = vrot.lane.b32.xlu0 %v4491, 9
        %v4499 = vpop.permute.xlu0 %4498
        %v4500 = vsel %vm1871, %v4493, %v4495
        %v4501 = vsel %vm1871, %v4495, %v4497
        %v4502 = vsel %vm1871, %v4497, %v4499
        %v4508 = vmul.f32 %v4467, %v4493
        %v4509 = vmul.f32 %v4468, %v4500
        %v4510 = vmul.f32 %v4469, %v4501
        %v4511 = vmul.f32 %v4470, %v4502
        %v4512 = vmul.f32 %v4471, %v4499
        %v4513 = vpack.c.bf16 %v4508, %v4508
        %v4514 = vpack.c.bf16 %v4509, %v4509
        %v4515 = vpack.c.bf16 %v4510, %v4510
        %v4516 = vpack.c.bf16 %v4511, %v4511
        %v4517 = vpack.c.bf16 %v4512, %v4512
        %v4523 = vunpack.c.l.b16 %v4513
        %v4524 = vunpack.c.l.b16 %v4514
        %v4525 = vunpack.c.l.b16 %v4515
        %v4526 = vunpack.c.l.b16 %v4516
        %v4527 = vunpack.c.l.b16 %v4517
        %v4528 = vpack.c.b16 %v4524, %v4523
        %v4529 = vpack.c.b16 %v4526, %v4525
        %v4530 = vpack.c.b16 %v4527, %v4527
        %4531 = vrot.lane.b32.xlu0 %v4528, 119
        %v4532 = vpop.permute.xlu0 %4531
        %4533 = vrot.lane.b32.xlu0 %v4529, 119
        %v4534 = vpop.permute.xlu0 %4533
        %4535 = vrot.lane.b32.xlu0 %v4530, 119
        %v4536 = vpop.permute.xlu0 %4535
        %v4537 = vrot.slane %v4532, 4
        %v4538 = vrot.slane %v4534, 4
        %v4539 = vrot.slane %v4536, 4
        %v4540 = vsel %vm540, %v4537, %v4538
        %v4541 = vsel %vm1916, %v4532, %v4540
        %v4542 = vsel %vm540, %v4538, %v4539
        %v4543 = vsel %vm1916, %v4534, %v4542
        %4546 = vst [vmem:[#allocation4 + $0x110] sm:$0xff] %v4541
        %4547 = vst [vmem:[#allocation4 + $0x118] sm:$0xff] %v4543
        %v4548 = vld [vmem:[#allocation2 + $0x8] sm:$0xff]
        %v4549 = vld [vmem:[#allocation2 + $0x10] sm:$0xff]
        %v4550 = vld [vmem:[#allocation2 + $0x18] sm:$0xff]
        %v4551 = vld [vmem:[#allocation2 + $0x20] sm:$0xff]
        %v4552 = vld [vmem:[#allocation2 + $0x28] sm:$0xff]
        %v4553 = vld [vmem:[%s1929] ss:$8 sm:$0xf]
        %v4554 = vld [vmem:[%s468] ss:$8 sm:$0xf]
        %v4555 = vmul.f32 %v4553, %v4554
        %v4556 = vld [vmem:[%s471] ss:$8 sm:$0xf]
        %v4557 = vmul.f32 %v4555, %v4556
        %v4559 = vlaneseq
        %v4560 = vshrl.u32 %v4559, 7
        %v4561 = vsub.s32 0, %v4560
        %v4562 = vrot.slane %v4557, %v4561
        %v4563 = vlaneseq
        %v4564 = vshrl.u32 %v4563, 7
        %v4565 = vsub.s32 1, %v4564
        %v4566 = vrot.slane %v4557, %v4565
        %v4567 = vlaneseq
        %v4568 = vshrl.u32 %v4567, 7
        %v4569 = vsub.s32 2, %v4568
        %v4570 = vrot.slane %v4557, %v4569
        %v4571 = vlaneseq
        %v4572 = vshrl.u32 %v4571, 7
        %v4573 = vsub.s32 3, %v4572
        %v4574 = vrot.slane %v4557, %v4573
        %4575 = vrot.lane.b32.xlu0 %v4562, 55
        %v4576 = vpop.permute.xlu0 %4575
        %4577 = vrot.lane.b32.xlu0 %v4566, 55
        %v4578 = vpop.permute.xlu0 %4577
        %4579 = vrot.lane.b32.xlu0 %v4570, 55
        %v4580 = vpop.permute.xlu0 %4579
        %4581 = vrot.lane.b32.xlu0 %v4574, 55
        %v4582 = vpop.permute.xlu0 %4581
        %v4583 = vsel %vm499, %v4576, %v4578
        %v4584 = vsel %vm499, %v4578, %v4580
        %v4585 = vsel %vm499, %v4580, %v4582
        %v4591 = vmul.f32 %v4548, %v4576
        %v4592 = vmul.f32 %v4549, %v4583
        %v4593 = vmul.f32 %v4550, %v4584
        %v4594 = vmul.f32 %v4551, %v4585
        %v4595 = vmul.f32 %v4552, %v4582
        %v4596 = vpack.c.bf16 %v4591, %v4591
        %v4597 = vpack.c.bf16 %v4592, %v4592
        %v4598 = vpack.c.bf16 %v4593, %v4593
        %v4599 = vpack.c.bf16 %v4594, %v4594
        %v4600 = vpack.c.bf16 %v4595, %v4595
        %v4606 = vunpack.c.l.b16 %v4596
        %v4607 = vunpack.c.l.b16 %v4597
        %v4608 = vunpack.c.l.b16 %v4598
        %v4609 = vunpack.c.l.b16 %v4599
        %v4610 = vunpack.c.l.b16 %v4600
        %v4611 = vpack.c.b16 %v4607, %v4606
        %v4612 = vpack.c.b16 %v4609, %v4608
        %v4613 = vpack.c.b16 %v4610, %v4610
        %4614 = vrot.lane.b32.xlu0 %v4611, 73
        %v4615 = vpop.permute.xlu0 %4614
        %4616 = vrot.lane.b32.xlu0 %v4612, 73
        %v4617 = vpop.permute.xlu0 %4616
        %4618 = vrot.lane.b32.xlu0 %v4613, 73
        %v4619 = vpop.permute.xlu0 %4618
        %v4620 = vrot.slane %v4615, 4
        %v4621 = vrot.slane %v4617, 4
        %v4622 = vrot.slane %v4619, 4
        %v4623 = vsel %vm540, %v4620, %v4621
        %v4624 = vsel %vm542, %v4615, %v4623
        %v4625 = vsel %vm540, %v4621, %v4622
        %v4626 = vsel %vm542, %v4617, %v4625
        %4629 = vst [vmem:[#allocation4 + $0x120] sm:$0xff] %v4624
        %4630 = vst [vmem:[#allocation4 + $0x128] sm:$0xff] %v4626
        %v4631 = vld [vmem:[#allocation2 + $0x8] sm:$0xff]
        %v4632 = vld [vmem:[#allocation2 + $0x10] sm:$0xff]
        %v4633 = vld [vmem:[#allocation2 + $0x18] sm:$0xff]
        %v4634 = vld [vmem:[#allocation2 + $0x20] sm:$0xff]
        %v4635 = vld [vmem:[#allocation2 + $0x28] sm:$0xff]
        %v4636 = vld [vmem:[%s1929] ss:$8 sm:$0xf]
        %v4637 = vld [vmem:[%s468] ss:$8 sm:$0xf]
        %v4638 = vmul.f32 %v4636, %v4637
        %v4640 = vlaneseq
        %v4641 = vshrl.u32 %v4640, 7
        %v4642 = vsub.s32 0, %v4641
        %v4643 = vrot.slane %v4638, %v4642
        %v4644 = vlaneseq
        %v4645 = vshrl.u32 %v4644, 7
        %v4646 = vsub.s32 1, %v4645
        %v4647 = vrot.slane %v4638, %v4646
        %v4648 = vlaneseq
        %v4649 = vshrl.u32 %v4648, 7
        %v4650 = vsub.s32 2, %v4649
        %v4651 = vrot.slane %v4638, %v4650
        %v4652 = vlaneseq
        %v4653 = vshrl.u32 %v4652, 7
        %v4654 = vsub.s32 3, %v4653
        %v4655 = vrot.slane %v4638, %v4654
        %4656 = vrot.lane.b32.xlu0 %v4643, 56
        %v4657 = vpop.permute.xlu0 %4656
        %4658 = vrot.lane.b32.xlu0 %v4647, 56
        %v4659 = vpop.permute.xlu0 %4658
        %4660 = vrot.lane.b32.xlu0 %v4651, 56
        %v4661 = vpop.permute.xlu0 %4660
        %4662 = vrot.lane.b32.xlu0 %v4655, 56
        %v4663 = vpop.permute.xlu0 %4662
        %v4664 = vsel %vm583, %v4657, %v4659
        %v4665 = vsel %vm583, %v4659, %v4661
        %v4666 = vsel %vm583, %v4661, %v4663
        %v4672 = vmul.f32 %v4631, %v4657
        %v4673 = vmul.f32 %v4632, %v4664
        %v4674 = vmul.f32 %v4633, %v4665
        %v4675 = vmul.f32 %v4634, %v4666
        %v4676 = vmul.f32 %v4635, %v4663
        %v4677 = vpack.c.bf16 %v4672, %v4672
        %v4678 = vpack.c.bf16 %v4673, %v4673
        %v4679 = vpack.c.bf16 %v4674, %v4674
        %v4680 = vpack.c.bf16 %v4675, %v4675
        %v4681 = vpack.c.bf16 %v4676, %v4676
        %v4687 = vunpack.c.l.b16 %v4677
        %v4688 = vunpack.c.l.b16 %v4678
        %v4689 = vunpack.c.l.b16 %v4679
        %v4690 = vunpack.c.l.b16 %v4680
        %v4691 = vunpack.c.l.b16 %v4681
        %v4692 = vpack.c.b16 %v4688, %v4687
        %v4693 = vpack.c.b16 %v4690, %v4689
        %v4694 = vpack.c.b16 %v4691, %v4691
        %4695 = vrot.lane.b32.xlu0 %v4692, 72
        %v4696 = vpop.permute.xlu0 %4695
        %4697 = vrot.lane.b32.xlu0 %v4693, 72
        %v4698 = vpop.permute.xlu0 %4697
        %4699 = vrot.lane.b32.xlu0 %v4694, 72
        %v4700 = vpop.permute.xlu0 %4699
        %v4701 = vrot.slane %v4696, 4
        %v4702 = vrot.slane %v4698, 4
        %v4703 = vrot.slane %v4700, 4
        %v4704 = vsel %vm540, %v4701, %v4702
        %v4705 = vsel %vm628, %v4696, %v4704
        %v4706 = vsel %vm540, %v4702, %v4703
        %v4707 = vsel %vm628, %v4698, %v4706
        %4710 = vst [vmem:[#allocation4 + $0x130] sm:$0xff] %v4705
        %4711 = vst [vmem:[#allocation4 + $0x138] sm:$0xff] %v4707
        %v4712 = vld [vmem:[#allocation2 + $0x8] sm:$0xff]
        %v4713 = vld [vmem:[#allocation2 + $0x10] sm:$0xff]
        %v4714 = vld [vmem:[#allocation2 + $0x18] sm:$0xff]
        %v4715 = vld [vmem:[#allocation2 + $0x20] sm:$0xff]
        %v4716 = vld [vmem:[#allocation2 + $0x28] sm:$0xff]
        %v4717 = vld [vmem:[%s1929] ss:$8 sm:$0xf]
        %v4718 = vld [vmem:[%s468] ss:$8 sm:$0xf]
        %v4719 = vmul.f32 %v4717, %v4718
        %v4720 = vld [vmem:[%s644] ss:$8 sm:$0xf]
        %v4721 = vmul.f32 %v4719, %v4720
        %v4723 = vlaneseq
        %v4724 = vshrl.u32 %v4723, 7
        %v4725 = vsub.s32 0, %v4724
        %v4726 = vrot.slane %v4721, %v4725
        %v4727 = vlaneseq
        %v4728 = vshrl.u32 %v4727, 7
        %v4729 = vsub.s32 1, %v4728
        %v4730 = vrot.slane %v4721, %v4729
        %v4731 = vlaneseq
        %v4732 = vshrl.u32 %v4731, 7
        %v4733 = vsub.s32 2, %v4732
        %v4734 = vrot.slane %v4721, %v4733
        %v4735 = vlaneseq
        %v4736 = vshrl.u32 %v4735, 7
        %v4737 = vsub.s32 3, %v4736
        %v4738 = vrot.slane %v4721, %v4737
        %4739 = vrot.lane.b32.xlu0 %v4726, 57
        %v4740 = vpop.permute.xlu0 %4739
        %4741 = vrot.lane.b32.xlu0 %v4730, 57
        %v4742 = vpop.permute.xlu0 %4741
        %4743 = vrot.lane.b32.xlu0 %v4734, 57
        %v4744 = vpop.permute.xlu0 %4743
        %4745 = vrot.lane.b32.xlu0 %v4738, 57
        %v4746 = vpop.permute.xlu0 %4745
        %v4747 = vsel %vm672, %v4740, %v4742
        %v4748 = vsel %vm672, %v4742, %v4744
        %v4749 = vsel %vm672, %v4744, %v4746
        %v4755 = vmul.f32 %v4712, %v4740
        %v4756 = vmul.f32 %v4713, %v4747
        %v4757 = vmul.f32 %v4714, %v4748
        %v4758 = vmul.f32 %v4715, %v4749
        %v4759 = vmul.f32 %v4716, %v4746
        %v4760 = vpack.c.bf16 %v4755, %v4755
        %v4761 = vpack.c.bf16 %v4756, %v4756
        %v4762 = vpack.c.bf16 %v4757, %v4757
        %v4763 = vpack.c.bf16 %v4758, %v4758
        %v4764 = vpack.c.bf16 %v4759, %v4759
        %v4770 = vunpack.c.l.b16 %v4760
        %v4771 = vunpack.c.l.b16 %v4761
        %v4772 = vunpack.c.l.b16 %v4762
        %v4773 = vunpack.c.l.b16 %v4763
        %v4774 = vunpack.c.l.b16 %v4764
        %v4775 = vpack.c.b16 %v4771, %v4770
        %v4776 = vpack.c.b16 %v4773, %v4772
        %v4777 = vpack.c.b16 %v4774, %v4774
        %4778 = vrot.lane.b32.xlu0 %v4775, 71
        %v4779 = vpop.permute.xlu0 %4778
        %4780 = vrot.lane.b32.xlu0 %v4776, 71
        %v4781 = vpop.permute.xlu0 %4780
        %4782 = vrot.lane.b32.xlu0 %v4777, 71
        %v4783 = vpop.permute.xlu0 %4782
        %v4784 = vrot.slane %v4779, 4
        %v4785 = vrot.slane %v4781, 4
        %v4786 = vrot.slane %v4783, 4
        %v4787 = vsel %vm540, %v4784, %v4785
        %v4788 = vsel %vm714, %v4779, %v4787
        %v4789 = vsel %vm540, %v4785, %v4786
        %v4790 = vsel %vm714, %v4781, %v4789
        %4793 = vst [vmem:[#allocation4 + $0x140] sm:$0xff] %v4788
        %4794 = vst [vmem:[#allocation4 + $0x148] sm:$0xff] %v4790
        %v4795 = vld [vmem:[#allocation2 + $0x8] sm:$0xff]
        %v4796 = vld [vmem:[#allocation2 + $0x10] sm:$0xff]
        %v4797 = vld [vmem:[#allocation2 + $0x18] sm:$0xff]
        %v4798 = vld [vmem:[#allocation2 + $0x20] sm:$0xff]
        %v4799 = vld [vmem:[#allocation2 + $0x28] sm:$0xff]
        %v4800 = vld [vmem:[%s1929] ss:$8 sm:$0xf]
        %v4801 = vld [vmem:[%s471] ss:$8 sm:$0xf]
        %v4802 = vmul.f32 %v4800, %v4801
        %v4804 = vlaneseq
        %v4805 = vshrl.u32 %v4804, 7
        %v4806 = vsub.s32 0, %v4805
        %v4807 = vrot.slane %v4802, %v4806
        %v4808 = vlaneseq
        %v4809 = vshrl.u32 %v4808, 7
        %v4810 = vsub.s32 1, %v4809
        %v4811 = vrot.slane %v4802, %v4810
        %v4812 = vlaneseq
        %v4813 = vshrl.u32 %v4812, 7
        %v4814 = vsub.s32 2, %v4813
        %v4815 = vrot.slane %v4802, %v4814
        %v4816 = vlaneseq
        %v4817 = vshrl.u32 %v4816, 7
        %v4818 = vsub.s32 3, %v4817
        %v4819 = vrot.slane %v4802, %v4818
        %4820 = vrot.lane.b32.xlu0 %v4807, 63
        %v4821 = vpop.permute.xlu0 %4820
        %4822 = vrot.lane.b32.xlu0 %v4811, 63
        %v4823 = vpop.permute.xlu0 %4822
        %4824 = vrot.lane.b32.xlu0 %v4815, 63
        %v4825 = vpop.permute.xlu0 %4824
        %4826 = vrot.lane.b32.xlu0 %v4819, 63
        %v4827 = vpop.permute.xlu0 %4826
        %v4828 = vsel %vm755, %v4821, %v4823
        %v4829 = vsel %vm755, %v4823, %v4825
        %v4830 = vsel %vm755, %v4825, %v4827
        %v4836 = vmul.f32 %v4795, %v4821
        %v4837 = vmul.f32 %v4796, %v4828
        %v4838 = vmul.f32 %v4797, %v4829
        %v4839 = vmul.f32 %v4798, %v4830
        %v4840 = vmul.f32 %v4799, %v4827
        %v4841 = vpack.c.bf16 %v4836, %v4836
        %v4842 = vpack.c.bf16 %v4837, %v4837
        %v4843 = vpack.c.bf16 %v4838, %v4838
        %v4844 = vpack.c.bf16 %v4839, %v4839
        %v4845 = vpack.c.bf16 %v4840, %v4840
        %v4851 = vunpack.c.l.b16 %v4841
        %v4852 = vunpack.c.l.b16 %v4842
        %v4853 = vunpack.c.l.b16 %v4843
        %v4854 = vunpack.c.l.b16 %v4844
        %v4855 = vunpack.c.l.b16 %v4845
        %v4856 = vpack.c.b16 %v4852, %v4851
        %v4857 = vpack.c.b16 %v4854, %v4853
        %v4858 = vpack.c.b16 %v4855, %v4855
        %4859 = vrot.lane.b32.xlu0 %v4856, 65
        %v4860 = vpop.permute.xlu0 %4859
        %4861 = vrot.lane.b32.xlu0 %v4857, 65
        %v4862 = vpop.permute.xlu0 %4861
        %4863 = vrot.lane.b32.xlu0 %v4858, 65
        %v4864 = vpop.permute.xlu0 %4863
        %v4865 = vrot.slane %v4860, 4
        %v4866 = vrot.slane %v4862, 4
        %v4867 = vrot.slane %v4864, 4
        %v4868 = vsel %vm540, %v4865, %v4866
        %v4869 = vsel %vm800, %v4860, %v4868
        %v4870 = vsel %vm540, %v4866, %v4867
        %v4871 = vsel %vm800, %v4862, %v4870
        %4874 = vst [vmem:[#allocation4 + $0x150] sm:$0xff] %v4869
        %4875 = vst [vmem:[#allocation4 + $0x158] sm:$0xff] %v4871
        %v4876 = vld [vmem:[#allocation2 + $0x8] sm:$0xff]
        %v4877 = vld [vmem:[#allocation2 + $0x10] sm:$0xff]
        %v4878 = vld [vmem:[#allocation2 + $0x18] sm:$0xff]
        %v4879 = vld [vmem:[#allocation2 + $0x20] sm:$0xff]
        %v4880 = vld [vmem:[#allocation2 + $0x28] sm:$0xff]
        %v4881 = vld [vmem:[%s1929] ss:$8 sm:$0xf]
        %v4883 = vlaneseq
        %v4884 = vshrl.u32 %v4883, 7
        %v4885 = vsub.s32 0, %v4884
        %v4886 = vrot.slane %v4881, %v4885
        %v4887 = vlaneseq
        %v4888 = vshrl.u32 %v4887, 7
        %v4889 = vsub.s32 1, %v4888
        %v4890 = vrot.slane %v4881, %v4889
        %v4891 = vlaneseq
        %v4892 = vshrl.u32 %v4891, 7
        %v4893 = vsub.s32 2, %v4892
        %v4894 = vrot.slane %v4881, %v4893
        %v4895 = vlaneseq
        %v4896 = vshrl.u32 %v4895, 7
        %v4897 = vsub.s32 3, %v4896
        %v4898 = vrot.slane %v4881, %v4897
        %4899 = vrot.lane.b32.xlu0 %v4886, 64
        %v4900 = vpop.permute.xlu0 %4899
        %4901 = vrot.lane.b32.xlu0 %v4890, 64
        %v4902 = vpop.permute.xlu0 %4901
        %4903 = vrot.lane.b32.xlu0 %v4894, 64
        %v4904 = vpop.permute.xlu0 %4903
        %4905 = vrot.lane.b32.xlu0 %v4898, 64
        %v4906 = vpop.permute.xlu0 %4905
        %v4907 = vsel %vm839, %v4900, %v4902
        %v4908 = vsel %vm839, %v4902, %v4904
        %v4909 = vsel %vm839, %v4904, %v4906
        %v4915 = vmul.f32 %v4876, %v4900
        %v4916 = vmul.f32 %v4877, %v4907
        %v4917 = vmul.f32 %v4878, %v4908
        %v4918 = vmul.f32 %v4879, %v4909
        %v4919 = vmul.f32 %v4880, %v4906
        %v4920 = vpack.c.bf16 %v4915, %v4915
        %v4921 = vpack.c.bf16 %v4916, %v4916
        %v4922 = vpack.c.bf16 %v4917, %v4917
        %v4923 = vpack.c.bf16 %v4918, %v4918
        %v4924 = vpack.c.bf16 %v4919, %v4919
        %v4930 = vunpack.c.l.b16 %v4920
        %v4931 = vunpack.c.l.b16 %v4921
        %v4932 = vunpack.c.l.b16 %v4922
        %v4933 = vunpack.c.l.b16 %v4923
        %v4934 = vunpack.c.l.b16 %v4924
        %v4935 = vpack.c.b16 %v4931, %v4930
        %v4936 = vpack.c.b16 %v4933, %v4932
        %v4937 = vpack.c.b16 %v4934, %v4934
        %4938 = vrot.lane.b32.xlu0 %v4935, 64
        %v4939 = vpop.permute.xlu0 %4938
        %4940 = vrot.lane.b32.xlu0 %v4936, 64
        %v4941 = vpop.permute.xlu0 %4940
        %4942 = vrot.lane.b32.xlu0 %v4937, 64
        %v4943 = vpop.permute.xlu0 %4942
        %v4944 = vrot.slane %v4939, 4
        %v4945 = vrot.slane %v4941, 4
        %v4946 = vrot.slane %v4943, 4
        %v4947 = vsel %vm540, %v4944, %v4945
        %v4948 = vsel %vm881, %v4939, %v4947
        %v4949 = vsel %vm540, %v4945, %v4946
        %v4950 = vsel %vm881, %v4941, %v4949
        %4953 = vst [vmem:[#allocation4 + $0x160] sm:$0xff] %v4948
        %4954 = vst [vmem:[#allocation4 + $0x168] sm:$0xff] %v4950
        %v4955 = vld [vmem:[#allocation2 + $0x8] sm:$0xff]
        %v4956 = vld [vmem:[#allocation2 + $0x10] sm:$0xff]
        %v4957 = vld [vmem:[#allocation2 + $0x18] sm:$0xff]
        %v4958 = vld [vmem:[#allocation2 + $0x20] sm:$0xff]
        %v4959 = vld [vmem:[#allocation2 + $0x28] sm:$0xff]
        %v4960 = vld [vmem:[%s1929] ss:$8 sm:$0xf]
        %v4961 = vld [vmem:[%s644] ss:$8 sm:$0xf]
        %v4962 = vmul.f32 %v4960, %v4961
        %v4964 = vlaneseq
        %v4965 = vshrl.u32 %v4964, 7
        %v4966 = vsub.s32 0, %v4965
        %v4967 = vrot.slane %v4962, %v4966
        %v4968 = vlaneseq
        %v4969 = vshrl.u32 %v4968, 7
        %v4970 = vsub.s32 1, %v4969
        %v4971 = vrot.slane %v4962, %v4970
        %v4972 = vlaneseq
        %v4973 = vshrl.u32 %v4972, 7
        %v4974 = vsub.s32 2, %v4973
        %v4975 = vrot.slane %v4962, %v4974
        %v4976 = vlaneseq
        %v4977 = vshrl.u32 %v4976, 7
        %v4978 = vsub.s32 3, %v4977
        %v4979 = vrot.slane %v4962, %v4978
        %4980 = vrot.lane.b32.xlu0 %v4967, 65
        %v4981 = vpop.permute.xlu0 %4980
        %4982 = vrot.lane.b32.xlu0 %v4971, 65
        %v4983 = vpop.permute.xlu0 %4982
        %4984 = vrot.lane.b32.xlu0 %v4975, 65
        %v4985 = vpop.permute.xlu0 %4984
        %4986 = vrot.lane.b32.xlu0 %v4979, 65
        %v4987 = vpop.permute.xlu0 %4986
        %v4988 = vsel %vm922, %v4981, %v4983
        %v4989 = vsel %vm922, %v4983, %v4985
        %v4990 = vsel %vm922, %v4985, %v4987
        %v4996 = vmul.f32 %v4955, %v4981
        %v4997 = vmul.f32 %v4956, %v4988
        %v4998 = vmul.f32 %v4957, %v4989
        %v4999 = vmul.f32 %v4958, %v4990
        %v5000 = vmul.f32 %v4959, %v4987
        %v5001 = vpack.c.bf16 %v4996, %v4996
        %v5002 = vpack.c.bf16 %v4997, %v4997
        %v5003 = vpack.c.bf16 %v4998, %v4998
        %v5004 = vpack.c.bf16 %v4999, %v4999
        %v5005 = vpack.c.bf16 %v5000, %v5000
        %v5011 = vunpack.c.l.b16 %v5001
        %v5012 = vunpack.c.l.b16 %v5002
        %v5013 = vunpack.c.l.b16 %v5003
        %v5014 = vunpack.c.l.b16 %v5004
        %v5015 = vunpack.c.l.b16 %v5005
        %v5016 = vpack.c.b16 %v5012, %v5011
        %v5017 = vpack.c.b16 %v5014, %v5013
        %v5018 = vpack.c.b16 %v5015, %v5015
        %5019 = vrot.lane.b32.xlu0 %v5016, 63
        %v5020 = vpop.permute.xlu0 %5019
        %5021 = vrot.lane.b32.xlu0 %v5017, 63
        %v5022 = vpop.permute.xlu0 %5021
        %5023 = vrot.lane.b32.xlu0 %v5018, 63
        %v5024 = vpop.permute.xlu0 %5023
        %v5025 = vrot.slane %v5020, 4
        %v5026 = vrot.slane %v5022, 4
        %v5027 = vrot.slane %v5024, 4
        %v5028 = vsel %vm540, %v5025, %v5026
        %v5029 = vsel %vm967, %v5020, %v5028
        %v5030 = vsel %vm540, %v5026, %v5027
        %v5031 = vsel %vm967, %v5022, %v5030
        %5034 = vst [vmem:[#allocation4 + $0x170] sm:$0xff] %v5029
        %5035 = vst [vmem:[#allocation4 + $0x178] sm:$0xff] %v5031
        %v5036 = vld [vmem:[#allocation2 + $0x8] sm:$0xff]
        %v5037 = vld [vmem:[#allocation2 + $0x10] sm:$0xff]
        %v5038 = vld [vmem:[#allocation2 + $0x18] sm:$0xff]
        %v5039 = vld [vmem:[#allocation2 + $0x20] sm:$0xff]
        %v5040 = vld [vmem:[#allocation2 + $0x28] sm:$0xff]
        %v5041 = vld [vmem:[%s1929] ss:$8 sm:$0xf]
        %v5042 = vld [vmem:[%s981] ss:$8 sm:$0xf]
        %v5043 = vmul.f32 %v5041, %v5042
        %v5044 = vld [vmem:[%s471] ss:$8 sm:$0xf]
        %v5045 = vmul.f32 %v5043, %v5044
        %v5047 = vlaneseq
        %v5048 = vshrl.u32 %v5047, 7
        %v5049 = vsub.s32 0, %v5048
        %v5050 = vrot.slane %v5045, %v5049
        %v5051 = vlaneseq
        %v5052 = vshrl.u32 %v5051, 7
        %v5053 = vsub.s32 1, %v5052
        %v5054 = vrot.slane %v5045, %v5053
        %v5055 = vlaneseq
        %v5056 = vshrl.u32 %v5055, 7
        %v5057 = vsub.s32 2, %v5056
        %v5058 = vrot.slane %v5045, %v5057
        %v5059 = vlaneseq
        %v5060 = vshrl.u32 %v5059, 7
        %v5061 = vsub.s32 3, %v5060
        %v5062 = vrot.slane %v5045, %v5061
        %5063 = vrot.lane.b32.xlu0 %v5050, 71
        %v5064 = vpop.permute.xlu0 %5063
        %5065 = vrot.lane.b32.xlu0 %v5054, 71
        %v5066 = vpop.permute.xlu0 %5065
        %5067 = vrot.lane.b32.xlu0 %v5058, 71
        %v5068 = vpop.permute.xlu0 %5067
        %5069 = vrot.lane.b32.xlu0 %v5062, 71
        %v5070 = vpop.permute.xlu0 %5069
        %v5071 = vsel %vm1011, %v5064, %v5066
        %v5072 = vsel %vm1011, %v5066, %v5068
        %v5073 = vsel %vm1011, %v5068, %v5070
        %v5079 = vmul.f32 %v5036, %v5064
        %v5080 = vmul.f32 %v5037, %v5071
        %v5081 = vmul.f32 %v5038, %v5072
        %v5082 = vmul.f32 %v5039, %v5073
        %v5083 = vmul.f32 %v5040, %v5070
        %v5084 = vpack.c.bf16 %v5079, %v5079
        %v5085 = vpack.c.bf16 %v5080, %v5080
        %v5086 = vpack.c.bf16 %v5081, %v5081
        %v5087 = vpack.c.bf16 %v5082, %v5082
        %v5088 = vpack.c.bf16 %v5083, %v5083
        %v5094 = vunpack.c.l.b16 %v5084
        %v5095 = vunpack.c.l.b16 %v5085
        %v5096 = vunpack.c.l.b16 %v5086
        %v5097 = vunpack.c.l.b16 %v5087
        %v5098 = vunpack.c.l.b16 %v5088
        %v5099 = vpack.c.b16 %v5095, %v5094
        %v5100 = vpack.c.b16 %v5097, %v5096
        %v5101 = vpack.c.b16 %v5098, %v5098
        %5102 = vrot.lane.b32.xlu0 %v5099, 57
        %v5103 = vpop.permute.xlu0 %5102
        %5104 = vrot.lane.b32.xlu0 %v5100, 57
        %v5105 = vpop.permute.xlu0 %5104
        %5106 = vrot.lane.b32.xlu0 %v5101, 57
        %v5107 = vpop.permute.xlu0 %5106
        %v5108 = vrot.slane %v5103, 4
        %v5109 = vrot.slane %v5105, 4
        %v5110 = vrot.slane %v5107, 4
        %v5111 = vsel %vm540, %v5108, %v5109
        %v5112 = vsel %vm1053, %v5103, %v5111
        %v5113 = vsel %vm540, %v5109, %v5110
        %v5114 = vsel %vm1053, %v5105, %v5113
        %5117 = vst [vmem:[#allocation4 + $0x180] sm:$0xff] %v5112
        %5118 = vst [vmem:[#allocation4 + $0x188] sm:$0xff] %v5114
        %v5119 = vld [vmem:[#allocation2 + $0x8] sm:$0xff]
        %v5120 = vld [vmem:[#allocation2 + $0x10] sm:$0xff]
        %v5121 = vld [vmem:[#allocation2 + $0x18] sm:$0xff]
        %v5122 = vld [vmem:[#allocation2 + $0x20] sm:$0xff]
        %v5123 = vld [vmem:[#allocation2 + $0x28] sm:$0xff]
        %v5124 = vld [vmem:[%s1929] ss:$8 sm:$0xf]
        %v5125 = vld [vmem:[%s981] ss:$8 sm:$0xf]
        %v5126 = vmul.f32 %v5124, %v5125
        %v5128 = vlaneseq
        %v5129 = vshrl.u32 %v5128, 7
        %v5130 = vsub.s32 0, %v5129
        %v5131 = vrot.slane %v5126, %v5130
        %v5132 = vlaneseq
        %v5133 = vshrl.u32 %v5132, 7
        %v5134 = vsub.s32 1, %v5133
        %v5135 = vrot.slane %v5126, %v5134
        %v5136 = vlaneseq
        %v5137 = vshrl.u32 %v5136, 7
        %v5138 = vsub.s32 2, %v5137
        %v5139 = vrot.slane %v5126, %v5138
        %v5140 = vlaneseq
        %v5141 = vshrl.u32 %v5140, 7
        %v5142 = vsub.s32 3, %v5141
        %v5143 = vrot.slane %v5126, %v5142
        %5144 = vrot.lane.b32.xlu0 %v5131, 72
        %v5145 = vpop.permute.xlu0 %5144
        %5146 = vrot.lane.b32.xlu0 %v5135, 72
        %v5147 = vpop.permute.xlu0 %5146
        %5148 = vrot.lane.b32.xlu0 %v5139, 72
        %v5149 = vpop.permute.xlu0 %5148
        %5150 = vrot.lane.b32.xlu0 %v5143, 72
        %v5151 = vpop.permute.xlu0 %5150
        %v5152 = vsel %vm1094, %v5145, %v5147
        %v5153 = vsel %vm1094, %v5147, %v5149
        %v5154 = vsel %vm1094, %v5149, %v5151
        %v5160 = vmul.f32 %v5119, %v5145
        %v5161 = vmul.f32 %v5120, %v5152
        %v5162 = vmul.f32 %v5121, %v5153
        %v5163 = vmul.f32 %v5122, %v5154
        %v5164 = vmul.f32 %v5123, %v5151
        %v5165 = vpack.c.bf16 %v5160, %v5160
        %v5166 = vpack.c.bf16 %v5161, %v5161
        %v5167 = vpack.c.bf16 %v5162, %v5162
        %v5168 = vpack.c.bf16 %v5163, %v5163
        %v5169 = vpack.c.bf16 %v5164, %v5164
        %v5175 = vunpack.c.l.b16 %v5165
        %v5176 = vunpack.c.l.b16 %v5166
        %v5177 = vunpack.c.l.b16 %v5167
        %v5178 = vunpack.c.l.b16 %v5168
        %v5179 = vunpack.c.l.b16 %v5169
        %v5180 = vpack.c.b16 %v5176, %v5175
        %v5181 = vpack.c.b16 %v5178, %v5177
        %v5182 = vpack.c.b16 %v5179, %v5179
        %5183 = vrot.lane.b32.xlu0 %v5180, 56
        %v5184 = vpop.permute.xlu0 %5183
        %5185 = vrot.lane.b32.xlu0 %v5181, 56
        %v5186 = vpop.permute.xlu0 %5185
        %5187 = vrot.lane.b32.xlu0 %v5182, 56
        %v5188 = vpop.permute.xlu0 %5187
        %v5189 = vrot.slane %v5184, 4
        %v5190 = vrot.slane %v5186, 4
        %v5191 = vrot.slane %v5188, 4
        %v5192 = vsel %vm540, %v5189, %v5190
        %v5193 = vsel %vm1139, %v5184, %v5192
        %v5194 = vsel %vm540, %v5190, %v5191
        %v5195 = vsel %vm1139, %v5186, %v5194
        %5198 = vst [vmem:[#allocation4 + $0x190] sm:$0xff] %v5193
        %5199 = vst [vmem:[#allocation4 + $0x198] sm:$0xff] %v5195
        %v5200 = vld [vmem:[#allocation2 + $0x8] sm:$0xff]
        %v5201 = vld [vmem:[#allocation2 + $0x10] sm:$0xff]
        %v5202 = vld [vmem:[#allocation2 + $0x18] sm:$0xff]
        %v5203 = vld [vmem:[#allocation2 + $0x20] sm:$0xff]
        %v5204 = vld [vmem:[#allocation2 + $0x28] sm:$0xff]
        %v5205 = vld [vmem:[%s1929] ss:$8 sm:$0xf]
        %v5206 = vld [vmem:[%s981] ss:$8 sm:$0xf]
        %v5207 = vmul.f32 %v5205, %v5206
        %v5208 = vld [vmem:[%s644] ss:$8 sm:$0xf]
        %v5209 = vmul.f32 %v5207, %v5208
        %v5211 = vlaneseq
        %v5212 = vshrl.u32 %v5211, 7
        %v5213 = vsub.s32 0, %v5212
        %v5214 = vrot.slane %v5209, %v5213
        %v5215 = vlaneseq
        %v5216 = vshrl.u32 %v5215, 7
        %v5217 = vsub.s32 1, %v5216
        %v5218 = vrot.slane %v5209, %v5217
        %v5219 = vlaneseq
        %v5220 = vshrl.u32 %v5219, 7
        %v5221 = vsub.s32 2, %v5220
        %v5222 = vrot.slane %v5209, %v5221
        %v5223 = vlaneseq
        %v5224 = vshrl.u32 %v5223, 7
        %v5225 = vsub.s32 3, %v5224
        %v5226 = vrot.slane %v5209, %v5225
        %5227 = vrot.lane.b32.xlu0 %v5214, 73
        %v5228 = vpop.permute.xlu0 %5227
        %5229 = vrot.lane.b32.xlu0 %v5218, 73
        %v5230 = vpop.permute.xlu0 %5229
        %5231 = vrot.lane.b32.xlu0 %v5222, 73
        %v5232 = vpop.permute.xlu0 %5231
        %5233 = vrot.lane.b32.xlu0 %v5226, 73
        %v5234 = vpop.permute.xlu0 %5233
        %v5235 = vsel %vm1182, %v5228, %v5230
        %v5236 = vsel %vm1182, %v5230, %v5232
        %v5237 = vsel %vm1182, %v5232, %v5234
        %v5243 = vmul.f32 %v5200, %v5228
        %v5244 = vmul.f32 %v5201, %v5235
        %v5245 = vmul.f32 %v5202, %v5236
        %v5246 = vmul.f32 %v5203, %v5237
        %v5247 = vmul.f32 %v5204, %v5234
        %v5248 = vpack.c.bf16 %v5243, %v5243
        %v5249 = vpack.c.bf16 %v5244, %v5244
        %v5250 = vpack.c.bf16 %v5245, %v5245
        %v5251 = vpack.c.bf16 %v5246, %v5246
        %v5252 = vpack.c.bf16 %v5247, %v5247
        %v5258 = vunpack.c.l.b16 %v5248
        %v5259 = vunpack.c.l.b16 %v5249
        %v5260 = vunpack.c.l.b16 %v5250
        %v5261 = vunpack.c.l.b16 %v5251
        %v5262 = vunpack.c.l.b16 %v5252
        %v5263 = vpack.c.b16 %v5259, %v5258
        %v5264 = vpack.c.b16 %v5261, %v5260
        %v5265 = vpack.c.b16 %v5262, %v5262
        %5266 = vrot.lane.b32.xlu0 %v5263, 55
        %v5267 = vpop.permute.xlu0 %5266
        %5268 = vrot.lane.b32.xlu0 %v5264, 55
        %v5269 = vpop.permute.xlu0 %5268
        %5270 = vrot.lane.b32.xlu0 %v5265, 55
        %v5271 = vpop.permute.xlu0 %5270
        %v5272 = vrot.slane %v5267, 4
        %v5273 = vrot.slane %v5269, 4
        %v5274 = vrot.slane %v5271, 4
        %v5275 = vsel %vm540, %v5272, %v5273
        %v5276 = vsel %vm1224, %v5267, %v5275
        %v5277 = vsel %vm540, %v5273, %v5274
        %v5278 = vsel %vm1224, %v5269, %v5277
        %5281 = vst [vmem:[#allocation4 + $0x1a0] sm:$0xff] %v5276
        %5282 = vst [vmem:[#allocation4 + $0x1a8] sm:$0xff] %v5278
        %v5283 = vld [vmem:[#allocation10] sm:$0xff]
        %v5284 = vld [vmem:[#allocation4] sm:$0xff]
        %v5285 = vld [vmem:[#allocation4 + $0x8] sm:$0xff]
        %v5286 = vld [vmem:[#allocation4 + $0x10] sm:$0xff]
        %v5287 = vld [vmem:[#allocation4 + $0x18] sm:$0xff]
        %v5288 = vld [vmem:[#allocation4 + $0x20] sm:$0xff]
        %v5289 = vld [vmem:[#allocation4 + $0x28] sm:$0xff]
        %v5290 = vld [vmem:[#allocation4 + $0x30] sm:$0xff]
        %v5291 = vld [vmem:[#allocation4 + $0x38] sm:$0xff]
        %v5292 = vld [vmem:[#allocation4 + $0x40] sm:$0xff]
        %v5293 = vld [vmem:[#allocation4 + $0x48] sm:$0xff]
        %v5294 = vld [vmem:[#allocation4 + $0x50] sm:$0xff]
        %v5295 = vld [vmem:[#allocation4 + $0x58] sm:$0xff]
        %v5296 = vld [vmem:[#allocation4 + $0x60] sm:$0xff]
        %v5297 = vld [vmem:[#allocation4 + $0x68] sm:$0xff]
        %v5298 = vld [vmem:[#allocation4 + $0x70] sm:$0xff]
        %v5299 = vld [vmem:[#allocation4 + $0x78] sm:$0xff]
        %v5300 = vld [vmem:[#allocation4 + $0x80] sm:$0xff]
        %v5301 = vld [vmem:[#allocation4 + $0x88] sm:$0xff]
        %v5302 = vld [vmem:[#allocation4 + $0x90] sm:$0xff]
        %v5303 = vld [vmem:[#allocation4 + $0x98] sm:$0xff]
        %v5304 = vld [vmem:[#allocation4 + $0xa0] sm:$0xff]
        %v5305 = vld [vmem:[#allocation4 + $0xa8] sm:$0xff]
        %v5306 = vld [vmem:[#allocation4 + $0xb0] sm:$0xff]
        %v5307 = vld [vmem:[#allocation4 + $0xb8] sm:$0xff]
        %v5308 = vld [vmem:[#allocation4 + $0xc0] sm:$0xff]
        %v5309 = vld [vmem:[#allocation4 + $0xc8] sm:$0xff]
        %v5310 = vld [vmem:[#allocation4 + $0xd0] sm:$0xff]
        %v5311 = vld [vmem:[#allocation4 + $0xd8] sm:$0xff]
        %v5312 = vld [vmem:[#allocation4 + $0xe0] sm:$0xff]
        %v5313 = vld [vmem:[#allocation4 + $0xe8] sm:$0xff]
        %v5314 = vld [vmem:[#allocation4 + $0xf0] sm:$0xff]
        %v5315 = vld [vmem:[#allocation4 + $0xf8] sm:$0xff]
        %v5316 = vld [vmem:[#allocation4 + $0x100] sm:$0xff]
        %v5317 = vld [vmem:[#allocation4 + $0x108] sm:$0xff]
        %v5318 = vld [vmem:[#allocation4 + $0x110] sm:$0xff]
        %v5319 = vld [vmem:[#allocation4 + $0x118] sm:$0xff]
        %v5320 = vld [vmem:[#allocation4 + $0x120] sm:$0xff]
        %v5321 = vld [vmem:[#allocation4 + $0x128] sm:$0xff]
        %v5322 = vld [vmem:[#allocation4 + $0x130] sm:$0xff]
        %v5323 = vld [vmem:[#allocation4 + $0x138] sm:$0xff]
        %v5324 = vld [vmem:[#allocation4 + $0x140] sm:$0xff]
        %v5325 = vld [vmem:[#allocation4 + $0x148] sm:$0xff]
        %v5326 = vld [vmem:[#allocation4 + $0x150] sm:$0xff]
        %v5327 = vld [vmem:[#allocation4 + $0x158] sm:$0xff]
        %v5328 = vld [vmem:[#allocation4 + $0x160] sm:$0xff]
        %v5329 = vld [vmem:[#allocation4 + $0x168] sm:$0xff]
        %v5330 = vld [vmem:[#allocation4 + $0x170] sm:$0xff]
        %v5331 = vld [vmem:[#allocation4 + $0x178] sm:$0xff]
        %v5332 = vld [vmem:[#allocation4 + $0x180] sm:$0xff]
        %v5333 = vld [vmem:[#allocation4 + $0x188] sm:$0xff]
        %v5334 = vld [vmem:[#allocation4 + $0x190] sm:$0xff]
        %v5335 = vld [vmem:[#allocation4 + $0x198] sm:$0xff]
        %v5336 = vld [vmem:[#allocation4 + $0x1a0] sm:$0xff]
        %v5337 = vld [vmem:[#allocation4 + $0x1a8] sm:$0xff]
        %v5339 = vunpack.c.l.b16 %v5283
        %v5340 = vunpack.c.h.b16 %v5283
        %v5341 = vpack.c.b16 %v5339, %v5339
        %v5342 = vpack.c.b16 %v5340, %v5340
        %v5398 = vunpack.c.l.b16 %v5284
        %v5399 = vunpack.c.h.b16 %v5284
        %v5400 = vunpack.c.l.b16 %v5285
        %v5401 = vunpack.c.h.b16 %v5285
        %v5402 = vunpack.c.l.b16 %v5286
        %v5403 = vunpack.c.h.b16 %v5286
        %v5404 = vunpack.c.l.b16 %v5287
        %v5405 = vunpack.c.h.b16 %v5287
        %v5406 = vunpack.c.l.b16 %v5288
        %v5407 = vunpack.c.h.b16 %v5288
        %v5408 = vunpack.c.l.b16 %v5289
        %v5409 = vunpack.c.h.b16 %v5289
        %v5410 = vunpack.c.l.b16 %v5290
        %v5411 = vunpack.c.h.b16 %v5290
        %v5412 = vunpack.c.l.b16 %v5291
        %v5413 = vunpack.c.h.b16 %v5291
        %v5414 = vunpack.c.l.b16 %v5292
        %v5415 = vunpack.c.h.b16 %v5292
        %v5416 = vunpack.c.l.b16 %v5293
        %v5417 = vunpack.c.h.b16 %v5293
        %v5418 = vunpack.c.l.b16 %v5294
        %v5419 = vunpack.c.h.b16 %v5294
        %v5420 = vunpack.c.l.b16 %v5295
        %v5421 = vunpack.c.h.b16 %v5295
        %v5422 = vunpack.c.l.b16 %v5296
        %v5423 = vunpack.c.h.b16 %v5296
        %v5424 = vunpack.c.l.b16 %v5297
        %v5425 = vunpack.c.h.b16 %v5297
        %v5426 = vunpack.c.l.b16 %v5298
        %v5427 = vunpack.c.h.b16 %v5298
        %v5428 = vunpack.c.l.b16 %v5299
        %v5429 = vunpack.c.h.b16 %v5299
        %v5430 = vunpack.c.l.b16 %v5300
        %v5431 = vunpack.c.h.b16 %v5300
        %v5432 = vunpack.c.l.b16 %v5301
        %v5433 = vunpack.c.h.b16 %v5301
        %v5434 = vunpack.c.l.b16 %v5302
        %v5435 = vunpack.c.h.b16 %v5302
        %v5436 = vunpack.c.l.b16 %v5303
        %v5437 = vunpack.c.h.b16 %v5303
        %v5438 = vunpack.c.l.b16 %v5304
        %v5439 = vunpack.c.h.b16 %v5304
        %v5440 = vunpack.c.l.b16 %v5305
        %v5441 = vunpack.c.h.b16 %v5305
        %v5442 = vunpack.c.l.b16 %v5306
        %v5443 = vunpack.c.h.b16 %v5306
        %v5444 = vunpack.c.l.b16 %v5307
        %v5445 = vunpack.c.h.b16 %v5307
        %v5446 = vunpack.c.l.b16 %v5308
        %v5447 = vunpack.c.h.b16 %v5308
        %v5448 = vunpack.c.l.b16 %v5309
        %v5449 = vunpack.c.h.b16 %v5309
        %v5450 = vunpack.c.l.b16 %v5310
        %v5451 = vunpack.c.h.b16 %v5310
        %v5452 = vunpack.c.l.b16 %v5311
        %v5453 = vunpack.c.h.b16 %v5311
        %v5454 = vunpack.c.l.b16 %v5312
        %v5455 = vunpack.c.h.b16 %v5312
        %v5456 = vunpack.c.l.b16 %v5313
        %v5457 = vunpack.c.h.b16 %v5313
        %v5458 = vunpack.c.l.b16 %v5314
        %v5459 = vunpack.c.h.b16 %v5314
        %v5460 = vunpack.c.l.b16 %v5315
        %v5461 = vunpack.c.h.b16 %v5315
        %v5462 = vunpack.c.l.b16 %v5316
        %v5463 = vunpack.c.h.b16 %v5316
        %v5464 = vunpack.c.l.b16 %v5317
        %v5465 = vunpack.c.h.b16 %v5317
        %v5466 = vunpack.c.l.b16 %v5318
        %v5467 = vunpack.c.h.b16 %v5318
        %v5468 = vunpack.c.l.b16 %v5319
        %v5469 = vunpack.c.h.b16 %v5319
        %v5470 = vunpack.c.l.b16 %v5320
        %v5471 = vunpack.c.h.b16 %v5320
        %v5472 = vunpack.c.l.b16 %v5321
        %v5473 = vunpack.c.h.b16 %v5321
        %v5474 = vunpack.c.l.b16 %v5322
        %v5475 = vunpack.c.h.b16 %v5322
        %v5476 = vunpack.c.l.b16 %v5323
        %v5477 = vunpack.c.h.b16 %v5323
        %v5478 = vunpack.c.l.b16 %v5324
        %v5479 = vunpack.c.h.b16 %v5324
        %v5480 = vunpack.c.l.b16 %v5325
        %v5481 = vunpack.c.h.b16 %v5325
        %v5482 = vunpack.c.l.b16 %v5326
        %v5483 = vunpack.c.h.b16 %v5326
        %v5484 = vunpack.c.l.b16 %v5327
        %v5485 = vunpack.c.h.b16 %v5327
        %v5486 = vunpack.c.l.b16 %v5328
        %v5487 = vunpack.c.h.b16 %v5328
        %v5488 = vunpack.c.l.b16 %v5329
        %v5489 = vunpack.c.h.b16 %v5329
        %v5490 = vunpack.c.l.b16 %v5330
        %v5491 = vunpack.c.h.b16 %v5330
        %v5492 = vunpack.c.l.b16 %v5331
        %v5493 = vunpack.c.h.b16 %v5331
        %v5494 = vunpack.c.l.b16 %v5332
        %v5495 = vunpack.c.h.b16 %v5332
        %v5496 = vunpack.c.l.b16 %v5333
        %v5497 = vunpack.c.h.b16 %v5333
        %v5498 = vunpack.c.l.b16 %v5334
        %v5499 = vunpack.c.h.b16 %v5334
        %v5500 = vunpack.c.l.b16 %v5335
        %v5501 = vunpack.c.h.b16 %v5335
        %v5502 = vunpack.c.l.b16 %v5336
        %v5503 = vunpack.c.h.b16 %v5336
        %v5504 = vunpack.c.l.b16 %v5337
        %v5505 = vunpack.c.h.b16 %v5337
        %v5506 = vpack.c.b16 %v5402, %v5398
        %v5507 = vpack.c.b16 %v5403, %v5399
        %v5508 = vpack.c.b16 %v5404, %v5400
        %v5509 = vpack.c.b16 %v5405, %v5401
        %v5510 = vpack.c.b16 %v5410, %v5406
        %v5511 = vpack.c.b16 %v5411, %v5407
        %v5512 = vpack.c.b16 %v5412, %v5408
        %v5513 = vpack.c.b16 %v5413, %v5409
        %v5514 = vpack.c.b16 %v5418, %v5414
        %v5515 = vpack.c.b16 %v5419, %v5415
        %v5516 = vpack.c.b16 %v5420, %v5416
        %v5517 = vpack.c.b16 %v5421, %v5417
        %v5518 = vpack.c.b16 %v5426, %v5422
        %v5519 = vpack.c.b16 %v5427, %v5423
        %v5520 = vpack.c.b16 %v5428, %v5424
        %v5521 = vpack.c.b16 %v5429, %v5425
        %v5522 = vpack.c.b16 %v5434, %v5430
        %v5523 = vpack.c.b16 %v5435, %v5431
        %v5524 = vpack.c.b16 %v5436, %v5432
        %v5525 = vpack.c.b16 %v5437, %v5433
        %v5526 = vpack.c.b16 %v5442, %v5438
        %v5527 = vpack.c.b16 %v5443, %v5439
        %v5528 = vpack.c.b16 %v5444, %v5440
        %v5529 = vpack.c.b16 %v5445, %v5441
        %v5530 = vpack.c.b16 %v5450, %v5446
        %v5531 = vpack.c.b16 %v5451, %v5447
        %v5532 = vpack.c.b16 %v5452, %v5448
        %v5533 = vpack.c.b16 %v5453, %v5449
        %v5534 = vpack.c.b16 %v5458, %v5454
        %v5535 = vpack.c.b16 %v5459, %v5455
        %v5536 = vpack.c.b16 %v5460, %v5456
        %v5537 = vpack.c.b16 %v5461, %v5457
        %v5538 = vpack.c.b16 %v5466, %v5462
        %v5539 = vpack.c.b16 %v5467, %v5463
        %v5540 = vpack.c.b16 %v5468, %v5464
        %v5541 = vpack.c.b16 %v5469, %v5465
        %v5542 = vpack.c.b16 %v5474, %v5470
        %v5543 = vpack.c.b16 %v5475, %v5471
        %v5544 = vpack.c.b16 %v5476, %v5472
        %v5545 = vpack.c.b16 %v5477, %v5473
        %v5546 = vpack.c.b16 %v5482, %v5478
        %v5547 = vpack.c.b16 %v5483, %v5479
        %v5548 = vpack.c.b16 %v5484, %v5480
        %v5549 = vpack.c.b16 %v5485, %v5481
        %v5550 = vpack.c.b16 %v5490, %v5486
        %v5551 = vpack.c.b16 %v5491, %v5487
        %v5552 = vpack.c.b16 %v5492, %v5488
        %v5553 = vpack.c.b16 %v5493, %v5489
        %v5554 = vpack.c.b16 %v5498, %v5494
        %v5555 = vpack.c.b16 %v5499, %v5495
        %v5556 = vpack.c.b16 %v5500, %v5496
        %v5557 = vpack.c.b16 %v5501, %v5497
        %v5558 = vpack.c.b16 %v5502, %v5502
        %v5559 = vpack.c.b16 %v5503, %v5503
        %v5560 = vpack.c.b16 %v5504, %v5504
        %v5561 = vpack.c.b16 %v5505, %v5505
        %vm5614 = vcmask 719872
        %v5616 = vsel %vm5614, %v5342, 0
        %vm5618 = vcmask 1043456
        %v5620 = vsel %vm5618, %v5558, 0
        %v5623 = vsel %vm5618, %v5559, 0
        %v5626 = vsel %vm5618, %v5560, 0
        %v5629 = vsel %vm5618, %v5561, 0
        %5631 = vmatprep.subr.bf16.mxu0 %v5507
        %5632 = vmatpush1.bf16.msra.mxu0 %v5506
        %5633 = vmatprep.subr.bf16.mxu0 %v5511
        %5634 = vmatpush1.bf16.msra.mxu0 %v5510
        %5635 = vmatprep.subr.bf16.mxu0 %v5515
        %5636 = vmatpush1.bf16.msra.mxu0 %v5514
        %5637 = vmatprep.subr.bf16.mxu0 %v5519
        %5638 = vmatpush1.bf16.msra.mxu0 %v5518
        %5639 = vmatprep.subr.bf16.mxu0 %v5523
        %5640 = vmatpush1.bf16.msra.mxu0 %v5522
        %5641 = vmatprep.subr.bf16.mxu0 %v5527
        %5642 = vmatpush1.bf16.msra.mxu0 %v5526
        %5643 = vmatprep.subr.bf16.mxu0 %v5531
        %5644 = vmatpush1.bf16.msra.mxu0 %v5530
        %5645 = vmatprep.subr.bf16.mxu0 %v5535
        %5646 = vmatpush1.bf16.msra.mxu0 %v5534
        %5647 = vmatprep.subr.bf16.mxu0 %v5539
        %5648 = vmatpush1.bf16.msra.mxu0 %v5538
        %5649 = vmatprep.subr.bf16.mxu0 %v5543
        %5650 = vmatpush1.bf16.msra.mxu0 %v5542
        %5651 = vmatprep.subr.bf16.mxu0 %v5547
        %5652 = vmatpush1.bf16.msra.mxu0 %v5546
        %5653 = vmatprep.subr.bf16.mxu0 %v5551
        %5654 = vmatpush1.bf16.msra.mxu0 %v5550
        %5655 = vmatprep.subr.bf16.mxu0 %v5555
        %5656 = vmatpush1.bf16.msra.mxu0 %v5554
        %5657 = vmatprep.subr.bf16.mxu0 %v5623
        %5658 = vmatpush1.bf16.msra.mxu0 %v5620
        %5659 = vmatprep.subr.bf16.mxu0 0
        %5660 = vmatpush1.bf16.msra.mxu0 0
        %5661 = vmatprep.subr.bf16.mxu0 0
        %5662 = vmatpush1.bf16.msra.mxu0 0
        %5663 = vmatprep.mubr.bf16.mxu0 %v5616
        %5664 = vmatmul.mubr.bf16.gmra.mrb[0].mxu0 %v5341
        %v5665 = vpop.f32.mrb[0].mxu0
        %v5666 = vadd.f32 0.0, %v5665
        %v5667 = vpop.f32.mrb[0].mxu0
        %v5668 = vadd.f32 0.0, %v5667
        %v5669 = vpop.f32.mrb[0].mxu0
        %v5670 = vpop.f32.mrb[0].mxu0
        %5671 = vdwg.mxu0
        %5672 = vmatprep.subr.bf16.mxu0 %v5509
        %5673 = vmatpush1.bf16.msra.mxu0 %v5508
        %5674 = vmatprep.subr.bf16.mxu0 %v5513
        %5675 = vmatpush1.bf16.msra.mxu0 %v5512
        %5676 = vmatprep.subr.bf16.mxu0 %v5517
        %5677 = vmatpush1.bf16.msra.mxu0 %v5516
        %5678 = vmatprep.subr.bf16.mxu0 %v5521
        %5679 = vmatpush1.bf16.msra.mxu0 %v5520
        %5680 = vmatprep.subr.bf16.mxu0 %v5525
        %5681 = vmatpush1.bf16.msra.mxu0 %v5524
        %5682 = vmatprep.subr.bf16.mxu0 %v5529
        %5683 = vmatpush1.bf16.msra.mxu0 %v5528
        %5684 = vmatprep.subr.bf16.mxu0 %v5533
        %5685 = vmatpush1.bf16.msra.mxu0 %v5532
        %5686 = vmatprep.subr.bf16.mxu0 %v5537
        %5687 = vmatpush1.bf16.msra.mxu0 %v5536
        %5688 = vmatprep.subr.bf16.mxu0 %v5541
        %5689 = vmatpush1.bf16.msra.mxu0 %v5540
        %5690 = vmatprep.subr.bf16.mxu0 %v5545
        %5691 = vmatpush1.bf16.msra.mxu0 %v5544
        %5692 = vmatprep.subr.bf16.mxu0 %v5549
        %5693 = vmatpush1.bf16.msra.mxu0 %v5548
        %5694 = vmatprep.subr.bf16.mxu0 %v5553
        %5695 = vmatpush1.bf16.msra.mxu0 %v5552
        %5696 = vmatprep.subr.bf16.mxu0 %v5557
        %5697 = vmatpush1.bf16.msra.mxu0 %v5556
        %5698 = vmatprep.subr.bf16.mxu0 %v5629
        %5699 = vmatpush1.bf16.msra.mxu0 %v5626
        %5700 = vmatprep.subr.bf16.mxu0 0
        %5701 = vmatpush1.bf16.msra.mxu0 0
        %5702 = vmatprep.subr.bf16.mxu0 0
        %5703 = vmatpush1.bf16.msra.mxu0 0
        %5704 = vmatprep.mubr.bf16.mxu0 %v5616
        %5705 = vmatmul.mubr.bf16.gmra.mrb[0].mxu0 %v5341
        %v5706 = vpop.f32.mrb[0].mxu0
        %v5707 = vadd.f32 0.0, %v5706
        %v5708 = vpop.f32.mrb[0].mxu0
        %v5709 = vadd.f32 0.0, %v5708
        %v5710 = vpop.f32.mrb[0].mxu0
        %v5711 = vpop.f32.mrb[0].mxu0
        %5712 = vdwg.mxu0
        %v5713 = vld [vmem:[#allocation13] sm:$0xff]
        %v5714 = vadd.f32 %v5666, %v5668
        %v5715 = vadd.f32 %v5714, %v5707
        %v5716 = vadd.f32 %v5715, %v5709
        %5717 = vadd.xlane.f32.xlu0 %v5716
        %v5718 = vpop.xlane.xlu0 %5717
        %v5719 = vld [vmem:[%s5] sm:$0xff]
        %v5720 = vmul.f32 %v5718, %v5719
        %v5721 = vsel %vm1621, %v5720, 0.0
        %5722 = vadd.xlane.f32.xlu0 %v5721
        %v5723 = vpop.xlane.xlu0 %5722
        %v5724 = vrot.slane %v5723, 4
        %v5725 = vadd.f32 %v5723, %v5724
        %v5726 = vrot.slane %v5725, 2
        %v5727 = vadd.f32 %v5725, %v5726
        %v5728 = vrot.slane %v5727, 1
        %v5729 = vadd.f32 %v5727, %v5728
        %s5730 = vtos %v5729
        %s5731 = smul.f32 %s5730, 0.0009765625
        %v5732 = vstv %s5731
        %v5733 = vmul.f32 %v5719, %v5732
        %v5734 = vadd.f32 %v5733, 0.0
        %5736 = vrot.lane.b32.xlu0 %v5720, 127
        %v5737 = vpop.permute.xlu0 %5736
        %v5739 = vsel %vm1621, %v5737, 0.0
        %5740 = vadd.xlane.f32.xlu0 %v5739
        %v5741 = vpop.xlane.xlu0 %5740
        %v5742 = vrot.slane %v5741, 4
        %v5743 = vadd.f32 %v5741, %v5742
        %v5744 = vrot.slane %v5743, 2
        %v5745 = vadd.f32 %v5743, %v5744
        %v5746 = vrot.slane %v5745, 1
        %v5747 = vadd.f32 %v5745, %v5746
        %s5748 = vtos %v5747
        %s5749 = smul.f32 %s5748, 0.0009765625
        %v5750 = vstv %s5749
        %v5751 = vmul.f32 %v5719, %v5750
        %5753 = vrot.lane.b32.xlu0 %v5751, 127
        %v5754 = vpop.permute.xlu0 %5753
        %v5756 = vadd.f32 %v5734, %v5754
        %5757 = vrot.lane.b32.xlu0 %v5720, 126
        %v5758 = vpop.permute.xlu0 %5757
        %v5760 = vsel %vm1621, %v5758, 0.0
        %5761 = vadd.xlane.f32.xlu0 %v5760
        %v5762 = vpop.xlane.xlu0 %5761
        %v5763 = vrot.slane %v5762, 4
        %v5764 = vadd.f32 %v5762, %v5763
        %v5765 = vrot.slane %v5764, 2
        %v5766 = vadd.f32 %v5764, %v5765
        %v5767 = vrot.slane %v5766, 1
        %v5768 = vadd.f32 %v5766, %v5767
        %s5769 = vtos %v5768
        %s5770 = smul.f32 %s5769, 0.0009765625
        %v5771 = vstv %s5770
        %v5772 = vmul.f32 %v5719, %v5771
        %5774 = vrot.lane.b32.xlu0 %v5772, 126
        %v5775 = vpop.permute.xlu0 %5774
        %v5777 = vadd.f32 %v5756, %v5775
        %5778 = vrot.lane.b32.xlu0 %v5720, 125
        %v5779 = vpop.permute.xlu0 %5778
        %v5781 = vsel %vm1621, %v5779, 0.0
        %5782 = vadd.xlane.f32.xlu0 %v5781
        %v5783 = vpop.xlane.xlu0 %5782
        %v5784 = vrot.slane %v5783, 4
        %v5785 = vadd.f32 %v5783, %v5784
        %v5786 = vrot.slane %v5785, 2
        %v5787 = vadd.f32 %v5785, %v5786
        %v5788 = vrot.slane %v5787, 1
        %v5789 = vadd.f32 %v5787, %v5788
        %s5790 = vtos %v5789
        %s5791 = smul.f32 %s5790, 0.0009765625
        %v5792 = vstv %s5791
        %v5793 = vmul.f32 %v5719, %v5792
        %5795 = vrot.lane.b32.xlu0 %v5793, 125
        %v5796 = vpop.permute.xlu0 %5795
        %v5798 = vadd.f32 %v5777, %v5796
        %5800 = vset.pattern.permute.xlu0 0
        %5801 = vperm.xlu0 %5800, %v5798
        %v5802 = vpop.permute.xlu0 %5801
        %v5804 = vsub.f32 %v5666, %v5802
        %v5805 = vsub.f32 %v5668, %v5802
        %v5806 = vsub.f32 %v5707, %v5802
        %v5807 = vsub.f32 %v5709, %v5802
        %v5808 = vmul.f32 %v5804, %v5804
        %v5809 = vmul.f32 %v5805, %v5805
        %v5810 = vmul.f32 %v5806, %v5806
        %v5811 = vmul.f32 %v5807, %v5807
        %v5812 = vadd.f32 %v5808, %v5809
        %v5813 = vadd.f32 %v5812, %v5810
        %v5814 = vadd.f32 %v5813, %v5811
        %5815 = vadd.xlane.f32.xlu0 %v5814
        %v5816 = vpop.xlane.xlu0 %5815
        %v5817 = vmul.f32 %v5816, %v5719
        %v5818 = vsel %vm1621, %v5817, 0.0
        %5819 = vadd.xlane.f32.xlu0 %v5818
        %v5820 = vpop.xlane.xlu0 %5819
        %v5821 = vrot.slane %v5820, 4
        %v5822 = vadd.f32 %v5820, %v5821
        %v5823 = vrot.slane %v5822, 2
        %v5824 = vadd.f32 %v5822, %v5823
        %v5825 = vrot.slane %v5824, 1
        %v5826 = vadd.f32 %v5824, %v5825
        %s5827 = vtos %v5826
        %s5828 = smul.f32 %s5827, 0.0009765625
        %v5829 = vstv %s5828
        %v5830 = vmul.f32 %v5719, %v5829
        %v5831 = vadd.f32 %v5830, 0.0
        %5833 = vrot.lane.b32.xlu0 %v5817, 127
        %v5834 = vpop.permute.xlu0 %5833
        %v5836 = vsel %vm1621, %v5834, 0.0
        %5837 = vadd.xlane.f32.xlu0 %v5836
        %v5838 = vpop.xlane.xlu0 %5837
        %v5839 = vrot.slane %v5838, 4
        %v5840 = vadd.f32 %v5838, %v5839
        %v5841 = vrot.slane %v5840, 2
        %v5842 = vadd.f32 %v5840, %v5841
        %v5843 = vrot.slane %v5842, 1
        %v5844 = vadd.f32 %v5842, %v5843
        %s5845 = vtos %v5844
        %s5846 = smul.f32 %s5845, 0.0009765625
        %v5847 = vstv %s5846
        %v5848 = vmul.f32 %v5719, %v5847
        %5850 = vrot.lane.b32.xlu0 %v5848, 127
        %v5851 = vpop.permute.xlu0 %5850
        %v5853 = vadd.f32 %v5831, %v5851
        %5854 = vrot.lane.b32.xlu0 %v5817, 126
        %v5855 = vpop.permute.xlu0 %5854
        %v5857 = vsel %vm1621, %v5855, 0.0
        %5858 = vadd.xlane.f32.xlu0 %v5857
        %v5859 = vpop.xlane.xlu0 %5858
        %v5860 = vrot.slane %v5859, 4
        %v5861 = vadd.f32 %v5859, %v5860
        %v5862 = vrot.slane %v5861, 2
        %v5863 = vadd.f32 %v5861, %v5862
        %v5864 = vrot.slane %v5863, 1
        %v5865 = vadd.f32 %v5863, %v5864
        %s5866 = vtos %v5865
        %s5867 = smul.f32 %s5866, 0.0009765625
        %v5868 = vstv %s5867
        %v5869 = vmul.f32 %v5719, %v5868
        %5871 = vrot.lane.b32.xlu0 %v5869, 126
        %v5872 = vpop.permute.xlu0 %5871
        %v5874 = vadd.f32 %v5853, %v5872
        %5875 = vrot.lane.b32.xlu0 %v5817, 125
        %v5876 = vpop.permute.xlu0 %5875
        %v5878 = vsel %vm1621, %v5876, 0.0
        %5879 = vadd.xlane.f32.xlu0 %v5878
        %v5880 = vpop.xlane.xlu0 %5879
        %v5881 = vrot.slane %v5880, 4
        %v5882 = vadd.f32 %v5880, %v5881
        %v5883 = vrot.slane %v5882, 2
        %v5884 = vadd.f32 %v5882, %v5883
        %v5885 = vrot.slane %v5884, 1
        %v5886 = vadd.f32 %v5884, %v5885
        %s5887 = vtos %v5886
        %s5888 = smul.f32 %s5887, 0.0009765625
        %v5889 = vstv %s5888
        %v5890 = vmul.f32 %v5719, %v5889
        %5892 = vrot.lane.b32.xlu0 %v5890, 125
        %v5893 = vpop.permute.xlu0 %5892
        %v5895 = vadd.f32 %v5874, %v5893
        %v5896 = vadd.f32 %v5895, 1e-05
        %v5897 = vrsqrt.pop %v5896
        %5899 = vset.pattern.permute.xlu0 0
        %5900 = vperm.xlu0 %5899, %v5897
        %v5901 = vpop.permute.xlu0 %5900
        %v5903 = vmul.f32 %v5804, %v5901
        %v5904 = vmul.f32 %v5805, %v5901
        %v5905 = vmul.f32 %v5806, %v5901
        %v5906 = vmul.f32 %v5807, %v5901
        %5908 = vset.pattern.permute.xlu0 2
        %5909 = vperm.xlu0 %5908, %v5713
        %v5910 = vpop.permute.xlu0 %5909
        %v5912 = vmul.f32 %v5903, %v5910
        %v5913 = vmul.f32 %v5904, %v5910
        %v5914 = vmul.f32 %v5905, %v5910
        %v5915 = vmul.f32 %v5906, %v5910
        %5916 = vset.pattern.permute.xlu0 3
        %5917 = vperm.xlu0 %5916, %v5713
        %v5918 = vpop.permute.xlu0 %5917
        %v5920 = vadd.f32 %v5912, %v5918
        %v5921 = vadd.f32 %v5913, %v5918
        %v5922 = vadd.f32 %v5914, %v5918
        %v5923 = vadd.f32 %v5915, %v5918
        %v5924 = vmax.f32 %v5920, 0.0
        %v5925 = vmax.f32 %v5921, 0.0
        %v5926 = vmax.f32 %v5922, 0.0
        %v5927 = vmax.f32 %v5923, 0.0
        %5928 = vst [vmem:[#allocation2 + $0x8] sm:$0xff] %v5924
        %5929 = vst [vmem:[#allocation2 + $0x10] sm:$0xff] %v5925
        %5930 = vst [vmem:[#allocation2 + $0x18] sm:$0xff] %v5926
        %5931 = vst [vmem:[#allocation2 + $0x20] sm:$0xff] %v5927
        %v5932 = vld [vmem:[#allocation2] sm:$0xff]
        %v5933 = vld [vmem:[#allocation2 + $0x8] sm:$0xff]
        %v5934 = vld [vmem:[#allocation2 + $0x10] sm:$0xff]
        %v5935 = vld [vmem:[#allocation2 + $0x18] sm:$0xff]
        %v5936 = vld [vmem:[#allocation2 + $0x20] sm:$0xff]
        %v5937 = vld [vmem:[%s6] ss:$8 sm:$0xf]
        %v5938 = vld [vmem:[%s468] ss:$8 sm:$0xf]
        %v5939 = vmul.f32 %v5937, %v5938
        %v5940 = vld [vmem:[%s471] ss:$8 sm:$0xf]
        %v5941 = vmul.f32 %v5939, %v5940
        %v5943 = vlaneseq
        %v5944 = vshrl.u32 %v5943, 7
        %v5945 = vsub.s32 0, %v5944
        %v5946 = vrot.slane %v5941, %v5945
        %v5947 = vlaneseq
        %v5948 = vshrl.u32 %v5947, 7
        %v5949 = vsub.s32 1, %v5948
        %v5950 = vrot.slane %v5941, %v5949
        %v5951 = vlaneseq
        %v5952 = vshrl.u32 %v5951, 7
        %v5953 = vsub.s32 2, %v5952
        %v5954 = vrot.slane %v5941, %v5953
        %v5955 = vlaneseq
        %v5956 = vshrl.u32 %v5955, 7
        %v5957 = vsub.s32 3, %v5956
        %v5958 = vrot.slane %v5941, %v5957
        %5959 = vrot.lane.b32.xlu0 %v5946, 55
        %v5960 = vpop.permute.xlu0 %5959
        %5961 = vrot.lane.b32.xlu0 %v5950, 55
        %v5962 = vpop.permute.xlu0 %5961
        %5963 = vrot.lane.b32.xlu0 %v5954, 55
        %v5964 = vpop.permute.xlu0 %5963
        %5965 = vrot.lane.b32.xlu0 %v5958, 55
        %v5966 = vpop.permute.xlu0 %5965
        %v5967 = vsel %vm499, %v5960, %v5962
        %v5968 = vsel %vm499, %v5962, %v5964
        %v5969 = vsel %vm499, %v5964, %v5966
        %v5975 = vmul.f32 %v5932, %v5960
        %v5976 = vmul.f32 %v5933, %v5967
        %v5977 = vmul.f32 %v5934, %v5968
        %v5978 = vmul.f32 %v5935, %v5969
        %v5979 = vmul.f32 %v5936, %v5966
        %v5980 = vpack.c.bf16 %v5975, %v5975
        %v5981 = vpack.c.bf16 %v5976, %v5976
        %v5982 = vpack.c.bf16 %v5977, %v5977
        %v5983 = vpack.c.bf16 %v5978, %v5978
        %v5984 = vpack.c.bf16 %v5979, %v5979
        %v5990 = vunpack.c.l.b16 %v5980
        %v5991 = vunpack.c.l.b16 %v5981
        %v5992 = vunpack.c.l.b16 %v5982
        %v5993 = vunpack.c.l.b16 %v5983
        %v5994 = vunpack.c.l.b16 %v5984
        %v5995 = vpack.c.b16 %v5991, %v5990
        %v5996 = vpack.c.b16 %v5993, %v5992
        %v5997 = vpack.c.b16 %v5994, %v5994
        %5998 = vrot.lane.b32.xlu0 %v5995, 73
        %v5999 = vpop.permute.xlu0 %5998
        %6000 = vrot.lane.b32.xlu0 %v5996, 73
        %v6001 = vpop.permute.xlu0 %6000
        %6002 = vrot.lane.b32.xlu0 %v5997, 73
        %v6003 = vpop.permute.xlu0 %6002
        %v6004 = vrot.slane %v5999, 4
        %v6005 = vrot.slane %v6001, 4
        %v6006 = vrot.slane %v6003, 4
        %v6007 = vsel %vm540, %v6004, %v6005
        %v6008 = vsel %vm542, %v5999, %v6007
        %v6009 = vsel %vm540, %v6005, %v6006
        %v6010 = vsel %vm542, %v6001, %v6009
        %6013 = vst [vmem:[#allocation4] sm:$0xff] %v6008
        %6014 = vst [vmem:[#allocation4 + $0x8] sm:$0xff] %v6010
        %v6015 = vld [vmem:[#allocation2] sm:$0xff]
        %v6016 = vld [vmem:[#allocation2 + $0x8] sm:$0xff]
        %v6017 = vld [vmem:[#allocation2 + $0x10] sm:$0xff]
        %v6018 = vld [vmem:[#allocation2 + $0x18] sm:$0xff]
        %v6019 = vld [vmem:[#allocation2 + $0x20] sm:$0xff]
        %v6020 = vld [vmem:[%s6] ss:$8 sm:$0xf]
        %v6021 = vld [vmem:[%s468] ss:$8 sm:$0xf]
        %v6022 = vmul.f32 %v6020, %v6021
        %v6024 = vlaneseq
        %v6025 = vshrl.u32 %v6024, 7
        %v6026 = vsub.s32 0, %v6025
        %v6027 = vrot.slane %v6022, %v6026
        %v6028 = vlaneseq
        %v6029 = vshrl.u32 %v6028, 7
        %v6030 = vsub.s32 1, %v6029
        %v6031 = vrot.slane %v6022, %v6030
        %v6032 = vlaneseq
        %v6033 = vshrl.u32 %v6032, 7
        %v6034 = vsub.s32 2, %v6033
        %v6035 = vrot.slane %v6022, %v6034
        %v6036 = vlaneseq
        %v6037 = vshrl.u32 %v6036, 7
        %v6038 = vsub.s32 3, %v6037
        %v6039 = vrot.slane %v6022, %v6038
        %6040 = vrot.lane.b32.xlu0 %v6027, 56
        %v6041 = vpop.permute.xlu0 %6040
        %6042 = vrot.lane.b32.xlu0 %v6031, 56
        %v6043 = vpop.permute.xlu0 %6042
        %6044 = vrot.lane.b32.xlu0 %v6035, 56
        %v6045 = vpop.permute.xlu0 %6044
        %6046 = vrot.lane.b32.xlu0 %v6039, 56
        %v6047 = vpop.permute.xlu0 %6046
        %v6048 = vsel %vm583, %v6041, %v6043
        %v6049 = vsel %vm583, %v6043, %v6045
        %v6050 = vsel %vm583, %v6045, %v6047
        %v6056 = vmul.f32 %v6015, %v6041
        %v6057 = vmul.f32 %v6016, %v6048
        %v6058 = vmul.f32 %v6017, %v6049
        %v6059 = vmul.f32 %v6018, %v6050
        %v6060 = vmul.f32 %v6019, %v6047
        %v6061 = vpack.c.bf16 %v6056, %v6056
        %v6062 = vpack.c.bf16 %v6057, %v6057
        %v6063 = vpack.c.bf16 %v6058, %v6058
        %v6064 = vpack.c.bf16 %v6059, %v6059
        %v6065 = vpack.c.bf16 %v6060, %v6060
        %v6071 = vunpack.c.l.b16 %v6061
        %v6072 = vunpack.c.l.b16 %v6062
        %v6073 = vunpack.c.l.b16 %v6063
        %v6074 = vunpack.c.l.b16 %v6064
        %v6075 = vunpack.c.l.b16 %v6065
        %v6076 = vpack.c.b16 %v6072, %v6071
        %v6077 = vpack.c.b16 %v6074, %v6073
        %v6078 = vpack.c.b16 %v6075, %v6075
        %6079 = vrot.lane.b32.xlu0 %v6076, 72
        %v6080 = vpop.permute.xlu0 %6079
        %6081 = vrot.lane.b32.xlu0 %v6077, 72
        %v6082 = vpop.permute.xlu0 %6081
        %6083 = vrot.lane.b32.xlu0 %v6078, 72
        %v6084 = vpop.permute.xlu0 %6083
        %v6085 = vrot.slane %v6080, 4
        %v6086 = vrot.slane %v6082, 4
        %v6087 = vrot.slane %v6084, 4
        %v6088 = vsel %vm540, %v6085, %v6086
        %v6089 = vsel %vm628, %v6080, %v6088
        %v6090 = vsel %vm540, %v6086, %v6087
        %v6091 = vsel %vm628, %v6082, %v6090
        %6094 = vst [vmem:[#allocation4 + $0x10] sm:$0xff] %v6089
        %6095 = vst [vmem:[#allocation4 + $0x18] sm:$0xff] %v6091
        %v6096 = vld [vmem:[#allocation2] sm:$0xff]
        %v6097 = vld [vmem:[#allocation2 + $0x8] sm:$0xff]
        %v6098 = vld [vmem:[#allocation2 + $0x10] sm:$0xff]
        %v6099 = vld [vmem:[#allocation2 + $0x18] sm:$0xff]
        %v6100 = vld [vmem:[#allocation2 + $0x20] sm:$0xff]
        %v6101 = vld [vmem:[%s6] ss:$8 sm:$0xf]
        %v6102 = vld [vmem:[%s468] ss:$8 sm:$0xf]
        %v6103 = vmul.f32 %v6101, %v6102
        %v6104 = vld [vmem:[%s644] ss:$8 sm:$0xf]
        %v6105 = vmul.f32 %v6103, %v6104
        %v6107 = vlaneseq
        %v6108 = vshrl.u32 %v6107, 7
        %v6109 = vsub.s32 0, %v6108
        %v6110 = vrot.slane %v6105, %v6109
        %v6111 = vlaneseq
        %v6112 = vshrl.u32 %v6111, 7
        %v6113 = vsub.s32 1, %v6112
        %v6114 = vrot.slane %v6105, %v6113
        %v6115 = vlaneseq
        %v6116 = vshrl.u32 %v6115, 7
        %v6117 = vsub.s32 2, %v6116
        %v6118 = vrot.slane %v6105, %v6117
        %v6119 = vlaneseq
        %v6120 = vshrl.u32 %v6119, 7
        %v6121 = vsub.s32 3, %v6120
        %v6122 = vrot.slane %v6105, %v6121
        %6123 = vrot.lane.b32.xlu0 %v6110, 57
        %v6124 = vpop.permute.xlu0 %6123
        %6125 = vrot.lane.b32.xlu0 %v6114, 57
        %v6126 = vpop.permute.xlu0 %6125
        %6127 = vrot.lane.b32.xlu0 %v6118, 57
        %v6128 = vpop.permute.xlu0 %6127
        %6129 = vrot.lane.b32.xlu0 %v6122, 57
        %v6130 = vpop.permute.xlu0 %6129
        %v6131 = vsel %vm672, %v6124, %v6126
        %v6132 = vsel %vm672, %v6126, %v6128
        %v6133 = vsel %vm672, %v6128, %v6130
        %v6139 = vmul.f32 %v6096, %v6124
        %v6140 = vmul.f32 %v6097, %v6131
        %v6141 = vmul.f32 %v6098, %v6132
        %v6142 = vmul.f32 %v6099, %v6133
        %v6143 = vmul.f32 %v6100, %v6130
        %v6144 = vpack.c.bf16 %v6139, %v6139
        %v6145 = vpack.c.bf16 %v6140, %v6140
        %v6146 = vpack.c.bf16 %v6141, %v6141
        %v6147 = vpack.c.bf16 %v6142, %v6142
        %v6148 = vpack.c.bf16 %v6143, %v6143
        %v6154 = vunpack.c.l.b16 %v6144
        %v6155 = vunpack.c.l.b16 %v6145
        %v6156 = vunpack.c.l.b16 %v6146
        %v6157 = vunpack.c.l.b16 %v6147
        %v6158 = vunpack.c.l.b16 %v6148
        %v6159 = vpack.c.b16 %v6155, %v6154
        %v6160 = vpack.c.b16 %v6157, %v6156
        %v6161 = vpack.c.b16 %v6158, %v6158
        %6162 = vrot.lane.b32.xlu0 %v6159, 71
        %v6163 = vpop.permute.xlu0 %6162
        %6164 = vrot.lane.b32.xlu0 %v6160, 71
        %v6165 = vpop.permute.xlu0 %6164
        %6166 = vrot.lane.b32.xlu0 %v6161, 71
        %v6167 = vpop.permute.xlu0 %6166
        %v6168 = vrot.slane %v6163, 4
        %v6169 = vrot.slane %v6165, 4
        %v6170 = vrot.slane %v6167, 4
        %v6171 = vsel %vm540, %v6168, %v6169
        %v6172 = vsel %vm714, %v6163, %v6171
        %v6173 = vsel %vm540, %v6169, %v6170
        %v6174 = vsel %vm714, %v6165, %v6173
        %6177 = vst [vmem:[#allocation4 + $0x20] sm:$0xff] %v6172
        %6178 = vst [vmem:[#allocation4 + $0x28] sm:$0xff] %v6174
        %v6179 = vld [vmem:[#allocation2] sm:$0xff]
        %v6180 = vld [vmem:[#allocation2 + $0x8] sm:$0xff]
        %v6181 = vld [vmem:[#allocation2 + $0x10] sm:$0xff]
        %v6182 = vld [vmem:[#allocation2 + $0x18] sm:$0xff]
        %v6183 = vld [vmem:[#allocation2 + $0x20] sm:$0xff]
        %v6184 = vld [vmem:[%s6] ss:$8 sm:$0xf]
        %v6185 = vld [vmem:[%s471] ss:$8 sm:$0xf]
        %v6186 = vmul.f32 %v6184, %v6185
        %v6188 = vlaneseq
        %v6189 = vshrl.u32 %v6188, 7
        %v6190 = vsub.s32 0, %v6189
        %v6191 = vrot.slane %v6186, %v6190
        %v6192 = vlaneseq
        %v6193 = vshrl.u32 %v6192, 7
        %v6194 = vsub.s32 1, %v6193
        %v6195 = vrot.slane %v6186, %v6194
        %v6196 = vlaneseq
        %v6197 = vshrl.u32 %v6196, 7
        %v6198 = vsub.s32 2, %v6197
        %v6199 = vrot.slane %v6186, %v6198
        %v6200 = vlaneseq
        %v6201 = vshrl.u32 %v6200, 7
        %v6202 = vsub.s32 3, %v6201
        %v6203 = vrot.slane %v6186, %v6202
        %6204 = vrot.lane.b32.xlu0 %v6191, 63
        %v6205 = vpop.permute.xlu0 %6204
        %6206 = vrot.lane.b32.xlu0 %v6195, 63
        %v6207 = vpop.permute.xlu0 %6206
        %6208 = vrot.lane.b32.xlu0 %v6199, 63
        %v6209 = vpop.permute.xlu0 %6208
        %6210 = vrot.lane.b32.xlu0 %v6203, 63
        %v6211 = vpop.permute.xlu0 %6210
        %v6212 = vsel %vm755, %v6205, %v6207
        %v6213 = vsel %vm755, %v6207, %v6209
        %v6214 = vsel %vm755, %v6209, %v6211
        %v6220 = vmul.f32 %v6179, %v6205
        %v6221 = vmul.f32 %v6180, %v6212
        %v6222 = vmul.f32 %v6181, %v6213
        %v6223 = vmul.f32 %v6182, %v6214
        %v6224 = vmul.f32 %v6183, %v6211
        %v6225 = vpack.c.bf16 %v6220, %v6220
        %v6226 = vpack.c.bf16 %v6221, %v6221
        %v6227 = vpack.c.bf16 %v6222, %v6222
        %v6228 = vpack.c.bf16 %v6223, %v6223
        %v6229 = vpack.c.bf16 %v6224, %v6224
        %v6235 = vunpack.c.l.b16 %v6225
        %v6236 = vunpack.c.l.b16 %v6226
        %v6237 = vunpack.c.l.b16 %v6227
        %v6238 = vunpack.c.l.b16 %v6228
        %v6239 = vunpack.c.l.b16 %v6229
        %v6240 = vpack.c.b16 %v6236, %v6235
        %v6241 = vpack.c.b16 %v6238, %v6237
        %v6242 = vpack.c.b16 %v6239, %v6239
        %6243 = vrot.lane.b32.xlu0 %v6240, 65
        %v6244 = vpop.permute.xlu0 %6243
        %6245 = vrot.lane.b32.xlu0 %v6241, 65
        %v6246 = vpop.permute.xlu0 %6245
        %6247 = vrot.lane.b32.xlu0 %v6242, 65
        %v6248 = vpop.permute.xlu0 %6247
        %v6249 = vrot.slane %v6244, 4
        %v6250 = vrot.slane %v6246, 4
        %v6251 = vrot.slane %v6248, 4
        %v6252 = vsel %vm540, %v6249, %v6250
        %v6253 = vsel %vm800, %v6244, %v6252
        %v6254 = vsel %vm540, %v6250, %v6251
        %v6255 = vsel %vm800, %v6246, %v6254
        %6258 = vst [vmem:[#allocation4 + $0x30] sm:$0xff] %v6253
        %6259 = vst [vmem:[#allocation4 + $0x38] sm:$0xff] %v6255
        %v6260 = vld [vmem:[#allocation2] sm:$0xff]
        %v6261 = vld [vmem:[#allocation2 + $0x8] sm:$0xff]
        %v6262 = vld [vmem:[#allocation2 + $0x10] sm:$0xff]
        %v6263 = vld [vmem:[#allocation2 + $0x18] sm:$0xff]
        %v6264 = vld [vmem:[#allocation2 + $0x20] sm:$0xff]
        %v6265 = vld [vmem:[%s6] ss:$8 sm:$0xf]
        %v6267 = vlaneseq
        %v6268 = vshrl.u32 %v6267, 7
        %v6269 = vsub.s32 0, %v6268
        %v6270 = vrot.slane %v6265, %v6269
        %v6271 = vlaneseq
        %v6272 = vshrl.u32 %v6271, 7
        %v6273 = vsub.s32 1, %v6272
        %v6274 = vrot.slane %v6265, %v6273
        %v6275 = vlaneseq
        %v6276 = vshrl.u32 %v6275, 7
        %v6277 = vsub.s32 2, %v6276
        %v6278 = vrot.slane %v6265, %v6277
        %v6279 = vlaneseq
        %v6280 = vshrl.u32 %v6279, 7
        %v6281 = vsub.s32 3, %v6280
        %v6282 = vrot.slane %v6265, %v6281
        %6283 = vrot.lane.b32.xlu0 %v6270, 64
        %v6284 = vpop.permute.xlu0 %6283
        %6285 = vrot.lane.b32.xlu0 %v6274, 64
        %v6286 = vpop.permute.xlu0 %6285
        %6287 = vrot.lane.b32.xlu0 %v6278, 64
        %v6288 = vpop.permute.xlu0 %6287
        %6289 = vrot.lane.b32.xlu0 %v6282, 64
        %v6290 = vpop.permute.xlu0 %6289
        %v6291 = vsel %vm839, %v6284, %v6286
        %v6292 = vsel %vm839, %v6286, %v6288
        %v6293 = vsel %vm839, %v6288, %v6290
        %v6299 = vmul.f32 %v6260, %v6284
        %v6300 = vmul.f32 %v6261, %v6291
        %v6301 = vmul.f32 %v6262, %v6292
        %v6302 = vmul.f32 %v6263, %v6293
        %v6303 = vmul.f32 %v6264, %v6290
        %v6304 = vpack.c.bf16 %v6299, %v6299
        %v6305 = vpack.c.bf16 %v6300, %v6300
        %v6306 = vpack.c.bf16 %v6301, %v6301
        %v6307 = vpack.c.bf16 %v6302, %v6302
        %v6308 = vpack.c.bf16 %v6303, %v6303
        %v6314 = vunpack.c.l.b16 %v6304
        %v6315 = vunpack.c.l.b16 %v6305
        %v6316 = vunpack.c.l.b16 %v6306
        %v6317 = vunpack.c.l.b16 %v6307
        %v6318 = vunpack.c.l.b16 %v6308
        %v6319 = vpack.c.b16 %v6315, %v6314
        %v6320 = vpack.c.b16 %v6317, %v6316
        %v6321 = vpack.c.b16 %v6318, %v6318
        %6322 = vrot.lane.b32.xlu0 %v6319, 64
        %v6323 = vpop.permute.xlu0 %6322
        %6324 = vrot.lane.b32.xlu0 %v6320, 64
        %v6325 = vpop.permute.xlu0 %6324
        %6326 = vrot.lane.b32.xlu0 %v6321, 64
        %v6327 = vpop.permute.xlu0 %6326
        %v6328 = vrot.slane %v6323, 4
        %v6329 = vrot.slane %v6325, 4
        %v6330 = vrot.slane %v6327, 4
        %v6331 = vsel %vm540, %v6328, %v6329
        %v6332 = vsel %vm881, %v6323, %v6331
        %v6333 = vsel %vm540, %v6329, %v6330
        %v6334 = vsel %vm881, %v6325, %v6333
        %6337 = vst [vmem:[#allocation4 + $0x40] sm:$0xff] %v6332
        %6338 = vst [vmem:[#allocation4 + $0x48] sm:$0xff] %v6334
        %v6339 = vld [vmem:[#allocation2] sm:$0xff]
        %v6340 = vld [vmem:[#allocation2 + $0x8] sm:$0xff]
        %v6341 = vld [vmem:[#allocation2 + $0x10] sm:$0xff]
        %v6342 = vld [vmem:[#allocation2 + $0x18] sm:$0xff]
        %v6343 = vld [vmem:[#allocation2 + $0x20] sm:$0xff]
        %v6344 = vld [vmem:[%s6] ss:$8 sm:$0xf]
        %v6345 = vld [vmem:[%s644] ss:$8 sm:$0xf]
        %v6346 = vmul.f32 %v6344, %v6345
        %v6348 = vlaneseq
        %v6349 = vshrl.u32 %v6348, 7
        %v6350 = vsub.s32 0, %v6349
        %v6351 = vrot.slane %v6346, %v6350
        %v6352 = vlaneseq
        %v6353 = vshrl.u32 %v6352, 7
        %v6354 = vsub.s32 1, %v6353
        %v6355 = vrot.slane %v6346, %v6354
        %v6356 = vlaneseq
        %v6357 = vshrl.u32 %v6356, 7
        %v6358 = vsub.s32 2, %v6357
        %v6359 = vrot.slane %v6346, %v6358
        %v6360 = vlaneseq
        %v6361 = vshrl.u32 %v6360, 7
        %v6362 = vsub.s32 3, %v6361
        %v6363 = vrot.slane %v6346, %v6362
        %6364 = vrot.lane.b32.xlu0 %v6351, 65
        %v6365 = vpop.permute.xlu0 %6364
        %6366 = vrot.lane.b32.xlu0 %v6355, 65
        %v6367 = vpop.permute.xlu0 %6366
        %6368 = vrot.lane.b32.xlu0 %v6359, 65
        %v6369 = vpop.permute.xlu0 %6368
        %6370 = vrot.lane.b32.xlu0 %v6363, 65
        %v6371 = vpop.permute.xlu0 %6370
        %v6372 = vsel %vm922, %v6365, %v6367
        %v6373 = vsel %vm922, %v6367, %v6369
        %v6374 = vsel %vm922, %v6369, %v6371
        %v6380 = vmul.f32 %v6339, %v6365
        %v6381 = vmul.f32 %v6340, %v6372
        %v6382 = vmul.f32 %v6341, %v6373
        %v6383 = vmul.f32 %v6342, %v6374
        %v6384 = vmul.f32 %v6343, %v6371
        %v6385 = vpack.c.bf16 %v6380, %v6380
        %v6386 = vpack.c.bf16 %v6381, %v6381
        %v6387 = vpack.c.bf16 %v6382, %v6382
        %v6388 = vpack.c.bf16 %v6383, %v6383
        %v6389 = vpack.c.bf16 %v6384, %v6384
        %v6395 = vunpack.c.l.b16 %v6385
        %v6396 = vunpack.c.l.b16 %v6386
        %v6397 = vunpack.c.l.b16 %v6387
        %v6398 = vunpack.c.l.b16 %v6388
        %v6399 = vunpack.c.l.b16 %v6389
        %v6400 = vpack.c.b16 %v6396, %v6395
        %v6401 = vpack.c.b16 %v6398, %v6397
        %v6402 = vpack.c.b16 %v6399, %v6399
        %6403 = vrot.lane.b32.xlu0 %v6400, 63
        %v6404 = vpop.permute.xlu0 %6403
        %6405 = vrot.lane.b32.xlu0 %v6401, 63
        %v6406 = vpop.permute.xlu0 %6405
        %6407 = vrot.lane.b32.xlu0 %v6402, 63
        %v6408 = vpop.permute.xlu0 %6407
        %v6409 = vrot.slane %v6404, 4
        %v6410 = vrot.slane %v6406, 4
        %v6411 = vrot.slane %v6408, 4
        %v6412 = vsel %vm540, %v6409, %v6410
        %v6413 = vsel %vm967, %v6404, %v6412
        %v6414 = vsel %vm540, %v6410, %v6411
        %v6415 = vsel %vm967, %v6406, %v6414
        %6418 = vst [vmem:[#allocation4 + $0x50] sm:$0xff] %v6413
        %6419 = vst [vmem:[#allocation4 + $0x58] sm:$0xff] %v6415
        %v6420 = vld [vmem:[#allocation2] sm:$0xff]
        %v6421 = vld [vmem:[#allocation2 + $0x8] sm:$0xff]
        %v6422 = vld [vmem:[#allocation2 + $0x10] sm:$0xff]
        %v6423 = vld [vmem:[#allocation2 + $0x18] sm:$0xff]
        %v6424 = vld [vmem:[#allocation2 + $0x20] sm:$0xff]
        %v6425 = vld [vmem:[%s6] ss:$8 sm:$0xf]
        %v6426 = vld [vmem:[%s981] ss:$8 sm:$0xf]
        %v6427 = vmul.f32 %v6425, %v6426
        %v6428 = vld [vmem:[%s471] ss:$8 sm:$0xf]
        %v6429 = vmul.f32 %v6427, %v6428
        %v6431 = vlaneseq
        %v6432 = vshrl.u32 %v6431, 7
        %v6433 = vsub.s32 0, %v6432
        %v6434 = vrot.slane %v6429, %v6433
        %v6435 = vlaneseq
        %v6436 = vshrl.u32 %v6435, 7
        %v6437 = vsub.s32 1, %v6436
        %v6438 = vrot.slane %v6429, %v6437
        %v6439 = vlaneseq
        %v6440 = vshrl.u32 %v6439, 7
        %v6441 = vsub.s32 2, %v6440
        %v6442 = vrot.slane %v6429, %v6441
        %v6443 = vlaneseq
        %v6444 = vshrl.u32 %v6443, 7
        %v6445 = vsub.s32 3, %v6444
        %v6446 = vrot.slane %v6429, %v6445
        %6447 = vrot.lane.b32.xlu0 %v6434, 71
        %v6448 = vpop.permute.xlu0 %6447
        %6449 = vrot.lane.b32.xlu0 %v6438, 71
        %v6450 = vpop.permute.xlu0 %6449
        %6451 = vrot.lane.b32.xlu0 %v6442, 71
        %v6452 = vpop.permute.xlu0 %6451
        %6453 = vrot.lane.b32.xlu0 %v6446, 71
        %v6454 = vpop.permute.xlu0 %6453
        %v6455 = vsel %vm1011, %v6448, %v6450
        %v6456 = vsel %vm1011, %v6450, %v6452
        %v6457 = vsel %vm1011, %v6452, %v6454
        %v6463 = vmul.f32 %v6420, %v6448
        %v6464 = vmul.f32 %v6421, %v6455
        %v6465 = vmul.f32 %v6422, %v6456
        %v6466 = vmul.f32 %v6423, %v6457
        %v6467 = vmul.f32 %v6424, %v6454
        %v6468 = vpack.c.bf16 %v6463, %v6463
        %v6469 = vpack.c.bf16 %v6464, %v6464
        %v6470 = vpack.c.bf16 %v6465, %v6465
        %v6471 = vpack.c.bf16 %v6466, %v6466
        %v6472 = vpack.c.bf16 %v6467, %v6467
        %v6478 = vunpack.c.l.b16 %v6468
        %v6479 = vunpack.c.l.b16 %v6469
        %v6480 = vunpack.c.l.b16 %v6470
        %v6481 = vunpack.c.l.b16 %v6471
        %v6482 = vunpack.c.l.b16 %v6472
        %v6483 = vpack.c.b16 %v6479, %v6478
        %v6484 = vpack.c.b16 %v6481, %v6480
        %v6485 = vpack.c.b16 %v6482, %v6482
        %6486 = vrot.lane.b32.xlu0 %v6483, 57
        %v6487 = vpop.permute.xlu0 %6486
        %6488 = vrot.lane.b32.xlu0 %v6484, 57
        %v6489 = vpop.permute.xlu0 %6488
        %6490 = vrot.lane.b32.xlu0 %v6485, 57
        %v6491 = vpop.permute.xlu0 %6490
        %v6492 = vrot.slane %v6487, 4
        %v6493 = vrot.slane %v6489, 4
        %v6494 = vrot.slane %v6491, 4
        %v6495 = vsel %vm540, %v6492, %v6493
        %v6496 = vsel %vm1053, %v6487, %v6495
        %v6497 = vsel %vm540, %v6493, %v6494
        %v6498 = vsel %vm1053, %v6489, %v6497
        %6501 = vst [vmem:[#allocation4 + $0x60] sm:$0xff] %v6496
        %6502 = vst [vmem:[#allocation4 + $0x68] sm:$0xff] %v6498
        %v6503 = vld [vmem:[#allocation2] sm:$0xff]
        %v6504 = vld [vmem:[#allocation2 + $0x8] sm:$0xff]
        %v6505 = vld [vmem:[#allocation2 + $0x10] sm:$0xff]
        %v6506 = vld [vmem:[#allocation2 + $0x18] sm:$0xff]
        %v6507 = vld [vmem:[#allocation2 + $0x20] sm:$0xff]
        %v6508 = vld [vmem:[%s6] ss:$8 sm:$0xf]
        %v6509 = vld [vmem:[%s981] ss:$8 sm:$0xf]
        %v6510 = vmul.f32 %v6508, %v6509
        %v6512 = vlaneseq
        %v6513 = vshrl.u32 %v6512, 7
        %v6514 = vsub.s32 0, %v6513
        %v6515 = vrot.slane %v6510, %v6514
        %v6516 = vlaneseq
        %v6517 = vshrl.u32 %v6516, 7
        %v6518 = vsub.s32 1, %v6517
        %v6519 = vrot.slane %v6510, %v6518
        %v6520 = vlaneseq
        %v6521 = vshrl.u32 %v6520, 7
        %v6522 = vsub.s32 2, %v6521
        %v6523 = vrot.slane %v6510, %v6522
        %v6524 = vlaneseq
        %v6525 = vshrl.u32 %v6524, 7
        %v6526 = vsub.s32 3, %v6525
        %v6527 = vrot.slane %v6510, %v6526
        %6528 = vrot.lane.b32.xlu0 %v6515, 72
        %v6529 = vpop.permute.xlu0 %6528
        %6530 = vrot.lane.b32.xlu0 %v6519, 72
        %v6531 = vpop.permute.xlu0 %6530
        %6532 = vrot.lane.b32.xlu0 %v6523, 72
        %v6533 = vpop.permute.xlu0 %6532
        %6534 = vrot.lane.b32.xlu0 %v6527, 72
        %v6535 = vpop.permute.xlu0 %6534
        %v6536 = vsel %vm1094, %v6529, %v6531
        %v6537 = vsel %vm1094, %v6531, %v6533
        %v6538 = vsel %vm1094, %v6533, %v6535
        %v6544 = vmul.f32 %v6503, %v6529
        %v6545 = vmul.f32 %v6504, %v6536
        %v6546 = vmul.f32 %v6505, %v6537
        %v6547 = vmul.f32 %v6506, %v6538
        %v6548 = vmul.f32 %v6507, %v6535
        %v6549 = vpack.c.bf16 %v6544, %v6544
        %v6550 = vpack.c.bf16 %v6545, %v6545
        %v6551 = vpack.c.bf16 %v6546, %v6546
        %v6552 = vpack.c.bf16 %v6547, %v6547
        %v6553 = vpack.c.bf16 %v6548, %v6548
        %v6559 = vunpack.c.l.b16 %v6549
        %v6560 = vunpack.c.l.b16 %v6550
        %v6561 = vunpack.c.l.b16 %v6551
        %v6562 = vunpack.c.l.b16 %v6552
        %v6563 = vunpack.c.l.b16 %v6553
        %v6564 = vpack.c.b16 %v6560, %v6559
        %v6565 = vpack.c.b16 %v6562, %v6561
        %v6566 = vpack.c.b16 %v6563, %v6563
        %6567 = vrot.lane.b32.xlu0 %v6564, 56
        %v6568 = vpop.permute.xlu0 %6567
        %6569 = vrot.lane.b32.xlu0 %v6565, 56
        %v6570 = vpop.permute.xlu0 %6569
        %6571 = vrot.lane.b32.xlu0 %v6566, 56
        %v6572 = vpop.permute.xlu0 %6571
        %v6573 = vrot.slane %v6568, 4
        %v6574 = vrot.slane %v6570, 4
        %v6575 = vrot.slane %v6572, 4
        %v6576 = vsel %vm540, %v6573, %v6574
        %v6577 = vsel %vm1139, %v6568, %v6576
        %v6578 = vsel %vm540, %v6574, %v6575
        %v6579 = vsel %vm1139, %v6570, %v6578
        %6582 = vst [vmem:[#allocation4 + $0x70] sm:$0xff] %v6577
        %6583 = vst [vmem:[#allocation4 + $0x78] sm:$0xff] %v6579
        %v6584 = vld [vmem:[#allocation2] sm:$0xff]
        %v6585 = vld [vmem:[#allocation2 + $0x8] sm:$0xff]
        %v6586 = vld [vmem:[#allocation2 + $0x10] sm:$0xff]
        %v6587 = vld [vmem:[#allocation2 + $0x18] sm:$0xff]
        %v6588 = vld [vmem:[#allocation2 + $0x20] sm:$0xff]
        %v6589 = vld [vmem:[%s6] ss:$8 sm:$0xf]
        %v6590 = vld [vmem:[%s981] ss:$8 sm:$0xf]
        %v6591 = vmul.f32 %v6589, %v6590
        %v6592 = vld [vmem:[%s644] ss:$8 sm:$0xf]
        %v6593 = vmul.f32 %v6591, %v6592
        %v6595 = vlaneseq
        %v6596 = vshrl.u32 %v6595, 7
        %v6597 = vsub.s32 0, %v6596
        %v6598 = vrot.slane %v6593, %v6597
        %v6599 = vlaneseq
        %v6600 = vshrl.u32 %v6599, 7
        %v6601 = vsub.s32 1, %v6600
        %v6602 = vrot.slane %v6593, %v6601
        %v6603 = vlaneseq
        %v6604 = vshrl.u32 %v6603, 7
        %v6605 = vsub.s32 2, %v6604
        %v6606 = vrot.slane %v6593, %v6605
        %v6607 = vlaneseq
        %v6608 = vshrl.u32 %v6607, 7
        %v6609 = vsub.s32 3, %v6608
        %v6610 = vrot.slane %v6593, %v6609
        %6611 = vrot.lane.b32.xlu0 %v6598, 73
        %v6612 = vpop.permute.xlu0 %6611
        %6613 = vrot.lane.b32.xlu0 %v6602, 73
        %v6614 = vpop.permute.xlu0 %6613
        %6615 = vrot.lane.b32.xlu0 %v6606, 73
        %v6616 = vpop.permute.xlu0 %6615
        %6617 = vrot.lane.b32.xlu0 %v6610, 73
        %v6618 = vpop.permute.xlu0 %6617
        %v6619 = vsel %vm1182, %v6612, %v6614
        %v6620 = vsel %vm1182, %v6614, %v6616
        %v6621 = vsel %vm1182, %v6616, %v6618
        %v6627 = vmul.f32 %v6584, %v6612
        %v6628 = vmul.f32 %v6585, %v6619
        %v6629 = vmul.f32 %v6586, %v6620
        %v6630 = vmul.f32 %v6587, %v6621
        %v6631 = vmul.f32 %v6588, %v6618
        %v6632 = vpack.c.bf16 %v6627, %v6627
        %v6633 = vpack.c.bf16 %v6628, %v6628
        %v6634 = vpack.c.bf16 %v6629, %v6629
        %v6635 = vpack.c.bf16 %v6630, %v6630
        %v6636 = vpack.c.bf16 %v6631, %v6631
        %v6642 = vunpack.c.l.b16 %v6632
        %v6643 = vunpack.c.l.b16 %v6633
        %v6644 = vunpack.c.l.b16 %v6634
        %v6645 = vunpack.c.l.b16 %v6635
        %v6646 = vunpack.c.l.b16 %v6636
        %v6647 = vpack.c.b16 %v6643, %v6642
        %v6648 = vpack.c.b16 %v6645, %v6644
        %v6649 = vpack.c.b16 %v6646, %v6646
        %6650 = vrot.lane.b32.xlu0 %v6647, 55
        %v6651 = vpop.permute.xlu0 %6650
        %6652 = vrot.lane.b32.xlu0 %v6648, 55
        %v6653 = vpop.permute.xlu0 %6652
        %6654 = vrot.lane.b32.xlu0 %v6649, 55
        %v6655 = vpop.permute.xlu0 %6654
        %v6656 = vrot.slane %v6651, 4
        %v6657 = vrot.slane %v6653, 4
        %v6658 = vrot.slane %v6655, 4
        %v6659 = vsel %vm540, %v6656, %v6657
        %v6660 = vsel %vm1224, %v6651, %v6659
        %v6661 = vsel %vm540, %v6657, %v6658
        %v6662 = vsel %vm1224, %v6653, %v6661
        %6665 = vst [vmem:[#allocation4 + $0x80] sm:$0xff] %v6660
        %6666 = vst [vmem:[#allocation4 + $0x88] sm:$0xff] %v6662
        %v6667 = vld [vmem:[#allocation2] sm:$0xff]
        %v6668 = vld [vmem:[#allocation2 + $0x8] sm:$0xff]
        %v6669 = vld [vmem:[#allocation2 + $0x10] sm:$0xff]
        %v6670 = vld [vmem:[#allocation2 + $0x18] sm:$0xff]
        %v6671 = vld [vmem:[#allocation2 + $0x20] sm:$0xff]
        %v6672 = vld [vmem:[%s468] ss:$8 sm:$0xf]
        %v6673 = vld [vmem:[%s471] ss:$8 sm:$0xf]
        %v6674 = vmul.f32 %v6672, %v6673
        %v6676 = vlaneseq
        %v6677 = vshrl.u32 %v6676, 7
        %v6678 = vsub.s32 0, %v6677
        %v6679 = vrot.slane %v6674, %v6678
        %v6680 = vlaneseq
        %v6681 = vshrl.u32 %v6680, 7
        %v6682 = vsub.s32 1, %v6681
        %v6683 = vrot.slane %v6674, %v6682
        %v6684 = vlaneseq
        %v6685 = vshrl.u32 %v6684, 7
        %v6686 = vsub.s32 2, %v6685
        %v6687 = vrot.slane %v6674, %v6686
        %v6688 = vlaneseq
        %v6689 = vshrl.u32 %v6688, 7
        %v6690 = vsub.s32 3, %v6689
        %v6691 = vrot.slane %v6674, %v6690
        %6692 = vrot.lane.b32.xlu0 %v6679, 119
        %v6693 = vpop.permute.xlu0 %6692
        %6694 = vrot.lane.b32.xlu0 %v6683, 119
        %v6695 = vpop.permute.xlu0 %6694
        %6696 = vrot.lane.b32.xlu0 %v6687, 119
        %v6697 = vpop.permute.xlu0 %6696
        %6698 = vrot.lane.b32.xlu0 %v6691, 119
        %v6699 = vpop.permute.xlu0 %6698
        %v6700 = vsel %vm1265, %v6693, %v6695
        %v6701 = vsel %vm1265, %v6695, %v6697
        %v6702 = vsel %vm1265, %v6697, %v6699
        %v6708 = vmul.f32 %v6667, %v6693
        %v6709 = vmul.f32 %v6668, %v6700
        %v6710 = vmul.f32 %v6669, %v6701
        %v6711 = vmul.f32 %v6670, %v6702
        %v6712 = vmul.f32 %v6671, %v6699
        %v6713 = vpack.c.bf16 %v6708, %v6708
        %v6714 = vpack.c.bf16 %v6709, %v6709
        %v6715 = vpack.c.bf16 %v6710, %v6710
        %v6716 = vpack.c.bf16 %v6711, %v6711
        %v6717 = vpack.c.bf16 %v6712, %v6712
        %v6723 = vunpack.c.l.b16 %v6713
        %v6724 = vunpack.c.l.b16 %v6714
        %v6725 = vunpack.c.l.b16 %v6715
        %v6726 = vunpack.c.l.b16 %v6716
        %v6727 = vunpack.c.l.b16 %v6717
        %v6728 = vpack.c.b16 %v6724, %v6723
        %v6729 = vpack.c.b16 %v6726, %v6725
        %v6730 = vpack.c.b16 %v6727, %v6727
        %6731 = vrot.lane.b32.xlu0 %v6728, 9
        %v6732 = vpop.permute.xlu0 %6731
        %6733 = vrot.lane.b32.xlu0 %v6729, 9
        %v6734 = vpop.permute.xlu0 %6733
        %6735 = vrot.lane.b32.xlu0 %v6730, 9
        %v6736 = vpop.permute.xlu0 %6735
        %v6737 = vrot.slane %v6732, 4
        %v6738 = vrot.slane %v6734, 4
        %v6739 = vrot.slane %v6736, 4
        %v6740 = vsel %vm540, %v6737, %v6738
        %v6741 = vsel %vm1310, %v6732, %v6740
        %v6742 = vsel %vm540, %v6738, %v6739
        %v6743 = vsel %vm1310, %v6734, %v6742
        %6746 = vst [vmem:[#allocation4 + $0x90] sm:$0xff] %v6741
        %6747 = vst [vmem:[#allocation4 + $0x98] sm:$0xff] %v6743
        %v6748 = vld [vmem:[#allocation2] sm:$0xff]
        %v6749 = vld [vmem:[#allocation2 + $0x8] sm:$0xff]
        %v6750 = vld [vmem:[#allocation2 + $0x10] sm:$0xff]
        %v6751 = vld [vmem:[#allocation2 + $0x18] sm:$0xff]
        %v6752 = vld [vmem:[#allocation2 + $0x20] sm:$0xff]
        %v6753 = vld [vmem:[%s468] ss:$8 sm:$0xf]
        %v6755 = vlaneseq
        %v6756 = vshrl.u32 %v6755, 7
        %v6757 = vsub.s32 0, %v6756
        %v6758 = vrot.slane %v6753, %v6757
        %v6759 = vlaneseq
        %v6760 = vshrl.u32 %v6759, 7
        %v6761 = vsub.s32 1, %v6760
        %v6762 = vrot.slane %v6753, %v6761
        %v6763 = vlaneseq
        %v6764 = vshrl.u32 %v6763, 7
        %v6765 = vsub.s32 2, %v6764
        %v6766 = vrot.slane %v6753, %v6765
        %v6767 = vlaneseq
        %v6768 = vshrl.u32 %v6767, 7
        %v6769 = vsub.s32 3, %v6768
        %v6770 = vrot.slane %v6753, %v6769
        %6771 = vrot.lane.b32.xlu0 %v6758, 120
        %v6772 = vpop.permute.xlu0 %6771
        %6773 = vrot.lane.b32.xlu0 %v6762, 120
        %v6774 = vpop.permute.xlu0 %6773
        %6775 = vrot.lane.b32.xlu0 %v6766, 120
        %v6776 = vpop.permute.xlu0 %6775
        %6777 = vrot.lane.b32.xlu0 %v6770, 120
        %v6778 = vpop.permute.xlu0 %6777
        %v6779 = vsel %vm1349, %v6772, %v6774
        %v6780 = vsel %vm1349, %v6774, %v6776
        %v6781 = vsel %vm1349, %v6776, %v6778
        %v6787 = vmul.f32 %v6748, %v6772
        %v6788 = vmul.f32 %v6749, %v6779
        %v6789 = vmul.f32 %v6750, %v6780
        %v6790 = vmul.f32 %v6751, %v6781
        %v6791 = vmul.f32 %v6752, %v6778
        %v6792 = vpack.c.bf16 %v6787, %v6787
        %v6793 = vpack.c.bf16 %v6788, %v6788
        %v6794 = vpack.c.bf16 %v6789, %v6789
        %v6795 = vpack.c.bf16 %v6790, %v6790
        %v6796 = vpack.c.bf16 %v6791, %v6791
        %v6802 = vunpack.c.l.b16 %v6792
        %v6803 = vunpack.c.l.b16 %v6793
        %v6804 = vunpack.c.l.b16 %v6794
        %v6805 = vunpack.c.l.b16 %v6795
        %v6806 = vunpack.c.l.b16 %v6796
        %v6807 = vpack.c.b16 %v6803, %v6802
        %v6808 = vpack.c.b16 %v6805, %v6804
        %v6809 = vpack.c.b16 %v6806, %v6806
        %6810 = vrot.lane.b32.xlu0 %v6807, 8
        %v6811 = vpop.permute.xlu0 %6810
        %6812 = vrot.lane.b32.xlu0 %v6808, 8
        %v6813 = vpop.permute.xlu0 %6812
        %6814 = vrot.lane.b32.xlu0 %v6809, 8
        %v6815 = vpop.permute.xlu0 %6814
        %v6816 = vrot.slane %v6811, 4
        %v6817 = vrot.slane %v6813, 4
        %v6818 = vrot.slane %v6815, 4
        %v6819 = vsel %vm540, %v6816, %v6817
        %v6820 = vsel %vm1391, %v6811, %v6819
        %v6821 = vsel %vm540, %v6817, %v6818
        %v6822 = vsel %vm1391, %v6813, %v6821
        %6825 = vst [vmem:[#allocation4 + $0xa0] sm:$0xff] %v6820
        %6826 = vst [vmem:[#allocation4 + $0xa8] sm:$0xff] %v6822
        %v6827 = vld [vmem:[#allocation2] sm:$0xff]
        %v6828 = vld [vmem:[#allocation2 + $0x8] sm:$0xff]
        %v6829 = vld [vmem:[#allocation2 + $0x10] sm:$0xff]
        %v6830 = vld [vmem:[#allocation2 + $0x18] sm:$0xff]
        %v6831 = vld [vmem:[#allocation2 + $0x20] sm:$0xff]
        %v6832 = vld [vmem:[%s468] ss:$8 sm:$0xf]
        %v6833 = vld [vmem:[%s644] ss:$8 sm:$0xf]
        %v6834 = vmul.f32 %v6832, %v6833
        %v6836 = vlaneseq
        %v6837 = vshrl.u32 %v6836, 7
        %v6838 = vsub.s32 0, %v6837
        %v6839 = vrot.slane %v6834, %v6838
        %v6840 = vlaneseq
        %v6841 = vshrl.u32 %v6840, 7
        %v6842 = vsub.s32 1, %v6841
        %v6843 = vrot.slane %v6834, %v6842
        %v6844 = vlaneseq
        %v6845 = vshrl.u32 %v6844, 7
        %v6846 = vsub.s32 2, %v6845
        %v6847 = vrot.slane %v6834, %v6846
        %v6848 = vlaneseq
        %v6849 = vshrl.u32 %v6848, 7
        %v6850 = vsub.s32 3, %v6849
        %v6851 = vrot.slane %v6834, %v6850
        %6852 = vrot.lane.b32.xlu0 %v6839, 121
        %v6853 = vpop.permute.xlu0 %6852
        %6854 = vrot.lane.b32.xlu0 %v6843, 121
        %v6855 = vpop.permute.xlu0 %6854
        %6856 = vrot.lane.b32.xlu0 %v6847, 121
        %v6857 = vpop.permute.xlu0 %6856
        %6858 = vrot.lane.b32.xlu0 %v6851, 121
        %v6859 = vpop.permute.xlu0 %6858
        %v6860 = vsel %vm1432, %v6853, %v6855
        %v6861 = vsel %vm1432, %v6855, %v6857
        %v6862 = vsel %vm1432, %v6857, %v6859
        %v6868 = vmul.f32 %v6827, %v6853
        %v6869 = vmul.f32 %v6828, %v6860
        %v6870 = vmul.f32 %v6829, %v6861
        %v6871 = vmul.f32 %v6830, %v6862
        %v6872 = vmul.f32 %v6831, %v6859
        %v6873 = vpack.c.bf16 %v6868, %v6868
        %v6874 = vpack.c.bf16 %v6869, %v6869
        %v6875 = vpack.c.bf16 %v6870, %v6870
        %v6876 = vpack.c.bf16 %v6871, %v6871
        %v6877 = vpack.c.bf16 %v6872, %v6872
        %v6883 = vunpack.c.l.b16 %v6873
        %v6884 = vunpack.c.l.b16 %v6874
        %v6885 = vunpack.c.l.b16 %v6875
        %v6886 = vunpack.c.l.b16 %v6876
        %v6887 = vunpack.c.l.b16 %v6877
        %v6888 = vpack.c.b16 %v6884, %v6883
        %v6889 = vpack.c.b16 %v6886, %v6885
        %v6890 = vpack.c.b16 %v6887, %v6887
        %6891 = vrot.lane.b32.xlu0 %v6888, 7
        %v6892 = vpop.permute.xlu0 %6891
        %6893 = vrot.lane.b32.xlu0 %v6889, 7
        %v6894 = vpop.permute.xlu0 %6893
        %6895 = vrot.lane.b32.xlu0 %v6890, 7
        %v6896 = vpop.permute.xlu0 %6895
        %v6897 = vrot.slane %v6892, 4
        %v6898 = vrot.slane %v6894, 4
        %v6899 = vrot.slane %v6896, 4
        %v6900 = vsel %vm540, %v6897, %v6898
        %v6901 = vsel %vm1477, %v6892, %v6900
        %v6902 = vsel %vm540, %v6898, %v6899
        %v6903 = vsel %vm1477, %v6894, %v6902
        %6906 = vst [vmem:[#allocation4 + $0xb0] sm:$0xff] %v6901
        %6907 = vst [vmem:[#allocation4 + $0xb8] sm:$0xff] %v6903
        %v6908 = vld [vmem:[#allocation2] sm:$0xff]
        %v6909 = vld [vmem:[#allocation2 + $0x8] sm:$0xff]
        %v6910 = vld [vmem:[#allocation2 + $0x10] sm:$0xff]
        %v6911 = vld [vmem:[#allocation2 + $0x18] sm:$0xff]
        %v6912 = vld [vmem:[#allocation2 + $0x20] sm:$0xff]
        %v6913 = vld [vmem:[%s471] ss:$8 sm:$0xf]
        %v6915 = vlaneseq
        %v6916 = vshrl.u32 %v6915, 7
        %v6917 = vsub.s32 0, %v6916
        %v6918 = vrot.slane %v6913, %v6917
        %v6919 = vlaneseq
        %v6920 = vshrl.u32 %v6919, 7
        %v6921 = vsub.s32 1, %v6920
        %v6922 = vrot.slane %v6913, %v6921
        %v6923 = vlaneseq
        %v6924 = vshrl.u32 %v6923, 7
        %v6925 = vsub.s32 2, %v6924
        %v6926 = vrot.slane %v6913, %v6925
        %v6927 = vlaneseq
        %v6928 = vshrl.u32 %v6927, 7
        %v6929 = vsub.s32 3, %v6928
        %v6930 = vrot.slane %v6913, %v6929
        %6931 = vrot.lane.b32.xlu0 %v6918, 127
        %v6932 = vpop.permute.xlu0 %6931
        %6933 = vrot.lane.b32.xlu0 %v6922, 127
        %v6934 = vpop.permute.xlu0 %6933
        %6935 = vrot.lane.b32.xlu0 %v6926, 127
        %v6936 = vpop.permute.xlu0 %6935
        %6937 = vrot.lane.b32.xlu0 %v6930, 127
        %v6938 = vpop.permute.xlu0 %6937
        %v6939 = vsel %vm1516, %v6932, %v6934
        %v6940 = vsel %vm1516, %v6934, %v6936
        %v6941 = vsel %vm1516, %v6936, %v6938
        %v6947 = vmul.f32 %v6908, %v6932
        %v6948 = vmul.f32 %v6909, %v6939
        %v6949 = vmul.f32 %v6910, %v6940
        %v6950 = vmul.f32 %v6911, %v6941
        %v6951 = vmul.f32 %v6912, %v6938
        %v6952 = vpack.c.bf16 %v6947, %v6947
        %v6953 = vpack.c.bf16 %v6948, %v6948
        %v6954 = vpack.c.bf16 %v6949, %v6949
        %v6955 = vpack.c.bf16 %v6950, %v6950
        %v6956 = vpack.c.bf16 %v6951, %v6951
        %v6962 = vunpack.c.l.b16 %v6952
        %v6963 = vunpack.c.l.b16 %v6953
        %v6964 = vunpack.c.l.b16 %v6954
        %v6965 = vunpack.c.l.b16 %v6955
        %v6966 = vunpack.c.l.b16 %v6956
        %v6967 = vpack.c.b16 %v6963, %v6962
        %v6968 = vpack.c.b16 %v6965, %v6964
        %v6969 = vpack.c.b16 %v6966, %v6966
        %6970 = vrot.lane.b32.xlu0 %v6967, 1
        %v6971 = vpop.permute.xlu0 %6970
        %6972 = vrot.lane.b32.xlu0 %v6968, 1
        %v6973 = vpop.permute.xlu0 %6972
        %6974 = vrot.lane.b32.xlu0 %v6969, 1
        %v6975 = vpop.permute.xlu0 %6974
        %v6976 = vrot.slane %v6971, 4
        %v6977 = vrot.slane %v6973, 4
        %v6978 = vrot.slane %v6975, 4
        %v6979 = vsel %vm540, %v6976, %v6977
        %v6980 = vsel %vm1558, %v6971, %v6979
        %v6981 = vsel %vm540, %v6977, %v6978
        %v6982 = vsel %vm1558, %v6973, %v6981
        %6985 = vst [vmem:[#allocation4 + $0xc0] sm:$0xff] %v6980
        %6986 = vst [vmem:[#allocation4 + $0xc8] sm:$0xff] %v6982
        %v6987 = vld [vmem:[#allocation2 + $0x8] sm:$0xff]
        %v6988 = vld [vmem:[#allocation2 + $0x10] sm:$0xff]
        %v6989 = vld [vmem:[#allocation2 + $0x18] sm:$0xff]
        %v6990 = vld [vmem:[#allocation2 + $0x20] sm:$0xff]
        %v6991 = vpack.c.bf16 %v6987, %v6987
        %v6992 = vpack.c.bf16 %v6988, %v6988
        %v6993 = vpack.c.bf16 %v6989, %v6989
        %v6994 = vpack.c.bf16 %v6990, %v6990
        %v6999 = vunpack.c.l.b16 %v6991
        %v7000 = vunpack.c.l.b16 %v6992
        %v7001 = vunpack.c.l.b16 %v6993
        %v7002 = vunpack.c.l.b16 %v6994
        %v7003 = vpack.c.b16 %v7000, %v6999
        %v7004 = vpack.c.b16 %v7002, %v7001
        %7007 = vst [vmem:[#allocation4 + $0xd0] sm:$0xff] %v7003
        %7008 = vst [vmem:[#allocation4 + $0xd8] sm:$0xff] %v7004
        %v7009 = vld [vmem:[#allocation2 + $0x8] sm:$0xff]
        %v7010 = vld [vmem:[#allocation2 + $0x10] sm:$0xff]
        %v7011 = vld [vmem:[#allocation2 + $0x18] sm:$0xff]
        %v7012 = vld [vmem:[#allocation2 + $0x20] sm:$0xff]
        %v7013 = vld [vmem:[#allocation2 + $0x28] sm:$0xff]
        %v7014 = vld [vmem:[%s644] ss:$8 sm:$0xf]
        %v7016 = vlaneseq
        %v7017 = vshrl.u32 %v7016, 7
        %v7018 = vsub.s32 0, %v7017
        %v7019 = vrot.slane %v7014, %v7018
        %v7020 = vlaneseq
        %v7021 = vshrl.u32 %v7020, 7
        %v7022 = vsub.s32 1, %v7021
        %v7023 = vrot.slane %v7014, %v7022
        %v7024 = vlaneseq
        %v7025 = vshrl.u32 %v7024, 7
        %v7026 = vsub.s32 2, %v7025
        %v7027 = vrot.slane %v7014, %v7026
        %v7028 = vlaneseq
        %v7029 = vshrl.u32 %v7028, 7
        %v7030 = vsub.s32 3, %v7029
        %v7031 = vrot.slane %v7014, %v7030
        %7032 = vrot.lane.b32.xlu0 %v7019, 1
        %v7033 = vpop.permute.xlu0 %7032
        %7034 = vrot.lane.b32.xlu0 %v7023, 1
        %v7035 = vpop.permute.xlu0 %7034
        %7036 = vrot.lane.b32.xlu0 %v7027, 1
        %v7037 = vpop.permute.xlu0 %7036
        %7038 = vrot.lane.b32.xlu0 %v7031, 1
        %v7039 = vpop.permute.xlu0 %7038
        %v7040 = vsel %vm1621, %v7033, %v7035
        %v7041 = vsel %vm1621, %v7035, %v7037
        %v7042 = vsel %vm1621, %v7037, %v7039
        %v7048 = vmul.f32 %v7009, %v7033
        %v7049 = vmul.f32 %v7010, %v7040
        %v7050 = vmul.f32 %v7011, %v7041
        %v7051 = vmul.f32 %v7012, %v7042
        %v7052 = vmul.f32 %v7013, %v7039
        %v7053 = vpack.c.bf16 %v7048, %v7048
        %v7054 = vpack.c.bf16 %v7049, %v7049
        %v7055 = vpack.c.bf16 %v7050, %v7050
        %v7056 = vpack.c.bf16 %v7051, %v7051
        %v7057 = vpack.c.bf16 %v7052, %v7052
        %v7063 = vunpack.c.l.b16 %v7053
        %v7064 = vunpack.c.l.b16 %v7054
        %v7065 = vunpack.c.l.b16 %v7055
        %v7066 = vunpack.c.l.b16 %v7056
        %v7067 = vunpack.c.l.b16 %v7057
        %v7068 = vpack.c.b16 %v7064, %v7063
        %v7069 = vpack.c.b16 %v7066, %v7065
        %v7070 = vpack.c.b16 %v7067, %v7067
        %7071 = vrot.lane.b32.xlu0 %v7068, 127
        %v7072 = vpop.permute.xlu0 %7071
        %7073 = vrot.lane.b32.xlu0 %v7069, 127
        %v7074 = vpop.permute.xlu0 %7073
        %7075 = vrot.lane.b32.xlu0 %v7070, 127
        %v7076 = vpop.permute.xlu0 %7075
        %v7077 = vrot.slane %v7072, 4
        %v7078 = vrot.slane %v7074, 4
        %v7079 = vrot.slane %v7076, 4
        %v7080 = vsel %vm540, %v7077, %v7078
        %v7081 = vsel %vm1663, %v7072, %v7080
        %v7082 = vsel %vm540, %v7078, %v7079
        %v7083 = vsel %vm1663, %v7074, %v7082
        %7086 = vst [vmem:[#allocation4 + $0xe0] sm:$0xff] %v7081
        %7087 = vst [vmem:[#allocation4 + $0xe8] sm:$0xff] %v7083
        %v7088 = vld [vmem:[#allocation2 + $0x8] sm:$0xff]
        %v7089 = vld [vmem:[#allocation2 + $0x10] sm:$0xff]
        %v7090 = vld [vmem:[#allocation2 + $0x18] sm:$0xff]
        %v7091 = vld [vmem:[#allocation2 + $0x20] sm:$0xff]
        %v7092 = vld [vmem:[#allocation2 + $0x28] sm:$0xff]
        %v7093 = vld [vmem:[%s981] ss:$8 sm:$0xf]
        %v7094 = vld [vmem:[%s471] ss:$8 sm:$0xf]
        %v7095 = vmul.f32 %v7093, %v7094
        %v7097 = vlaneseq
        %v7098 = vshrl.u32 %v7097, 7
        %v7099 = vsub.s32 0, %v7098
        %v7100 = vrot.slane %v7095, %v7099
        %v7101 = vlaneseq
        %v7102 = vshrl.u32 %v7101, 7
        %v7103 = vsub.s32 1, %v7102
        %v7104 = vrot.slane %v7095, %v7103
        %v7105 = vlaneseq
        %v7106 = vshrl.u32 %v7105, 7
        %v7107 = vsub.s32 2, %v7106
        %v7108 = vrot.slane %v7095, %v7107
        %v7109 = vlaneseq
        %v7110 = vshrl.u32 %v7109, 7
        %v7111 = vsub.s32 3, %v7110
        %v7112 = vrot.slane %v7095, %v7111
        %7113 = vrot.lane.b32.xlu0 %v7100, 7
        %v7114 = vpop.permute.xlu0 %7113
        %7115 = vrot.lane.b32.xlu0 %v7104, 7
        %v7116 = vpop.permute.xlu0 %7115
        %7117 = vrot.lane.b32.xlu0 %v7108, 7
        %v7118 = vpop.permute.xlu0 %7117
        %7119 = vrot.lane.b32.xlu0 %v7112, 7
        %v7120 = vpop.permute.xlu0 %7119
        %v7121 = vsel %vm1704, %v7114, %v7116
        %v7122 = vsel %vm1704, %v7116, %v7118
        %v7123 = vsel %vm1704, %v7118, %v7120
        %v7129 = vmul.f32 %v7088, %v7114
        %v7130 = vmul.f32 %v7089, %v7121
        %v7131 = vmul.f32 %v7090, %v7122
        %v7132 = vmul.f32 %v7091, %v7123
        %v7133 = vmul.f32 %v7092, %v7120
        %v7134 = vpack.c.bf16 %v7129, %v7129
        %v7135 = vpack.c.bf16 %v7130, %v7130
        %v7136 = vpack.c.bf16 %v7131, %v7131
        %v7137 = vpack.c.bf16 %v7132, %v7132
        %v7138 = vpack.c.bf16 %v7133, %v7133
        %v7144 = vunpack.c.l.b16 %v7134
        %v7145 = vunpack.c.l.b16 %v7135
        %v7146 = vunpack.c.l.b16 %v7136
        %v7147 = vunpack.c.l.b16 %v7137
        %v7148 = vunpack.c.l.b16 %v7138
        %v7149 = vpack.c.b16 %v7145, %v7144
        %v7150 = vpack.c.b16 %v7147, %v7146
        %v7151 = vpack.c.b16 %v7148, %v7148
        %7152 = vrot.lane.b32.xlu0 %v7149, 121
        %v7153 = vpop.permute.xlu0 %7152
        %7154 = vrot.lane.b32.xlu0 %v7150, 121
        %v7155 = vpop.permute.xlu0 %7154
        %7156 = vrot.lane.b32.xlu0 %v7151, 121
        %v7157 = vpop.permute.xlu0 %7156
        %v7158 = vrot.slane %v7153, 4
        %v7159 = vrot.slane %v7155, 4
        %v7160 = vrot.slane %v7157, 4
        %v7161 = vsel %vm540, %v7158, %v7159
        %v7162 = vsel %vm1749, %v7153, %v7161
        %v7163 = vsel %vm540, %v7159, %v7160
        %v7164 = vsel %vm1749, %v7155, %v7163
        %7167 = vst [vmem:[#allocation4 + $0xf0] sm:$0xff] %v7162
        %7168 = vst [vmem:[#allocation4 + $0xf8] sm:$0xff] %v7164
        %v7169 = vld [vmem:[#allocation2 + $0x8] sm:$0xff]
        %v7170 = vld [vmem:[#allocation2 + $0x10] sm:$0xff]
        %v7171 = vld [vmem:[#allocation2 + $0x18] sm:$0xff]
        %v7172 = vld [vmem:[#allocation2 + $0x20] sm:$0xff]
        %v7173 = vld [vmem:[#allocation2 + $0x28] sm:$0xff]
        %v7174 = vld [vmem:[%s981] ss:$8 sm:$0xf]
        %v7176 = vlaneseq
        %v7177 = vshrl.u32 %v7176, 7
        %v7178 = vsub.s32 0, %v7177
        %v7179 = vrot.slane %v7174, %v7178
        %v7180 = vlaneseq
        %v7181 = vshrl.u32 %v7180, 7
        %v7182 = vsub.s32 1, %v7181
        %v7183 = vrot.slane %v7174, %v7182
        %v7184 = vlaneseq
        %v7185 = vshrl.u32 %v7184, 7
        %v7186 = vsub.s32 2, %v7185
        %v7187 = vrot.slane %v7174, %v7186
        %v7188 = vlaneseq
        %v7189 = vshrl.u32 %v7188, 7
        %v7190 = vsub.s32 3, %v7189
        %v7191 = vrot.slane %v7174, %v7190
        %7192 = vrot.lane.b32.xlu0 %v7179, 8
        %v7193 = vpop.permute.xlu0 %7192
        %7194 = vrot.lane.b32.xlu0 %v7183, 8
        %v7195 = vpop.permute.xlu0 %7194
        %7196 = vrot.lane.b32.xlu0 %v7187, 8
        %v7197 = vpop.permute.xlu0 %7196
        %7198 = vrot.lane.b32.xlu0 %v7191, 8
        %v7199 = vpop.permute.xlu0 %7198
        %v7200 = vsel %vm1788, %v7193, %v7195
        %v7201 = vsel %vm1788, %v7195, %v7197
        %v7202 = vsel %vm1788, %v7197, %v7199
        %v7208 = vmul.f32 %v7169, %v7193
        %v7209 = vmul.f32 %v7170, %v7200
        %v7210 = vmul.f32 %v7171, %v7201
        %v7211 = vmul.f32 %v7172, %v7202
        %v7212 = vmul.f32 %v7173, %v7199
        %v7213 = vpack.c.bf16 %v7208, %v7208
        %v7214 = vpack.c.bf16 %v7209, %v7209
        %v7215 = vpack.c.bf16 %v7210, %v7210
        %v7216 = vpack.c.bf16 %v7211, %v7211
        %v7217 = vpack.c.bf16 %v7212, %v7212
        %v7223 = vunpack.c.l.b16 %v7213
        %v7224 = vunpack.c.l.b16 %v7214
        %v7225 = vunpack.c.l.b16 %v7215
        %v7226 = vunpack.c.l.b16 %v7216
        %v7227 = vunpack.c.l.b16 %v7217
        %v7228 = vpack.c.b16 %v7224, %v7223
        %v7229 = vpack.c.b16 %v7226, %v7225
        %v7230 = vpack.c.b16 %v7227, %v7227
        %7231 = vrot.lane.b32.xlu0 %v7228, 120
        %v7232 = vpop.permute.xlu0 %7231
        %7233 = vrot.lane.b32.xlu0 %v7229, 120
        %v7234 = vpop.permute.xlu0 %7233
        %7235 = vrot.lane.b32.xlu0 %v7230, 120
        %v7236 = vpop.permute.xlu0 %7235
        %v7237 = vrot.slane %v7232, 4
        %v7238 = vrot.slane %v7234, 4
        %v7239 = vrot.slane %v7236, 4
        %v7240 = vsel %vm540, %v7237, %v7238
        %v7241 = vsel %vm1830, %v7232, %v7240
        %v7242 = vsel %vm540, %v7238, %v7239
        %v7243 = vsel %vm1830, %v7234, %v7242
        %7246 = vst [vmem:[#allocation4 + $0x100] sm:$0xff] %v7241
        %7247 = vst [vmem:[#allocation4 + $0x108] sm:$0xff] %v7243
        %v7248 = vld [vmem:[#allocation2 + $0x8] sm:$0xff]
        %v7249 = vld [vmem:[#allocation2 + $0x10] sm:$0xff]
        %v7250 = vld [vmem:[#allocation2 + $0x18] sm:$0xff]
        %v7251 = vld [vmem:[#allocation2 + $0x20] sm:$0xff]
        %v7252 = vld [vmem:[#allocation2 + $0x28] sm:$0xff]
        %v7253 = vld [vmem:[%s981] ss:$8 sm:$0xf]
        %v7254 = vld [vmem:[%s644] ss:$8 sm:$0xf]
        %v7255 = vmul.f32 %v7253, %v7254
        %v7257 = vlaneseq
        %v7258 = vshrl.u32 %v7257, 7
        %v7259 = vsub.s32 0, %v7258
        %v7260 = vrot.slane %v7255, %v7259
        %v7261 = vlaneseq
        %v7262 = vshrl.u32 %v7261, 7
        %v7263 = vsub.s32 1, %v7262
        %v7264 = vrot.slane %v7255, %v7263
        %v7265 = vlaneseq
        %v7266 = vshrl.u32 %v7265, 7
        %v7267 = vsub.s32 2, %v7266
        %v7268 = vrot.slane %v7255, %v7267
        %v7269 = vlaneseq
        %v7270 = vshrl.u32 %v7269, 7
        %v7271 = vsub.s32 3, %v7270
        %v7272 = vrot.slane %v7255, %v7271
        %7273 = vrot.lane.b32.xlu0 %v7260, 9
        %v7274 = vpop.permute.xlu0 %7273
        %7275 = vrot.lane.b32.xlu0 %v7264, 9
        %v7276 = vpop.permute.xlu0 %7275
        %7277 = vrot.lane.b32.xlu0 %v7268, 9
        %v7278 = vpop.permute.xlu0 %7277
        %7279 = vrot.lane.b32.xlu0 %v7272, 9
        %v7280 = vpop.permute.xlu0 %7279
        %v7281 = vsel %vm1871, %v7274, %v7276
        %v7282 = vsel %vm1871, %v7276, %v7278
        %v7283 = vsel %vm1871, %v7278, %v7280
        %v7289 = vmul.f32 %v7248, %v7274
        %v7290 = vmul.f32 %v7249, %v7281
        %v7291 = vmul.f32 %v7250, %v7282
        %v7292 = vmul.f32 %v7251, %v7283
        %v7293 = vmul.f32 %v7252, %v7280
        %v7294 = vpack.c.bf16 %v7289, %v7289
        %v7295 = vpack.c.bf16 %v7290, %v7290
        %v7296 = vpack.c.bf16 %v7291, %v7291
        %v7297 = vpack.c.bf16 %v7292, %v7292
        %v7298 = vpack.c.bf16 %v7293, %v7293
        %v7304 = vunpack.c.l.b16 %v7294
        %v7305 = vunpack.c.l.b16 %v7295
        %v7306 = vunpack.c.l.b16 %v7296
        %v7307 = vunpack.c.l.b16 %v7297
        %v7308 = vunpack.c.l.b16 %v7298
        %v7309 = vpack.c.b16 %v7305, %v7304
        %v7310 = vpack.c.b16 %v7307, %v7306
        %v7311 = vpack.c.b16 %v7308, %v7308
        %7312 = vrot.lane.b32.xlu0 %v7309, 119
        %v7313 = vpop.permute.xlu0 %7312
        %7314 = vrot.lane.b32.xlu0 %v7310, 119
        %v7315 = vpop.permute.xlu0 %7314
        %7316 = vrot.lane.b32.xlu0 %v7311, 119
        %v7317 = vpop.permute.xlu0 %7316
        %v7318 = vrot.slane %v7313, 4
        %v7319 = vrot.slane %v7315, 4
        %v7320 = vrot.slane %v7317, 4
        %v7321 = vsel %vm540, %v7318, %v7319
        %v7322 = vsel %vm1916, %v7313, %v7321
        %v7323 = vsel %vm540, %v7319, %v7320
        %v7324 = vsel %vm1916, %v7315, %v7323
        %7327 = vst [vmem:[#allocation4 + $0x110] sm:$0xff] %v7322
        %7328 = vst [vmem:[#allocation4 + $0x118] sm:$0xff] %v7324
        %v7329 = vld [vmem:[#allocation2 + $0x8] sm:$0xff]
        %v7330 = vld [vmem:[#allocation2 + $0x10] sm:$0xff]
        %v7331 = vld [vmem:[#allocation2 + $0x18] sm:$0xff]
        %v7332 = vld [vmem:[#allocation2 + $0x20] sm:$0xff]
        %v7333 = vld [vmem:[#allocation2 + $0x28] sm:$0xff]
        %v7334 = vld [vmem:[%s1929] ss:$8 sm:$0xf]
        %v7335 = vld [vmem:[%s468] ss:$8 sm:$0xf]
        %v7336 = vmul.f32 %v7334, %v7335
        %v7337 = vld [vmem:[%s471] ss:$8 sm:$0xf]
        %v7338 = vmul.f32 %v7336, %v7337
        %v7340 = vlaneseq
        %v7341 = vshrl.u32 %v7340, 7
        %v7342 = vsub.s32 0, %v7341
        %v7343 = vrot.slane %v7338, %v7342
        %v7344 = vlaneseq
        %v7345 = vshrl.u32 %v7344, 7
        %v7346 = vsub.s32 1, %v7345
        %v7347 = vrot.slane %v7338, %v7346
        %v7348 = vlaneseq
        %v7349 = vshrl.u32 %v7348, 7
        %v7350 = vsub.s32 2, %v7349
        %v7351 = vrot.slane %v7338, %v7350
        %v7352 = vlaneseq
        %v7353 = vshrl.u32 %v7352, 7
        %v7354 = vsub.s32 3, %v7353
        %v7355 = vrot.slane %v7338, %v7354
        %7356 = vrot.lane.b32.xlu0 %v7343, 55
        %v7357 = vpop.permute.xlu0 %7356
        %7358 = vrot.lane.b32.xlu0 %v7347, 55
        %v7359 = vpop.permute.xlu0 %7358
        %7360 = vrot.lane.b32.xlu0 %v7351, 55
        %v7361 = vpop.permute.xlu0 %7360
        %7362 = vrot.lane.b32.xlu0 %v7355, 55
        %v7363 = vpop.permute.xlu0 %7362
        %v7364 = vsel %vm499, %v7357, %v7359
        %v7365 = vsel %vm499, %v7359, %v7361
        %v7366 = vsel %vm499, %v7361, %v7363
        %v7372 = vmul.f32 %v7329, %v7357
        %v7373 = vmul.f32 %v7330, %v7364
        %v7374 = vmul.f32 %v7331, %v7365
        %v7375 = vmul.f32 %v7332, %v7366
        %v7376 = vmul.f32 %v7333, %v7363
        %v7377 = vpack.c.bf16 %v7372, %v7372
        %v7378 = vpack.c.bf16 %v7373, %v7373
        %v7379 = vpack.c.bf16 %v7374, %v7374
        %v7380 = vpack.c.bf16 %v7375, %v7375
        %v7381 = vpack.c.bf16 %v7376, %v7376
        %v7387 = vunpack.c.l.b16 %v7377
        %v7388 = vunpack.c.l.b16 %v7378
        %v7389 = vunpack.c.l.b16 %v7379
        %v7390 = vunpack.c.l.b16 %v7380
        %v7391 = vunpack.c.l.b16 %v7381
        %v7392 = vpack.c.b16 %v7388, %v7387
        %v7393 = vpack.c.b16 %v7390, %v7389
        %v7394 = vpack.c.b16 %v7391, %v7391
        %7395 = vrot.lane.b32.xlu0 %v7392, 73
        %v7396 = vpop.permute.xlu0 %7395
        %7397 = vrot.lane.b32.xlu0 %v7393, 73
        %v7398 = vpop.permute.xlu0 %7397
        %7399 = vrot.lane.b32.xlu0 %v7394, 73
        %v7400 = vpop.permute.xlu0 %7399
        %v7401 = vrot.slane %v7396, 4
        %v7402 = vrot.slane %v7398, 4
        %v7403 = vrot.slane %v7400, 4
        %v7404 = vsel %vm540, %v7401, %v7402
        %v7405 = vsel %vm542, %v7396, %v7404
        %v7406 = vsel %vm540, %v7402, %v7403
        %v7407 = vsel %vm542, %v7398, %v7406
        %7410 = vst [vmem:[#allocation4 + $0x120] sm:$0xff] %v7405
        %7411 = vst [vmem:[#allocation4 + $0x128] sm:$0xff] %v7407
        %v7412 = vld [vmem:[#allocation2 + $0x8] sm:$0xff]
        %v7413 = vld [vmem:[#allocation2 + $0x10] sm:$0xff]
        %v7414 = vld [vmem:[#allocation2 + $0x18] sm:$0xff]
        %v7415 = vld [vmem:[#allocation2 + $0x20] sm:$0xff]
        %v7416 = vld [vmem:[#allocation2 + $0x28] sm:$0xff]
        %v7417 = vld [vmem:[%s1929] ss:$8 sm:$0xf]
        %v7418 = vld [vmem:[%s468] ss:$8 sm:$0xf]
        %v7419 = vmul.f32 %v7417, %v7418
        %v7421 = vlaneseq
        %v7422 = vshrl.u32 %v7421, 7
        %v7423 = vsub.s32 0, %v7422
        %v7424 = vrot.slane %v7419, %v7423
        %v7425 = vlaneseq
        %v7426 = vshrl.u32 %v7425, 7
        %v7427 = vsub.s32 1, %v7426
        %v7428 = vrot.slane %v7419, %v7427
        %v7429 = vlaneseq
        %v7430 = vshrl.u32 %v7429, 7
        %v7431 = vsub.s32 2, %v7430
        %v7432 = vrot.slane %v7419, %v7431
        %v7433 = vlaneseq
        %v7434 = vshrl.u32 %v7433, 7
        %v7435 = vsub.s32 3, %v7434
        %v7436 = vrot.slane %v7419, %v7435
        %7437 = vrot.lane.b32.xlu0 %v7424, 56
        %v7438 = vpop.permute.xlu0 %7437
        %7439 = vrot.lane.b32.xlu0 %v7428, 56
        %v7440 = vpop.permute.xlu0 %7439
        %7441 = vrot.lane.b32.xlu0 %v7432, 56
        %v7442 = vpop.permute.xlu0 %7441
        %7443 = vrot.lane.b32.xlu0 %v7436, 56
        %v7444 = vpop.permute.xlu0 %7443
        %v7445 = vsel %vm583, %v7438, %v7440
        %v7446 = vsel %vm583, %v7440, %v7442
        %v7447 = vsel %vm583, %v7442, %v7444
        %v7453 = vmul.f32 %v7412, %v7438
        %v7454 = vmul.f32 %v7413, %v7445
        %v7455 = vmul.f32 %v7414, %v7446
        %v7456 = vmul.f32 %v7415, %v7447
        %v7457 = vmul.f32 %v7416, %v7444
        %v7458 = vpack.c.bf16 %v7453, %v7453
        %v7459 = vpack.c.bf16 %v7454, %v7454
        %v7460 = vpack.c.bf16 %v7455, %v7455
        %v7461 = vpack.c.bf16 %v7456, %v7456
        %v7462 = vpack.c.bf16 %v7457, %v7457
        %v7468 = vunpack.c.l.b16 %v7458
        %v7469 = vunpack.c.l.b16 %v7459
        %v7470 = vunpack.c.l.b16 %v7460
        %v7471 = vunpack.c.l.b16 %v7461
        %v7472 = vunpack.c.l.b16 %v7462
        %v7473 = vpack.c.b16 %v7469, %v7468
        %v7474 = vpack.c.b16 %v7471, %v7470
        %v7475 = vpack.c.b16 %v7472, %v7472
        %7476 = vrot.lane.b32.xlu0 %v7473, 72
        %v7477 = vpop.permute.xlu0 %7476
        %7478 = vrot.lane.b32.xlu0 %v7474, 72
        %v7479 = vpop.permute.xlu0 %7478
        %7480 = vrot.lane.b32.xlu0 %v7475, 72
        %v7481 = vpop.permute.xlu0 %7480
        %v7482 = vrot.slane %v7477, 4
        %v7483 = vrot.slane %v7479, 4
        %v7484 = vrot.slane %v7481, 4
        %v7485 = vsel %vm540, %v7482, %v7483
        %v7486 = vsel %vm628, %v7477, %v7485
        %v7487 = vsel %vm540, %v7483, %v7484
        %v7488 = vsel %vm628, %v7479, %v7487
        %7491 = vst [vmem:[#allocation4 + $0x130] sm:$0xff] %v7486
        %7492 = vst [vmem:[#allocation4 + $0x138] sm:$0xff] %v7488
        %v7493 = vld [vmem:[#allocation2 + $0x8] sm:$0xff]
        %v7494 = vld [vmem:[#allocation2 + $0x10] sm:$0xff]
        %v7495 = vld [vmem:[#allocation2 + $0x18] sm:$0xff]
        %v7496 = vld [vmem:[#allocation2 + $0x20] sm:$0xff]
        %v7497 = vld [vmem:[#allocation2 + $0x28] sm:$0xff]
        %v7498 = vld [vmem:[%s1929] ss:$8 sm:$0xf]
        %v7499 = vld [vmem:[%s468] ss:$8 sm:$0xf]
        %v7500 = vmul.f32 %v7498, %v7499
        %v7501 = vld [vmem:[%s644] ss:$8 sm:$0xf]
        %v7502 = vmul.f32 %v7500, %v7501
        %v7504 = vlaneseq
        %v7505 = vshrl.u32 %v7504, 7
        %v7506 = vsub.s32 0, %v7505
        %v7507 = vrot.slane %v7502, %v7506
        %v7508 = vlaneseq
        %v7509 = vshrl.u32 %v7508, 7
        %v7510 = vsub.s32 1, %v7509
        %v7511 = vrot.slane %v7502, %v7510
        %v7512 = vlaneseq
        %v7513 = vshrl.u32 %v7512, 7
        %v7514 = vsub.s32 2, %v7513
        %v7515 = vrot.slane %v7502, %v7514
        %v7516 = vlaneseq
        %v7517 = vshrl.u32 %v7516, 7
        %v7518 = vsub.s32 3, %v7517
        %v7519 = vrot.slane %v7502, %v7518
        %7520 = vrot.lane.b32.xlu0 %v7507, 57
        %v7521 = vpop.permute.xlu0 %7520
        %7522 = vrot.lane.b32.xlu0 %v7511, 57
        %v7523 = vpop.permute.xlu0 %7522
        %7524 = vrot.lane.b32.xlu0 %v7515, 57
        %v7525 = vpop.permute.xlu0 %7524
        %7526 = vrot.lane.b32.xlu0 %v7519, 57
        %v7527 = vpop.permute.xlu0 %7526
        %v7528 = vsel %vm672, %v7521, %v7523
        %v7529 = vsel %vm672, %v7523, %v7525
        %v7530 = vsel %vm672, %v7525, %v7527
        %v7536 = vmul.f32 %v7493, %v7521
        %v7537 = vmul.f32 %v7494, %v7528
        %v7538 = vmul.f32 %v7495, %v7529
        %v7539 = vmul.f32 %v7496, %v7530
        %v7540 = vmul.f32 %v7497, %v7527
        %v7541 = vpack.c.bf16 %v7536, %v7536
        %v7542 = vpack.c.bf16 %v7537, %v7537
        %v7543 = vpack.c.bf16 %v7538, %v7538
        %v7544 = vpack.c.bf16 %v7539, %v7539
        %v7545 = vpack.c.bf16 %v7540, %v7540
        %v7551 = vunpack.c.l.b16 %v7541
        %v7552 = vunpack.c.l.b16 %v7542
        %v7553 = vunpack.c.l.b16 %v7543
        %v7554 = vunpack.c.l.b16 %v7544
        %v7555 = vunpack.c.l.b16 %v7545
        %v7556 = vpack.c.b16 %v7552, %v7551
        %v7557 = vpack.c.b16 %v7554, %v7553
        %v7558 = vpack.c.b16 %v7555, %v7555
        %7559 = vrot.lane.b32.xlu0 %v7556, 71
        %v7560 = vpop.permute.xlu0 %7559
        %7561 = vrot.lane.b32.xlu0 %v7557, 71
        %v7562 = vpop.permute.xlu0 %7561
        %7563 = vrot.lane.b32.xlu0 %v7558, 71
        %v7564 = vpop.permute.xlu0 %7563
        %v7565 = vrot.slane %v7560, 4
        %v7566 = vrot.slane %v7562, 4
        %v7567 = vrot.slane %v7564, 4
        %v7568 = vsel %vm540, %v7565, %v7566
        %v7569 = vsel %vm714, %v7560, %v7568
        %v7570 = vsel %vm540, %v7566, %v7567
        %v7571 = vsel %vm714, %v7562, %v7570
        %7574 = vst [vmem:[#allocation4 + $0x140] sm:$0xff] %v7569
        %7575 = vst [vmem:[#allocation4 + $0x148] sm:$0xff] %v7571
        %v7576 = vld [vmem:[#allocation2 + $0x8] sm:$0xff]
        %v7577 = vld [vmem:[#allocation2 + $0x10] sm:$0xff]
        %v7578 = vld [vmem:[#allocation2 + $0x18] sm:$0xff]
        %v7579 = vld [vmem:[#allocation2 + $0x20] sm:$0xff]
        %v7580 = vld [vmem:[#allocation2 + $0x28] sm:$0xff]
        %v7581 = vld [vmem:[%s1929] ss:$8 sm:$0xf]
        %v7582 = vld [vmem:[%s471] ss:$8 sm:$0xf]
        %v7583 = vmul.f32 %v7581, %v7582
        %v7585 = vlaneseq
        %v7586 = vshrl.u32 %v7585, 7
        %v7587 = vsub.s32 0, %v7586
        %v7588 = vrot.slane %v7583, %v7587
        %v7589 = vlaneseq
        %v7590 = vshrl.u32 %v7589, 7
        %v7591 = vsub.s32 1, %v7590
        %v7592 = vrot.slane %v7583, %v7591
        %v7593 = vlaneseq
        %v7594 = vshrl.u32 %v7593, 7
        %v7595 = vsub.s32 2, %v7594
        %v7596 = vrot.slane %v7583, %v7595
        %v7597 = vlaneseq
        %v7598 = vshrl.u32 %v7597, 7
        %v7599 = vsub.s32 3, %v7598
        %v7600 = vrot.slane %v7583, %v7599
        %7601 = vrot.lane.b32.xlu0 %v7588, 63
        %v7602 = vpop.permute.xlu0 %7601
        %7603 = vrot.lane.b32.xlu0 %v7592, 63
        %v7604 = vpop.permute.xlu0 %7603
        %7605 = vrot.lane.b32.xlu0 %v7596, 63
        %v7606 = vpop.permute.xlu0 %7605
        %7607 = vrot.lane.b32.xlu0 %v7600, 63
        %v7608 = vpop.permute.xlu0 %7607
        %v7609 = vsel %vm755, %v7602, %v7604
        %v7610 = vsel %vm755, %v7604, %v7606
        %v7611 = vsel %vm755, %v7606, %v7608
        %v7617 = vmul.f32 %v7576, %v7602
        %v7618 = vmul.f32 %v7577, %v7609
        %v7619 = vmul.f32 %v7578, %v7610
        %v7620 = vmul.f32 %v7579, %v7611
        %v7621 = vmul.f32 %v7580, %v7608
        %v7622 = vpack.c.bf16 %v7617, %v7617
        %v7623 = vpack.c.bf16 %v7618, %v7618
        %v7624 = vpack.c.bf16 %v7619, %v7619
        %v7625 = vpack.c.bf16 %v7620, %v7620
        %v7626 = vpack.c.bf16 %v7621, %v7621
        %v7632 = vunpack.c.l.b16 %v7622
        %v7633 = vunpack.c.l.b16 %v7623
        %v7634 = vunpack.c.l.b16 %v7624
        %v7635 = vunpack.c.l.b16 %v7625
        %v7636 = vunpack.c.l.b16 %v7626
        %v7637 = vpack.c.b16 %v7633, %v7632
        %v7638 = vpack.c.b16 %v7635, %v7634
        %v7639 = vpack.c.b16 %v7636, %v7636
        %7640 = vrot.lane.b32.xlu0 %v7637, 65
        %v7641 = vpop.permute.xlu0 %7640
        %7642 = vrot.lane.b32.xlu0 %v7638, 65
        %v7643 = vpop.permute.xlu0 %7642
        %7644 = vrot.lane.b32.xlu0 %v7639, 65
        %v7645 = vpop.permute.xlu0 %7644
        %v7646 = vrot.slane %v7641, 4
        %v7647 = vrot.slane %v7643, 4
        %v7648 = vrot.slane %v7645, 4
        %v7649 = vsel %vm540, %v7646, %v7647
        %v7650 = vsel %vm800, %v7641, %v7649
        %v7651 = vsel %vm540, %v7647, %v7648
        %v7652 = vsel %vm800, %v7643, %v7651
        %7655 = vst [vmem:[#allocation4 + $0x150] sm:$0xff] %v7650
        %7656 = vst [vmem:[#allocation4 + $0x158] sm:$0xff] %v7652
        %v7657 = vld [vmem:[#allocation2 + $0x8] sm:$0xff]
        %v7658 = vld [vmem:[#allocation2 + $0x10] sm:$0xff]
        %v7659 = vld [vmem:[#allocation2 + $0x18] sm:$0xff]
        %v7660 = vld [vmem:[#allocation2 + $0x20] sm:$0xff]
        %v7661 = vld [vmem:[#allocation2 + $0x28] sm:$0xff]
        %v7662 = vld [vmem:[%s1929] ss:$8 sm:$0xf]
        %v7664 = vlaneseq
        %v7665 = vshrl.u32 %v7664, 7
        %v7666 = vsub.s32 0, %v7665
        %v7667 = vrot.slane %v7662, %v7666
        %v7668 = vlaneseq
        %v7669 = vshrl.u32 %v7668, 7
        %v7670 = vsub.s32 1, %v7669
        %v7671 = vrot.slane %v7662, %v7670
        %v7672 = vlaneseq
        %v7673 = vshrl.u32 %v7672, 7
        %v7674 = vsub.s32 2, %v7673
        %v7675 = vrot.slane %v7662, %v7674
        %v7676 = vlaneseq
        %v7677 = vshrl.u32 %v7676, 7
        %v7678 = vsub.s32 3, %v7677
        %v7679 = vrot.slane %v7662, %v7678
        %7680 = vrot.lane.b32.xlu0 %v7667, 64
        %v7681 = vpop.permute.xlu0 %7680
        %7682 = vrot.lane.b32.xlu0 %v7671, 64
        %v7683 = vpop.permute.xlu0 %7682
        %7684 = vrot.lane.b32.xlu0 %v7675, 64
        %v7685 = vpop.permute.xlu0 %7684
        %7686 = vrot.lane.b32.xlu0 %v7679, 64
        %v7687 = vpop.permute.xlu0 %7686
        %v7688 = vsel %vm839, %v7681, %v7683
        %v7689 = vsel %vm839, %v7683, %v7685
        %v7690 = vsel %vm839, %v7685, %v7687
        %v7696 = vmul.f32 %v7657, %v7681
        %v7697 = vmul.f32 %v7658, %v7688
        %v7698 = vmul.f32 %v7659, %v7689
        %v7699 = vmul.f32 %v7660, %v7690
        %v7700 = vmul.f32 %v7661, %v7687
        %v7701 = vpack.c.bf16 %v7696, %v7696
        %v7702 = vpack.c.bf16 %v7697, %v7697
        %v7703 = vpack.c.bf16 %v7698, %v7698
        %v7704 = vpack.c.bf16 %v7699, %v7699
        %v7705 = vpack.c.bf16 %v7700, %v7700
        %v7711 = vunpack.c.l.b16 %v7701
        %v7712 = vunpack.c.l.b16 %v7702
        %v7713 = vunpack.c.l.b16 %v7703
        %v7714 = vunpack.c.l.b16 %v7704
        %v7715 = vunpack.c.l.b16 %v7705
        %v7716 = vpack.c.b16 %v7712, %v7711
        %v7717 = vpack.c.b16 %v7714, %v7713
        %v7718 = vpack.c.b16 %v7715, %v7715
        %7719 = vrot.lane.b32.xlu0 %v7716, 64
        %v7720 = vpop.permute.xlu0 %7719
        %7721 = vrot.lane.b32.xlu0 %v7717, 64
        %v7722 = vpop.permute.xlu0 %7721
        %7723 = vrot.lane.b32.xlu0 %v7718, 64
        %v7724 = vpop.permute.xlu0 %7723
        %v7725 = vrot.slane %v7720, 4
        %v7726 = vrot.slane %v7722, 4
        %v7727 = vrot.slane %v7724, 4
        %v7728 = vsel %vm540, %v7725, %v7726
        %v7729 = vsel %vm881, %v7720, %v7728
        %v7730 = vsel %vm540, %v7726, %v7727
        %v7731 = vsel %vm881, %v7722, %v7730
        %7734 = vst [vmem:[#allocation4 + $0x160] sm:$0xff] %v7729
        %7735 = vst [vmem:[#allocation4 + $0x168] sm:$0xff] %v7731
        %v7736 = vld [vmem:[#allocation2 + $0x8] sm:$0xff]
        %v7737 = vld [vmem:[#allocation2 + $0x10] sm:$0xff]
        %v7738 = vld [vmem:[#allocation2 + $0x18] sm:$0xff]
        %v7739 = vld [vmem:[#allocation2 + $0x20] sm:$0xff]
        %v7740 = vld [vmem:[#allocation2 + $0x28] sm:$0xff]
        %v7741 = vld [vmem:[%s1929] ss:$8 sm:$0xf]
        %v7742 = vld [vmem:[%s644] ss:$8 sm:$0xf]
        %v7743 = vmul.f32 %v7741, %v7742
        %v7745 = vlaneseq
        %v7746 = vshrl.u32 %v7745, 7
        %v7747 = vsub.s32 0, %v7746
        %v7748 = vrot.slane %v7743, %v7747
        %v7749 = vlaneseq
        %v7750 = vshrl.u32 %v7749, 7
        %v7751 = vsub.s32 1, %v7750
        %v7752 = vrot.slane %v7743, %v7751
        %v7753 = vlaneseq
        %v7754 = vshrl.u32 %v7753, 7
        %v7755 = vsub.s32 2, %v7754
        %v7756 = vrot.slane %v7743, %v7755
        %v7757 = vlaneseq
        %v7758 = vshrl.u32 %v7757, 7
        %v7759 = vsub.s32 3, %v7758
        %v7760 = vrot.slane %v7743, %v7759
        %7761 = vrot.lane.b32.xlu0 %v7748, 65
        %v7762 = vpop.permute.xlu0 %7761
        %7763 = vrot.lane.b32.xlu0 %v7752, 65
        %v7764 = vpop.permute.xlu0 %7763
        %7765 = vrot.lane.b32.xlu0 %v7756, 65
        %v7766 = vpop.permute.xlu0 %7765
        %7767 = vrot.lane.b32.xlu0 %v7760, 65
        %v7768 = vpop.permute.xlu0 %7767
        %v7769 = vsel %vm922, %v7762, %v7764
        %v7770 = vsel %vm922, %v7764, %v7766
        %v7771 = vsel %vm922, %v7766, %v7768
        %v7777 = vmul.f32 %v7736, %v7762
        %v7778 = vmul.f32 %v7737, %v7769
        %v7779 = vmul.f32 %v7738, %v7770
        %v7780 = vmul.f32 %v7739, %v7771
        %v7781 = vmul.f32 %v7740, %v7768
        %v7782 = vpack.c.bf16 %v7777, %v7777
        %v7783 = vpack.c.bf16 %v7778, %v7778
        %v7784 = vpack.c.bf16 %v7779, %v7779
        %v7785 = vpack.c.bf16 %v7780, %v7780
        %v7786 = vpack.c.bf16 %v7781, %v7781
        %v7792 = vunpack.c.l.b16 %v7782
        %v7793 = vunpack.c.l.b16 %v7783
        %v7794 = vunpack.c.l.b16 %v7784
        %v7795 = vunpack.c.l.b16 %v7785
        %v7796 = vunpack.c.l.b16 %v7786
        %v7797 = vpack.c.b16 %v7793, %v7792
        %v7798 = vpack.c.b16 %v7795, %v7794
        %v7799 = vpack.c.b16 %v7796, %v7796
        %7800 = vrot.lane.b32.xlu0 %v7797, 63
        %v7801 = vpop.permute.xlu0 %7800
        %7802 = vrot.lane.b32.xlu0 %v7798, 63
        %v7803 = vpop.permute.xlu0 %7802
        %7804 = vrot.lane.b32.xlu0 %v7799, 63
        %v7805 = vpop.permute.xlu0 %7804
        %v7806 = vrot.slane %v7801, 4
        %v7807 = vrot.slane %v7803, 4
        %v7808 = vrot.slane %v7805, 4
        %v7809 = vsel %vm540, %v7806, %v7807
        %v7810 = vsel %vm967, %v7801, %v7809
        %v7811 = vsel %vm540, %v7807, %v7808
        %v7812 = vsel %vm967, %v7803, %v7811
        %7815 = vst [vmem:[#allocation4 + $0x170] sm:$0xff] %v7810
        %7816 = vst [vmem:[#allocation4 + $0x178] sm:$0xff] %v7812
        %v7817 = vld [vmem:[#allocation2 + $0x8] sm:$0xff]
        %v7818 = vld [vmem:[#allocation2 + $0x10] sm:$0xff]
        %v7819 = vld [vmem:[#allocation2 + $0x18] sm:$0xff]
        %v7820 = vld [vmem:[#allocation2 + $0x20] sm:$0xff]
        %v7821 = vld [vmem:[#allocation2 + $0x28] sm:$0xff]
        %v7822 = vld [vmem:[%s1929] ss:$8 sm:$0xf]
        %v7823 = vld [vmem:[%s981] ss:$8 sm:$0xf]
        %v7824 = vmul.f32 %v7822, %v7823
        %v7825 = vld [vmem:[%s471] ss:$8 sm:$0xf]
        %v7826 = vmul.f32 %v7824, %v7825
        %v7828 = vlaneseq
        %v7829 = vshrl.u32 %v7828, 7
        %v7830 = vsub.s32 0, %v7829
        %v7831 = vrot.slane %v7826, %v7830
        %v7832 = vlaneseq
        %v7833 = vshrl.u32 %v7832, 7
        %v7834 = vsub.s32 1, %v7833
        %v7835 = vrot.slane %v7826, %v7834
        %v7836 = vlaneseq
        %v7837 = vshrl.u32 %v7836, 7
        %v7838 = vsub.s32 2, %v7837
        %v7839 = vrot.slane %v7826, %v7838
        %v7840 = vlaneseq
        %v7841 = vshrl.u32 %v7840, 7
        %v7842 = vsub.s32 3, %v7841
        %v7843 = vrot.slane %v7826, %v7842
        %7844 = vrot.lane.b32.xlu0 %v7831, 71
        %v7845 = vpop.permute.xlu0 %7844
        %7846 = vrot.lane.b32.xlu0 %v7835, 71
        %v7847 = vpop.permute.xlu0 %7846
        %7848 = vrot.lane.b32.xlu0 %v7839, 71
        %v7849 = vpop.permute.xlu0 %7848
        %7850 = vrot.lane.b32.xlu0 %v7843, 71
        %v7851 = vpop.permute.xlu0 %7850
        %v7852 = vsel %vm1011, %v7845, %v7847
        %v7853 = vsel %vm1011, %v7847, %v7849
        %v7854 = vsel %vm1011, %v7849, %v7851
        %v7860 = vmul.f32 %v7817, %v7845
        %v7861 = vmul.f32 %v7818, %v7852
        %v7862 = vmul.f32 %v7819, %v7853
        %v7863 = vmul.f32 %v7820, %v7854
        %v7864 = vmul.f32 %v7821, %v7851
        %v7865 = vpack.c.bf16 %v7860, %v7860
        %v7866 = vpack.c.bf16 %v7861, %v7861
        %v7867 = vpack.c.bf16 %v7862, %v7862
        %v7868 = vpack.c.bf16 %v7863, %v7863
        %v7869 = vpack.c.bf16 %v7864, %v7864
        %v7875 = vunpack.c.l.b16 %v7865
        %v7876 = vunpack.c.l.b16 %v7866
        %v7877 = vunpack.c.l.b16 %v7867
        %v7878 = vunpack.c.l.b16 %v7868
        %v7879 = vunpack.c.l.b16 %v7869
        %v7880 = vpack.c.b16 %v7876, %v7875
        %v7881 = vpack.c.b16 %v7878, %v7877
        %v7882 = vpack.c.b16 %v7879, %v7879
        %7883 = vrot.lane.b32.xlu0 %v7880, 57
        %v7884 = vpop.permute.xlu0 %7883
        %7885 = vrot.lane.b32.xlu0 %v7881, 57
        %v7886 = vpop.permute.xlu0 %7885
        %7887 = vrot.lane.b32.xlu0 %v7882, 57
        %v7888 = vpop.permute.xlu0 %7887
        %v7889 = vrot.slane %v7884, 4
        %v7890 = vrot.slane %v7886, 4
        %v7891 = vrot.slane %v7888, 4
        %v7892 = vsel %vm540, %v7889, %v7890
        %v7893 = vsel %vm1053, %v7884, %v7892
        %v7894 = vsel %vm540, %v7890, %v7891
        %v7895 = vsel %vm1053, %v7886, %v7894
        %7898 = vst [vmem:[#allocation4 + $0x180] sm:$0xff] %v7893
        %7899 = vst [vmem:[#allocation4 + $0x188] sm:$0xff] %v7895
        %v7900 = vld [vmem:[#allocation2 + $0x8] sm:$0xff]
        %v7901 = vld [vmem:[#allocation2 + $0x10] sm:$0xff]
        %v7902 = vld [vmem:[#allocation2 + $0x18] sm:$0xff]
        %v7903 = vld [vmem:[#allocation2 + $0x20] sm:$0xff]
        %v7904 = vld [vmem:[#allocation2 + $0x28] sm:$0xff]
        %v7905 = vld [vmem:[%s1929] ss:$8 sm:$0xf]
        %v7906 = vld [vmem:[%s981] ss:$8 sm:$0xf]
        %v7907 = vmul.f32 %v7905, %v7906
        %v7909 = vlaneseq
        %v7910 = vshrl.u32 %v7909, 7
        %v7911 = vsub.s32 0, %v7910
        %v7912 = vrot.slane %v7907, %v7911
        %v7913 = vlaneseq
        %v7914 = vshrl.u32 %v7913, 7
        %v7915 = vsub.s32 1, %v7914
        %v7916 = vrot.slane %v7907, %v7915
        %v7917 = vlaneseq
        %v7918 = vshrl.u32 %v7917, 7
        %v7919 = vsub.s32 2, %v7918
        %v7920 = vrot.slane %v7907, %v7919
        %v7921 = vlaneseq
        %v7922 = vshrl.u32 %v7921, 7
        %v7923 = vsub.s32 3, %v7922
        %v7924 = vrot.slane %v7907, %v7923
        %7925 = vrot.lane.b32.xlu0 %v7912, 72
        %v7926 = vpop.permute.xlu0 %7925
        %7927 = vrot.lane.b32.xlu0 %v7916, 72
        %v7928 = vpop.permute.xlu0 %7927
        %7929 = vrot.lane.b32.xlu0 %v7920, 72
        %v7930 = vpop.permute.xlu0 %7929
        %7931 = vrot.lane.b32.xlu0 %v7924, 72
        %v7932 = vpop.permute.xlu0 %7931
        %v7933 = vsel %vm1094, %v7926, %v7928
        %v7934 = vsel %vm1094, %v7928, %v7930
        %v7935 = vsel %vm1094, %v7930, %v7932
        %v7941 = vmul.f32 %v7900, %v7926
        %v7942 = vmul.f32 %v7901, %v7933
        %v7943 = vmul.f32 %v7902, %v7934
        %v7944 = vmul.f32 %v7903, %v7935
        %v7945 = vmul.f32 %v7904, %v7932
        %v7946 = vpack.c.bf16 %v7941, %v7941
        %v7947 = vpack.c.bf16 %v7942, %v7942
        %v7948 = vpack.c.bf16 %v7943, %v7943
        %v7949 = vpack.c.bf16 %v7944, %v7944
        %v7950 = vpack.c.bf16 %v7945, %v7945
        %v7956 = vunpack.c.l.b16 %v7946
        %v7957 = vunpack.c.l.b16 %v7947
        %v7958 = vunpack.c.l.b16 %v7948
        %v7959 = vunpack.c.l.b16 %v7949
        %v7960 = vunpack.c.l.b16 %v7950
        %v7961 = vpack.c.b16 %v7957, %v7956
        %v7962 = vpack.c.b16 %v7959, %v7958
        %v7963 = vpack.c.b16 %v7960, %v7960
        %7964 = vrot.lane.b32.xlu0 %v7961, 56
        %v7965 = vpop.permute.xlu0 %7964
        %7966 = vrot.lane.b32.xlu0 %v7962, 56
        %v7967 = vpop.permute.xlu0 %7966
        %7968 = vrot.lane.b32.xlu0 %v7963, 56
        %v7969 = vpop.permute.xlu0 %7968
        %v7970 = vrot.slane %v7965, 4
        %v7971 = vrot.slane %v7967, 4
        %v7972 = vrot.slane %v7969, 4
        %v7973 = vsel %vm540, %v7970, %v7971
        %v7974 = vsel %vm1139, %v7965, %v7973
        %v7975 = vsel %vm540, %v7971, %v7972
        %v7976 = vsel %vm1139, %v7967, %v7975
        %7979 = vst [vmem:[#allocation4 + $0x190] sm:$0xff] %v7974
        %7980 = vst [vmem:[#allocation4 + $0x198] sm:$0xff] %v7976
        %v7981 = vld [vmem:[#allocation2 + $0x8] sm:$0xff]
        %v7982 = vld [vmem:[#allocation2 + $0x10] sm:$0xff]
        %v7983 = vld [vmem:[#allocation2 + $0x18] sm:$0xff]
        %v7984 = vld [vmem:[#allocation2 + $0x20] sm:$0xff]
        %v7985 = vld [vmem:[#allocation2 + $0x28] sm:$0xff]
        %v7986 = vld [vmem:[%s1929] ss:$8 sm:$0xf]
        %v7987 = vld [vmem:[%s981] ss:$8 sm:$0xf]
        %v7988 = vmul.f32 %v7986, %v7987
        %v7989 = vld [vmem:[%s644] ss:$8 sm:$0xf]
        %v7990 = vmul.f32 %v7988, %v7989
        %v7992 = vlaneseq
        %v7993 = vshrl.u32 %v7992, 7
        %v7994 = vsub.s32 0, %v7993
        %v7995 = vrot.slane %v7990, %v7994
        %v7996 = vlaneseq
        %v7997 = vshrl.u32 %v7996, 7
        %v7998 = vsub.s32 1, %v7997
        %v7999 = vrot.slane %v7990, %v7998
        %v8000 = vlaneseq
        %v8001 = vshrl.u32 %v8000, 7
        %v8002 = vsub.s32 2, %v8001
        %v8003 = vrot.slane %v7990, %v8002
        %v8004 = vlaneseq
        %v8005 = vshrl.u32 %v8004, 7
        %v8006 = vsub.s32 3, %v8005
        %v8007 = vrot.slane %v7990, %v8006
        %8008 = vrot.lane.b32.xlu0 %v7995, 73
        %v8009 = vpop.permute.xlu0 %8008
        %8010 = vrot.lane.b32.xlu0 %v7999, 73
        %v8011 = vpop.permute.xlu0 %8010
        %8012 = vrot.lane.b32.xlu0 %v8003, 73
        %v8013 = vpop.permute.xlu0 %8012
        %8014 = vrot.lane.b32.xlu0 %v8007, 73
        %v8015 = vpop.permute.xlu0 %8014
        %v8016 = vsel %vm1182, %v8009, %v8011
        %v8017 = vsel %vm1182, %v8011, %v8013
        %v8018 = vsel %vm1182, %v8013, %v8015
        %v8024 = vmul.f32 %v7981, %v8009
        %v8025 = vmul.f32 %v7982, %v8016
        %v8026 = vmul.f32 %v7983, %v8017
        %v8027 = vmul.f32 %v7984, %v8018
        %v8028 = vmul.f32 %v7985, %v8015
        %v8029 = vpack.c.bf16 %v8024, %v8024
        %v8030 = vpack.c.bf16 %v8025, %v8025
        %v8031 = vpack.c.bf16 %v8026, %v8026
        %v8032 = vpack.c.bf16 %v8027, %v8027
        %v8033 = vpack.c.bf16 %v8028, %v8028
        %v8039 = vunpack.c.l.b16 %v8029
        %v8040 = vunpack.c.l.b16 %v8030
        %v8041 = vunpack.c.l.b16 %v8031
        %v8042 = vunpack.c.l.b16 %v8032
        %v8043 = vunpack.c.l.b16 %v8033
        %v8044 = vpack.c.b16 %v8040, %v8039
        %v8045 = vpack.c.b16 %v8042, %v8041
        %v8046 = vpack.c.b16 %v8043, %v8043
        %8047 = vrot.lane.b32.xlu0 %v8044, 55
        %v8048 = vpop.permute.xlu0 %8047
        %8049 = vrot.lane.b32.xlu0 %v8045, 55
        %v8050 = vpop.permute.xlu0 %8049
        %8051 = vrot.lane.b32.xlu0 %v8046, 55
        %v8052 = vpop.permute.xlu0 %8051
        %v8053 = vrot.slane %v8048, 4
        %v8054 = vrot.slane %v8050, 4
        %v8055 = vrot.slane %v8052, 4
        %v8056 = vsel %vm540, %v8053, %v8054
        %v8057 = vsel %vm1224, %v8048, %v8056
        %v8058 = vsel %vm540, %v8054, %v8055
        %v8059 = vsel %vm1224, %v8050, %v8058
        %8062 = vst [vmem:[#allocation4 + $0x1a0] sm:$0xff] %v8057
        %8063 = vst [vmem:[#allocation4 + $0x1a8] sm:$0xff] %v8059
        %v8064 = vld [vmem:[#allocation11] sm:$0xff]
        %v8065 = vld [vmem:[#allocation4] sm:$0xff]
        %v8066 = vld [vmem:[#allocation4 + $0x8] sm:$0xff]
        %v8067 = vld [vmem:[#allocation4 + $0x10] sm:$0xff]
        %v8068 = vld [vmem:[#allocation4 + $0x18] sm:$0xff]
        %v8069 = vld [vmem:[#allocation4 + $0x20] sm:$0xff]
        %v8070 = vld [vmem:[#allocation4 + $0x28] sm:$0xff]
        %v8071 = vld [vmem:[#allocation4 + $0x30] sm:$0xff]
        %v8072 = vld [vmem:[#allocation4 + $0x38] sm:$0xff]
        %v8073 = vld [vmem:[#allocation4 + $0x40] sm:$0xff]
        %v8074 = vld [vmem:[#allocation4 + $0x48] sm:$0xff]
        %v8075 = vld [vmem:[#allocation4 + $0x50] sm:$0xff]
        %v8076 = vld [vmem:[#allocation4 + $0x58] sm:$0xff]
        %v8077 = vld [vmem:[#allocation4 + $0x60] sm:$0xff]
        %v8078 = vld [vmem:[#allocation4 + $0x68] sm:$0xff]
        %v8079 = vld [vmem:[#allocation4 + $0x70] sm:$0xff]
        %v8080 = vld [vmem:[#allocation4 + $0x78] sm:$0xff]
        %v8081 = vld [vmem:[#allocation4 + $0x80] sm:$0xff]
        %v8082 = vld [vmem:[#allocation4 + $0x88] sm:$0xff]
        %v8083 = vld [vmem:[#allocation4 + $0x90] sm:$0xff]
        %v8084 = vld [vmem:[#allocation4 + $0x98] sm:$0xff]
        %v8085 = vld [vmem:[#allocation4 + $0xa0] sm:$0xff]
        %v8086 = vld [vmem:[#allocation4 + $0xa8] sm:$0xff]
        %v8087 = vld [vmem:[#allocation4 + $0xb0] sm:$0xff]
        %v8088 = vld [vmem:[#allocation4 + $0xb8] sm:$0xff]
        %v8089 = vld [vmem:[#allocation4 + $0xc0] sm:$0xff]
        %v8090 = vld [vmem:[#allocation4 + $0xc8] sm:$0xff]
        %v8091 = vld [vmem:[#allocation4 + $0xd0] sm:$0xff]
        %v8092 = vld [vmem:[#allocation4 + $0xd8] sm:$0xff]
        %v8093 = vld [vmem:[#allocation4 + $0xe0] sm:$0xff]
        %v8094 = vld [vmem:[#allocation4 + $0xe8] sm:$0xff]
        %v8095 = vld [vmem:[#allocation4 + $0xf0] sm:$0xff]
        %v8096 = vld [vmem:[#allocation4 + $0xf8] sm:$0xff]
        %v8097 = vld [vmem:[#allocation4 + $0x100] sm:$0xff]
        %v8098 = vld [vmem:[#allocation4 + $0x108] sm:$0xff]
        %v8099 = vld [vmem:[#allocation4 + $0x110] sm:$0xff]
        %v8100 = vld [vmem:[#allocation4 + $0x118] sm:$0xff]
        %v8101 = vld [vmem:[#allocation4 + $0x120] sm:$0xff]
        %v8102 = vld [vmem:[#allocation4 + $0x128] sm:$0xff]
        %v8103 = vld [vmem:[#allocation4 + $0x130] sm:$0xff]
        %v8104 = vld [vmem:[#allocation4 + $0x138] sm:$0xff]
        %v8105 = vld [vmem:[#allocation4 + $0x140] sm:$0xff]
        %v8106 = vld [vmem:[#allocation4 + $0x148] sm:$0xff]
        %v8107 = vld [vmem:[#allocation4 + $0x150] sm:$0xff]
        %v8108 = vld [vmem:[#allocation4 + $0x158] sm:$0xff]
        %v8109 = vld [vmem:[#allocation4 + $0x160] sm:$0xff]
        %v8110 = vld [vmem:[#allocation4 + $0x168] sm:$0xff]
        %v8111 = vld [vmem:[#allocation4 + $0x170] sm:$0xff]
        %v8112 = vld [vmem:[#allocation4 + $0x178] sm:$0xff]
        %v8113 = vld [vmem:[#allocation4 + $0x180] sm:$0xff]
        %v8114 = vld [vmem:[#allocation4 + $0x188] sm:$0xff]
        %v8115 = vld [vmem:[#allocation4 + $0x190] sm:$0xff]
        %v8116 = vld [vmem:[#allocation4 + $0x198] sm:$0xff]
        %v8117 = vld [vmem:[#allocation4 + $0x1a0] sm:$0xff]
        %v8118 = vld [vmem:[#allocation4 + $0x1a8] sm:$0xff]
        %v8120 = vunpack.c.l.b16 %v8064
        %v8121 = vunpack.c.h.b16 %v8064
        %v8122 = vpack.c.b16 %v8120, %v8120
        %v8123 = vpack.c.b16 %v8121, %v8121
        %v8179 = vunpack.c.l.b16 %v8065
        %v8180 = vunpack.c.h.b16 %v8065
        %v8181 = vunpack.c.l.b16 %v8066
        %v8182 = vunpack.c.h.b16 %v8066
        %v8183 = vunpack.c.l.b16 %v8067
        %v8184 = vunpack.c.h.b16 %v8067
        %v8185 = vunpack.c.l.b16 %v8068
        %v8186 = vunpack.c.h.b16 %v8068
        %v8187 = vunpack.c.l.b16 %v8069
        %v8188 = vunpack.c.h.b16 %v8069
        %v8189 = vunpack.c.l.b16 %v8070
        %v8190 = vunpack.c.h.b16 %v8070
        %v8191 = vunpack.c.l.b16 %v8071
        %v8192 = vunpack.c.h.b16 %v8071
        %v8193 = vunpack.c.l.b16 %v8072
        %v8194 = vunpack.c.h.b16 %v8072
        %v8195 = vunpack.c.l.b16 %v8073
        %v8196 = vunpack.c.h.b16 %v8073
        %v8197 = vunpack.c.l.b16 %v8074
        %v8198 = vunpack.c.h.b16 %v8074
        %v8199 = vunpack.c.l.b16 %v8075
        %v8200 = vunpack.c.h.b16 %v8075
        %v8201 = vunpack.c.l.b16 %v8076
        %v8202 = vunpack.c.h.b16 %v8076
        %v8203 = vunpack.c.l.b16 %v8077
        %v8204 = vunpack.c.h.b16 %v8077
        %v8205 = vunpack.c.l.b16 %v8078
        %v8206 = vunpack.c.h.b16 %v8078
        %v8207 = vunpack.c.l.b16 %v8079
        %v8208 = vunpack.c.h.b16 %v8079
        %v8209 = vunpack.c.l.b16 %v8080
        %v8210 = vunpack.c.h.b16 %v8080
        %v8211 = vunpack.c.l.b16 %v8081
        %v8212 = vunpack.c.h.b16 %v8081
        %v8213 = vunpack.c.l.b16 %v8082
        %v8214 = vunpack.c.h.b16 %v8082
        %v8215 = vunpack.c.l.b16 %v8083
        %v8216 = vunpack.c.h.b16 %v8083
        %v8217 = vunpack.c.l.b16 %v8084
        %v8218 = vunpack.c.h.b16 %v8084
        %v8219 = vunpack.c.l.b16 %v8085
        %v8220 = vunpack.c.h.b16 %v8085
        %v8221 = vunpack.c.l.b16 %v8086
        %v8222 = vunpack.c.h.b16 %v8086
        %v8223 = vunpack.c.l.b16 %v8087
        %v8224 = vunpack.c.h.b16 %v8087
        %v8225 = vunpack.c.l.b16 %v8088
        %v8226 = vunpack.c.h.b16 %v8088
        %v8227 = vunpack.c.l.b16 %v8089
        %v8228 = vunpack.c.h.b16 %v8089
        %v8229 = vunpack.c.l.b16 %v8090
        %v8230 = vunpack.c.h.b16 %v8090
        %v8231 = vunpack.c.l.b16 %v8091
        %v8232 = vunpack.c.h.b16 %v8091
        %v8233 = vunpack.c.l.b16 %v8092
        %v8234 = vunpack.c.h.b16 %v8092
        %v8235 = vunpack.c.l.b16 %v8093
        %v8236 = vunpack.c.h.b16 %v8093
        %v8237 = vunpack.c.l.b16 %v8094
        %v8238 = vunpack.c.h.b16 %v8094
        %v8239 = vunpack.c.l.b16 %v8095
        %v8240 = vunpack.c.h.b16 %v8095
        %v8241 = vunpack.c.l.b16 %v8096
        %v8242 = vunpack.c.h.b16 %v8096
        %v8243 = vunpack.c.l.b16 %v8097
        %v8244 = vunpack.c.h.b16 %v8097
        %v8245 = vunpack.c.l.b16 %v8098
        %v8246 = vunpack.c.h.b16 %v8098
        %v8247 = vunpack.c.l.b16 %v8099
        %v8248 = vunpack.c.h.b16 %v8099
        %v8249 = vunpack.c.l.b16 %v8100
        %v8250 = vunpack.c.h.b16 %v8100
        %v8251 = vunpack.c.l.b16 %v8101
        %v8252 = vunpack.c.h.b16 %v8101
        %v8253 = vunpack.c.l.b16 %v8102
        %v8254 = vunpack.c.h.b16 %v8102
        %v8255 = vunpack.c.l.b16 %v8103
        %v8256 = vunpack.c.h.b16 %v8103
        %v8257 = vunpack.c.l.b16 %v8104
        %v8258 = vunpack.c.h.b16 %v8104
        %v8259 = vunpack.c.l.b16 %v8105
        %v8260 = vunpack.c.h.b16 %v8105
        %v8261 = vunpack.c.l.b16 %v8106
        %v8262 = vunpack.c.h.b16 %v8106
        %v8263 = vunpack.c.l.b16 %v8107
        %v8264 = vunpack.c.h.b16 %v8107
        %v8265 = vunpack.c.l.b16 %v8108
        %v8266 = vunpack.c.h.b16 %v8108
        %v8267 = vunpack.c.l.b16 %v8109
        %v8268 = vunpack.c.h.b16 %v8109
        %v8269 = vunpack.c.l.b16 %v8110
        %v8270 = vunpack.c.h.b16 %v8110
        %v8271 = vunpack.c.l.b16 %v8111
        %v8272 = vunpack.c.h.b16 %v8111
        %v8273 = vunpack.c.l.b16 %v8112
        %v8274 = vunpack.c.h.b16 %v8112
        %v8275 = vunpack.c.l.b16 %v8113
        %v8276 = vunpack.c.h.b16 %v8113
        %v8277 = vunpack.c.l.b16 %v8114
        %v8278 = vunpack.c.h.b16 %v8114
        %v8279 = vunpack.c.l.b16 %v8115
        %v8280 = vunpack.c.h.b16 %v8115
        %v8281 = vunpack.c.l.b16 %v8116
        %v8282 = vunpack.c.h.b16 %v8116
        %v8283 = vunpack.c.l.b16 %v8117
        %v8284 = vunpack.c.h.b16 %v8117
        %v8285 = vunpack.c.l.b16 %v8118
        %v8286 = vunpack.c.h.b16 %v8118
        %v8287 = vpack.c.b16 %v8183, %v8179
        %v8288 = vpack.c.b16 %v8184, %v8180
        %v8289 = vpack.c.b16 %v8185, %v8181
        %v8290 = vpack.c.b16 %v8186, %v8182
        %v8291 = vpack.c.b16 %v8191, %v8187
        %v8292 = vpack.c.b16 %v8192, %v8188
        %v8293 = vpack.c.b16 %v8193, %v8189
        %v8294 = vpack.c.b16 %v8194, %v8190
        %v8295 = vpack.c.b16 %v8199, %v8195
        %v8296 = vpack.c.b16 %v8200, %v8196
        %v8297 = vpack.c.b16 %v8201, %v8197
        %v8298 = vpack.c.b16 %v8202, %v8198
        %v8299 = vpack.c.b16 %v8207, %v8203
        %v8300 = vpack.c.b16 %v8208, %v8204
        %v8301 = vpack.c.b16 %v8209, %v8205
        %v8302 = vpack.c.b16 %v8210, %v8206
        %v8303 = vpack.c.b16 %v8215, %v8211
        %v8304 = vpack.c.b16 %v8216, %v8212
        %v8305 = vpack.c.b16 %v8217, %v8213
        %v8306 = vpack.c.b16 %v8218, %v8214
        %v8307 = vpack.c.b16 %v8223, %v8219
        %v8308 = vpack.c.b16 %v8224, %v8220
        %v8309 = vpack.c.b16 %v8225, %v8221
        %v8310 = vpack.c.b16 %v8226, %v8222
        %v8311 = vpack.c.b16 %v8231, %v8227
        %v8312 = vpack.c.b16 %v8232, %v8228
        %v8313 = vpack.c.b16 %v8233, %v8229
        %v8314 = vpack.c.b16 %v8234, %v8230
        %v8315 = vpack.c.b16 %v8239, %v8235
        %v8316 = vpack.c.b16 %v8240, %v8236
        %v8317 = vpack.c.b16 %v8241, %v8237
        %v8318 = vpack.c.b16 %v8242, %v8238
        %v8319 = vpack.c.b16 %v8247, %v8243
        %v8320 = vpack.c.b16 %v8248, %v8244
        %v8321 = vpack.c.b16 %v8249, %v8245
        %v8322 = vpack.c.b16 %v8250, %v8246
        %v8323 = vpack.c.b16 %v8255, %v8251
        %v8324 = vpack.c.b16 %v8256, %v8252
        %v8325 = vpack.c.b16 %v8257, %v8253
        %v8326 = vpack.c.b16 %v8258, %v8254
        %v8327 = vpack.c.b16 %v8263, %v8259
        %v8328 = vpack.c.b16 %v8264, %v8260
        %v8329 = vpack.c.b16 %v8265, %v8261
        %v8330 = vpack.c.b16 %v8266, %v8262
        %v8331 = vpack.c.b16 %v8271, %v8267
        %v8332 = vpack.c.b16 %v8272, %v8268
        %v8333 = vpack.c.b16 %v8273, %v8269
        %v8334 = vpack.c.b16 %v8274, %v8270
        %v8335 = vpack.c.b16 %v8279, %v8275
        %v8336 = vpack.c.b16 %v8280, %v8276
        %v8337 = vpack.c.b16 %v8281, %v8277
        %v8338 = vpack.c.b16 %v8282, %v8278
        %v8339 = vpack.c.b16 %v8283, %v8283
        %v8340 = vpack.c.b16 %v8284, %v8284
        %v8341 = vpack.c.b16 %v8285, %v8285
        %v8342 = vpack.c.b16 %v8286, %v8286
        %v8396 = vsel %vm5614, %v8123, 0
        %v8399 = vsel %vm5618, %v8339, 0
        %v8402 = vsel %vm5618, %v8340, 0
        %v8405 = vsel %vm5618, %v8341, 0
        %v8408 = vsel %vm5618, %v8342, 0
        %8410 = vmatprep.subr.bf16.mxu0 %v8288
        %8411 = vmatpush1.bf16.msra.mxu0 %v8287
        %8412 = vmatprep.subr.bf16.mxu0 %v8292
        %8413 = vmatpush1.bf16.msra.mxu0 %v8291
        %8414 = vmatprep.subr.bf16.mxu0 %v8296
        %8415 = vmatpush1.bf16.msra.mxu0 %v8295
        %8416 = vmatprep.subr.bf16.mxu0 %v8300
        %8417 = vmatpush1.bf16.msra.mxu0 %v8299
        %8418 = vmatprep.subr.bf16.mxu0 %v8304
        %8419 = vmatpush1.bf16.msra.mxu0 %v8303
        %8420 = vmatprep.subr.bf16.mxu0 %v8308
        %8421 = vmatpush1.bf16.msra.mxu0 %v8307
        %8422 = vmatprep.subr.bf16.mxu0 %v8312
        %8423 = vmatpush1.bf16.msra.mxu0 %v8311
        %8424 = vmatprep.subr.bf16.mxu0 %v8316
        %8425 = vmatpush1.bf16.msra.mxu0 %v8315
        %8426 = vmatprep.subr.bf16.mxu0 %v8320
        %8427 = vmatpush1.bf16.msra.mxu0 %v8319
        %8428 = vmatprep.subr.bf16.mxu0 %v8324
        %8429 = vmatpush1.bf16.msra.mxu0 %v8323
        %8430 = vmatprep.subr.bf16.mxu0 %v8328
        %8431 = vmatpush1.bf16.msra.mxu0 %v8327
        %8432 = vmatprep.subr.bf16.mxu0 %v8332
        %8433 = vmatpush1.bf16.msra.mxu0 %v8331
        %8434 = vmatprep.subr.bf16.mxu0 %v8336
        %8435 = vmatpush1.bf16.msra.mxu0 %v8335
        %8436 = vmatprep.subr.bf16.mxu0 %v8402
        %8437 = vmatpush1.bf16.msra.mxu0 %v8399
        %8438 = vmatprep.subr.bf16.mxu0 0
        %8439 = vmatpush1.bf16.msra.mxu0 0
        %8440 = vmatprep.subr.bf16.mxu0 0
        %8441 = vmatpush1.bf16.msra.mxu0 0
        %8442 = vmatprep.mubr.bf16.mxu0 %v8396
        %8443 = vmatmul.mubr.bf16.gmra.mrb[0].mxu0 %v8122
        %v8444 = vpop.f32.mrb[0].mxu0
        %v8445 = vadd.f32 0.0, %v8444
        %v8446 = vpop.f32.mrb[0].mxu0
        %v8447 = vadd.f32 0.0, %v8446
        %v8448 = vpop.f32.mrb[0].mxu0
        %v8449 = vpop.f32.mrb[0].mxu0
        %8450 = vdwg.mxu0
        %8451 = vmatprep.subr.bf16.mxu0 %v8290
        %8452 = vmatpush1.bf16.msra.mxu0 %v8289
        %8453 = vmatprep.subr.bf16.mxu0 %v8294
        %8454 = vmatpush1.bf16.msra.mxu0 %v8293
        %8455 = vmatprep.subr.bf16.mxu0 %v8298
        %8456 = vmatpush1.bf16.msra.mxu0 %v8297
        %8457 = vmatprep.subr.bf16.mxu0 %v8302
        %8458 = vmatpush1.bf16.msra.mxu0 %v8301
        %8459 = vmatprep.subr.bf16.mxu0 %v8306
        %8460 = vmatpush1.bf16.msra.mxu0 %v8305
        %8461 = vmatprep.subr.bf16.mxu0 %v8310
        %8462 = vmatpush1.bf16.msra.mxu0 %v8309
        %8463 = vmatprep.subr.bf16.mxu0 %v8314
        %8464 = vmatpush1.bf16.msra.mxu0 %v8313
        %8465 = vmatprep.subr.bf16.mxu0 %v8318
        %8466 = vmatpush1.bf16.msra.mxu0 %v8317
        %8467 = vmatprep.subr.bf16.mxu0 %v8322
        %8468 = vmatpush1.bf16.msra.mxu0 %v8321
        %8469 = vmatprep.subr.bf16.mxu0 %v8326
        %8470 = vmatpush1.bf16.msra.mxu0 %v8325
        %8471 = vmatprep.subr.bf16.mxu0 %v8330
        %8472 = vmatpush1.bf16.msra.mxu0 %v8329
        %8473 = vmatprep.subr.bf16.mxu0 %v8334
        %8474 = vmatpush1.bf16.msra.mxu0 %v8333
        %8475 = vmatprep.subr.bf16.mxu0 %v8338
        %8476 = vmatpush1.bf16.msra.mxu0 %v8337
        %8477 = vmatprep.subr.bf16.mxu0 %v8408
        %8478 = vmatpush1.bf16.msra.mxu0 %v8405
        %8479 = vmatprep.subr.bf16.mxu0 0
        %8480 = vmatpush1.bf16.msra.mxu0 0
        %8481 = vmatprep.subr.bf16.mxu0 0
        %8482 = vmatpush1.bf16.msra.mxu0 0
        %8483 = vmatprep.mubr.bf16.mxu0 %v8396
        %8484 = vmatmul.mubr.bf16.gmra.mrb[0].mxu0 %v8122
        %v8485 = vpop.f32.mrb[0].mxu0
        %v8486 = vadd.f32 0.0, %v8485
        %v8487 = vpop.f32.mrb[0].mxu0
        %v8488 = vadd.f32 0.0, %v8487
        %v8489 = vpop.f32.mrb[0].mxu0
        %v8490 = vpop.f32.mrb[0].mxu0
        %8491 = vdwg.mxu0
        %v8492 = vld [vmem:[#allocation13] sm:$0xff]
        %v8493 = vadd.f32 %v8445, %v8447
        %v8494 = vadd.f32 %v8493, %v8486
        %v8495 = vadd.f32 %v8494, %v8488
        %8496 = vadd.xlane.f32.xlu0 %v8495
        %v8497 = vpop.xlane.xlu0 %8496
        %v8498 = vld [vmem:[%s5] sm:$0xff]
        %v8499 = vmul.f32 %v8497, %v8498
        %v8500 = vsel %vm1621, %v8499, 0.0
        %8501 = vadd.xlane.f32.xlu0 %v8500
        %v8502 = vpop.xlane.xlu0 %8501
        %v8503 = vrot.slane %v8502, 4
        %v8504 = vadd.f32 %v8502, %v8503
        %v8505 = vrot.slane %v8504, 2
        %v8506 = vadd.f32 %v8504, %v8505
        %v8507 = vrot.slane %v8506, 1
        %v8508 = vadd.f32 %v8506, %v8507
        %s8509 = vtos %v8508
        %s8510 = smul.f32 %s8509, 0.0009765625
        %v8511 = vstv %s8510
        %v8512 = vmul.f32 %v8498, %v8511
        %v8513 = vadd.f32 %v8512, 0.0
        %8515 = vrot.lane.b32.xlu0 %v8499, 127
        %v8516 = vpop.permute.xlu0 %8515
        %v8518 = vsel %vm1621, %v8516, 0.0
        %8519 = vadd.xlane.f32.xlu0 %v8518
        %v8520 = vpop.xlane.xlu0 %8519
        %v8521 = vrot.slane %v8520, 4
        %v8522 = vadd.f32 %v8520, %v8521
        %v8523 = vrot.slane %v8522, 2
        %v8524 = vadd.f32 %v8522, %v8523
        %v8525 = vrot.slane %v8524, 1
        %v8526 = vadd.f32 %v8524, %v8525
        %s8527 = vtos %v8526
        %s8528 = smul.f32 %s8527, 0.0009765625
        %v8529 = vstv %s8528
        %v8530 = vmul.f32 %v8498, %v8529
        %8532 = vrot.lane.b32.xlu0 %v8530, 127
        %v8533 = vpop.permute.xlu0 %8532
        %v8535 = vadd.f32 %v8513, %v8533
        %8536 = vrot.lane.b32.xlu0 %v8499, 126
        %v8537 = vpop.permute.xlu0 %8536
        %v8539 = vsel %vm1621, %v8537, 0.0
        %8540 = vadd.xlane.f32.xlu0 %v8539
        %v8541 = vpop.xlane.xlu0 %8540
        %v8542 = vrot.slane %v8541, 4
        %v8543 = vadd.f32 %v8541, %v8542
        %v8544 = vrot.slane %v8543, 2
        %v8545 = vadd.f32 %v8543, %v8544
        %v8546 = vrot.slane %v8545, 1
        %v8547 = vadd.f32 %v8545, %v8546
        %s8548 = vtos %v8547
        %s8549 = smul.f32 %s8548, 0.0009765625
        %v8550 = vstv %s8549
        %v8551 = vmul.f32 %v8498, %v8550
        %8553 = vrot.lane.b32.xlu0 %v8551, 126
        %v8554 = vpop.permute.xlu0 %8553
        %v8556 = vadd.f32 %v8535, %v8554
        %8557 = vrot.lane.b32.xlu0 %v8499, 125
        %v8558 = vpop.permute.xlu0 %8557
        %v8560 = vsel %vm1621, %v8558, 0.0
        %8561 = vadd.xlane.f32.xlu0 %v8560
        %v8562 = vpop.xlane.xlu0 %8561
        %v8563 = vrot.slane %v8562, 4
        %v8564 = vadd.f32 %v8562, %v8563
        %v8565 = vrot.slane %v8564, 2
        %v8566 = vadd.f32 %v8564, %v8565
        %v8567 = vrot.slane %v8566, 1
        %v8568 = vadd.f32 %v8566, %v8567
        %s8569 = vtos %v8568
        %s8570 = smul.f32 %s8569, 0.0009765625
        %v8571 = vstv %s8570
        %v8572 = vmul.f32 %v8498, %v8571
        %8574 = vrot.lane.b32.xlu0 %v8572, 125
        %v8575 = vpop.permute.xlu0 %8574
        %v8577 = vadd.f32 %v8556, %v8575
        %8579 = vset.pattern.permute.xlu0 0
        %8580 = vperm.xlu0 %8579, %v8577
        %v8581 = vpop.permute.xlu0 %8580
        %v8583 = vsub.f32 %v8445, %v8581
        %v8584 = vsub.f32 %v8447, %v8581
        %v8585 = vsub.f32 %v8486, %v8581
        %v8586 = vsub.f32 %v8488, %v8581
        %v8587 = vmul.f32 %v8583, %v8583
        %v8588 = vmul.f32 %v8584, %v8584
        %v8589 = vmul.f32 %v8585, %v8585
        %v8590 = vmul.f32 %v8586, %v8586
        %v8591 = vadd.f32 %v8587, %v8588
        %v8592 = vadd.f32 %v8591, %v8589
        %v8593 = vadd.f32 %v8592, %v8590
        %8594 = vadd.xlane.f32.xlu0 %v8593
        %v8595 = vpop.xlane.xlu0 %8594
        %v8596 = vmul.f32 %v8595, %v8498
        %v8597 = vsel %vm1621, %v8596, 0.0
        %8598 = vadd.xlane.f32.xlu0 %v8597
        %v8599 = vpop.xlane.xlu0 %8598
        %v8600 = vrot.slane %v8599, 4
        %v8601 = vadd.f32 %v8599, %v8600
        %v8602 = vrot.slane %v8601, 2
        %v8603 = vadd.f32 %v8601, %v8602
        %v8604 = vrot.slane %v8603, 1
        %v8605 = vadd.f32 %v8603, %v8604
        %s8606 = vtos %v8605
        %s8607 = smul.f32 %s8606, 0.0009765625
        %v8608 = vstv %s8607
        %v8609 = vmul.f32 %v8498, %v8608
        %v8610 = vadd.f32 %v8609, 0.0
        %8612 = vrot.lane.b32.xlu0 %v8596, 127
        %v8613 = vpop.permute.xlu0 %8612
        %v8615 = vsel %vm1621, %v8613, 0.0
        %8616 = vadd.xlane.f32.xlu0 %v8615
        %v8617 = vpop.xlane.xlu0 %8616
        %v8618 = vrot.slane %v8617, 4
        %v8619 = vadd.f32 %v8617, %v8618
        %v8620 = vrot.slane %v8619, 2
        %v8621 = vadd.f32 %v8619, %v8620
        %v8622 = vrot.slane %v8621, 1
        %v8623 = vadd.f32 %v8621, %v8622
        %s8624 = vtos %v8623
        %s8625 = smul.f32 %s8624, 0.0009765625
        %v8626 = vstv %s8625
        %v8627 = vmul.f32 %v8498, %v8626
        %8629 = vrot.lane.b32.xlu0 %v8627, 127
        %v8630 = vpop.permute.xlu0 %8629
        %v8632 = vadd.f32 %v8610, %v8630
        %8633 = vrot.lane.b32.xlu0 %v8596, 126
        %v8634 = vpop.permute.xlu0 %8633
        %v8636 = vsel %vm1621, %v8634, 0.0
        %8637 = vadd.xlane.f32.xlu0 %v8636
        %v8638 = vpop.xlane.xlu0 %8637
        %v8639 = vrot.slane %v8638, 4
        %v8640 = vadd.f32 %v8638, %v8639
        %v8641 = vrot.slane %v8640, 2
        %v8642 = vadd.f32 %v8640, %v8641
        %v8643 = vrot.slane %v8642, 1
        %v8644 = vadd.f32 %v8642, %v8643
        %s8645 = vtos %v8644
        %s8646 = smul.f32 %s8645, 0.0009765625
        %v8647 = vstv %s8646
        %v8648 = vmul.f32 %v8498, %v8647
        %8650 = vrot.lane.b32.xlu0 %v8648, 126
        %v8651 = vpop.permute.xlu0 %8650
        %v8653 = vadd.f32 %v8632, %v8651
        %8654 = vrot.lane.b32.xlu0 %v8596, 125
        %v8655 = vpop.permute.xlu0 %8654
        %v8657 = vsel %vm1621, %v8655, 0.0
        %8658 = vadd.xlane.f32.xlu0 %v8657
        %v8659 = vpop.xlane.xlu0 %8658
        %v8660 = vrot.slane %v8659, 4
        %v8661 = vadd.f32 %v8659, %v8660
        %v8662 = vrot.slane %v8661, 2
        %v8663 = vadd.f32 %v8661, %v8662
        %v8664 = vrot.slane %v8663, 1
        %v8665 = vadd.f32 %v8663, %v8664
        %s8666 = vtos %v8665
        %s8667 = smul.f32 %s8666, 0.0009765625
        %v8668 = vstv %s8667
        %v8669 = vmul.f32 %v8498, %v8668
        %8671 = vrot.lane.b32.xlu0 %v8669, 125
        %v8672 = vpop.permute.xlu0 %8671
        %v8674 = vadd.f32 %v8653, %v8672
        %v8675 = vadd.f32 %v8674, 1e-05
        %v8676 = vrsqrt.pop %v8675
        %8678 = vset.pattern.permute.xlu0 0
        %8679 = vperm.xlu0 %8678, %v8676
        %v8680 = vpop.permute.xlu0 %8679
        %v8682 = vmul.f32 %v8583, %v8680
        %v8683 = vmul.f32 %v8584, %v8680
        %v8684 = vmul.f32 %v8585, %v8680
        %v8685 = vmul.f32 %v8586, %v8680
        %8687 = vset.pattern.permute.xlu0 4
        %8688 = vperm.xlu0 %8687, %v8492
        %v8689 = vpop.permute.xlu0 %8688
        %v8691 = vmul.f32 %v8682, %v8689
        %v8692 = vmul.f32 %v8683, %v8689
        %v8693 = vmul.f32 %v8684, %v8689
        %v8694 = vmul.f32 %v8685, %v8689
        %8695 = vset.pattern.permute.xlu0 5
        %8696 = vperm.xlu0 %8695, %v8492
        %v8697 = vpop.permute.xlu0 %8696
        %v8699 = vadd.f32 %v8691, %v8697
        %v8700 = vadd.f32 %v8692, %v8697
        %v8701 = vadd.f32 %v8693, %v8697
        %v8702 = vadd.f32 %v8694, %v8697
        %v8703 = vadd.f32 %v3143, %v8699
        %v8704 = vadd.f32 %v3144, %v8700
        %v8705 = vadd.f32 %v3145, %v8701
        %v8706 = vadd.f32 %v3146, %v8702
        %v8707 = vmax.f32 %v8703, 0.0
        %v8708 = vmax.f32 %v8704, 0.0
        %v8709 = vmax.f32 %v8705, 0.0
        %v8710 = vmax.f32 %v8706, 0.0
        %8711 = vst [vmem:[%s346] sm:$0xff] %v8707
        %8712 = vst [vmem:[%s346 + $0x8] sm:$0xff] %v8708
        %8713 = vst [vmem:[%s346 + $0x10] sm:$0xff] %v8709
        %8714 = vst [vmem:[%s346 + $0x18] sm:$0xff] %v8710
        %s8715 = sand.u32 %s186, 1
        %s8716 = scalar_lea.sflag [#allocation7], %s8715
        %s8717 = sand.u32 %s186, 1
        %s8718 = smul.addr %s8717, 32
        %s8719 = scalar_lea.vmem [#allocation14], %s8718
        // Predicated region
        $region69: #{tpu_custom_call.1} parent=47 // pred_check
          %p8720 = pneg %p196
        $region70: #{tpu_custom_call.1} parent=47 // pred_check_branch
          %8722 = sbr.rel (%p8720) target = $region72
        $region71: #{tpu_custom_call.1} parent=47 // pred_region
          %s8724 = ssub.s32 512, 512
          %8725 = vsyncadd %s8716, %s8724
          %s8726 = smul.addr %s26, 4
          %s8727 = smul.addr %s8726, 128
          %s8728 = scalar_lea.hbm %s7, %s8727
          %s8730 = sshll.u32 %s8719, 4
          %s8731 = int_to_ptr.vmem [resolvable:$true] %s8730
          %8733 = dma.vmem_to_hbm [thread:$0]  %s8731, 512, %s8728, %s8716
        $region72: #{tpu_custom_call.1} parent=47 // pred_fallthru
          _
      $region48: #{tpu_custom_call.1} parent=5 // pred_fallthru
        _
      %p8734 = scmp.le.s32.totalorder 2, %s21
      // Predicated region
      $region73: #{tpu_custom_call.1} parent=5 // pred_check
        %p8735 = pneg %p8734
      $region74: #{tpu_custom_call.1} parent=5 // pred_check_branch
        %8737 = sbr.rel (%p8735) target = $region76
      $region75: #{tpu_custom_call.1} parent=5 // pred_region
        %s8738 = ssub.s32 %s21, 2
        // Predicated region
        $region77: #{tpu_custom_call.1} parent=75 // pred_check
          %p8739 = pneg %p202
        $region78: #{tpu_custom_call.1} parent=75 // pred_check_branch
          %8741 = sbr.rel (%p8739) target = $region80
        $region79: #{tpu_custom_call.1} parent=75 // pred_region
          %s8742 = sand.u32 %s187, 1
          %s8743 = scalar_lea.sflag [#allocation7], %s8742
          %s8744 = sand.u32 %s187, 1
          %s8745 = smul.addr %s8744, 32
          %s8746 = scalar_lea.vmem [#allocation14], %s8745
          %8747 = dma.done %s8743, 512
        $region80: #{tpu_custom_call.1} parent=75 // pred_fallthru
          _
      $region76: #{tpu_custom_call.1} parent=5 // pred_fallthru
        _
    $region6: #{tpu_custom_call.1} parent=1 // loop_footer
      %s25 = sadd.s32 1, %s21
    $region7: #{tpu_custom_call.1} parent=1 // loop_footer_branch
      %20 = sbr.rel target = $region3
    $region8: #{tpu_custom_call.1} parent=1 // loop_exit
      _
    %8748 = vsyncpa [#allocation6], 1
    %s8749 = scalar_lea.sflag [#allocation6], 1
    %8750 = vsyncpa %s8749, 1
    %8751 = vsyncpa [#allocation9], 1
    %8752 = vsyncpa [#allocation12], 1
    %8753 = vsyncpa [#allocation7], 1
    %s8754 = scalar_lea.sflag [#allocation7], 1
    %8755 = vsyncpa %s8754, 1

</llo_original>
